<compile_context>
chip_gen: v7x
topology: tpu7x:2x2x1
jax: 0.10.0
libtpu: 0.0.40
codegen_flags: <defaults>
</compile_context>

<pallas_src>
import functools

import jax
import jax.numpy as jnp
from jax.experimental import pallas as pl
from jax.experimental.pallas import tpu as pltpu

LANE = 128


# ----------------------------------------------------------------------------
# Kernel 1: fused dense1 + dense2 stack
#   o_tile = relu( relu(z @ W1 + s1) @ W2_tile + s2_tile )
# dense1 (B x latent x 512) is ~free, so it is recomputed per N tile.
# ----------------------------------------------------------------------------
def dense_stack_kernel(z_ref, w1_ref, s1_ref, w2_ref, s2_ref, o_ref):
    h = jnp.dot(z_ref[...], w1_ref[...], preferred_element_type=jnp.float32)
    h = jnp.maximum(h + s1_ref[...], 0.0)
    y = jnp.dot(h.astype(jnp.bfloat16), w2_ref[...],
                preferred_element_type=jnp.float32)
    y = jnp.maximum(y + s2_ref[...], 0.0)
    o_ref[...] = y.astype(o_ref.dtype)


def dense_stack(z, w1, s1, w2, s2, *, tn):
    """relu(relu(z@W1+s1)@W2+s2) -> (B, N) bf16.  Tiled 2-way over N."""
    B, L = z.shape
    K1, H = w1.shape
    H2, N = w2.shape
    assert L == K1 and H == H2 and N % tn == 0 and tn % LANE == 0
    z = z.astype(jnp.bfloat16)
    s1r = s1.reshape(1, H).astype(jnp.float32)
    s2r = s2.reshape(1, N).astype(jnp.float32)
    return pl.pallas_call(
        dense_stack_kernel,
        out_shape=jax.ShapeDtypeStruct((B, N), jnp.bfloat16),
        grid_spec=pltpu.PrefetchScalarGridSpec(
            num_scalar_prefetch=0,
            grid=(N // tn,),
            in_specs=[
                pl.BlockSpec((B, L), lambda j: (0, 0)),
                pl.BlockSpec((L, H), lambda j: (0, 0)),
                pl.BlockSpec((1, H), lambda j: (0, 0)),
                pl.BlockSpec((H, tn), lambda j: (0, j)),
                pl.BlockSpec((1, tn), lambda j: (0, j)),
            ],
            out_specs=pl.BlockSpec((B, tn), lambda j: (0, j)),
        ),
        compiler_params=pltpu.CompilerParams(
            # Independent N tiles -> megacore-shardable on v7x (each TC streams
            # half the 512x6400 dense2 weight, the dominant HBM transfer).
            dimension_semantics=("parallel",),
        ),
    )(z, w1, s1r, w2, s2r)


# ----------------------------------------------------------------------------
# Kernel 2: fused GEMM for the deconv phase matmuls:
#   o = relu_opt(x @ w + shift)      (single block, lane-dense N >= 128)
# ----------------------------------------------------------------------------
def fused_gemm_kernel(x_ref, w_ref, shift_ref, o_ref, *, apply_relu):
    y = jnp.dot(x_ref[...], w_ref[...], preferred_element_type=jnp.float32)
    y = y + shift_ref[...]                       # (M, N) + (1, N)
    if apply_relu:
        y = jnp.maximum(y, 0.0)
    o_ref[...] = y.astype(o_ref.dtype)


def fused_gemm(x, w, shift, *, relu, out_dtype):
    M, K = x.shape
    K2, N = w.shape
    assert K == K2 and N % LANE == 0
    if x.dtype != jnp.bfloat16:                  # chained layers are already bf16
        x = x.astype(jnp.bfloat16)
    shift2 = shift.reshape(1, N).astype(jnp.float32)
    kernel = functools.partial(fused_gemm_kernel, apply_relu=relu)
    return pl.pallas_call(
        kernel,
        out_shape=jax.ShapeDtypeStruct((M, N), out_dtype),
        grid_spec=pltpu.PrefetchScalarGridSpec(
            num_scalar_prefetch=0,
            grid=(1,),
            in_specs=[
                pl.BlockSpec((M, K), lambda j: (0, 0)),
                pl.BlockSpec((K, N), lambda j: (0, 0)),
                pl.BlockSpec((1, N), lambda j: (0, 0)),
            ],
            out_specs=pl.BlockSpec((M, N), lambda j: (0, 0)),
        ),
    )(x, w, shift2)


# ----------------------------------------------------------------------------
# Plain-JAX glue (trace-time weight prep + cheap reshapes around the GEMMs)
# ----------------------------------------------------------------------------
def fold_bn(bn, eps=1e-5):
    gamma, beta, mean, var = bn
    scale = gamma / jnp.sqrt(var + eps)
    shift = beta - mean * scale
    return scale, shift


def deconv_weight_to_gemm(w_t, stride):
    """PyTorch ConvTranspose2d weight (Cin, Cout, k, k) -> phase-GEMM matrix
    (m*m*Cin, Cout*s*s) with m = k // stride (requires k % stride == 0).
    Row order (di, dj, cin) matches the concatenate-based im2col; column
    order (cout, r, q)."""
    Cin, Cout, k, k2 = w_t.shape
    assert k == k2 and k % stride == 0
    m = k // stride
    w = w_t.reshape(Cin, Cout, m, stride, m, stride)   # (cin, cout, di, r, dj, q)
    w = w[:, :, ::-1, :, ::-1, :]                      # spatial flip over di, dj
    w = w.transpose(2, 4, 0, 1, 3, 5)                  # (di, dj, cin, cout, r, q)
    return w.reshape(m * m * Cin, Cout * stride * stride)


def prep_gemm_layer(w, b, bn, cols_per_cout=1, pad_to_lanes=False):
    """Fold eval-mode BN + bias into (bf16 weight, f32 shift, real N)."""
    if bn is not None:
        scale, bshift = fold_bn(bn)
        shift = b * scale + bshift
    else:
        scale = jnp.ones_like(b)
        shift = b
    colscale = jnp.repeat(scale, cols_per_cout)
    colshift = jnp.repeat(shift, cols_per_cout)
    w = w * colscale[None, :]
    n_real = w.shape[1]
    if pad_to_lanes and n_real % LANE != 0:
        n_pad = -n_real % LANE                     # lane-dense output columns
        w = jnp.pad(w, ((0, 0), (0, n_pad)))
        colshift = jnp.pad(colshift, (0, n_pad))
    return w.astype(jnp.bfloat16), colshift.astype(jnp.float32), n_real


def im2col_nhwc(x, m, pad):
    """NHWC im2col, m x m kernel, stride 1.  Column order = (di, dj, cin).
    Uses concatenate along the channel/lane axis (layout-friendly, no
    small-trailing-axis interleave)."""
    B, H, W, C = x.shape
    xp = jnp.pad(x, ((0, 0), (pad, pad), (pad, pad), (0, 0)))
    A = H + 2 * pad - m + 1
    Aw = W + 2 * pad - m + 1
    cols = []
    for di in range(m):
        for dj in range(m):
            cols.append(xp[:, di:di + A, dj:dj + Aw, :])   # (B, A, Aw, C)
    p = jnp.concatenate(cols, axis=-1)                     # (B, A, Aw, m*m*C)
    return p.reshape(B * A * Aw, m * m * C), A, Aw


def deconv_layer(x, wg, shift, n_real, *, stride, pad, k, relu, out_dtype):
    """ConvTranspose2d (k % stride == 0) via phase decomposition.
    x: (B, H, W, Cin) NHWC  ->  (B, OH, OW, Cout) NHWC."""
    B, H, W, _ = x.shape
    m = k // stride
    patches, A, Aw = im2col_nhwc(x, m, m - 1)
    Cout = n_real // (stride * stride)
    y = fused_gemm(patches, wg, shift, relu=relu, out_dtype=out_dtype)
    if y.shape[1] != n_real:
        y = y[:, :n_real]                          # drop lane-padding columns
    y = y.reshape(B, A, Aw, Cout, stride, stride)
    y = y.transpose(0, 1, 4, 2, 5, 3)              # (B, A, r, Aw, q, Cout)
    y = y.reshape(B, A * stride, Aw * stride, Cout)
    OH = (H - 1) * stride - 2 * pad + k
    OW = (W - 1) * stride - 2 * pad + k
    if pad:
        y = y[:, pad:pad + OH, pad:pad + OW, :]
    return y


# ----------------------------------------------------------------------------
# Parameter preparation (BN fold, bf16 cast, layout permutes) — done once.
# ----------------------------------------------------------------------------
def prepare_params(raw):
    p = {}
    # dense1: Linear(latent, 512) + BN1(512) + ReLU
    p["dense1_w"], p["dense1_shift"], _ = prep_gemm_layer(
        raw["dense1_w"].T, raw["dense1_b"], raw["bn1"])

    # dense2: Linear(512, 6400) + BN2(6400) + ReLU.  Fold the PyTorch
    # `h.view(-1, 64, 10, 10)` NCHW reinterpretation into a trace-time column
    # permutation so the GEMM directly emits the NHWC (B,10,10,64) layout.
    w2, s2, _ = prep_gemm_layer(raw["dense2_w"].T, raw["dense2_b"], raw["bn2"])
    yy, xx, cc = jnp.meshgrid(jnp.arange(10), jnp.arange(10), jnp.arange(64),
                              indexing="ij")
    perm = (cc * 100 + yy * 10 + xx).reshape(-1)       # new (y,x,c) <- old (c,y,x)
    p["dense2_w"] = w2[:, perm]
    p["dense2_shift"] = s2[perm]

    # upconv1..3: phase-decomposed transposed convolutions, lane-dense N.
    for name, wkey, bkey, bn, s in (
            ("up1", "upconv1_w", "upconv1_b", raw["bn3"], 1),
            ("up2", "upconv2_w", "upconv2_b", raw["bn4"], 2),
            ("up3", "upconv3_w", "upconv3_b", None, 4)):
        wg = deconv_weight_to_gemm(raw[wkey], s)
        w, sh, n_real = prep_gemm_layer(
            wg, raw[bkey], bn, cols_per_cout=s * s, pad_to_lanes=True)
        p[name + "_w"], p[name + "_shift"], p[name + "_n"] = w, sh, n_real
    return p


# ----------------------------------------------------------------------------
# DecoderLikeDQN forward (eval-mode BatchNorm semantics)
# ----------------------------------------------------------------------------
def decoder_like_dqn_forward(z, p):
    B = z.shape[0]
    # dense1 + BN1 + ReLU fused with dense2 + BN2 + ReLU (one pallas_call)
    h = dense_stack(z, p["dense1_w"], p["dense1_shift"],
                    p["dense2_w"], p["dense2_shift"], tn=3200)   # (B,6400) bf16
    h = h.reshape(B, 10, 10, 64)          # NHWC; NCHW view folded into dense2_w

    # upconv1: ConvTranspose2d(64,32,3,1,1) + BN3 + ReLU  -> (B,10,10,32)
    h = deconv_layer(h, p["up1_w"], p["up1_shift"], p["up1_n"],
                     stride=1, pad=1, k=3, relu=True, out_dtype=jnp.bfloat16)
    # upconv2: ConvTranspose2d(32,32,4,2,1) + BN4 + ReLU  -> (B,20,20,32)
    h = deconv_layer(h, p["up2_w"], p["up2_shift"], p["up2_n"],
                     stride=2, pad=1, k=4, relu=True, out_dtype=jnp.bfloat16)
    # upconv3: ConvTranspose2d(32,C,8,4,0), no BN/ReLU    -> (B,84,84,C) f32
    img = deconv_layer(h, p["up3_w"], p["up3_shift"], p["up3_n"],
                       stride=4, pad=0, k=8, relu=False, out_dtype=jnp.float32)

    # TODO(synk): drop this transpose if the consumer accepts NHWC; kept for
    # strict PyTorch NCHW output parity.
    return img.transpose(0, 3, 1, 2)


# ----------------------------------------------------------------------------
# Deterministic parameter init (PyTorch layouts from DecoderLikeDQN.__init__)
# ----------------------------------------------------------------------------
def init_raw_params(key, num_channels, latent_dim):
    ks = jax.random.split(key, 16)

    def bn(k, n):
        k1, k2, k3, k4 = jax.random.split(k, 4)
        gamma = 1.0 + 0.1 * jax.random.normal(k1, (n,), jnp.float32)
        beta = 0.1 * jax.random.normal(k2, (n,), jnp.float32)
        mean = 0.1 * jax.random.normal(k3, (n,), jnp.float32)
        var = 1.0 + 0.1 * jnp.abs(jax.random.normal(k4, (n,), jnp.float32))
        return gamma, beta, mean, var

    return {
        "dense1_w": 0.05 * jax.random.normal(ks[0], (512, latent_dim), jnp.float32),
        "dense1_b": 0.05 * jax.random.normal(ks[1], (512,), jnp.float32),
        "dense2_w": 0.02 * jax.random.normal(ks[2], (6400, 512), jnp.float32),
        "dense2_b": 0.02 * jax.random.normal(ks[3], (6400,), jnp.float32),
        "upconv1_w": 0.05 * jax.random.normal(ks[4], (64, 32, 3, 3), jnp.float32),
        "upconv1_b": 0.05 * jax.random.normal(ks[5], (32,), jnp.float32),
        "upconv2_w": 0.05 * jax.random.normal(ks[6], (32, 32, 4, 4), jnp.float32),
        "upconv2_b": 0.05 * jax.random.normal(ks[7], (32,), jnp.float32),
        "upconv3_w": 0.05 * jax.random.normal(ks[8], (32, num_channels, 8, 8), jnp.float32),
        "upconv3_b": 0.05 * jax.random.normal(ks[9], (num_channels,), jnp.float32),
        "bn1": bn(ks[10], 512),
        "bn2": bn(ks[11], 6400),
        "bn3": bn(ks[12], 32),
        "bn4": bn(ks[13], 32),
    }


if __name__ == "__main__":
    # Shapes implied by the module: dense2 output 6400 = 64*10*10, so the
    # decoder output is (B, num_channels, 84, 84).  Keep batch/channels small.
    B, latent_dim, num_channels = 2, 32, 4

    key = jax.random.PRNGKey(0)
    kz, kp = jax.random.split(key)
    z = jax.random.normal(kz, (B, latent_dim), jnp.float32)
    raw = init_raw_params(kp, num_channels, latent_dim)
    params = prepare_params(raw)   # BN fold + bf16 cast + layout permutes (once)

    fwd = jax.jit(lambda zz: decoder_like_dqn_forward(zz, params))
    out = fwd(z)
    jax.block_until_ready(out)
    assert out.shape == (B, num_channels, 84, 84) and out.dtype == jnp.float32
    print("KERNEL_OK")
</pallas_src>

<mosaic_0001>
module attributes {stable_mosaic.version = 11 : i64} {
  func.func @dense_stack_kernel(%arg0: i32, %arg1: memref<2x32xbf16, #tpu.memory_space<vmem>>, %arg2: memref<32x512xbf16, #tpu.memory_space<vmem>>, %arg3: memref<1x512xf32, #tpu.memory_space<vmem>>, %arg4: memref<512x3200xbf16, #tpu.memory_space<vmem>>, %arg5: memref<1x3200xf32, #tpu.memory_space<vmem>>, %arg6: memref<2x3200xbf16, #tpu.memory_space<vmem>>) attributes {dimension_semantics = [#tpu.dimension_semantics<parallel>], iteration_bounds = array<i64: 2>, scalar_prefetch = 0 : i64, scratch_operands = 0 : i64, tpu.core_type = #tpu.core_type<tc>, window_params = [{pipeline_mode = #tpu.pipeline_mode<synchronous>, transform_indices = @transform_0, window_bounds = array<i64: 2, 32>}, {pipeline_mode = #tpu.pipeline_mode<synchronous>, transform_indices = @transform_1, window_bounds = array<i64: 32, 512>}, {pipeline_mode = #tpu.pipeline_mode<synchronous>, transform_indices = @transform_2, window_bounds = array<i64: 1, 512>}, {transform_indices = @transform_3, window_bounds = array<i64: 512, 3200>}, {transform_indices = @transform_4, window_bounds = array<i64: 1, 3200>}, {transform_indices = @transform_5, window_bounds = array<i64: 2, 3200>}]} {
    %c0 = arith.constant 0 : index
    %c0_0 = arith.constant 0 : index
    %0 = vector.load %arg1[%c0, %c0_0] : memref<2x32xbf16, #tpu.memory_space<vmem>>, vector<2x32xbf16>
    %c0_1 = arith.constant 0 : index
    %c0_2 = arith.constant 0 : index
    %1 = vector.load %arg2[%c0_1, %c0_2] : memref<32x512xbf16, #tpu.memory_space<vmem>>, vector<32x512xbf16>
    %cst = arith.constant dense<0.000000e+00> : vector<2x512xf32>
    %2 = tpu.matmul %0, %1, %cst {dimension_numbers = #tpu.dot_dimension_numbers<[1], [0], [0], [1], [0, 0, 1, 1], [], []>} : vector<2x32xbf16>, vector<32x512xbf16>, vector<2x512xf32> -> vector<2x512xf32>
    %c0_3 = arith.constant 0 : index
    %c0_4 = arith.constant 0 : index
    %3 = vector.load %arg3[%c0_3, %c0_4] : memref<1x512xf32, #tpu.memory_space<vmem>>, vector<1x512xf32>
    %4 = vector.broadcast %3 : vector<1x512xf32> to vector<2x512xf32>
    %5 = arith.addf %2, %4 : vector<2x512xf32>
    %cst_5 = arith.constant 0.000000e+00 : f32
    %6 = vector.broadcast %cst_5 : f32 to vector<2x512xf32>
    %7 = arith.maximumf %5, %6 : vector<2x512xf32>
    %8 = arith.truncf %7 : vector<2x512xf32> to vector<2x512xbf16>
    %c0_6 = arith.constant 0 : index
    %c0_7 = arith.constant 0 : index
    %9 = vector.load %arg4[%c0_6, %c0_7] : memref<512x3200xbf16, #tpu.memory_space<vmem>>, vector<512x3200xbf16>
    %cst_8 = arith.constant dense<0.000000e+00> : vector<2x3200xf32>
    %10 = tpu.matmul %8, %9, %cst_8 {dimension_numbers = #tpu.dot_dimension_numbers<[1], [0], [0], [1], [0, 0, 1, 1], [], []>} : vector<2x512xbf16>, vector<512x3200xbf16>, vector<2x3200xf32> -> vector<2x3200xf32>
    %c0_9 = arith.constant 0 : index
    %c0_10 = arith.constant 0 : index
    %11 = vector.load %arg5[%c0_9, %c0_10] : memref<1x3200xf32, #tpu.memory_space<vmem>>, vector<1x3200xf32>
    %12 = vector.broadcast %11 : vector<1x3200xf32> to vector<2x3200xf32>
    %13 = arith.addf %10, %12 : vector<2x3200xf32>
    %cst_11 = arith.constant 0.000000e+00 : f32
    %14 = vector.broadcast %cst_11 : f32 to vector<2x3200xf32>
    %15 = arith.maximumf %13, %14 : vector<2x3200xf32>
    %16 = arith.truncf %15 : vector<2x3200xf32> to vector<2x3200xbf16>
    %c0_12 = arith.constant 0 : index
    %c0_13 = arith.constant 0 : index
    %17 = vector.load %arg6[%c0_12, %c0_13] : memref<2x3200xbf16, #tpu.memory_space<vmem>>, vector<2x3200xbf16>
    tpu.vector_store %arg6[%c0_12, %c0_13], %16 {strides = array<i32>} : memref<2x3200xbf16, #tpu.memory_space<vmem>>, vector<2x3200xbf16>,
    return
  }
  func.func @transform_0(%arg0: i32) -> (i32, i32) {
    %c0_i32 = arith.constant 0 : i32
    %c0_i32_0 = arith.constant 0 : i32
    %c0_i32_1 = arith.constant 0 : i32
    return %c0_i32, %c0_i32_0 : i32, i32
  }
  func.func @transform_1(%arg0: i32) -> (i32, i32) {
    %c0_i32 = arith.constant 0 : i32
    %c0_i32_0 = arith.constant 0 : i32
    %c0_i32_1 = arith.constant 0 : i32
    return %c0_i32, %c0_i32_0 : i32, i32
  }
  func.func @transform_2(%arg0: i32) -> (i32, i32) {
    %c0_i32 = arith.constant 0 : i32
    %c0_i32_0 = arith.constant 0 : i32
    %c0_i32_1 = arith.constant 0 : i32
    return %c0_i32, %c0_i32_0 : i32, i32
  }
  func.func @transform_3(%arg0: i32) -> (i32, i32) {
    %c0_i32 = arith.constant 0 : i32
    %c0_i32_0 = arith.constant 0 : i32
    return %c0_i32, %arg0 : i32, i32
  }
  func.func @transform_4(%arg0: i32) -> (i32, i32) {
    %c0_i32 = arith.constant 0 : i32
    %c0_i32_0 = arith.constant 0 : i32
    return %c0_i32, %arg0 : i32, i32
  }
  func.func @transform_5(%arg0: i32) -> (i32, i32) {
    %c0_i32 = arith.constant 0 : i32
    %c0_i32_0 = arith.constant 0 : i32
    return %c0_i32, %arg0 : i32, i32
  }
}

module attributes {stable_mosaic.version = 11 : i64} {
  func.func @fused_gemm_kernel(%arg0: i32, %arg1: memref<288x576xbf16, #tpu.memory_space<vmem>>, %arg2: memref<576x128xbf16, #tpu.memory_space<vmem>>, %arg3: memref<1x128xf32, #tpu.memory_space<vmem>>, %arg4: memref<288x128xbf16, #tpu.memory_space<vmem>>) attributes {dimension_semantics = [#tpu.dimension_semantics<arbitrary>], iteration_bounds = array<i64: 1>, scalar_prefetch = 0 : i64, scratch_operands = 0 : i64, tpu.core_type = #tpu.core_type<tc>, window_params = [{pipeline_mode = #tpu.pipeline_mode<synchronous>, transform_indices = @transform_0, window_bounds = array<i64: 288, 576>}, {pipeline_mode = #tpu.pipeline_mode<synchronous>, transform_indices = @transform_1, window_bounds = array<i64: 576, 128>}, {pipeline_mode = #tpu.pipeline_mode<synchronous>, transform_indices = @transform_2, window_bounds = array<i64: 1, 128>}, {pipeline_mode = #tpu.pipeline_mode<synchronous>, transform_indices = @transform_3, window_bounds = array<i64: 288, 128>}]} {
    %c0 = arith.constant 0 : index
    %c0_0 = arith.constant 0 : index
    %0 = vector.load %arg1[%c0, %c0_0] : memref<288x576xbf16, #tpu.memory_space<vmem>>, vector<288x576xbf16>
    %c0_1 = arith.constant 0 : index
    %c0_2 = arith.constant 0 : index
    %1 = vector.load %arg2[%c0_1, %c0_2] : memref<576x128xbf16, #tpu.memory_space<vmem>>, vector<576x128xbf16>
    %cst = arith.constant dense<0.000000e+00> : vector<288x128xf32>
    %2 = tpu.matmul %0, %1, %cst {dimension_numbers = #tpu.dot_dimension_numbers<[1], [0], [0], [1], [0, 0, 1, 1], [], []>} : vector<288x576xbf16>, vector<576x128xbf16>, vector<288x128xf32> -> vector<288x128xf32>
    %c0_3 = arith.constant 0 : index
    %c0_4 = arith.constant 0 : index
    %3 = vector.load %arg3[%c0_3, %c0_4] : memref<1x128xf32, #tpu.memory_space<vmem>>, vector<1x128xf32>
    %4 = vector.broadcast %3 : vector<1x128xf32> to vector<288x128xf32>
    %5 = arith.addf %2, %4 : vector<288x128xf32>
    %cst_5 = arith.constant 0.000000e+00 : f32
    %6 = vector.broadcast %cst_5 : f32 to vector<288x128xf32>
    %7 = arith.maximumf %5, %6 : vector<288x128xf32>
    %8 = arith.truncf %7 : vector<288x128xf32> to vector<288x128xbf16>
    %c0_6 = arith.constant 0 : index
    %c0_7 = arith.constant 0 : index
    %9 = vector.load %arg4[%c0_6, %c0_7] : memref<288x128xbf16, #tpu.memory_space<vmem>>, vector<288x128xbf16>
    tpu.vector_store %arg4[%c0_6, %c0_7], %8 {strides = array<i32>} : memref<288x128xbf16, #tpu.memory_space<vmem>>, vector<288x128xbf16>,
    return
  }
  func.func @transform_0(%arg0: i32) -> (i32, i32) {
    %c0_i32 = arith.constant 0 : i32
    %c0_i32_0 = arith.constant 0 : i32
    %c0_i32_1 = arith.constant 0 : i32
    return %c0_i32, %c0_i32_0 : i32, i32
  }
  func.func @transform_1(%arg0: i32) -> (i32, i32) {
    %c0_i32 = arith.constant 0 : i32
    %c0_i32_0 = arith.constant 0 : i32
    %c0_i32_1 = arith.constant 0 : i32
    return %c0_i32, %c0_i32_0 : i32, i32
  }
  func.func @transform_2(%arg0: i32) -> (i32, i32) {
    %c0_i32 = arith.constant 0 : i32
    %c0_i32_0 = arith.constant 0 : i32
    %c0_i32_1 = arith.constant 0 : i32
    return %c0_i32, %c0_i32_0 : i32, i32
  }
  func.func @transform_3(%arg0: i32) -> (i32, i32) {
    %c0_i32 = arith.constant 0 : i32
    %c0_i32_0 = arith.constant 0 : i32
    %c0_i32_1 = arith.constant 0 : i32
    return %c0_i32, %c0_i32_0 : i32, i32
  }
}

module attributes {stable_mosaic.version = 11 : i64} {
  func.func @fused_gemm_kernel(%arg0: i32, %arg1: memref<242x128xbf16, #tpu.memory_space<vmem>>, %arg2: memref<128x128xbf16, #tpu.memory_space<vmem>>, %arg3: memref<1x128xf32, #tpu.memory_space<vmem>>, %arg4: memref<242x128xbf16, #tpu.memory_space<vmem>>) attributes {dimension_semantics = [#tpu.dimension_semantics<arbitrary>], iteration_bounds = array<i64: 1>, scalar_prefetch = 0 : i64, scratch_operands = 0 : i64, tpu.core_type = #tpu.core_type<tc>, window_params = [{pipeline_mode = #tpu.pipeline_mode<synchronous>, transform_indices = @transform_0, window_bounds = array<i64: 242, 128>}, {pipeline_mode = #tpu.pipeline_mode<synchronous>, transform_indices = @transform_1, window_bounds = array<i64: 128, 128>}, {pipeline_mode = #tpu.pipeline_mode<synchronous>, transform_indices = @transform_2, window_bounds = array<i64: 1, 128>}, {pipeline_mode = #tpu.pipeline_mode<synchronous>, transform_indices = @transform_3, window_bounds = array<i64: 242, 128>}]} {
    %c0 = arith.constant 0 : index
    %c0_0 = arith.constant 0 : index
    %0 = vector.load %arg1[%c0, %c0_0] : memref<242x128xbf16, #tpu.memory_space<vmem>>, vector<242x128xbf16>
    %c0_1 = arith.constant 0 : index
    %c0_2 = arith.constant 0 : index
    %1 = vector.load %arg2[%c0_1, %c0_2] : memref<128x128xbf16, #tpu.memory_space<vmem>>, vector<128x128xbf16>
    %cst = arith.constant dense<0.000000e+00> : vector<242x128xf32>
    %2 = tpu.matmul %0, %1, %cst {dimension_numbers = #tpu.dot_dimension_numbers<[1], [0], [0], [1], [0, 0, 1, 1], [], []>} : vector<242x128xbf16>, vector<128x128xbf16>, vector<242x128xf32> -> vector<242x128xf32>
    %c0_3 = arith.constant 0 : index
    %c0_4 = arith.constant 0 : index
    %3 = vector.load %arg3[%c0_3, %c0_4] : memref<1x128xf32, #tpu.memory_space<vmem>>, vector<1x128xf32>
    %4 = vector.broadcast %3 : vector<1x128xf32> to vector<242x128xf32>
    %5 = arith.addf %2, %4 : vector<242x128xf32>
    %cst_5 = arith.constant 0.000000e+00 : f32
    %6 = vector.broadcast %cst_5 : f32 to vector<242x128xf32>
    %7 = arith.maximumf %5, %6 : vector<242x128xf32>
    %8 = arith.truncf %7 : vector<242x128xf32> to vector<242x128xbf16>
    %c0_6 = arith.constant 0 : index
    %c0_7 = arith.constant 0 : index
    %9 = vector.load %arg4[%c0_6, %c0_7] : memref<242x128xbf16, #tpu.memory_space<vmem>>, vector<242x128xbf16>
    tpu.vector_store %arg4[%c0_6, %c0_7], %8 {strides = array<i32>} : memref<242x128xbf16, #tpu.memory_space<vmem>>, vector<242x128xbf16>,
    return
  }
  func.func @transform_0(%arg0: i32) -> (i32, i32) {
    %c0_i32 = arith.constant 0 : i32
    %c0_i32_0 = arith.constant 0 : i32
    %c0_i32_1 = arith.constant 0 : i32
    return %c0_i32, %c0_i32_0 : i32, i32
  }
  func.func @transform_1(%arg0: i32) -> (i32, i32) {
    %c0_i32 = arith.constant 0 : i32
    %c0_i32_0 = arith.constant 0 : i32
    %c0_i32_1 = arith.constant 0 : i32
    return %c0_i32, %c0_i32_0 : i32, i32
  }
  func.func @transform_2(%arg0: i32) -> (i32, i32) {
    %c0_i32 = arith.constant 0 : i32
    %c0_i32_0 = arith.constant 0 : i32
    %c0_i32_1 = arith.constant 0 : i32
    return %c0_i32, %c0_i32_0 : i32, i32
  }
  func.func @transform_3(%arg0: i32) -> (i32, i32) {
    %c0_i32 = arith.constant 0 : i32
    %c0_i32_0 = arith.constant 0 : i32
    %c0_i32_1 = arith.constant 0 : i32
    return %c0_i32, %c0_i32_0 : i32, i32
  }
}

module attributes {stable_mosaic.version = 11 : i64} {
  func.func @fused_gemm_kernel(%arg0: i32, %arg1: memref<882x128xbf16, #tpu.memory_space<vmem>>, %arg2: memref<128x128xbf16, #tpu.memory_space<vmem>>, %arg3: memref<1x128xf32, #tpu.memory_space<vmem>>, %arg4: memref<882x128xf32, #tpu.memory_space<vmem>>) attributes {dimension_semantics = [#tpu.dimension_semantics<arbitrary>], iteration_bounds = array<i64: 1>, scalar_prefetch = 0 : i64, scratch_operands = 0 : i64, tpu.core_type = #tpu.core_type<tc>, window_params = [{pipeline_mode = #tpu.pipeline_mode<synchronous>, transform_indices = @transform_0, window_bounds = array<i64: 882, 128>}, {pipeline_mode = #tpu.pipeline_mode<synchronous>, transform_indices = @transform_1, window_bounds = array<i64: 128, 128>}, {pipeline_mode = #tpu.pipeline_mode<synchronous>, transform_indices = @transform_2, window_bounds = array<i64: 1, 128>}, {pipeline_mode = #tpu.pipeline_mode<synchronous>, transform_indices = @transform_3, window_bounds = array<i64: 882, 128>}]} {
    %c0 = arith.constant 0 : index
    %c0_0 = arith.constant 0 : index
    %0 = vector.load %arg1[%c0, %c0_0] : memref<882x128xbf16, #tpu.memory_space<vmem>>, vector<882x128xbf16>
    %c0_1 = arith.constant 0 : index
    %c0_2 = arith.constant 0 : index
    %1 = vector.load %arg2[%c0_1, %c0_2] : memref<128x128xbf16, #tpu.memory_space<vmem>>, vector<128x128xbf16>
    %cst = arith.constant dense<0.000000e+00> : vector<882x128xf32>
    %2 = tpu.matmul %0, %1, %cst {dimension_numbers = #tpu.dot_dimension_numbers<[1], [0], [0], [1], [0, 0, 1, 1], [], []>} : vector<882x128xbf16>, vector<128x128xbf16>, vector<882x128xf32> -> vector<882x128xf32>
    %c0_3 = arith.constant 0 : index
    %c0_4 = arith.constant 0 : index
    %3 = vector.load %arg3[%c0_3, %c0_4] : memref<1x128xf32, #tpu.memory_space<vmem>>, vector<1x128xf32>
    %4 = vector.broadcast %3 : vector<1x128xf32> to vector<882x128xf32>
    %5 = arith.addf %2, %4 : vector<882x128xf32>
    %c0_5 = arith.constant 0 : index
    %c0_6 = arith.constant 0 : index
    %6 = vector.load %arg4[%c0_5, %c0_6] : memref<882x128xf32, #tpu.memory_space<vmem>>, vector<882x128xf32>
    tpu.vector_store %arg4[%c0_5, %c0_6], %5 {strides = array<i32>} : memref<882x128xf32, #tpu.memory_space<vmem>>, vector<882x128xf32>,
    return
  }
  func.func @transform_0(%arg0: i32) -> (i32, i32) {
    %c0_i32 = arith.constant 0 : i32
    %c0_i32_0 = arith.constant 0 : i32
    %c0_i32_1 = arith.constant 0 : i32
    return %c0_i32, %c0_i32_0 : i32, i32
  }
  func.func @transform_1(%arg0: i32) -> (i32, i32) {
    %c0_i32 = arith.constant 0 : i32
    %c0_i32_0 = arith.constant 0 : i32
    %c0_i32_1 = arith.constant 0 : i32
    return %c0_i32, %c0_i32_0 : i32, i32
  }
  func.func @transform_2(%arg0: i32) -> (i32, i32) {
    %c0_i32 = arith.constant 0 : i32
    %c0_i32_0 = arith.constant 0 : i32
    %c0_i32_1 = arith.constant 0 : i32
    return %c0_i32, %c0_i32_0 : i32, i32
  }
  func.func @transform_3(%arg0: i32) -> (i32, i32) {
    %c0_i32 = arith.constant 0 : i32
    %c0_i32_0 = arith.constant 0 : i32
    %c0_i32_1 = arith.constant 0 : i32
    return %c0_i32, %c0_i32_0 : i32, i32
  }
}

</mosaic_0001>

<llo_original>
// kernel: _lambda_.5
$region0: #{_lambda_.5}
  #allocation0 [shape = 'u32[]', space=smem, size = 0x4, offset = 0x4, fixed_abs, tag = 'smem constant byte address 0x4 - core index']
  #allocation1 [shape = 'u32[144,128]{1,0:T(1,128)}', space=vmem, size = 0x12000, scoped, tag = 'internal scratch']
  %s0 = inlined_call_operand.vmem [shape: bf16[288,576], index: 0, kind: input, shape index: {}]
  %s1 = inlined_call_operand.vmem [shape: bf16[576,128], index: 1, kind: input, shape index: {}]
  %s2 = inlined_call_operand.vmem [shape: f32[1,128], index: 2, kind: input, shape index: {}]
  %s3 = inlined_call_operand.vmem [shape: bf16[288,128], index: 3, kind: output, shape index: {}]
  %s4 = sld [smem:[#allocation0]]
  $region22: #{_lambda_.5} parent=0
    _
  %s6 = ssub.s32 1, %s4
  %s7 = scalar_select 0, %s6, %s4
  // Predicated region
  $region2: #{_lambda_.5} parent=0 // pred_check
    _
  $region3: #{_lambda_.5} parent=0 // pred_check_branch
    %9 = sbr.rel (0) target = $region5
  $region4: #{_lambda_.5} parent=0 // pred_region
    _
  $region5: #{_lambda_.5} parent=0 // pred_fallthru
    _
  // Predicated region
  $region6: #{_lambda_.5} parent=0 // pred_check
    _
  $region7: #{_lambda_.5} parent=0 // pred_check_branch
    %11 = sbr.rel (0) target = $region9
  $region8: #{_lambda_.5} parent=0 // pred_region
    _
  $region9: #{_lambda_.5} parent=0 // pred_fallthru
    _
  // Predicated region
  $region10: #{_lambda_.5} parent=0 // pred_check
    _
  $region11: #{_lambda_.5} parent=0 // pred_check_branch
    %13 = sbr.rel (0) target = $region13
  $region12: #{_lambda_.5} parent=0 // pred_region
    _
  $region13: #{_lambda_.5} parent=0 // pred_fallthru
    _
  %v15 = vld [vmem:[%s0] sm:$0xff]
  %v16 = vld [vmem:[%s0 + $0x8] sm:$0xff]
  %v17 = vld [vmem:[%s0 + $0x10] sm:$0xf]
  %v18 = vld [vmem:[%s0 + $0x14] sm:$0xff]
  %v19 = vld [vmem:[%s0 + $0x1c] sm:$0xff]
  %v20 = vld [vmem:[%s0 + $0x24] sm:$0xf]
  %v21 = vld [vmem:[%s0 + $0x28] sm:$0xff]
  %v22 = vld [vmem:[%s0 + $0x30] sm:$0xff]
  %v23 = vld [vmem:[%s0 + $0x38] sm:$0xf]
  %v24 = vld [vmem:[%s0 + $0x3c] sm:$0xff]
  %v25 = vld [vmem:[%s0 + $0x44] sm:$0xff]
  %v26 = vld [vmem:[%s0 + $0x4c] sm:$0xf]
  %v27 = vld [vmem:[%s0 + $0x50] sm:$0xff]
  %v28 = vld [vmem:[%s0 + $0x58] sm:$0xff]
  %v29 = vld [vmem:[%s0 + $0x60] sm:$0xf]
  %v30 = vld [vmem:[%s0 + $0x64] sm:$0xff]
  %v31 = vld [vmem:[%s0 + $0x6c] sm:$0xff]
  %v32 = vld [vmem:[%s0 + $0x74] sm:$0xf]
  %v33 = vld [vmem:[%s0 + $0x78] sm:$0xff]
  %v34 = vld [vmem:[%s0 + $0x80] sm:$0xff]
  %v35 = vld [vmem:[%s0 + $0x88] sm:$0xf]
  %v36 = vld [vmem:[%s0 + $0x8c] sm:$0xff]
  %v37 = vld [vmem:[%s0 + $0x94] sm:$0xff]
  %v38 = vld [vmem:[%s0 + $0x9c] sm:$0xf]
  %v39 = vld [vmem:[%s0 + $0xa0] sm:$0xff]
  %v40 = vld [vmem:[%s0 + $0xa8] sm:$0xff]
  %v41 = vld [vmem:[%s0 + $0xb0] sm:$0xf]
  %v42 = vld [vmem:[%s0 + $0xb4] sm:$0xff]
  %v43 = vld [vmem:[%s0 + $0xbc] sm:$0xff]
  %v44 = vld [vmem:[%s0 + $0xc4] sm:$0xf]
  %v45 = vld [vmem:[%s0 + $0xc8] sm:$0xff]
  %v46 = vld [vmem:[%s0 + $0xd0] sm:$0xff]
  %v47 = vld [vmem:[%s0 + $0xd8] sm:$0xf]
  %v48 = vld [vmem:[%s0 + $0xdc] sm:$0xff]
  %v49 = vld [vmem:[%s0 + $0xe4] sm:$0xff]
  %v50 = vld [vmem:[%s0 + $0xec] sm:$0xf]
  %v51 = vld [vmem:[%s0 + $0xf0] sm:$0xff]
  %v52 = vld [vmem:[%s0 + $0xf8] sm:$0xff]
  %v53 = vld [vmem:[%s0 + $0x100] sm:$0xf]
  %v54 = vld [vmem:[%s0 + $0x104] sm:$0xff]
  %v55 = vld [vmem:[%s0 + $0x10c] sm:$0xff]
  %v56 = vld [vmem:[%s0 + $0x114] sm:$0xf]
  %v57 = vld [vmem:[%s0 + $0x118] sm:$0xff]
  %v58 = vld [vmem:[%s0 + $0x120] sm:$0xff]
  %v59 = vld [vmem:[%s0 + $0x128] sm:$0xf]
  %v60 = vld [vmem:[%s0 + $0x12c] sm:$0xff]
  %v61 = vld [vmem:[%s0 + $0x134] sm:$0xff]
  %v62 = vld [vmem:[%s0 + $0x13c] sm:$0xf]
  %v63 = vld [vmem:[%s0 + $0x140] sm:$0xff]
  %v64 = vld [vmem:[%s0 + $0x148] sm:$0xff]
  %v65 = vld [vmem:[%s0 + $0x150] sm:$0xf]
  %v66 = vld [vmem:[%s0 + $0x154] sm:$0xff]
  %v67 = vld [vmem:[%s0 + $0x15c] sm:$0xff]
  %v68 = vld [vmem:[%s0 + $0x164] sm:$0xf]
  %v69 = vld [vmem:[%s0 + $0x168] sm:$0xff]
  %v70 = vld [vmem:[%s0 + $0x170] sm:$0xff]
  %v71 = vld [vmem:[%s0 + $0x178] sm:$0xf]
  %v72 = vld [vmem:[%s0 + $0x17c] sm:$0xff]
  %v73 = vld [vmem:[%s0 + $0x184] sm:$0xff]
  %v74 = vld [vmem:[%s0 + $0x18c] sm:$0xf]
  %v75 = vld [vmem:[%s0 + $0x190] sm:$0xff]
  %v76 = vld [vmem:[%s0 + $0x198] sm:$0xff]
  %v77 = vld [vmem:[%s0 + $0x1a0] sm:$0xf]
  %v78 = vld [vmem:[%s0 + $0x1a4] sm:$0xff]
  %v79 = vld [vmem:[%s0 + $0x1ac] sm:$0xff]
  %v80 = vld [vmem:[%s0 + $0x1b4] sm:$0xf]
  %v81 = vld [vmem:[%s0 + $0x1b8] sm:$0xff]
  %v82 = vld [vmem:[%s0 + $0x1c0] sm:$0xff]
  %v83 = vld [vmem:[%s0 + $0x1c8] sm:$0xf]
  %v84 = vld [vmem:[%s0 + $0x1cc] sm:$0xff]
  %v85 = vld [vmem:[%s0 + $0x1d4] sm:$0xff]
  %v86 = vld [vmem:[%s0 + $0x1dc] sm:$0xf]
  %v87 = vld [vmem:[%s0 + $0x1e0] sm:$0xff]
  %v88 = vld [vmem:[%s0 + $0x1e8] sm:$0xff]
  %v89 = vld [vmem:[%s0 + $0x1f0] sm:$0xf]
  %v90 = vld [vmem:[%s0 + $0x1f4] sm:$0xff]
  %v91 = vld [vmem:[%s0 + $0x1fc] sm:$0xff]
  %v92 = vld [vmem:[%s0 + $0x204] sm:$0xf]
  %v93 = vld [vmem:[%s0 + $0x208] sm:$0xff]
  %v94 = vld [vmem:[%s0 + $0x210] sm:$0xff]
  %v95 = vld [vmem:[%s0 + $0x218] sm:$0xf]
  %v96 = vld [vmem:[%s0 + $0x21c] sm:$0xff]
  %v97 = vld [vmem:[%s0 + $0x224] sm:$0xff]
  %v98 = vld [vmem:[%s0 + $0x22c] sm:$0xf]
  %v99 = vld [vmem:[%s0 + $0x230] sm:$0xff]
  %v100 = vld [vmem:[%s0 + $0x238] sm:$0xff]
  %v101 = vld [vmem:[%s0 + $0x240] sm:$0xf]
  %v102 = vld [vmem:[%s0 + $0x244] sm:$0xff]
  %v103 = vld [vmem:[%s0 + $0x24c] sm:$0xff]
  %v104 = vld [vmem:[%s0 + $0x254] sm:$0xf]
  %v105 = vld [vmem:[%s0 + $0x258] sm:$0xff]
  %v106 = vld [vmem:[%s0 + $0x260] sm:$0xff]
  %v107 = vld [vmem:[%s0 + $0x268] sm:$0xf]
  %v108 = vld [vmem:[%s0 + $0x26c] sm:$0xff]
  %v109 = vld [vmem:[%s0 + $0x274] sm:$0xff]
  %v110 = vld [vmem:[%s0 + $0x27c] sm:$0xf]
  %v111 = vld [vmem:[%s0 + $0x280] sm:$0xff]
  %v112 = vld [vmem:[%s0 + $0x288] sm:$0xff]
  %v113 = vld [vmem:[%s0 + $0x290] sm:$0xf]
  %v114 = vld [vmem:[%s0 + $0x294] sm:$0xff]
  %v115 = vld [vmem:[%s0 + $0x29c] sm:$0xff]
  %v116 = vld [vmem:[%s0 + $0x2a4] sm:$0xf]
  %v117 = vld [vmem:[%s0 + $0x2a8] sm:$0xff]
  %v118 = vld [vmem:[%s0 + $0x2b0] sm:$0xff]
  %v119 = vld [vmem:[%s0 + $0x2b8] sm:$0xf]
  %v120 = vld [vmem:[%s0 + $0x2bc] sm:$0xff]
  %v121 = vld [vmem:[%s0 + $0x2c4] sm:$0xff]
  %v122 = vld [vmem:[%s0 + $0x2cc] sm:$0xf]
  %v123 = vld [vmem:[%s1] sm:$0xf]
  %v124 = vld [vmem:[%s1 + $0x4] sm:$0xf]
  %v125 = vld [vmem:[%s1 + $0x8] sm:$0xf]
  %v126 = vld [vmem:[%s1 + $0xc] sm:$0xf]
  %v127 = vld [vmem:[%s1 + $0x10] sm:$0xf]
  %v128 = vld [vmem:[%s1 + $0x14] sm:$0xf]
  %v129 = vld [vmem:[%s1 + $0x18] sm:$0xf]
  %v130 = vld [vmem:[%s1 + $0x1c] sm:$0xf]
  %v131 = vld [vmem:[%s1 + $0x20] sm:$0xf]
  %v132 = vld [vmem:[%s1 + $0x24] sm:$0xf]
  %v133 = vld [vmem:[%s1 + $0x28] sm:$0xf]
  %v134 = vld [vmem:[%s1 + $0x2c] sm:$0xf]
  %v135 = vld [vmem:[%s1 + $0x30] sm:$0xf]
  %v136 = vld [vmem:[%s1 + $0x34] sm:$0xf]
  %v137 = vld [vmem:[%s1 + $0x38] sm:$0xf]
  %v138 = vld [vmem:[%s1 + $0x3c] sm:$0xf]
  %v139 = vld [vmem:[%s1 + $0x40] sm:$0xf]
  %v140 = vld [vmem:[%s1 + $0x44] sm:$0xf]
  %v141 = vld [vmem:[%s1 + $0x48] sm:$0xf]
  %v142 = vld [vmem:[%s1 + $0x4c] sm:$0xf]
  %v143 = vld [vmem:[%s1 + $0x50] sm:$0xf]
  %v144 = vld [vmem:[%s1 + $0x54] sm:$0xf]
  %v145 = vld [vmem:[%s1 + $0x58] sm:$0xf]
  %v146 = vld [vmem:[%s1 + $0x5c] sm:$0xf]
  %v147 = vld [vmem:[%s1 + $0x60] sm:$0xf]
  %v148 = vld [vmem:[%s1 + $0x64] sm:$0xf]
  %v149 = vld [vmem:[%s1 + $0x68] sm:$0xf]
  %v150 = vld [vmem:[%s1 + $0x6c] sm:$0xf]
  %v151 = vld [vmem:[%s1 + $0x70] sm:$0xf]
  %v152 = vld [vmem:[%s1 + $0x74] sm:$0xf]
  %v153 = vld [vmem:[%s1 + $0x78] sm:$0xf]
  %v154 = vld [vmem:[%s1 + $0x7c] sm:$0xf]
  %v155 = vld [vmem:[%s1 + $0x80] sm:$0xf]
  %v156 = vld [vmem:[%s1 + $0x84] sm:$0xf]
  %v157 = vld [vmem:[%s1 + $0x88] sm:$0xf]
  %v158 = vld [vmem:[%s1 + $0x8c] sm:$0xf]
  %v159 = vld [vmem:[%s1 + $0x90] sm:$0xf]
  %v160 = vld [vmem:[%s1 + $0x94] sm:$0xf]
  %v161 = vld [vmem:[%s1 + $0x98] sm:$0xf]
  %v162 = vld [vmem:[%s1 + $0x9c] sm:$0xf]
  %v163 = vld [vmem:[%s1 + $0xa0] sm:$0xf]
  %v164 = vld [vmem:[%s1 + $0xa4] sm:$0xf]
  %v165 = vld [vmem:[%s1 + $0xa8] sm:$0xf]
  %v166 = vld [vmem:[%s1 + $0xac] sm:$0xf]
  %v167 = vld [vmem:[%s1 + $0xb0] sm:$0xf]
  %v168 = vld [vmem:[%s1 + $0xb4] sm:$0xf]
  %v169 = vld [vmem:[%s1 + $0xb8] sm:$0xf]
  %v170 = vld [vmem:[%s1 + $0xbc] sm:$0xf]
  %v171 = vld [vmem:[%s1 + $0xc0] sm:$0xf]
  %v172 = vld [vmem:[%s1 + $0xc4] sm:$0xf]
  %v173 = vld [vmem:[%s1 + $0xc8] sm:$0xf]
  %v174 = vld [vmem:[%s1 + $0xcc] sm:$0xf]
  %v175 = vld [vmem:[%s1 + $0xd0] sm:$0xf]
  %v176 = vld [vmem:[%s1 + $0xd4] sm:$0xf]
  %v177 = vld [vmem:[%s1 + $0xd8] sm:$0xf]
  %v178 = vld [vmem:[%s1 + $0xdc] sm:$0xf]
  %v179 = vld [vmem:[%s1 + $0xe0] sm:$0xf]
  %v180 = vld [vmem:[%s1 + $0xe4] sm:$0xf]
  %v181 = vld [vmem:[%s1 + $0xe8] sm:$0xf]
  %v182 = vld [vmem:[%s1 + $0xec] sm:$0xf]
  %v183 = vld [vmem:[%s1 + $0xf0] sm:$0xf]
  %v184 = vld [vmem:[%s1 + $0xf4] sm:$0xf]
  %v185 = vld [vmem:[%s1 + $0xf8] sm:$0xf]
  %v186 = vld [vmem:[%s1 + $0xfc] sm:$0xf]
  %v187 = vld [vmem:[%s1 + $0x100] sm:$0xf]
  %v188 = vld [vmem:[%s1 + $0x104] sm:$0xf]
  %v189 = vld [vmem:[%s1 + $0x108] sm:$0xf]
  %v190 = vld [vmem:[%s1 + $0x10c] sm:$0xf]
  %v191 = vld [vmem:[%s1 + $0x110] sm:$0xf]
  %v192 = vld [vmem:[%s1 + $0x114] sm:$0xf]
  %v193 = vld [vmem:[%s1 + $0x118] sm:$0xf]
  %v194 = vld [vmem:[%s1 + $0x11c] sm:$0xf]
  %v195 = vld [vmem:[%s2] sm:$0x1]
  %v197 = vlaneseq
  %v198 = vshrl.u32 %v197, 7
  %v199 = vsub.s32 0, %v198
  %v200 = vrot.slane %v195, %v199
  %v310 = vunpack.c.l.b16 %v15
  %v311 = vunpack.c.h.b16 %v15
  %v312 = vunpack.c.l.b16 %v16
  %v313 = vunpack.c.h.b16 %v16
  %v314 = vunpack.c.l.b16 %v17
  %v315 = vunpack.c.l.b16 %v18
  %v316 = vunpack.c.h.b16 %v18
  %v317 = vunpack.c.l.b16 %v19
  %v318 = vunpack.c.h.b16 %v19
  %v319 = vunpack.c.l.b16 %v20
  %v320 = vunpack.c.l.b16 %v21
  %v321 = vunpack.c.h.b16 %v21
  %v322 = vunpack.c.l.b16 %v22
  %v323 = vunpack.c.h.b16 %v22
  %v324 = vunpack.c.l.b16 %v23
  %v325 = vunpack.c.l.b16 %v24
  %v326 = vunpack.c.h.b16 %v24
  %v327 = vunpack.c.l.b16 %v25
  %v328 = vunpack.c.h.b16 %v25
  %v329 = vunpack.c.l.b16 %v26
  %v330 = vunpack.c.l.b16 %v27
  %v331 = vunpack.c.h.b16 %v27
  %v332 = vunpack.c.l.b16 %v28
  %v333 = vunpack.c.h.b16 %v28
  %v334 = vunpack.c.l.b16 %v29
  %v335 = vunpack.c.l.b16 %v30
  %v336 = vunpack.c.h.b16 %v30
  %v337 = vunpack.c.l.b16 %v31
  %v338 = vunpack.c.h.b16 %v31
  %v339 = vunpack.c.l.b16 %v32
  %v340 = vunpack.c.l.b16 %v33
  %v341 = vunpack.c.h.b16 %v33
  %v342 = vunpack.c.l.b16 %v34
  %v343 = vunpack.c.h.b16 %v34
  %v344 = vunpack.c.l.b16 %v35
  %v345 = vunpack.c.l.b16 %v36
  %v346 = vunpack.c.h.b16 %v36
  %v347 = vunpack.c.l.b16 %v37
  %v348 = vunpack.c.h.b16 %v37
  %v349 = vunpack.c.l.b16 %v38
  %v350 = vunpack.c.l.b16 %v39
  %v351 = vunpack.c.h.b16 %v39
  %v352 = vunpack.c.l.b16 %v40
  %v353 = vunpack.c.h.b16 %v40
  %v354 = vunpack.c.l.b16 %v41
  %v355 = vunpack.c.l.b16 %v42
  %v356 = vunpack.c.h.b16 %v42
  %v357 = vunpack.c.l.b16 %v43
  %v358 = vunpack.c.h.b16 %v43
  %v359 = vunpack.c.l.b16 %v44
  %v360 = vunpack.c.l.b16 %v45
  %v361 = vunpack.c.h.b16 %v45
  %v362 = vunpack.c.l.b16 %v46
  %v363 = vunpack.c.h.b16 %v46
  %v364 = vunpack.c.l.b16 %v47
  %v365 = vunpack.c.l.b16 %v48
  %v366 = vunpack.c.h.b16 %v48
  %v367 = vunpack.c.l.b16 %v49
  %v368 = vunpack.c.h.b16 %v49
  %v369 = vunpack.c.l.b16 %v50
  %v370 = vunpack.c.l.b16 %v51
  %v371 = vunpack.c.h.b16 %v51
  %v372 = vunpack.c.l.b16 %v52
  %v373 = vunpack.c.h.b16 %v52
  %v374 = vunpack.c.l.b16 %v53
  %v375 = vunpack.c.l.b16 %v54
  %v376 = vunpack.c.h.b16 %v54
  %v377 = vunpack.c.l.b16 %v55
  %v378 = vunpack.c.h.b16 %v55
  %v379 = vunpack.c.l.b16 %v56
  %v380 = vunpack.c.l.b16 %v57
  %v381 = vunpack.c.h.b16 %v57
  %v382 = vunpack.c.l.b16 %v58
  %v383 = vunpack.c.h.b16 %v58
  %v384 = vunpack.c.l.b16 %v59
  %v385 = vunpack.c.l.b16 %v60
  %v386 = vunpack.c.h.b16 %v60
  %v387 = vunpack.c.l.b16 %v61
  %v388 = vunpack.c.h.b16 %v61
  %v389 = vunpack.c.l.b16 %v62
  %v390 = vunpack.c.l.b16 %v63
  %v391 = vunpack.c.h.b16 %v63
  %v392 = vunpack.c.l.b16 %v64
  %v393 = vunpack.c.h.b16 %v64
  %v394 = vunpack.c.l.b16 %v65
  %v395 = vunpack.c.l.b16 %v66
  %v396 = vunpack.c.h.b16 %v66
  %v397 = vunpack.c.l.b16 %v67
  %v398 = vunpack.c.h.b16 %v67
  %v399 = vunpack.c.l.b16 %v68
  %v400 = vunpack.c.l.b16 %v69
  %v401 = vunpack.c.h.b16 %v69
  %v402 = vunpack.c.l.b16 %v70
  %v403 = vunpack.c.h.b16 %v70
  %v404 = vunpack.c.l.b16 %v71
  %v405 = vunpack.c.l.b16 %v72
  %v406 = vunpack.c.h.b16 %v72
  %v407 = vunpack.c.l.b16 %v73
  %v408 = vunpack.c.h.b16 %v73
  %v409 = vunpack.c.l.b16 %v74
  %v410 = vunpack.c.l.b16 %v75
  %v411 = vunpack.c.h.b16 %v75
  %v412 = vunpack.c.l.b16 %v76
  %v413 = vunpack.c.h.b16 %v76
  %v414 = vunpack.c.l.b16 %v77
  %v415 = vunpack.c.l.b16 %v78
  %v416 = vunpack.c.h.b16 %v78
  %v417 = vunpack.c.l.b16 %v79
  %v418 = vunpack.c.h.b16 %v79
  %v419 = vunpack.c.l.b16 %v80
  %v420 = vunpack.c.l.b16 %v81
  %v421 = vunpack.c.h.b16 %v81
  %v422 = vunpack.c.l.b16 %v82
  %v423 = vunpack.c.h.b16 %v82
  %v424 = vunpack.c.l.b16 %v83
  %v425 = vunpack.c.l.b16 %v84
  %v426 = vunpack.c.h.b16 %v84
  %v427 = vunpack.c.l.b16 %v85
  %v428 = vunpack.c.h.b16 %v85
  %v429 = vunpack.c.l.b16 %v86
  %v430 = vunpack.c.l.b16 %v87
  %v431 = vunpack.c.h.b16 %v87
  %v432 = vunpack.c.l.b16 %v88
  %v433 = vunpack.c.h.b16 %v88
  %v434 = vunpack.c.l.b16 %v89
  %v435 = vunpack.c.l.b16 %v90
  %v436 = vunpack.c.h.b16 %v90
  %v437 = vunpack.c.l.b16 %v91
  %v438 = vunpack.c.h.b16 %v91
  %v439 = vunpack.c.l.b16 %v92
  %v440 = vunpack.c.l.b16 %v93
  %v441 = vunpack.c.h.b16 %v93
  %v442 = vunpack.c.l.b16 %v94
  %v443 = vunpack.c.h.b16 %v94
  %v444 = vunpack.c.l.b16 %v95
  %v445 = vunpack.c.l.b16 %v96
  %v446 = vunpack.c.h.b16 %v96
  %v447 = vunpack.c.l.b16 %v97
  %v448 = vunpack.c.h.b16 %v97
  %v449 = vunpack.c.l.b16 %v98
  %v450 = vunpack.c.l.b16 %v99
  %v451 = vunpack.c.h.b16 %v99
  %v452 = vunpack.c.l.b16 %v100
  %v453 = vunpack.c.h.b16 %v100
  %v454 = vunpack.c.l.b16 %v101
  %v455 = vunpack.c.l.b16 %v102
  %v456 = vunpack.c.h.b16 %v102
  %v457 = vunpack.c.l.b16 %v103
  %v458 = vunpack.c.h.b16 %v103
  %v459 = vunpack.c.l.b16 %v104
  %v460 = vunpack.c.l.b16 %v105
  %v461 = vunpack.c.h.b16 %v105
  %v462 = vunpack.c.l.b16 %v106
  %v463 = vunpack.c.h.b16 %v106
  %v464 = vunpack.c.l.b16 %v107
  %v465 = vunpack.c.l.b16 %v108
  %v466 = vunpack.c.h.b16 %v108
  %v467 = vunpack.c.l.b16 %v109
  %v468 = vunpack.c.h.b16 %v109
  %v469 = vunpack.c.l.b16 %v110
  %v470 = vunpack.c.l.b16 %v111
  %v471 = vunpack.c.h.b16 %v111
  %v472 = vunpack.c.l.b16 %v112
  %v473 = vunpack.c.h.b16 %v112
  %v474 = vunpack.c.l.b16 %v113
  %v475 = vunpack.c.l.b16 %v114
  %v476 = vunpack.c.h.b16 %v114
  %v477 = vunpack.c.l.b16 %v115
  %v478 = vunpack.c.h.b16 %v115
  %v479 = vunpack.c.l.b16 %v116
  %v480 = vunpack.c.l.b16 %v117
  %v481 = vunpack.c.h.b16 %v117
  %v482 = vunpack.c.l.b16 %v118
  %v483 = vunpack.c.h.b16 %v118
  %v484 = vunpack.c.l.b16 %v119
  %v485 = vunpack.c.l.b16 %v120
  %v486 = vunpack.c.h.b16 %v120
  %v487 = vunpack.c.l.b16 %v121
  %v488 = vunpack.c.h.b16 %v121
  %v489 = vunpack.c.l.b16 %v122
  %v490 = vpack.c.b16 %v315, %v310
  %v491 = vpack.c.b16 %v316, %v311
  %v492 = vpack.c.b16 %v317, %v312
  %v493 = vpack.c.b16 %v318, %v313
  %v494 = vpack.c.b16 %v319, %v314
  %v495 = vpack.c.b16 %v325, %v320
  %v496 = vpack.c.b16 %v326, %v321
  %v497 = vpack.c.b16 %v327, %v322
  %v498 = vpack.c.b16 %v328, %v323
  %v499 = vpack.c.b16 %v329, %v324
  %v500 = vpack.c.b16 %v335, %v330
  %v501 = vpack.c.b16 %v336, %v331
  %v502 = vpack.c.b16 %v337, %v332
  %v503 = vpack.c.b16 %v338, %v333
  %v504 = vpack.c.b16 %v339, %v334
  %v505 = vpack.c.b16 %v345, %v340
  %v506 = vpack.c.b16 %v346, %v341
  %v507 = vpack.c.b16 %v347, %v342
  %v508 = vpack.c.b16 %v348, %v343
  %v509 = vpack.c.b16 %v349, %v344
  %v510 = vpack.c.b16 %v355, %v350
  %v511 = vpack.c.b16 %v356, %v351
  %v512 = vpack.c.b16 %v357, %v352
  %v513 = vpack.c.b16 %v358, %v353
  %v514 = vpack.c.b16 %v359, %v354
  %v515 = vpack.c.b16 %v365, %v360
  %v516 = vpack.c.b16 %v366, %v361
  %v517 = vpack.c.b16 %v367, %v362
  %v518 = vpack.c.b16 %v368, %v363
  %v519 = vpack.c.b16 %v369, %v364
  %v520 = vpack.c.b16 %v375, %v370
  %v521 = vpack.c.b16 %v376, %v371
  %v522 = vpack.c.b16 %v377, %v372
  %v523 = vpack.c.b16 %v378, %v373
  %v524 = vpack.c.b16 %v379, %v374
  %v525 = vpack.c.b16 %v385, %v380
  %v526 = vpack.c.b16 %v386, %v381
  %v527 = vpack.c.b16 %v387, %v382
  %v528 = vpack.c.b16 %v388, %v383
  %v529 = vpack.c.b16 %v389, %v384
  %v530 = vpack.c.b16 %v395, %v390
  %v531 = vpack.c.b16 %v396, %v391
  %v532 = vpack.c.b16 %v397, %v392
  %v533 = vpack.c.b16 %v398, %v393
  %v534 = vpack.c.b16 %v399, %v394
  %v535 = vpack.c.b16 %v405, %v400
  %v536 = vpack.c.b16 %v406, %v401
  %v537 = vpack.c.b16 %v407, %v402
  %v538 = vpack.c.b16 %v408, %v403
  %v539 = vpack.c.b16 %v409, %v404
  %v540 = vpack.c.b16 %v415, %v410
  %v541 = vpack.c.b16 %v416, %v411
  %v542 = vpack.c.b16 %v417, %v412
  %v543 = vpack.c.b16 %v418, %v413
  %v544 = vpack.c.b16 %v419, %v414
  %v545 = vpack.c.b16 %v425, %v420
  %v546 = vpack.c.b16 %v426, %v421
  %v547 = vpack.c.b16 %v427, %v422
  %v548 = vpack.c.b16 %v428, %v423
  %v549 = vpack.c.b16 %v429, %v424
  %v550 = vpack.c.b16 %v435, %v430
  %v551 = vpack.c.b16 %v436, %v431
  %v552 = vpack.c.b16 %v437, %v432
  %v553 = vpack.c.b16 %v438, %v433
  %v554 = vpack.c.b16 %v439, %v434
  %v555 = vpack.c.b16 %v445, %v440
  %v556 = vpack.c.b16 %v446, %v441
  %v557 = vpack.c.b16 %v447, %v442
  %v558 = vpack.c.b16 %v448, %v443
  %v559 = vpack.c.b16 %v449, %v444
  %v560 = vpack.c.b16 %v455, %v450
  %v561 = vpack.c.b16 %v456, %v451
  %v562 = vpack.c.b16 %v457, %v452
  %v563 = vpack.c.b16 %v458, %v453
  %v564 = vpack.c.b16 %v459, %v454
  %v565 = vpack.c.b16 %v465, %v460
  %v566 = vpack.c.b16 %v466, %v461
  %v567 = vpack.c.b16 %v467, %v462
  %v568 = vpack.c.b16 %v468, %v463
  %v569 = vpack.c.b16 %v469, %v464
  %v570 = vpack.c.b16 %v475, %v470
  %v571 = vpack.c.b16 %v476, %v471
  %v572 = vpack.c.b16 %v477, %v472
  %v573 = vpack.c.b16 %v478, %v473
  %v574 = vpack.c.b16 %v479, %v474
  %v575 = vpack.c.b16 %v485, %v480
  %v576 = vpack.c.b16 %v486, %v481
  %v577 = vpack.c.b16 %v487, %v482
  %v578 = vpack.c.b16 %v488, %v483
  %v579 = vpack.c.b16 %v489, %v484
  %v724 = vunpack.c.l.b16 %v123
  %v725 = vunpack.c.l.b16 %v124
  %v726 = vunpack.c.l.b16 %v125
  %v727 = vunpack.c.l.b16 %v126
  %v728 = vunpack.c.l.b16 %v127
  %v729 = vunpack.c.l.b16 %v128
  %v730 = vunpack.c.l.b16 %v129
  %v731 = vunpack.c.l.b16 %v130
  %v732 = vunpack.c.l.b16 %v131
  %v733 = vunpack.c.l.b16 %v132
  %v734 = vunpack.c.l.b16 %v133
  %v735 = vunpack.c.l.b16 %v134
  %v736 = vunpack.c.l.b16 %v135
  %v737 = vunpack.c.l.b16 %v136
  %v738 = vunpack.c.l.b16 %v137
  %v739 = vunpack.c.l.b16 %v138
  %v740 = vunpack.c.l.b16 %v139
  %v741 = vunpack.c.l.b16 %v140
  %v742 = vunpack.c.l.b16 %v141
  %v743 = vunpack.c.l.b16 %v142
  %v744 = vunpack.c.l.b16 %v143
  %v745 = vunpack.c.l.b16 %v144
  %v746 = vunpack.c.l.b16 %v145
  %v747 = vunpack.c.l.b16 %v146
  %v748 = vunpack.c.l.b16 %v147
  %v749 = vunpack.c.l.b16 %v148
  %v750 = vunpack.c.l.b16 %v149
  %v751 = vunpack.c.l.b16 %v150
  %v752 = vunpack.c.l.b16 %v151
  %v753 = vunpack.c.l.b16 %v152
  %v754 = vunpack.c.l.b16 %v153
  %v755 = vunpack.c.l.b16 %v154
  %v756 = vunpack.c.l.b16 %v155
  %v757 = vunpack.c.l.b16 %v156
  %v758 = vunpack.c.l.b16 %v157
  %v759 = vunpack.c.l.b16 %v158
  %v760 = vunpack.c.l.b16 %v159
  %v761 = vunpack.c.l.b16 %v160
  %v762 = vunpack.c.l.b16 %v161
  %v763 = vunpack.c.l.b16 %v162
  %v764 = vunpack.c.l.b16 %v163
  %v765 = vunpack.c.l.b16 %v164
  %v766 = vunpack.c.l.b16 %v165
  %v767 = vunpack.c.l.b16 %v166
  %v768 = vunpack.c.l.b16 %v167
  %v769 = vunpack.c.l.b16 %v168
  %v770 = vunpack.c.l.b16 %v169
  %v771 = vunpack.c.l.b16 %v170
  %v772 = vunpack.c.l.b16 %v171
  %v773 = vunpack.c.l.b16 %v172
  %v774 = vunpack.c.l.b16 %v173
  %v775 = vunpack.c.l.b16 %v174
  %v776 = vunpack.c.l.b16 %v175
  %v777 = vunpack.c.l.b16 %v176
  %v778 = vunpack.c.l.b16 %v177
  %v779 = vunpack.c.l.b16 %v178
  %v780 = vunpack.c.l.b16 %v179
  %v781 = vunpack.c.l.b16 %v180
  %v782 = vunpack.c.l.b16 %v181
  %v783 = vunpack.c.l.b16 %v182
  %v784 = vunpack.c.l.b16 %v183
  %v785 = vunpack.c.l.b16 %v184
  %v786 = vunpack.c.l.b16 %v185
  %v787 = vunpack.c.l.b16 %v186
  %v788 = vunpack.c.l.b16 %v187
  %v789 = vunpack.c.l.b16 %v188
  %v790 = vunpack.c.l.b16 %v189
  %v791 = vunpack.c.l.b16 %v190
  %v792 = vunpack.c.l.b16 %v191
  %v793 = vunpack.c.l.b16 %v192
  %v794 = vunpack.c.l.b16 %v193
  %v795 = vunpack.c.l.b16 %v194
  %v796 = vpack.c.b16 %v725, %v724
  %v797 = vpack.c.b16 %v727, %v726
  %v798 = vpack.c.b16 %v729, %v728
  %v799 = vpack.c.b16 %v731, %v730
  %v800 = vpack.c.b16 %v733, %v732
  %v801 = vpack.c.b16 %v735, %v734
  %v802 = vpack.c.b16 %v737, %v736
  %v803 = vpack.c.b16 %v739, %v738
  %v804 = vpack.c.b16 %v741, %v740
  %v805 = vpack.c.b16 %v743, %v742
  %v806 = vpack.c.b16 %v745, %v744
  %v807 = vpack.c.b16 %v747, %v746
  %v808 = vpack.c.b16 %v749, %v748
  %v809 = vpack.c.b16 %v751, %v750
  %v810 = vpack.c.b16 %v753, %v752
  %v811 = vpack.c.b16 %v755, %v754
  %v812 = vpack.c.b16 %v757, %v756
  %v813 = vpack.c.b16 %v759, %v758
  %v814 = vpack.c.b16 %v761, %v760
  %v815 = vpack.c.b16 %v763, %v762
  %v816 = vpack.c.b16 %v765, %v764
  %v817 = vpack.c.b16 %v767, %v766
  %v818 = vpack.c.b16 %v769, %v768
  %v819 = vpack.c.b16 %v771, %v770
  %v820 = vpack.c.b16 %v773, %v772
  %v821 = vpack.c.b16 %v775, %v774
  %v822 = vpack.c.b16 %v777, %v776
  %v823 = vpack.c.b16 %v779, %v778
  %v824 = vpack.c.b16 %v781, %v780
  %v825 = vpack.c.b16 %v783, %v782
  %v826 = vpack.c.b16 %v785, %v784
  %v827 = vpack.c.b16 %v787, %v786
  %v828 = vpack.c.b16 %v789, %v788
  %v829 = vpack.c.b16 %v791, %v790
  %v830 = vpack.c.b16 %v793, %v792
  %v831 = vpack.c.b16 %v795, %v794
  %vm868 = vcmask 523264
  %v870 = vsel %vm868, %v494, 0
  %v873 = vsel %vm868, %v499, 0
  %v876 = vsel %vm868, %v504, 0
  %v879 = vsel %vm868, %v509, 0
  %v882 = vsel %vm868, %v514, 0
  %v885 = vsel %vm868, %v519, 0
  %v888 = vsel %vm868, %v524, 0
  %v891 = vsel %vm868, %v529, 0
  %v894 = vsel %vm868, %v534, 0
  %v897 = vsel %vm868, %v539, 0
  %v900 = vsel %vm868, %v544, 0
  %v903 = vsel %vm868, %v549, 0
  %v906 = vsel %vm868, %v554, 0
  %v909 = vsel %vm868, %v559, 0
  %v912 = vsel %vm868, %v564, 0
  %v915 = vsel %vm868, %v569, 0
  %v918 = vsel %vm868, %v574, 0
  %v921 = vsel %vm868, %v579, 0
  %923 = vmatprep.subr.bf16.mxu0 0
  %924 = vmatpush1.bf16.msra.mxu0 %v796
  %925 = vmatprep.subr.bf16.mxu0 0
  %926 = vmatpush1.bf16.msra.mxu0 %v797
  %927 = vmatprep.subr.bf16.mxu0 0
  %928 = vmatpush1.bf16.msra.mxu0 %v798
  %929 = vmatprep.subr.bf16.mxu0 0
  %930 = vmatpush1.bf16.msra.mxu0 %v799
  %931 = vmatprep.subr.bf16.mxu0 0
  %932 = vmatpush1.bf16.msra.mxu0 %v800
  %933 = vmatprep.subr.bf16.mxu0 0
  %934 = vmatpush1.bf16.msra.mxu0 %v801
  %935 = vmatprep.subr.bf16.mxu0 0
  %936 = vmatpush1.bf16.msra.mxu0 %v802
  %937 = vmatprep.subr.bf16.mxu0 0
  %938 = vmatpush1.bf16.msra.mxu0 %v803
  %939 = vmatprep.subr.bf16.mxu0 0
  %940 = vmatpush1.bf16.msra.mxu0 %v804
  %941 = vmatprep.subr.bf16.mxu0 0
  %942 = vmatpush1.bf16.msra.mxu0 %v805
  %943 = vmatprep.subr.bf16.mxu0 0
  %944 = vmatpush1.bf16.msra.mxu0 %v806
  %945 = vmatprep.subr.bf16.mxu0 0
  %946 = vmatpush1.bf16.msra.mxu0 %v807
  %947 = vmatprep.subr.bf16.mxu0 0
  %948 = vmatpush1.bf16.msra.mxu0 %v808
  %949 = vmatprep.subr.bf16.mxu0 0
  %950 = vmatpush1.bf16.msra.mxu0 %v809
  %951 = vmatprep.subr.bf16.mxu0 0
  %952 = vmatpush1.bf16.msra.mxu0 %v810
  %953 = vmatprep.subr.bf16.mxu0 0
  %954 = vmatpush1.bf16.msra.mxu0 %v811
  %955 = vmatprep.mubr.bf16.mxu0 %v491
  %956 = vmatmul.mubr.bf16.gmra.mrb[0].mxu0 %v490
  %v957 = vpop.f32.mrb[0].mxu0
  %v958 = vadd.f32 %v200, %v957
  %v959 = vpop.f32.mrb[0].mxu0
  %v960 = vpop.f32.mrb[0].mxu0
  %v961 = vadd.f32 %v200, %v960
  %v962 = vpop.f32.mrb[0].mxu0
  %963 = vmatprep.mubr.bf16.mxu0 %v496
  %964 = vmatmul.mubr.bf16.gmra.mrb[0].mxu0 %v495
  %v965 = vpop.f32.mrb[0].mxu0
  %v966 = vadd.f32 %v200, %v965
  %v967 = vpop.f32.mrb[0].mxu0
  %v968 = vpop.f32.mrb[0].mxu0
  %v969 = vadd.f32 %v200, %v968
  %v970 = vpop.f32.mrb[0].mxu0
  %971 = vmatprep.mubr.bf16.mxu0 %v501
  %972 = vmatmul.mubr.bf16.gmra.mrb[0].mxu0 %v500
  %v973 = vpop.f32.mrb[0].mxu0
  %v974 = vadd.f32 %v200, %v973
  %v975 = vpop.f32.mrb[0].mxu0
  %v976 = vpop.f32.mrb[0].mxu0
  %v977 = vadd.f32 %v200, %v976
  %v978 = vpop.f32.mrb[0].mxu0
  %979 = vmatprep.mubr.bf16.mxu0 %v506
  %980 = vmatmul.mubr.bf16.gmra.mrb[0].mxu0 %v505
  %v981 = vpop.f32.mrb[0].mxu0
  %v982 = vadd.f32 %v200, %v981
  %v983 = vpop.f32.mrb[0].mxu0
  %v984 = vpop.f32.mrb[0].mxu0
  %v985 = vadd.f32 %v200, %v984
  %v986 = vpop.f32.mrb[0].mxu0
  %987 = vmatprep.mubr.bf16.mxu0 %v511
  %988 = vmatmul.mubr.bf16.gmra.mrb[0].mxu0 %v510
  %v989 = vpop.f32.mrb[0].mxu0
  %v990 = vadd.f32 %v200, %v989
  %v991 = vpop.f32.mrb[0].mxu0
  %v992 = vpop.f32.mrb[0].mxu0
  %v993 = vadd.f32 %v200, %v992
  %v994 = vpop.f32.mrb[0].mxu0
  %995 = vmatprep.mubr.bf16.mxu0 %v516
  %996 = vmatmul.mubr.bf16.gmra.mrb[0].mxu0 %v515
  %v997 = vpop.f32.mrb[0].mxu0
  %v998 = vadd.f32 %v200, %v997
  %v999 = vpop.f32.mrb[0].mxu0
  %v1000 = vpop.f32.mrb[0].mxu0
  %v1001 = vadd.f32 %v200, %v1000
  %v1002 = vpop.f32.mrb[0].mxu0
  %1003 = vmatprep.mubr.bf16.mxu0 %v521
  %1004 = vmatmul.mubr.bf16.gmra.mrb[0].mxu0 %v520
  %v1005 = vpop.f32.mrb[0].mxu0
  %v1006 = vadd.f32 %v200, %v1005
  %v1007 = vpop.f32.mrb[0].mxu0
  %v1008 = vpop.f32.mrb[0].mxu0
  %v1009 = vadd.f32 %v200, %v1008
  %v1010 = vpop.f32.mrb[0].mxu0
  %1011 = vmatprep.mubr.bf16.mxu0 %v526
  %1012 = vmatmul.mubr.bf16.gmra.mrb[0].mxu0 %v525
  %v1013 = vpop.f32.mrb[0].mxu0
  %v1014 = vadd.f32 %v200, %v1013
  %v1015 = vpop.f32.mrb[0].mxu0
  %v1016 = vpop.f32.mrb[0].mxu0
  %v1017 = vadd.f32 %v200, %v1016
  %v1018 = vpop.f32.mrb[0].mxu0
  %1019 = vmatprep.mubr.bf16.mxu0 %v531
  %1020 = vmatmul.mubr.bf16.gmra.mrb[0].mxu0 %v530
  %v1021 = vpop.f32.mrb[0].mxu0
  %v1022 = vadd.f32 %v200, %v1021
  %v1023 = vpop.f32.mrb[0].mxu0
  %v1024 = vpop.f32.mrb[0].mxu0
  %v1025 = vadd.f32 %v200, %v1024
  %v1026 = vpop.f32.mrb[0].mxu0
  %1027 = vmatprep.mubr.bf16.mxu0 %v536
  %1028 = vmatmul.mubr.bf16.gmra.mrb[0].mxu0 %v535
  %v1029 = vpop.f32.mrb[0].mxu0
  %v1030 = vadd.f32 %v200, %v1029
  %v1031 = vpop.f32.mrb[0].mxu0
  %v1032 = vpop.f32.mrb[0].mxu0
  %v1033 = vadd.f32 %v200, %v1032
  %v1034 = vpop.f32.mrb[0].mxu0
  %1035 = vmatprep.mubr.bf16.mxu0 %v541
  %1036 = vmatmul.mubr.bf16.gmra.mrb[0].mxu0 %v540
  %v1037 = vpop.f32.mrb[0].mxu0
  %v1038 = vadd.f32 %v200, %v1037
  %v1039 = vpop.f32.mrb[0].mxu0
  %v1040 = vpop.f32.mrb[0].mxu0
  %v1041 = vadd.f32 %v200, %v1040
  %v1042 = vpop.f32.mrb[0].mxu0
  %1043 = vmatprep.mubr.bf16.mxu0 %v546
  %1044 = vmatmul.mubr.bf16.gmra.mrb[0].mxu0 %v545
  %v1045 = vpop.f32.mrb[0].mxu0
  %v1046 = vadd.f32 %v200, %v1045
  %v1047 = vpop.f32.mrb[0].mxu0
  %v1048 = vpop.f32.mrb[0].mxu0
  %v1049 = vadd.f32 %v200, %v1048
  %v1050 = vpop.f32.mrb[0].mxu0
  %1051 = vmatprep.mubr.bf16.mxu0 %v551
  %1052 = vmatmul.mubr.bf16.gmra.mrb[0].mxu0 %v550
  %v1053 = vpop.f32.mrb[0].mxu0
  %v1054 = vadd.f32 %v200, %v1053
  %v1055 = vpop.f32.mrb[0].mxu0
  %v1056 = vpop.f32.mrb[0].mxu0
  %v1057 = vadd.f32 %v200, %v1056
  %v1058 = vpop.f32.mrb[0].mxu0
  %1059 = vmatprep.mubr.bf16.mxu0 %v556
  %1060 = vmatmul.mubr.bf16.gmra.mrb[0].mxu0 %v555
  %v1061 = vpop.f32.mrb[0].mxu0
  %v1062 = vadd.f32 %v200, %v1061
  %v1063 = vpop.f32.mrb[0].mxu0
  %v1064 = vpop.f32.mrb[0].mxu0
  %v1065 = vadd.f32 %v200, %v1064
  %v1066 = vpop.f32.mrb[0].mxu0
  %1067 = vmatprep.mubr.bf16.mxu0 %v561
  %1068 = vmatmul.mubr.bf16.gmra.mrb[0].mxu0 %v560
  %v1069 = vpop.f32.mrb[0].mxu0
  %v1070 = vadd.f32 %v200, %v1069
  %v1071 = vpop.f32.mrb[0].mxu0
  %v1072 = vpop.f32.mrb[0].mxu0
  %v1073 = vadd.f32 %v200, %v1072
  %v1074 = vpop.f32.mrb[0].mxu0
  %1075 = vmatprep.mubr.bf16.mxu0 %v566
  %1076 = vmatmul.mubr.bf16.gmra.mrb[0].mxu0 %v565
  %v1077 = vpop.f32.mrb[0].mxu0
  %v1078 = vadd.f32 %v200, %v1077
  %v1079 = vpop.f32.mrb[0].mxu0
  %v1080 = vpop.f32.mrb[0].mxu0
  %v1081 = vadd.f32 %v200, %v1080
  %v1082 = vpop.f32.mrb[0].mxu0
  %1083 = vmatprep.mubr.bf16.mxu0 %v571
  %1084 = vmatmul.mubr.bf16.gmra.mrb[0].mxu0 %v570
  %v1085 = vpop.f32.mrb[0].mxu0
  %v1086 = vadd.f32 %v200, %v1085
  %v1087 = vpop.f32.mrb[0].mxu0
  %v1088 = vpop.f32.mrb[0].mxu0
  %v1089 = vadd.f32 %v200, %v1088
  %v1090 = vpop.f32.mrb[0].mxu0
  %1091 = vmatprep.mubr.bf16.mxu0 %v576
  %1092 = vmatmul.mubr.bf16.gmra.mrb[0].mxu0 %v575
  %v1093 = vpop.f32.mrb[0].mxu0
  %v1094 = vadd.f32 %v200, %v1093
  %v1095 = vpop.f32.mrb[0].mxu0
  %v1096 = vpop.f32.mrb[0].mxu0
  %v1097 = vadd.f32 %v200, %v1096
  %v1098 = vpop.f32.mrb[0].mxu0
  %1099 = vdwg.mxu0
  %1100 = vmatprep.subr.bf16.mxu0 0
  %1101 = vmatpush1.bf16.msra.mxu0 %v812
  %1102 = vmatprep.subr.bf16.mxu0 0
  %1103 = vmatpush1.bf16.msra.mxu0 %v813
  %1104 = vmatprep.subr.bf16.mxu0 0
  %1105 = vmatpush1.bf16.msra.mxu0 %v814
  %1106 = vmatprep.subr.bf16.mxu0 0
  %1107 = vmatpush1.bf16.msra.mxu0 %v815
  %1108 = vmatprep.subr.bf16.mxu0 0
  %1109 = vmatpush1.bf16.msra.mxu0 %v816
  %1110 = vmatprep.subr.bf16.mxu0 0
  %1111 = vmatpush1.bf16.msra.mxu0 %v817
  %1112 = vmatprep.subr.bf16.mxu0 0
  %1113 = vmatpush1.bf16.msra.mxu0 %v818
  %1114 = vmatprep.subr.bf16.mxu0 0
  %1115 = vmatpush1.bf16.msra.mxu0 %v819
  %1116 = vmatprep.subr.bf16.mxu0 0
  %1117 = vmatpush1.bf16.msra.mxu0 %v820
  %1118 = vmatprep.subr.bf16.mxu0 0
  %1119 = vmatpush1.bf16.msra.mxu0 %v821
  %1120 = vmatprep.subr.bf16.mxu0 0
  %1121 = vmatpush1.bf16.msra.mxu0 %v822
  %1122 = vmatprep.subr.bf16.mxu0 0
  %1123 = vmatpush1.bf16.msra.mxu0 %v823
  %1124 = vmatprep.subr.bf16.mxu0 0
  %1125 = vmatpush1.bf16.msra.mxu0 %v824
  %1126 = vmatprep.subr.bf16.mxu0 0
  %1127 = vmatpush1.bf16.msra.mxu0 %v825
  %1128 = vmatprep.subr.bf16.mxu0 0
  %1129 = vmatpush1.bf16.msra.mxu0 %v826
  %1130 = vmatprep.subr.bf16.mxu0 0
  %1131 = vmatpush1.bf16.msra.mxu0 %v827
  %1132 = vmatprep.mubr.bf16.mxu0 %v493
  %1133 = vmatmul.mubr.bf16.gmra.mrb[0].mxu0 %v492
  %v1134 = vpop.f32.mrb[0].mxu0
  %v1135 = vadd.f32 %v958, %v1134
  %v1136 = vpop.f32.mrb[0].mxu0
  %v1137 = vpop.f32.mrb[0].mxu0
  %v1138 = vadd.f32 %v961, %v1137
  %v1139 = vpop.f32.mrb[0].mxu0
  %1140 = vmatprep.mubr.bf16.mxu0 %v498
  %1141 = vmatmul.mubr.bf16.gmra.mrb[0].mxu0 %v497
  %v1142 = vpop.f32.mrb[0].mxu0
  %v1143 = vadd.f32 %v966, %v1142
  %v1144 = vpop.f32.mrb[0].mxu0
  %v1145 = vpop.f32.mrb[0].mxu0
  %v1146 = vadd.f32 %v969, %v1145
  %v1147 = vpop.f32.mrb[0].mxu0
  %1148 = vmatprep.mubr.bf16.mxu0 %v503
  %1149 = vmatmul.mubr.bf16.gmra.mrb[0].mxu0 %v502
  %v1150 = vpop.f32.mrb[0].mxu0
  %v1151 = vadd.f32 %v974, %v1150
  %v1152 = vpop.f32.mrb[0].mxu0
  %v1153 = vpop.f32.mrb[0].mxu0
  %v1154 = vadd.f32 %v977, %v1153
  %v1155 = vpop.f32.mrb[0].mxu0
  %1156 = vmatprep.mubr.bf16.mxu0 %v508
  %1157 = vmatmul.mubr.bf16.gmra.mrb[0].mxu0 %v507
  %v1158 = vpop.f32.mrb[0].mxu0
  %v1159 = vadd.f32 %v982, %v1158
  %v1160 = vpop.f32.mrb[0].mxu0
  %v1161 = vpop.f32.mrb[0].mxu0
  %v1162 = vadd.f32 %v985, %v1161
  %v1163 = vpop.f32.mrb[0].mxu0
  %1164 = vmatprep.mubr.bf16.mxu0 %v513
  %1165 = vmatmul.mubr.bf16.gmra.mrb[0].mxu0 %v512
  %v1166 = vpop.f32.mrb[0].mxu0
  %v1167 = vadd.f32 %v990, %v1166
  %v1168 = vpop.f32.mrb[0].mxu0
  %v1169 = vpop.f32.mrb[0].mxu0
  %v1170 = vadd.f32 %v993, %v1169
  %v1171 = vpop.f32.mrb[0].mxu0
  %1172 = vmatprep.mubr.bf16.mxu0 %v518
  %1173 = vmatmul.mubr.bf16.gmra.mrb[0].mxu0 %v517
  %v1174 = vpop.f32.mrb[0].mxu0
  %v1175 = vadd.f32 %v998, %v1174
  %v1176 = vpop.f32.mrb[0].mxu0
  %v1177 = vpop.f32.mrb[0].mxu0
  %v1178 = vadd.f32 %v1001, %v1177
  %v1179 = vpop.f32.mrb[0].mxu0
  %1180 = vmatprep.mubr.bf16.mxu0 %v523
  %1181 = vmatmul.mubr.bf16.gmra.mrb[0].mxu0 %v522
  %v1182 = vpop.f32.mrb[0].mxu0
  %v1183 = vadd.f32 %v1006, %v1182
  %v1184 = vpop.f32.mrb[0].mxu0
  %v1185 = vpop.f32.mrb[0].mxu0
  %v1186 = vadd.f32 %v1009, %v1185
  %v1187 = vpop.f32.mrb[0].mxu0
  %1188 = vmatprep.mubr.bf16.mxu0 %v528
  %1189 = vmatmul.mubr.bf16.gmra.mrb[0].mxu0 %v527
  %v1190 = vpop.f32.mrb[0].mxu0
  %v1191 = vadd.f32 %v1014, %v1190
  %v1192 = vpop.f32.mrb[0].mxu0
  %v1193 = vpop.f32.mrb[0].mxu0
  %v1194 = vadd.f32 %v1017, %v1193
  %v1195 = vpop.f32.mrb[0].mxu0
  %1196 = vmatprep.mubr.bf16.mxu0 %v533
  %1197 = vmatmul.mubr.bf16.gmra.mrb[0].mxu0 %v532
  %v1198 = vpop.f32.mrb[0].mxu0
  %v1199 = vadd.f32 %v1022, %v1198
  %v1200 = vpop.f32.mrb[0].mxu0
  %v1201 = vpop.f32.mrb[0].mxu0
  %v1202 = vadd.f32 %v1025, %v1201
  %v1203 = vpop.f32.mrb[0].mxu0
  %1204 = vmatprep.mubr.bf16.mxu0 %v538
  %1205 = vmatmul.mubr.bf16.gmra.mrb[0].mxu0 %v537
  %v1206 = vpop.f32.mrb[0].mxu0
  %v1207 = vadd.f32 %v1030, %v1206
  %v1208 = vpop.f32.mrb[0].mxu0
  %v1209 = vpop.f32.mrb[0].mxu0
  %v1210 = vadd.f32 %v1033, %v1209
  %v1211 = vpop.f32.mrb[0].mxu0
  %1212 = vmatprep.mubr.bf16.mxu0 %v543
  %1213 = vmatmul.mubr.bf16.gmra.mrb[0].mxu0 %v542
  %v1214 = vpop.f32.mrb[0].mxu0
  %v1215 = vadd.f32 %v1038, %v1214
  %v1216 = vpop.f32.mrb[0].mxu0
  %v1217 = vpop.f32.mrb[0].mxu0
  %v1218 = vadd.f32 %v1041, %v1217
  %v1219 = vpop.f32.mrb[0].mxu0
  %1220 = vmatprep.mubr.bf16.mxu0 %v548
  %1221 = vmatmul.mubr.bf16.gmra.mrb[0].mxu0 %v547
  %v1222 = vpop.f32.mrb[0].mxu0
  %v1223 = vadd.f32 %v1046, %v1222
  %v1224 = vpop.f32.mrb[0].mxu0
  %v1225 = vpop.f32.mrb[0].mxu0
  %v1226 = vadd.f32 %v1049, %v1225
  %v1227 = vpop.f32.mrb[0].mxu0
  %1228 = vmatprep.mubr.bf16.mxu0 %v553
  %1229 = vmatmul.mubr.bf16.gmra.mrb[0].mxu0 %v552
  %v1230 = vpop.f32.mrb[0].mxu0
  %v1231 = vadd.f32 %v1054, %v1230
  %v1232 = vpop.f32.mrb[0].mxu0
  %v1233 = vpop.f32.mrb[0].mxu0
  %v1234 = vadd.f32 %v1057, %v1233
  %v1235 = vpop.f32.mrb[0].mxu0
  %1236 = vmatprep.mubr.bf16.mxu0 %v558
  %1237 = vmatmul.mubr.bf16.gmra.mrb[0].mxu0 %v557
  %v1238 = vpop.f32.mrb[0].mxu0
  %v1239 = vadd.f32 %v1062, %v1238
  %v1240 = vpop.f32.mrb[0].mxu0
  %v1241 = vpop.f32.mrb[0].mxu0
  %v1242 = vadd.f32 %v1065, %v1241
  %v1243 = vpop.f32.mrb[0].mxu0
  %1244 = vmatprep.mubr.bf16.mxu0 %v563
  %1245 = vmatmul.mubr.bf16.gmra.mrb[0].mxu0 %v562
  %v1246 = vpop.f32.mrb[0].mxu0
  %v1247 = vadd.f32 %v1070, %v1246
  %v1248 = vpop.f32.mrb[0].mxu0
  %v1249 = vpop.f32.mrb[0].mxu0
  %v1250 = vadd.f32 %v1073, %v1249
  %v1251 = vpop.f32.mrb[0].mxu0
  %1252 = vmatprep.mubr.bf16.mxu0 %v568
  %1253 = vmatmul.mubr.bf16.gmra.mrb[0].mxu0 %v567
  %v1254 = vpop.f32.mrb[0].mxu0
  %v1255 = vadd.f32 %v1078, %v1254
  %v1256 = vpop.f32.mrb[0].mxu0
  %v1257 = vpop.f32.mrb[0].mxu0
  %v1258 = vadd.f32 %v1081, %v1257
  %v1259 = vpop.f32.mrb[0].mxu0
  %1260 = vmatprep.mubr.bf16.mxu0 %v573
  %1261 = vmatmul.mubr.bf16.gmra.mrb[0].mxu0 %v572
  %v1262 = vpop.f32.mrb[0].mxu0
  %v1263 = vadd.f32 %v1086, %v1262
  %v1264 = vpop.f32.mrb[0].mxu0
  %v1265 = vpop.f32.mrb[0].mxu0
  %v1266 = vadd.f32 %v1089, %v1265
  %v1267 = vpop.f32.mrb[0].mxu0
  %1268 = vmatprep.mubr.bf16.mxu0 %v578
  %1269 = vmatmul.mubr.bf16.gmra.mrb[0].mxu0 %v577
  %v1270 = vpop.f32.mrb[0].mxu0
  %v1271 = vadd.f32 %v1094, %v1270
  %v1272 = vpop.f32.mrb[0].mxu0
  %v1273 = vpop.f32.mrb[0].mxu0
  %v1274 = vadd.f32 %v1097, %v1273
  %v1275 = vpop.f32.mrb[0].mxu0
  %1276 = vdwg.mxu0
  %1277 = vmatprep.subr.bf16.mxu0 0
  %1278 = vmatpush1.bf16.msra.mxu0 %v828
  %1279 = vmatprep.subr.bf16.mxu0 0
  %1280 = vmatpush1.bf16.msra.mxu0 %v829
  %1281 = vmatprep.subr.bf16.mxu0 0
  %1282 = vmatpush1.bf16.msra.mxu0 %v830
  %1283 = vmatprep.subr.bf16.mxu0 0
  %1284 = vmatpush1.bf16.msra.mxu0 %v831
  %1285 = vmatprep.subr.bf16.mxu0 0
  %1286 = vmatpush1.bf16.msra.mxu0 0
  %1287 = vmatprep.subr.bf16.mxu0 0
  %1288 = vmatpush1.bf16.msra.mxu0 0
  %1289 = vmatprep.subr.bf16.mxu0 0
  %1290 = vmatpush1.bf16.msra.mxu0 0
  %1291 = vmatprep.subr.bf16.mxu0 0
  %1292 = vmatpush1.bf16.msra.mxu0 0
  %1293 = vmatprep.subr.bf16.mxu0 0
  %1294 = vmatpush1.bf16.msra.mxu0 0
  %1295 = vmatprep.subr.bf16.mxu0 0
  %1296 = vmatpush1.bf16.msra.mxu0 0
  %1297 = vmatprep.subr.bf16.mxu0 0
  %1298 = vmatpush1.bf16.msra.mxu0 0
  %1299 = vmatprep.subr.bf16.mxu0 0
  %1300 = vmatpush1.bf16.msra.mxu0 0
  %1301 = vmatprep.subr.bf16.mxu0 0
  %1302 = vmatpush1.bf16.msra.mxu0 0
  %1303 = vmatprep.subr.bf16.mxu0 0
  %1304 = vmatpush1.bf16.msra.mxu0 0
  %1305 = vmatprep.subr.bf16.mxu0 0
  %1306 = vmatpush1.bf16.msra.mxu0 0
  %1307 = vmatprep.subr.bf16.mxu0 0
  %1308 = vmatpush1.bf16.msra.mxu0 0
  %1309 = vmatprep.mubr.bf16.mxu0 0
  %1310 = vmatmul.mubr.bf16.gmra.mrb[0].mxu0 %v870
  %v1311 = vpop.f32.mrb[0].mxu0
  %v1312 = vadd.f32 %v1135, %v1311
  %v1313 = vpop.f32.mrb[0].mxu0
  %v1314 = vpop.f32.mrb[0].mxu0
  %v1315 = vadd.f32 %v1138, %v1314
  %v1316 = vpop.f32.mrb[0].mxu0
  %1317 = vmatprep.mubr.bf16.mxu0 0
  %1318 = vmatmul.mubr.bf16.gmra.mrb[0].mxu0 %v873
  %v1319 = vpop.f32.mrb[0].mxu0
  %v1320 = vadd.f32 %v1143, %v1319
  %v1321 = vpop.f32.mrb[0].mxu0
  %v1322 = vpop.f32.mrb[0].mxu0
  %v1323 = vadd.f32 %v1146, %v1322
  %v1324 = vpop.f32.mrb[0].mxu0
  %1325 = vmatprep.mubr.bf16.mxu0 0
  %1326 = vmatmul.mubr.bf16.gmra.mrb[0].mxu0 %v876
  %v1327 = vpop.f32.mrb[0].mxu0
  %v1328 = vadd.f32 %v1151, %v1327
  %v1329 = vpop.f32.mrb[0].mxu0
  %v1330 = vpop.f32.mrb[0].mxu0
  %v1331 = vadd.f32 %v1154, %v1330
  %v1332 = vpop.f32.mrb[0].mxu0
  %1333 = vmatprep.mubr.bf16.mxu0 0
  %1334 = vmatmul.mubr.bf16.gmra.mrb[0].mxu0 %v879
  %v1335 = vpop.f32.mrb[0].mxu0
  %v1336 = vadd.f32 %v1159, %v1335
  %v1337 = vpop.f32.mrb[0].mxu0
  %v1338 = vpop.f32.mrb[0].mxu0
  %v1339 = vadd.f32 %v1162, %v1338
  %v1340 = vpop.f32.mrb[0].mxu0
  %1341 = vmatprep.mubr.bf16.mxu0 0
  %1342 = vmatmul.mubr.bf16.gmra.mrb[0].mxu0 %v882
  %v1343 = vpop.f32.mrb[0].mxu0
  %v1344 = vadd.f32 %v1167, %v1343
  %v1345 = vpop.f32.mrb[0].mxu0
  %v1346 = vpop.f32.mrb[0].mxu0
  %v1347 = vadd.f32 %v1170, %v1346
  %v1348 = vpop.f32.mrb[0].mxu0
  %1349 = vmatprep.mubr.bf16.mxu0 0
  %1350 = vmatmul.mubr.bf16.gmra.mrb[0].mxu0 %v885
  %v1351 = vpop.f32.mrb[0].mxu0
  %v1352 = vadd.f32 %v1175, %v1351
  %v1353 = vpop.f32.mrb[0].mxu0
  %v1354 = vpop.f32.mrb[0].mxu0
  %v1355 = vadd.f32 %v1178, %v1354
  %v1356 = vpop.f32.mrb[0].mxu0
  %1357 = vmatprep.mubr.bf16.mxu0 0
  %1358 = vmatmul.mubr.bf16.gmra.mrb[0].mxu0 %v888
  %v1359 = vpop.f32.mrb[0].mxu0
  %v1360 = vadd.f32 %v1183, %v1359
  %v1361 = vpop.f32.mrb[0].mxu0
  %v1362 = vpop.f32.mrb[0].mxu0
  %v1363 = vadd.f32 %v1186, %v1362
  %v1364 = vpop.f32.mrb[0].mxu0
  %1365 = vmatprep.mubr.bf16.mxu0 0
  %1366 = vmatmul.mubr.bf16.gmra.mrb[0].mxu0 %v891
  %v1367 = vpop.f32.mrb[0].mxu0
  %v1368 = vadd.f32 %v1191, %v1367
  %v1369 = vpop.f32.mrb[0].mxu0
  %v1370 = vpop.f32.mrb[0].mxu0
  %v1371 = vadd.f32 %v1194, %v1370
  %v1372 = vpop.f32.mrb[0].mxu0
  %1373 = vmatprep.mubr.bf16.mxu0 0
  %1374 = vmatmul.mubr.bf16.gmra.mrb[0].mxu0 %v894
  %v1375 = vpop.f32.mrb[0].mxu0
  %v1376 = vadd.f32 %v1199, %v1375
  %v1377 = vpop.f32.mrb[0].mxu0
  %v1378 = vpop.f32.mrb[0].mxu0
  %v1379 = vadd.f32 %v1202, %v1378
  %v1380 = vpop.f32.mrb[0].mxu0
  %1381 = vmatprep.mubr.bf16.mxu0 0
  %1382 = vmatmul.mubr.bf16.gmra.mrb[0].mxu0 %v897
  %v1383 = vpop.f32.mrb[0].mxu0
  %v1384 = vadd.f32 %v1207, %v1383
  %v1385 = vpop.f32.mrb[0].mxu0
  %v1386 = vpop.f32.mrb[0].mxu0
  %v1387 = vadd.f32 %v1210, %v1386
  %v1388 = vpop.f32.mrb[0].mxu0
  %1389 = vmatprep.mubr.bf16.mxu0 0
  %1390 = vmatmul.mubr.bf16.gmra.mrb[0].mxu0 %v900
  %v1391 = vpop.f32.mrb[0].mxu0
  %v1392 = vadd.f32 %v1215, %v1391
  %v1393 = vpop.f32.mrb[0].mxu0
  %v1394 = vpop.f32.mrb[0].mxu0
  %v1395 = vadd.f32 %v1218, %v1394
  %v1396 = vpop.f32.mrb[0].mxu0
  %1397 = vmatprep.mubr.bf16.mxu0 0
  %1398 = vmatmul.mubr.bf16.gmra.mrb[0].mxu0 %v903
  %v1399 = vpop.f32.mrb[0].mxu0
  %v1400 = vadd.f32 %v1223, %v1399
  %v1401 = vpop.f32.mrb[0].mxu0
  %v1402 = vpop.f32.mrb[0].mxu0
  %v1403 = vadd.f32 %v1226, %v1402
  %v1404 = vpop.f32.mrb[0].mxu0
  %1405 = vmatprep.mubr.bf16.mxu0 0
  %1406 = vmatmul.mubr.bf16.gmra.mrb[0].mxu0 %v906
  %v1407 = vpop.f32.mrb[0].mxu0
  %v1408 = vadd.f32 %v1231, %v1407
  %v1409 = vpop.f32.mrb[0].mxu0
  %v1410 = vpop.f32.mrb[0].mxu0
  %v1411 = vadd.f32 %v1234, %v1410
  %v1412 = vpop.f32.mrb[0].mxu0
  %1413 = vmatprep.mubr.bf16.mxu0 0
  %1414 = vmatmul.mubr.bf16.gmra.mrb[0].mxu0 %v909
  %v1415 = vpop.f32.mrb[0].mxu0
  %v1416 = vadd.f32 %v1239, %v1415
  %v1417 = vpop.f32.mrb[0].mxu0
  %v1418 = vpop.f32.mrb[0].mxu0
  %v1419 = vadd.f32 %v1242, %v1418
  %v1420 = vpop.f32.mrb[0].mxu0
  %1421 = vmatprep.mubr.bf16.mxu0 0
  %1422 = vmatmul.mubr.bf16.gmra.mrb[0].mxu0 %v912
  %v1423 = vpop.f32.mrb[0].mxu0
  %v1424 = vadd.f32 %v1247, %v1423
  %v1425 = vpop.f32.mrb[0].mxu0
  %v1426 = vpop.f32.mrb[0].mxu0
  %v1427 = vadd.f32 %v1250, %v1426
  %v1428 = vpop.f32.mrb[0].mxu0
  %1429 = vmatprep.mubr.bf16.mxu0 0
  %1430 = vmatmul.mubr.bf16.gmra.mrb[0].mxu0 %v915
  %v1431 = vpop.f32.mrb[0].mxu0
  %v1432 = vadd.f32 %v1255, %v1431
  %v1433 = vpop.f32.mrb[0].mxu0
  %v1434 = vpop.f32.mrb[0].mxu0
  %v1435 = vadd.f32 %v1258, %v1434
  %v1436 = vpop.f32.mrb[0].mxu0
  %1437 = vmatprep.mubr.bf16.mxu0 0
  %1438 = vmatmul.mubr.bf16.gmra.mrb[0].mxu0 %v918
  %v1439 = vpop.f32.mrb[0].mxu0
  %v1440 = vadd.f32 %v1263, %v1439
  %v1441 = vpop.f32.mrb[0].mxu0
  %v1442 = vpop.f32.mrb[0].mxu0
  %v1443 = vadd.f32 %v1266, %v1442
  %v1444 = vpop.f32.mrb[0].mxu0
  %1445 = vmatprep.mubr.bf16.mxu0 0
  %1446 = vmatmul.mubr.bf16.gmra.mrb[0].mxu0 %v921
  %v1447 = vpop.f32.mrb[0].mxu0
  %v1448 = vadd.f32 %v1271, %v1447
  %v1449 = vpop.f32.mrb[0].mxu0
  %v1450 = vpop.f32.mrb[0].mxu0
  %v1451 = vadd.f32 %v1274, %v1450
  %v1452 = vpop.f32.mrb[0].mxu0
  %1453 = vdwg.mxu0
  %v1454 = vmax.f32 %v1312, 0.0
  %v1455 = vmax.f32 %v1315, 0.0
  %v1456 = vmax.f32 %v1320, 0.0
  %v1457 = vmax.f32 %v1323, 0.0
  %v1458 = vmax.f32 %v1328, 0.0
  %v1459 = vmax.f32 %v1331, 0.0
  %v1460 = vmax.f32 %v1336, 0.0
  %v1461 = vmax.f32 %v1339, 0.0
  %v1462 = vmax.f32 %v1344, 0.0
  %v1463 = vmax.f32 %v1347, 0.0
  %v1464 = vmax.f32 %v1352, 0.0
  %v1465 = vmax.f32 %v1355, 0.0
  %v1466 = vmax.f32 %v1360, 0.0
  %v1467 = vmax.f32 %v1363, 0.0
  %v1468 = vmax.f32 %v1368, 0.0
  %v1469 = vmax.f32 %v1371, 0.0
  %v1470 = vmax.f32 %v1376, 0.0
  %v1471 = vmax.f32 %v1379, 0.0
  %v1472 = vmax.f32 %v1384, 0.0
  %v1473 = vmax.f32 %v1387, 0.0
  %v1474 = vmax.f32 %v1392, 0.0
  %v1475 = vmax.f32 %v1395, 0.0
  %v1476 = vmax.f32 %v1400, 0.0
  %v1477 = vmax.f32 %v1403, 0.0
  %v1478 = vmax.f32 %v1408, 0.0
  %v1479 = vmax.f32 %v1411, 0.0
  %v1480 = vmax.f32 %v1416, 0.0
  %v1481 = vmax.f32 %v1419, 0.0
  %v1482 = vmax.f32 %v1424, 0.0
  %v1483 = vmax.f32 %v1427, 0.0
  %v1484 = vmax.f32 %v1432, 0.0
  %v1485 = vmax.f32 %v1435, 0.0
  %v1486 = vmax.f32 %v1440, 0.0
  %v1487 = vmax.f32 %v1443, 0.0
  %v1488 = vmax.f32 %v1448, 0.0
  %v1489 = vmax.f32 %v1451, 0.0
  %v1490 = vpack.c.bf16 %v1455, %v1454
  %v1491 = vpack.c.bf16 %v1457, %v1456
  %v1492 = vpack.c.bf16 %v1459, %v1458
  %v1493 = vpack.c.bf16 %v1461, %v1460
  %v1494 = vpack.c.bf16 %v1463, %v1462
  %v1495 = vpack.c.bf16 %v1465, %v1464
  %v1496 = vpack.c.bf16 %v1467, %v1466
  %v1497 = vpack.c.bf16 %v1469, %v1468
  %v1498 = vpack.c.bf16 %v1471, %v1470
  %v1499 = vpack.c.bf16 %v1473, %v1472
  %v1500 = vpack.c.bf16 %v1475, %v1474
  %v1501 = vpack.c.bf16 %v1477, %v1476
  %v1502 = vpack.c.bf16 %v1479, %v1478
  %v1503 = vpack.c.bf16 %v1481, %v1480
  %v1504 = vpack.c.bf16 %v1483, %v1482
  %v1505 = vpack.c.bf16 %v1485, %v1484
  %v1506 = vpack.c.bf16 %v1487, %v1486
  %v1507 = vpack.c.bf16 %v1489, %v1488
  %v1526 = vunpack.c.l.b16 %v1490
  %v1527 = vunpack.c.h.b16 %v1490
  %v1528 = vunpack.c.l.b16 %v1491
  %v1529 = vunpack.c.h.b16 %v1491
  %v1530 = vunpack.c.l.b16 %v1492
  %v1531 = vunpack.c.h.b16 %v1492
  %v1532 = vunpack.c.l.b16 %v1493
  %v1533 = vunpack.c.h.b16 %v1493
  %v1534 = vunpack.c.l.b16 %v1494
  %v1535 = vunpack.c.h.b16 %v1494
  %v1536 = vunpack.c.l.b16 %v1495
  %v1537 = vunpack.c.h.b16 %v1495
  %v1538 = vunpack.c.l.b16 %v1496
  %v1539 = vunpack.c.h.b16 %v1496
  %v1540 = vunpack.c.l.b16 %v1497
  %v1541 = vunpack.c.h.b16 %v1497
  %v1542 = vunpack.c.l.b16 %v1498
  %v1543 = vunpack.c.h.b16 %v1498
  %v1544 = vunpack.c.l.b16 %v1499
  %v1545 = vunpack.c.h.b16 %v1499
  %v1546 = vunpack.c.l.b16 %v1500
  %v1547 = vunpack.c.h.b16 %v1500
  %v1548 = vunpack.c.l.b16 %v1501
  %v1549 = vunpack.c.h.b16 %v1501
  %v1550 = vunpack.c.l.b16 %v1502
  %v1551 = vunpack.c.h.b16 %v1502
  %v1552 = vunpack.c.l.b16 %v1503
  %v1553 = vunpack.c.h.b16 %v1503
  %v1554 = vunpack.c.l.b16 %v1504
  %v1555 = vunpack.c.h.b16 %v1504
  %v1556 = vunpack.c.l.b16 %v1505
  %v1557 = vunpack.c.h.b16 %v1505
  %v1558 = vunpack.c.l.b16 %v1506
  %v1559 = vunpack.c.h.b16 %v1506
  %v1560 = vunpack.c.l.b16 %v1507
  %v1561 = vunpack.c.h.b16 %v1507
  %v1562 = vpack.c.b16 %v1526, %v1526
  %v1563 = vpack.c.b16 %v1527, %v1527
  %v1564 = vpack.c.b16 %v1528, %v1528
  %v1565 = vpack.c.b16 %v1529, %v1529
  %v1566 = vpack.c.b16 %v1530, %v1530
  %v1567 = vpack.c.b16 %v1531, %v1531
  %v1568 = vpack.c.b16 %v1532, %v1532
  %v1569 = vpack.c.b16 %v1533, %v1533
  %v1570 = vpack.c.b16 %v1534, %v1534
  %v1571 = vpack.c.b16 %v1535, %v1535
  %v1572 = vpack.c.b16 %v1536, %v1536
  %v1573 = vpack.c.b16 %v1537, %v1537
  %v1574 = vpack.c.b16 %v1538, %v1538
  %v1575 = vpack.c.b16 %v1539, %v1539
  %v1576 = vpack.c.b16 %v1540, %v1540
  %v1577 = vpack.c.b16 %v1541, %v1541
  %v1578 = vpack.c.b16 %v1542, %v1542
  %v1579 = vpack.c.b16 %v1543, %v1543
  %v1580 = vpack.c.b16 %v1544, %v1544
  %v1581 = vpack.c.b16 %v1545, %v1545
  %v1582 = vpack.c.b16 %v1546, %v1546
  %v1583 = vpack.c.b16 %v1547, %v1547
  %v1584 = vpack.c.b16 %v1548, %v1548
  %v1585 = vpack.c.b16 %v1549, %v1549
  %v1586 = vpack.c.b16 %v1550, %v1550
  %v1587 = vpack.c.b16 %v1551, %v1551
  %v1588 = vpack.c.b16 %v1552, %v1552
  %v1589 = vpack.c.b16 %v1553, %v1553
  %v1590 = vpack.c.b16 %v1554, %v1554
  %v1591 = vpack.c.b16 %v1555, %v1555
  %v1592 = vpack.c.b16 %v1556, %v1556
  %v1593 = vpack.c.b16 %v1557, %v1557
  %v1594 = vpack.c.b16 %v1558, %v1558
  %v1595 = vpack.c.b16 %v1559, %v1559
  %v1596 = vpack.c.b16 %v1560, %v1560
  %v1597 = vpack.c.b16 %v1561, %v1561
  %1634 = vst [vmem:[%s3] sm:$0xf] %v1562
  %1635 = vst [vmem:[%s3 + $0x4] sm:$0xf] %v1563
  %1636 = vst [vmem:[%s3 + $0x8] sm:$0xf] %v1564
  %1637 = vst [vmem:[%s3 + $0xc] sm:$0xf] %v1565
  %1638 = vst [vmem:[%s3 + $0x10] sm:$0xf] %v1566
  %1639 = vst [vmem:[%s3 + $0x14] sm:$0xf] %v1567
  %1640 = vst [vmem:[%s3 + $0x18] sm:$0xf] %v1568
  %1641 = vst [vmem:[%s3 + $0x1c] sm:$0xf] %v1569
  %1642 = vst [vmem:[%s3 + $0x20] sm:$0xf] %v1570
  %1643 = vst [vmem:[%s3 + $0x24] sm:$0xf] %v1571
  %1644 = vst [vmem:[%s3 + $0x28] sm:$0xf] %v1572
  %1645 = vst [vmem:[%s3 + $0x2c] sm:$0xf] %v1573
  %1646 = vst [vmem:[%s3 + $0x30] sm:$0xf] %v1574
  %1647 = vst [vmem:[%s3 + $0x34] sm:$0xf] %v1575
  %1648 = vst [vmem:[%s3 + $0x38] sm:$0xf] %v1576
  %1649 = vst [vmem:[%s3 + $0x3c] sm:$0xf] %v1577
  %1650 = vst [vmem:[%s3 + $0x40] sm:$0xf] %v1578
  %1651 = vst [vmem:[%s3 + $0x44] sm:$0xf] %v1579
  %1652 = vst [vmem:[%s3 + $0x48] sm:$0xf] %v1580
  %1653 = vst [vmem:[%s3 + $0x4c] sm:$0xf] %v1581
  %1654 = vst [vmem:[%s3 + $0x50] sm:$0xf] %v1582
  %1655 = vst [vmem:[%s3 + $0x54] sm:$0xf] %v1583
  %1656 = vst [vmem:[%s3 + $0x58] sm:$0xf] %v1584
  %1657 = vst [vmem:[%s3 + $0x5c] sm:$0xf] %v1585
  %1658 = vst [vmem:[%s3 + $0x60] sm:$0xf] %v1586
  %1659 = vst [vmem:[%s3 + $0x64] sm:$0xf] %v1587
  %1660 = vst [vmem:[%s3 + $0x68] sm:$0xf] %v1588
  %1661 = vst [vmem:[%s3 + $0x6c] sm:$0xf] %v1589
  %1662 = vst [vmem:[%s3 + $0x70] sm:$0xf] %v1590
  %1663 = vst [vmem:[%s3 + $0x74] sm:$0xf] %v1591
  %1664 = vst [vmem:[%s3 + $0x78] sm:$0xf] %v1592
  %1665 = vst [vmem:[%s3 + $0x7c] sm:$0xf] %v1593
  %1666 = vst [vmem:[%s3 + $0x80] sm:$0xf] %v1594
  %1667 = vst [vmem:[%s3 + $0x84] sm:$0xf] %v1595
  %1668 = vst [vmem:[%s3 + $0x88] sm:$0xf] %v1596
  %1669 = vst [vmem:[%s3 + $0x8c] sm:$0xf] %v1597
  // Predicated region
  $region14: #{_lambda_.5} parent=0 // pred_check
    _
  $region15: #{_lambda_.5} parent=0 // pred_check_branch
    %1671 = sbr.rel (0) target = $region17
  $region16: #{_lambda_.5} parent=0 // pred_region
    _
  $region17: #{_lambda_.5} parent=0 // pred_fallthru
    _
  // Predicated region
  $region18: #{_lambda_.5} parent=0 // pred_check
    _
  $region19: #{_lambda_.5} parent=0 // pred_check_branch
    %1673 = sbr.rel (0) target = $region21
  $region20: #{_lambda_.5} parent=0 // pred_region
    _
  $region21: #{_lambda_.5} parent=0 // pred_fallthru
    _

// kernel: _lambda_.6
$region0: #{_lambda_.6}
  #allocation0 [shape = 'u32[]', space=smem, size = 0x4, offset = 0x4, fixed_abs, tag = 'smem constant byte address 0x4 - core index']
  #allocation1 [shape = 'u32[144,128]{1,0:T(1,128)}', space=vmem, size = 0x12000, scoped, tag = 'internal scratch']
  %s0 = inlined_call_operand.vmem [shape: bf16[242,128], index: 0, kind: input, shape index: {}]
  %s1 = inlined_call_operand.vmem [shape: bf16[128,128], index: 1, kind: input, shape index: {}]
  %s2 = inlined_call_operand.vmem [shape: f32[1,128], index: 2, kind: input, shape index: {}]
  %s3 = inlined_call_operand.vmem [shape: bf16[242,128], index: 3, kind: output, shape index: {}]
  %s4 = sld [smem:[#allocation0]]
  $region22: #{_lambda_.6} parent=0
    _
  %s6 = ssub.s32 1, %s4
  %s7 = scalar_select 0, %s6, %s4
  // Predicated region
  $region2: #{_lambda_.6} parent=0 // pred_check
    _
  $region3: #{_lambda_.6} parent=0 // pred_check_branch
    %9 = sbr.rel (0) target = $region5
  $region4: #{_lambda_.6} parent=0 // pred_region
    _
  $region5: #{_lambda_.6} parent=0 // pred_fallthru
    _
  // Predicated region
  $region6: #{_lambda_.6} parent=0 // pred_check
    _
  $region7: #{_lambda_.6} parent=0 // pred_check_branch
    %11 = sbr.rel (0) target = $region9
  $region8: #{_lambda_.6} parent=0 // pred_region
    _
  $region9: #{_lambda_.6} parent=0 // pred_fallthru
    _
  // Predicated region
  $region10: #{_lambda_.6} parent=0 // pred_check
    _
  $region11: #{_lambda_.6} parent=0 // pred_check_branch
    %13 = sbr.rel (0) target = $region13
  $region12: #{_lambda_.6} parent=0 // pred_region
    _
  $region13: #{_lambda_.6} parent=0 // pred_fallthru
    _
  %v15 = vld [vmem:[%s0] sm:$0xf]
  %v16 = vld [vmem:[%s0 + $0x4] sm:$0xf]
  %v17 = vld [vmem:[%s0 + $0x8] sm:$0xf]
  %v18 = vld [vmem:[%s0 + $0xc] sm:$0xf]
  %v19 = vld [vmem:[%s0 + $0x10] sm:$0xf]
  %v20 = vld [vmem:[%s0 + $0x14] sm:$0xf]
  %v21 = vld [vmem:[%s0 + $0x18] sm:$0xf]
  %v22 = vld [vmem:[%s0 + $0x1c] sm:$0xf]
  %v23 = vld [vmem:[%s0 + $0x20] sm:$0xf]
  %v24 = vld [vmem:[%s0 + $0x24] sm:$0xf]
  %v25 = vld [vmem:[%s0 + $0x28] sm:$0xf]
  %v26 = vld [vmem:[%s0 + $0x2c] sm:$0xf]
  %v27 = vld [vmem:[%s0 + $0x30] sm:$0xf]
  %v28 = vld [vmem:[%s0 + $0x34] sm:$0xf]
  %v29 = vld [vmem:[%s0 + $0x38] sm:$0xf]
  %v30 = vld [vmem:[%s0 + $0x3c] sm:$0xf]
  %v31 = vld [vmem:[%s0 + $0x40] sm:$0xf]
  %v32 = vld [vmem:[%s0 + $0x44] sm:$0xf]
  %v33 = vld [vmem:[%s0 + $0x48] sm:$0xf]
  %v34 = vld [vmem:[%s0 + $0x4c] sm:$0xf]
  %v35 = vld [vmem:[%s0 + $0x50] sm:$0xf]
  %v36 = vld [vmem:[%s0 + $0x54] sm:$0xf]
  %v37 = vld [vmem:[%s0 + $0x58] sm:$0xf]
  %v38 = vld [vmem:[%s0 + $0x5c] sm:$0xf]
  %v39 = vld [vmem:[%s0 + $0x60] sm:$0xf]
  %v40 = vld [vmem:[%s0 + $0x64] sm:$0xf]
  %v41 = vld [vmem:[%s0 + $0x68] sm:$0xf]
  %v42 = vld [vmem:[%s0 + $0x6c] sm:$0xf]
  %v43 = vld [vmem:[%s0 + $0x70] sm:$0xf]
  %v44 = vld [vmem:[%s0 + $0x74] sm:$0xf]
  %v45 = vld [vmem:[%s0 + $0x78] sm:$0x1]
  %v46 = vld [vmem:[%s1] sm:$0xf]
  %v47 = vld [vmem:[%s1 + $0x4] sm:$0xf]
  %v48 = vld [vmem:[%s1 + $0x8] sm:$0xf]
  %v49 = vld [vmem:[%s1 + $0xc] sm:$0xf]
  %v50 = vld [vmem:[%s1 + $0x10] sm:$0xf]
  %v51 = vld [vmem:[%s1 + $0x14] sm:$0xf]
  %v52 = vld [vmem:[%s1 + $0x18] sm:$0xf]
  %v53 = vld [vmem:[%s1 + $0x1c] sm:$0xf]
  %v54 = vld [vmem:[%s1 + $0x20] sm:$0xf]
  %v55 = vld [vmem:[%s1 + $0x24] sm:$0xf]
  %v56 = vld [vmem:[%s1 + $0x28] sm:$0xf]
  %v57 = vld [vmem:[%s1 + $0x2c] sm:$0xf]
  %v58 = vld [vmem:[%s1 + $0x30] sm:$0xf]
  %v59 = vld [vmem:[%s1 + $0x34] sm:$0xf]
  %v60 = vld [vmem:[%s1 + $0x38] sm:$0xf]
  %v61 = vld [vmem:[%s1 + $0x3c] sm:$0xf]
  %v62 = vld [vmem:[%s2] sm:$0x1]
  %v64 = vlaneseq
  %v65 = vshrl.u32 %v64, 7
  %v66 = vsub.s32 0, %v65
  %v67 = vrot.slane %v62, %v66
  %v100 = vunpack.c.l.b16 %v15
  %v101 = vunpack.c.l.b16 %v16
  %v102 = vunpack.c.l.b16 %v17
  %v103 = vunpack.c.l.b16 %v18
  %v104 = vunpack.c.l.b16 %v19
  %v105 = vunpack.c.l.b16 %v20
  %v106 = vunpack.c.l.b16 %v21
  %v107 = vunpack.c.l.b16 %v22
  %v108 = vunpack.c.l.b16 %v23
  %v109 = vunpack.c.l.b16 %v24
  %v110 = vunpack.c.l.b16 %v25
  %v111 = vunpack.c.l.b16 %v26
  %v112 = vunpack.c.l.b16 %v27
  %v113 = vunpack.c.l.b16 %v28
  %v114 = vunpack.c.l.b16 %v29
  %v115 = vunpack.c.l.b16 %v30
  %v116 = vunpack.c.l.b16 %v31
  %v117 = vunpack.c.l.b16 %v32
  %v118 = vunpack.c.l.b16 %v33
  %v119 = vunpack.c.l.b16 %v34
  %v120 = vunpack.c.l.b16 %v35
  %v121 = vunpack.c.l.b16 %v36
  %v122 = vunpack.c.l.b16 %v37
  %v123 = vunpack.c.l.b16 %v38
  %v124 = vunpack.c.l.b16 %v39
  %v125 = vunpack.c.l.b16 %v40
  %v126 = vunpack.c.l.b16 %v41
  %v127 = vunpack.c.l.b16 %v42
  %v128 = vunpack.c.l.b16 %v43
  %v129 = vunpack.c.l.b16 %v44
  %v130 = vunpack.c.l.b16 %v45
  %v131 = vpack.c.b16 %v101, %v100
  %v132 = vpack.c.b16 %v103, %v102
  %v133 = vpack.c.b16 %v105, %v104
  %v134 = vpack.c.b16 %v107, %v106
  %v135 = vpack.c.b16 %v109, %v108
  %v136 = vpack.c.b16 %v111, %v110
  %v137 = vpack.c.b16 %v113, %v112
  %v138 = vpack.c.b16 %v115, %v114
  %v139 = vpack.c.b16 %v117, %v116
  %v140 = vpack.c.b16 %v119, %v118
  %v141 = vpack.c.b16 %v121, %v120
  %v142 = vpack.c.b16 %v123, %v122
  %v143 = vpack.c.b16 %v125, %v124
  %v144 = vpack.c.b16 %v127, %v126
  %v145 = vpack.c.b16 %v129, %v128
  %v146 = vpack.c.b16 %v130, %v130
  %v179 = vunpack.c.l.b16 %v46
  %v180 = vunpack.c.l.b16 %v47
  %v181 = vunpack.c.l.b16 %v48
  %v182 = vunpack.c.l.b16 %v49
  %v183 = vunpack.c.l.b16 %v50
  %v184 = vunpack.c.l.b16 %v51
  %v185 = vunpack.c.l.b16 %v52
  %v186 = vunpack.c.l.b16 %v53
  %v187 = vunpack.c.l.b16 %v54
  %v188 = vunpack.c.l.b16 %v55
  %v189 = vunpack.c.l.b16 %v56
  %v190 = vunpack.c.l.b16 %v57
  %v191 = vunpack.c.l.b16 %v58
  %v192 = vunpack.c.l.b16 %v59
  %v193 = vunpack.c.l.b16 %v60
  %v194 = vunpack.c.l.b16 %v61
  %v195 = vpack.c.b16 %v180, %v179
  %v196 = vpack.c.b16 %v182, %v181
  %v197 = vpack.c.b16 %v184, %v183
  %v198 = vpack.c.b16 %v186, %v185
  %v199 = vpack.c.b16 %v188, %v187
  %v200 = vpack.c.b16 %v190, %v189
  %v201 = vpack.c.b16 %v192, %v191
  %v202 = vpack.c.b16 %v194, %v193
  %211 = vmatprep.subr.bf16.mxu0 0
  %212 = vmatpush1.bf16.msra.mxu0 %v195
  %213 = vmatprep.subr.bf16.mxu0 0
  %214 = vmatpush1.bf16.msra.mxu0 %v196
  %215 = vmatprep.subr.bf16.mxu0 0
  %216 = vmatpush1.bf16.msra.mxu0 %v197
  %217 = vmatprep.subr.bf16.mxu0 0
  %218 = vmatpush1.bf16.msra.mxu0 %v198
  %219 = vmatprep.subr.bf16.mxu0 0
  %220 = vmatpush1.bf16.msra.mxu0 %v199
  %221 = vmatprep.subr.bf16.mxu0 0
  %222 = vmatpush1.bf16.msra.mxu0 %v200
  %223 = vmatprep.subr.bf16.mxu0 0
  %224 = vmatpush1.bf16.msra.mxu0 %v201
  %225 = vmatprep.subr.bf16.mxu0 0
  %226 = vmatpush1.bf16.msra.mxu0 %v202
  %227 = vmatprep.subr.bf16.mxu0 0
  %228 = vmatpush1.bf16.msra.mxu0 0
  %229 = vmatprep.subr.bf16.mxu0 0
  %230 = vmatpush1.bf16.msra.mxu0 0
  %231 = vmatprep.subr.bf16.mxu0 0
  %232 = vmatpush1.bf16.msra.mxu0 0
  %233 = vmatprep.subr.bf16.mxu0 0
  %234 = vmatpush1.bf16.msra.mxu0 0
  %235 = vmatprep.subr.bf16.mxu0 0
  %236 = vmatpush1.bf16.msra.mxu0 0
  %237 = vmatprep.subr.bf16.mxu0 0
  %238 = vmatpush1.bf16.msra.mxu0 0
  %239 = vmatprep.subr.bf16.mxu0 0
  %240 = vmatpush1.bf16.msra.mxu0 0
  %241 = vmatprep.subr.bf16.mxu0 0
  %242 = vmatpush1.bf16.msra.mxu0 0
  %243 = vmatprep.mubr.bf16.mxu0 0
  %244 = vmatmul.mubr.bf16.gmra.mrb[0].mxu0 %v131
  %v245 = vpop.f32.mrb[0].mxu0
  %v246 = vadd.f32 %v67, %v245
  %v247 = vpop.f32.mrb[0].mxu0
  %v248 = vpop.f32.mrb[0].mxu0
  %v249 = vadd.f32 %v67, %v248
  %v250 = vpop.f32.mrb[0].mxu0
  %251 = vmatprep.mubr.bf16.mxu0 0
  %252 = vmatmul.mubr.bf16.gmra.mrb[0].mxu0 %v132
  %v253 = vpop.f32.mrb[0].mxu0
  %v254 = vadd.f32 %v67, %v253
  %v255 = vpop.f32.mrb[0].mxu0
  %v256 = vpop.f32.mrb[0].mxu0
  %v257 = vadd.f32 %v67, %v256
  %v258 = vpop.f32.mrb[0].mxu0
  %259 = vmatprep.mubr.bf16.mxu0 0
  %260 = vmatmul.mubr.bf16.gmra.mrb[0].mxu0 %v133
  %v261 = vpop.f32.mrb[0].mxu0
  %v262 = vadd.f32 %v67, %v261
  %v263 = vpop.f32.mrb[0].mxu0
  %v264 = vpop.f32.mrb[0].mxu0
  %v265 = vadd.f32 %v67, %v264
  %v266 = vpop.f32.mrb[0].mxu0
  %267 = vmatprep.mubr.bf16.mxu0 0
  %268 = vmatmul.mubr.bf16.gmra.mrb[0].mxu0 %v134
  %v269 = vpop.f32.mrb[0].mxu0
  %v270 = vadd.f32 %v67, %v269
  %v271 = vpop.f32.mrb[0].mxu0
  %v272 = vpop.f32.mrb[0].mxu0
  %v273 = vadd.f32 %v67, %v272
  %v274 = vpop.f32.mrb[0].mxu0
  %275 = vmatprep.mubr.bf16.mxu0 0
  %276 = vmatmul.mubr.bf16.gmra.mrb[0].mxu0 %v135
  %v277 = vpop.f32.mrb[0].mxu0
  %v278 = vadd.f32 %v67, %v277
  %v279 = vpop.f32.mrb[0].mxu0
  %v280 = vpop.f32.mrb[0].mxu0
  %v281 = vadd.f32 %v67, %v280
  %v282 = vpop.f32.mrb[0].mxu0
  %283 = vmatprep.mubr.bf16.mxu0 0
  %284 = vmatmul.mubr.bf16.gmra.mrb[0].mxu0 %v136
  %v285 = vpop.f32.mrb[0].mxu0
  %v286 = vadd.f32 %v67, %v285
  %v287 = vpop.f32.mrb[0].mxu0
  %v288 = vpop.f32.mrb[0].mxu0
  %v289 = vadd.f32 %v67, %v288
  %v290 = vpop.f32.mrb[0].mxu0
  %291 = vmatprep.mubr.bf16.mxu0 0
  %292 = vmatmul.mubr.bf16.gmra.mrb[0].mxu0 %v137
  %v293 = vpop.f32.mrb[0].mxu0
  %v294 = vadd.f32 %v67, %v293
  %v295 = vpop.f32.mrb[0].mxu0
  %v296 = vpop.f32.mrb[0].mxu0
  %v297 = vadd.f32 %v67, %v296
  %v298 = vpop.f32.mrb[0].mxu0
  %299 = vmatprep.mubr.bf16.mxu0 0
  %300 = vmatmul.mubr.bf16.gmra.mrb[0].mxu0 %v138
  %v301 = vpop.f32.mrb[0].mxu0
  %v302 = vadd.f32 %v67, %v301
  %v303 = vpop.f32.mrb[0].mxu0
  %v304 = vpop.f32.mrb[0].mxu0
  %v305 = vadd.f32 %v67, %v304
  %v306 = vpop.f32.mrb[0].mxu0
  %307 = vmatprep.mubr.bf16.mxu0 0
  %308 = vmatmul.mubr.bf16.gmra.mrb[0].mxu0 %v139
  %v309 = vpop.f32.mrb[0].mxu0
  %v310 = vadd.f32 %v67, %v309
  %v311 = vpop.f32.mrb[0].mxu0
  %v312 = vpop.f32.mrb[0].mxu0
  %v313 = vadd.f32 %v67, %v312
  %v314 = vpop.f32.mrb[0].mxu0
  %315 = vmatprep.mubr.bf16.mxu0 0
  %316 = vmatmul.mubr.bf16.gmra.mrb[0].mxu0 %v140
  %v317 = vpop.f32.mrb[0].mxu0
  %v318 = vadd.f32 %v67, %v317
  %v319 = vpop.f32.mrb[0].mxu0
  %v320 = vpop.f32.mrb[0].mxu0
  %v321 = vadd.f32 %v67, %v320
  %v322 = vpop.f32.mrb[0].mxu0
  %323 = vmatprep.mubr.bf16.mxu0 0
  %324 = vmatmul.mubr.bf16.gmra.mrb[0].mxu0 %v141
  %v325 = vpop.f32.mrb[0].mxu0
  %v326 = vadd.f32 %v67, %v325
  %v327 = vpop.f32.mrb[0].mxu0
  %v328 = vpop.f32.mrb[0].mxu0
  %v329 = vadd.f32 %v67, %v328
  %v330 = vpop.f32.mrb[0].mxu0
  %331 = vmatprep.mubr.bf16.mxu0 0
  %332 = vmatmul.mubr.bf16.gmra.mrb[0].mxu0 %v142
  %v333 = vpop.f32.mrb[0].mxu0
  %v334 = vadd.f32 %v67, %v333
  %v335 = vpop.f32.mrb[0].mxu0
  %v336 = vpop.f32.mrb[0].mxu0
  %v337 = vadd.f32 %v67, %v336
  %v338 = vpop.f32.mrb[0].mxu0
  %339 = vmatprep.mubr.bf16.mxu0 0
  %340 = vmatmul.mubr.bf16.gmra.mrb[0].mxu0 %v143
  %v341 = vpop.f32.mrb[0].mxu0
  %v342 = vadd.f32 %v67, %v341
  %v343 = vpop.f32.mrb[0].mxu0
  %v344 = vpop.f32.mrb[0].mxu0
  %v345 = vadd.f32 %v67, %v344
  %v346 = vpop.f32.mrb[0].mxu0
  %347 = vmatprep.mubr.bf16.mxu0 0
  %348 = vmatmul.mubr.bf16.gmra.mrb[0].mxu0 %v144
  %v349 = vpop.f32.mrb[0].mxu0
  %v350 = vadd.f32 %v67, %v349
  %v351 = vpop.f32.mrb[0].mxu0
  %v352 = vpop.f32.mrb[0].mxu0
  %v353 = vadd.f32 %v67, %v352
  %v354 = vpop.f32.mrb[0].mxu0
  %355 = vmatprep.mubr.bf16.mxu0 0
  %356 = vmatmul.mubr.bf16.gmra.mrb[0].mxu0 %v145
  %v357 = vpop.f32.mrb[0].mxu0
  %v358 = vadd.f32 %v67, %v357
  %v359 = vpop.f32.mrb[0].mxu0
  %v360 = vpop.f32.mrb[0].mxu0
  %v361 = vadd.f32 %v67, %v360
  %v362 = vpop.f32.mrb[0].mxu0
  %363 = vmatprep.mubr.bf16.mxu0 0
  %364 = vmatmul.mubr.bf16.gmra.mrb[0].mxu0 %v146
  %v365 = vpop.f32.mrb[0].mxu0
  %v366 = vadd.f32 %v67, %v365
  %v367 = vpop.f32.mrb[0].mxu0
  %v368 = vpop.f32.mrb[0].mxu0
  %v369 = vpop.f32.mrb[0].mxu0
  %370 = vdwg.mxu0
  %v371 = vmax.f32 %v246, 0.0
  %v372 = vmax.f32 %v249, 0.0
  %v373 = vmax.f32 %v254, 0.0
  %v374 = vmax.f32 %v257, 0.0
  %v375 = vmax.f32 %v262, 0.0
  %v376 = vmax.f32 %v265, 0.0
  %v377 = vmax.f32 %v270, 0.0
  %v378 = vmax.f32 %v273, 0.0
  %v379 = vmax.f32 %v278, 0.0
  %v380 = vmax.f32 %v281, 0.0
  %v381 = vmax.f32 %v286, 0.0
  %v382 = vmax.f32 %v289, 0.0
  %v383 = vmax.f32 %v294, 0.0
  %v384 = vmax.f32 %v297, 0.0
  %v385 = vmax.f32 %v302, 0.0
  %v386 = vmax.f32 %v305, 0.0
  %v387 = vmax.f32 %v310, 0.0
  %v388 = vmax.f32 %v313, 0.0
  %v389 = vmax.f32 %v318, 0.0
  %v390 = vmax.f32 %v321, 0.0
  %v391 = vmax.f32 %v326, 0.0
  %v392 = vmax.f32 %v329, 0.0
  %v393 = vmax.f32 %v334, 0.0
  %v394 = vmax.f32 %v337, 0.0
  %v395 = vmax.f32 %v342, 0.0
  %v396 = vmax.f32 %v345, 0.0
  %v397 = vmax.f32 %v350, 0.0
  %v398 = vmax.f32 %v353, 0.0
  %v399 = vmax.f32 %v358, 0.0
  %v400 = vmax.f32 %v361, 0.0
  %v401 = vmax.f32 %v366, 0.0
  %v402 = vpack.c.bf16 %v372, %v371
  %v403 = vpack.c.bf16 %v374, %v373
  %v404 = vpack.c.bf16 %v376, %v375
  %v405 = vpack.c.bf16 %v378, %v377
  %v406 = vpack.c.bf16 %v380, %v379
  %v407 = vpack.c.bf16 %v382, %v381
  %v408 = vpack.c.bf16 %v384, %v383
  %v409 = vpack.c.bf16 %v386, %v385
  %v410 = vpack.c.bf16 %v388, %v387
  %v411 = vpack.c.bf16 %v390, %v389
  %v412 = vpack.c.bf16 %v392, %v391
  %v413 = vpack.c.bf16 %v394, %v393
  %v414 = vpack.c.bf16 %v396, %v395
  %v415 = vpack.c.bf16 %v398, %v397
  %v416 = vpack.c.bf16 %v400, %v399
  %v417 = vpack.c.bf16 %v401, %v401
  %v434 = vunpack.c.l.b16 %v402
  %v435 = vunpack.c.h.b16 %v402
  %v436 = vunpack.c.l.b16 %v403
  %v437 = vunpack.c.h.b16 %v403
  %v438 = vunpack.c.l.b16 %v404
  %v439 = vunpack.c.h.b16 %v404
  %v440 = vunpack.c.l.b16 %v405
  %v441 = vunpack.c.h.b16 %v405
  %v442 = vunpack.c.l.b16 %v406
  %v443 = vunpack.c.h.b16 %v406
  %v444 = vunpack.c.l.b16 %v407
  %v445 = vunpack.c.h.b16 %v407
  %v446 = vunpack.c.l.b16 %v408
  %v447 = vunpack.c.h.b16 %v408
  %v448 = vunpack.c.l.b16 %v409
  %v449 = vunpack.c.h.b16 %v409
  %v450 = vunpack.c.l.b16 %v410
  %v451 = vunpack.c.h.b16 %v410
  %v452 = vunpack.c.l.b16 %v411
  %v453 = vunpack.c.h.b16 %v411
  %v454 = vunpack.c.l.b16 %v412
  %v455 = vunpack.c.h.b16 %v412
  %v456 = vunpack.c.l.b16 %v413
  %v457 = vunpack.c.h.b16 %v413
  %v458 = vunpack.c.l.b16 %v414
  %v459 = vunpack.c.h.b16 %v414
  %v460 = vunpack.c.l.b16 %v415
  %v461 = vunpack.c.h.b16 %v415
  %v462 = vunpack.c.l.b16 %v416
  %v463 = vunpack.c.h.b16 %v416
  %v464 = vunpack.c.l.b16 %v417
  %v465 = vpack.c.b16 %v434, %v434
  %v466 = vpack.c.b16 %v435, %v435
  %v467 = vpack.c.b16 %v436, %v436
  %v468 = vpack.c.b16 %v437, %v437
  %v469 = vpack.c.b16 %v438, %v438
  %v470 = vpack.c.b16 %v439, %v439
  %v471 = vpack.c.b16 %v440, %v440
  %v472 = vpack.c.b16 %v441, %v441
  %v473 = vpack.c.b16 %v442, %v442
  %v474 = vpack.c.b16 %v443, %v443
  %v475 = vpack.c.b16 %v444, %v444
  %v476 = vpack.c.b16 %v445, %v445
  %v477 = vpack.c.b16 %v446, %v446
  %v478 = vpack.c.b16 %v447, %v447
  %v479 = vpack.c.b16 %v448, %v448
  %v480 = vpack.c.b16 %v449, %v449
  %v481 = vpack.c.b16 %v450, %v450
  %v482 = vpack.c.b16 %v451, %v451
  %v483 = vpack.c.b16 %v452, %v452
  %v484 = vpack.c.b16 %v453, %v453
  %v485 = vpack.c.b16 %v454, %v454
  %v486 = vpack.c.b16 %v455, %v455
  %v487 = vpack.c.b16 %v456, %v456
  %v488 = vpack.c.b16 %v457, %v457
  %v489 = vpack.c.b16 %v458, %v458
  %v490 = vpack.c.b16 %v459, %v459
  %v491 = vpack.c.b16 %v460, %v460
  %v492 = vpack.c.b16 %v461, %v461
  %v493 = vpack.c.b16 %v462, %v462
  %v494 = vpack.c.b16 %v463, %v463
  %v495 = vpack.c.b16 %v464, %v464
  %527 = vst [vmem:[%s3] sm:$0xf] %v465
  %528 = vst [vmem:[%s3 + $0x4] sm:$0xf] %v466
  %529 = vst [vmem:[%s3 + $0x8] sm:$0xf] %v467
  %530 = vst [vmem:[%s3 + $0xc] sm:$0xf] %v468
  %531 = vst [vmem:[%s3 + $0x10] sm:$0xf] %v469
  %532 = vst [vmem:[%s3 + $0x14] sm:$0xf] %v470
  %533 = vst [vmem:[%s3 + $0x18] sm:$0xf] %v471
  %534 = vst [vmem:[%s3 + $0x1c] sm:$0xf] %v472
  %535 = vst [vmem:[%s3 + $0x20] sm:$0xf] %v473
  %536 = vst [vmem:[%s3 + $0x24] sm:$0xf] %v474
  %537 = vst [vmem:[%s3 + $0x28] sm:$0xf] %v475
  %538 = vst [vmem:[%s3 + $0x2c] sm:$0xf] %v476
  %539 = vst [vmem:[%s3 + $0x30] sm:$0xf] %v477
  %540 = vst [vmem:[%s3 + $0x34] sm:$0xf] %v478
  %541 = vst [vmem:[%s3 + $0x38] sm:$0xf] %v479
  %542 = vst [vmem:[%s3 + $0x3c] sm:$0xf] %v480
  %543 = vst [vmem:[%s3 + $0x40] sm:$0xf] %v481
  %544 = vst [vmem:[%s3 + $0x44] sm:$0xf] %v482
  %545 = vst [vmem:[%s3 + $0x48] sm:$0xf] %v483
  %546 = vst [vmem:[%s3 + $0x4c] sm:$0xf] %v484
  %547 = vst [vmem:[%s3 + $0x50] sm:$0xf] %v485
  %548 = vst [vmem:[%s3 + $0x54] sm:$0xf] %v486
  %549 = vst [vmem:[%s3 + $0x58] sm:$0xf] %v487
  %550 = vst [vmem:[%s3 + $0x5c] sm:$0xf] %v488
  %551 = vst [vmem:[%s3 + $0x60] sm:$0xf] %v489
  %552 = vst [vmem:[%s3 + $0x64] sm:$0xf] %v490
  %553 = vst [vmem:[%s3 + $0x68] sm:$0xf] %v491
  %554 = vst [vmem:[%s3 + $0x6c] sm:$0xf] %v492
  %555 = vst [vmem:[%s3 + $0x70] sm:$0xf] %v493
  %556 = vst [vmem:[%s3 + $0x74] sm:$0xf] %v494
  %557 = vst [vmem:[%s3 + $0x78] sm:$0x1] %v495
  // Predicated region
  $region14: #{_lambda_.6} parent=0 // pred_check
    _
  $region15: #{_lambda_.6} parent=0 // pred_check_branch
    %559 = sbr.rel (0) target = $region17
  $region16: #{_lambda_.6} parent=0 // pred_region
    _
  $region17: #{_lambda_.6} parent=0 // pred_fallthru
    _
  // Predicated region
  $region18: #{_lambda_.6} parent=0 // pred_check
    _
  $region19: #{_lambda_.6} parent=0 // pred_check_branch
    %561 = sbr.rel (0) target = $region21
  $region20: #{_lambda_.6} parent=0 // pred_region
    _
  $region21: #{_lambda_.6} parent=0 // pred_fallthru
    _

// kernel: _lambda_.4
$region0: #{_lambda_.4}
  #allocation0 [shape = 'u32[]', space=smem, size = 0x4, offset = 0x4, fixed_abs, tag = 'smem constant byte address 0x4 - core index']
  #allocation1 [shape = 'u32[144,128]{1,0:T(1,128)}', space=vmem, size = 0x12000, scoped, tag = 'internal scratch']
  %s0 = inlined_call_operand.vmem [shape: bf16[2,32], index: 0, kind: input, shape index: {}]
  %s1 = inlined_call_operand.vmem [shape: bf16[32,512], index: 1, kind: input, shape index: {}]
  %s2 = inlined_call_operand.vmem [shape: f32[1,512], index: 2, kind: input, shape index: {}]
  %s3 = inlined_call_operand.vmem [shape: bf16[512,6400], index: 3, kind: input, shape index: {}]
  %s4 = inlined_call_operand.vmem [shape: f32[1,6400], index: 4, kind: input, shape index: {}]
  %s5 = inlined_call_operand.vmem [shape: bf16[2,6400], index: 5, kind: output, shape index: {}]
  %s6 = sld [smem:[#allocation0]]
  $region79: #{_lambda_.4} parent=0
    _
  %s8 = ssub.s32 1, %s6
  %s9 = scalar_select 0, %s8, %s6
  $region1: #{_lambda_.4} parent=0
    #allocation2 [shape = 'u8[6553600]{0}', space=vmem, size = 0x640000, scoped, tag = 'input window, operand 3']
    loop: start=0, step=1, limit=4
    $region2: #{_lambda_.4} parent=1 // loop_pre_header
      _
    $region3: #{_lambda_.4} parent=1 // loop_header
      %s11 = sphi 0, %s15
      %p12 = scmp.ge.s32.totalorder %s11, 4
      %s19 = sphi 0, %s19
      %s21 = sphi 0, %s19
      %s22 = sphi 0, %s21
      %s36 = sphi 0, %s22
      %s40 = sphi 0, %s40
      %s42 = sphi 0, %s40
      %s43 = sphi 0, %s42
      %s57 = sphi 0, %s43
      %s61 = sphi 0, %s61
      %s63 = sphi 0, %s61
      %s64 = sphi 0, %s63
      %s78 = sphi 0, %s64
      %s84 = sphi 0, %s86
      %s87 = sphi 0, %s84
      %s88 = sphi 0, %s87
      %s104 = sphi 0, %s88
      %s110 = sphi 0, %s112
      %s113 = sphi 0, %s110
      %s114 = sphi 0, %s113
      %s130 = sphi 0, %s114
      %s136 = sphi 0, %s138
      %s139 = sphi 0, %s136
      %s140 = sphi 0, %s139
      %s156 = sphi 0, %s140
    $region4: #{_lambda_.4} parent=1 // loop_header_branch
      %14 = sbr.rel (%p12) target = $region8
    $region5: #{_lambda_.4} parent=1 // loop_body
      %s16 = ssub.s32 %s11, 1
      %s17 = ssub.s32 %s11, 2
      %s18 = sadd.s32 %s11, 1
      %s20 = sadd.s32 %s19, 1
      %p23 = scmp.eq.s32.totalorder %s11, 1
      %p24 = scmp.ne.s32.totalorder %s19, %s21
      %p25 = scmp.eq.s32.totalorder %s11, 0
      %p26 = por %p24, %p25
      %p27 = scmp.ne.s32.totalorder %s19, %s21
      %p28 = scmp.eq.s32.totalorder %s16, 1
      %p29 = por %p27, %p28
      %p30 = scmp.ne.s32.totalorder %s21, %s22
      %p31 = scmp.eq.s32.totalorder %s16, 0
      %p32 = por %p30, %p31
      %p33 = scmp.ne.s32.totalorder %s21, %s22
      %p34 = scmp.eq.s32.totalorder %s17, 1
      %p35 = por %p33, %p34
      %p37 = scmp.ne.s32.totalorder %s22, %s36
      %p38 = scmp.eq.s32.totalorder %s17, 0
      %p39 = por %p37, %p38
      %s41 = sadd.s32 %s40, 1
      %p44 = scmp.eq.s32.totalorder %s11, 1
      %p45 = scmp.ne.s32.totalorder %s40, %s42
      %p46 = scmp.eq.s32.totalorder %s11, 0
      %p47 = por %p45, %p46
      %p48 = scmp.ne.s32.totalorder %s40, %s42
      %p49 = scmp.eq.s32.totalorder %s16, 1
      %p50 = por %p48, %p49
      %p51 = scmp.ne.s32.totalorder %s42, %s43
      %p52 = scmp.eq.s32.totalorder %s16, 0
      %p53 = por %p51, %p52
      %p54 = scmp.ne.s32.totalorder %s42, %s43
      %p55 = scmp.eq.s32.totalorder %s17, 1
      %p56 = por %p54, %p55
      %p58 = scmp.ne.s32.totalorder %s43, %s57
      %p59 = scmp.eq.s32.totalorder %s17, 0
      %p60 = por %p58, %p59
      %s62 = sadd.s32 %s61, 1
      %p65 = scmp.eq.s32.totalorder %s11, 1
      %p66 = scmp.ne.s32.totalorder %s61, %s63
      %p67 = scmp.eq.s32.totalorder %s11, 0
      %p68 = por %p66, %p67
      %p69 = scmp.ne.s32.totalorder %s61, %s63
      %p70 = scmp.eq.s32.totalorder %s16, 1
      %p71 = por %p69, %p70
      %p72 = scmp.ne.s32.totalorder %s63, %s64
      %p73 = scmp.eq.s32.totalorder %s16, 0
      %p74 = por %p72, %p73
      %p75 = scmp.ne.s32.totalorder %s63, %s64
      %p76 = scmp.eq.s32.totalorder %s17, 1
      %p77 = por %p75, %p76
      %p79 = scmp.ne.s32.totalorder %s64, %s78
      %p80 = scmp.eq.s32.totalorder %s17, 0
      %p81 = por %p79, %p80
      %s82 = ssub.s32 %s11, %s18
      %p83 = scmp.eq.s32.totalorder %s82, 0
      %s85 = sadd.s32 %s84, 1
      %s86 = scalar_select %p83, %s84, %s85
      %p89 = pneg %p83
      %p90 = scmp.eq.s32.totalorder %s11, 1
      %p91 = por %p89, %p90
      %p92 = scmp.ne.s32.totalorder %s84, %s87
      %p93 = scmp.eq.s32.totalorder %s11, 0
      %p94 = por %p92, %p93
      %p95 = scmp.ne.s32.totalorder %s84, %s87
      %p96 = scmp.eq.s32.totalorder %s16, 1
      %p97 = por %p95, %p96
      %p98 = scmp.ne.s32.totalorder %s87, %s88
      %p99 = scmp.eq.s32.totalorder %s16, 0
      %p100 = por %p98, %p99
      %p101 = scmp.ne.s32.totalorder %s87, %s88
      %p102 = scmp.eq.s32.totalorder %s17, 1
      %p103 = por %p101, %p102
      %p105 = scmp.ne.s32.totalorder %s88, %s104
      %p106 = scmp.eq.s32.totalorder %s17, 0
      %p107 = por %p105, %p106
      %s108 = ssub.s32 %s11, %s18
      %p109 = scmp.eq.s32.totalorder %s108, 0
      %s111 = sadd.s32 %s110, 1
      %s112 = scalar_select %p109, %s110, %s111
      %p115 = pneg %p109
      %p116 = scmp.eq.s32.totalorder %s11, 1
      %p117 = por %p115, %p116
      %p118 = scmp.ne.s32.totalorder %s110, %s113
      %p119 = scmp.eq.s32.totalorder %s11, 0
      %p120 = por %p118, %p119
      %p121 = scmp.ne.s32.totalorder %s110, %s113
      %p122 = scmp.eq.s32.totalorder %s16, 1
      %p123 = por %p121, %p122
      %p124 = scmp.ne.s32.totalorder %s113, %s114
      %p125 = scmp.eq.s32.totalorder %s16, 0
      %p126 = por %p124, %p125
      %p127 = scmp.ne.s32.totalorder %s113, %s114
      %p128 = scmp.eq.s32.totalorder %s17, 1
      %p129 = por %p127, %p128
      %p131 = scmp.ne.s32.totalorder %s114, %s130
      %p132 = scmp.eq.s32.totalorder %s17, 0
      %p133 = por %p131, %p132
      %s134 = ssub.s32 %s11, %s18
      %p135 = scmp.eq.s32.totalorder %s134, 0
      %s137 = sadd.s32 %s136, 1
      %s138 = scalar_select %p135, %s136, %s137
      %p141 = pneg %p135
      %p142 = scmp.eq.s32.totalorder %s11, 1
      %p143 = por %p141, %p142
      %p144 = scmp.ne.s32.totalorder %s136, %s139
      %p145 = scmp.eq.s32.totalorder %s11, 0
      %p146 = por %p144, %p145
      %p147 = scmp.ne.s32.totalorder %s136, %s139
      %p148 = scmp.eq.s32.totalorder %s16, 1
      %p149 = por %p147, %p148
      %p150 = scmp.ne.s32.totalorder %s139, %s140
      %p151 = scmp.eq.s32.totalorder %s16, 0
      %p152 = por %p150, %p151
      %p153 = scmp.ne.s32.totalorder %s139, %s140
      %p154 = scmp.eq.s32.totalorder %s17, 1
      %p155 = por %p153, %p154
      %p157 = scmp.ne.s32.totalorder %s140, %s156
      %p158 = scmp.eq.s32.totalorder %s17, 0
      %p159 = por %p157, %p158
      %p160 = scmp.le.s32.totalorder 1, %s11
      %p161 = scmp.lt.s32.totalorder %s11, 3
      %p162 = pnand %p160, %p161
      %p163 = pneg %p162
      // Predicated region
      $region9: #{_lambda_.4} parent=5 // pred_check
        _
      $region10: #{_lambda_.4} parent=5 // pred_check_branch
        %165 = sbr.rel (%p162) target = $region12
      $region11: #{_lambda_.4} parent=5 // pred_region
        %s166 = ssub.s32 %s11, 1
        // Predicated region
        $region13: #{_lambda_.4} parent=11 // pred_check
          %p167 = pneg %p32
        $region14: #{_lambda_.4} parent=11 // pred_check_branch
          %169 = sbr.rel (%p167) target = $region16
        $region15: #{_lambda_.4} parent=11 // pred_region
          _
        $region16: #{_lambda_.4} parent=11 // pred_fallthru
          _
        // Predicated region
        $region17: #{_lambda_.4} parent=11 // pred_check
          %p170 = pneg %p53
        $region18: #{_lambda_.4} parent=11 // pred_check_branch
          %172 = sbr.rel (%p170) target = $region20
        $region19: #{_lambda_.4} parent=11 // pred_region
          _
        $region20: #{_lambda_.4} parent=11 // pred_fallthru
          _
        // Predicated region
        $region21: #{_lambda_.4} parent=11 // pred_check
          %p173 = pneg %p74
        $region22: #{_lambda_.4} parent=11 // pred_check_branch
          %175 = sbr.rel (%p173) target = $region24
        $region23: #{_lambda_.4} parent=11 // pred_region
          _
        $region24: #{_lambda_.4} parent=11 // pred_fallthru
          _
      $region12: #{_lambda_.4} parent=5 // pred_fallthru
        _
      %p176 = scmp.lt.s32.totalorder %s11, 2
      // Predicated region
      $region25: #{_lambda_.4} parent=5 // pred_check
        %p177 = pneg %p176
      $region26: #{_lambda_.4} parent=5 // pred_check_branch
        %179 = sbr.rel (%p177) target = $region28
      $region27: #{_lambda_.4} parent=5 // pred_region
        // Predicated region
        $region29: #{_lambda_.4} parent=27 // pred_check
          %p180 = pneg %p94
        $region30: #{_lambda_.4} parent=27 // pred_check_branch
          %182 = sbr.rel (%p180) target = $region32
        $region31: #{_lambda_.4} parent=27 // pred_region
          %s183 = sand.u32 %s84, 1
          %s184 = sand.u32 %s84, 1
          %s185 = smul.addr %s184, 6400
          %s186 = scalar_lea.vmem [#allocation2], %s185
          %s187 = smul.u32 25, %s11
          %s188 = smul.addr %s187, 4
          %s189 = scalar_lea.vmem %s3, %s188
          // Predicated region
          $region33: #{_lambda_.4} parent=31 // pred_check
            _
          $region34: #{_lambda_.4} parent=31 // pred_check_branch
            %191 = sbr.rel (0) target = $region36
          $region35: #{_lambda_.4} parent=31 // pred_region
            // Predicated region
            $region37: #{_lambda_.4} parent=35 // pred_check
              _
            $region38: #{_lambda_.4} parent=35 // pred_check_branch
              %193 = sbr.rel (0) target = $region40
            $region39: #{_lambda_.4} parent=35 // pred_region
              %s194 = scalar_lea.vmem %s189, 96
              %s195 = scalar_lea.vmem %s186, 96 [#allocation2]
              loop: start=0, step=1, limit=1
              $region41: #{_lambda_.4} parent=39 // loop_pre_header
                _
              $region42: #{_lambda_.4} parent=39 // loop_header
                %s197 = sphi 0, %s201
                %p198 = scmp.ge.s32.totalorder %s197, 1
                %s202 = sphi %s189, %s189
                %s203 = sphi %s186, %s186
              $region43: #{_lambda_.4} parent=39 // loop_header_branch
                %200 = sbr.rel (%p198) target = $region47
              $region44: #{_lambda_.4} parent=39 // loop_body
                %v204 = vld [vmem:[%s202] sm:$0xff]
                %205 = vst [vmem:[%s203] sm:$0xff] %v204
                %v206 = vld [vmem:[%s202 + $0x8] sm:$0xff]
                %207 = vst [vmem:[%s203 + $0x8] sm:$0xff] %v206
                %v208 = vld [vmem:[%s202 + $0x10] sm:$0xff]
                %209 = vst [vmem:[%s203 + $0x10] sm:$0xff] %v208
                %v210 = vld [vmem:[%s202 + $0x18] sm:$0xff]
                %211 = vst [vmem:[%s203 + $0x18] sm:$0xff] %v210
                %v212 = vld [vmem:[%s202 + $0x20] sm:$0xff]
                %213 = vst [vmem:[%s203 + $0x20] sm:$0xff] %v212
                %v214 = vld [vmem:[%s202 + $0x28] sm:$0xff]
                %215 = vst [vmem:[%s203 + $0x28] sm:$0xff] %v214
                %v216 = vld [vmem:[%s202 + $0x30] sm:$0xff]
                %217 = vst [vmem:[%s203 + $0x30] sm:$0xff] %v216
                %v218 = vld [vmem:[%s202 + $0x38] sm:$0xff]
                %219 = vst [vmem:[%s203 + $0x38] sm:$0xff] %v218
                %v220 = vld [vmem:[%s202 + $0x40] sm:$0xff]
                %221 = vst [vmem:[%s203 + $0x40] sm:$0xff] %v220
                %v222 = vld [vmem:[%s202 + $0x48] sm:$0xff]
                %223 = vst [vmem:[%s203 + $0x48] sm:$0xff] %v222
                %v224 = vld [vmem:[%s202 + $0x50] sm:$0xff]
                %225 = vst [vmem:[%s203 + $0x50] sm:$0xff] %v224
                %v226 = vld [vmem:[%s202 + $0x58] sm:$0xff]
                %227 = vst [vmem:[%s203 + $0x58] sm:$0xff] %v226
                %v228 = vld [vmem:[%s202 + $0xc8] sm:$0xff]
                %229 = vst [vmem:[%s203 + $0x64] sm:$0xff] %v228
                %v230 = vld [vmem:[%s202 + $0xd0] sm:$0xff]
                %231 = vst [vmem:[%s203 + $0x6c] sm:$0xff] %v230
                %v232 = vld [vmem:[%s202 + $0xd8] sm:$0xff]
                %233 = vst [vmem:[%s203 + $0x74] sm:$0xff] %v232
                %v234 = vld [vmem:[%s202 + $0xe0] sm:$0xff]
                %235 = vst [vmem:[%s203 + $0x7c] sm:$0xff] %v234
                %v236 = vld [vmem:[%s202 + $0xe8] sm:$0xff]
                %237 = vst [vmem:[%s203 + $0x84] sm:$0xff] %v236
                %v238 = vld [vmem:[%s202 + $0xf0] sm:$0xff]
                %239 = vst [vmem:[%s203 + $0x8c] sm:$0xff] %v238
                %v240 = vld [vmem:[%s202 + $0xf8] sm:$0xff]
                %241 = vst [vmem:[%s203 + $0x94] sm:$0xff] %v240
                %v242 = vld [vmem:[%s202 + $0x100] sm:$0xff]
                %243 = vst [vmem:[%s203 + $0x9c] sm:$0xff] %v242
                %v244 = vld [vmem:[%s202 + $0x108] sm:$0xff]
                %245 = vst [vmem:[%s203 + $0xa4] sm:$0xff] %v244
                %v246 = vld [vmem:[%s202 + $0x110] sm:$0xff]
                %247 = vst [vmem:[%s203 + $0xac] sm:$0xff] %v246
                %v248 = vld [vmem:[%s202 + $0x118] sm:$0xff]
                %249 = vst [vmem:[%s203 + $0xb4] sm:$0xff] %v248
                %v250 = vld [vmem:[%s202 + $0x120] sm:$0xff]
                %251 = vst [vmem:[%s203 + $0xbc] sm:$0xff] %v250
                %v252 = vld [vmem:[%s202 + $0x190] sm:$0xff]
                %253 = vst [vmem:[%s203 + $0xc8] sm:$0xff] %v252
                %v254 = vld [vmem:[%s202 + $0x198] sm:$0xff]
                %255 = vst [vmem:[%s203 + $0xd0] sm:$0xff] %v254
                %v256 = vld [vmem:[%s202 + $0x1a0] sm:$0xff]
                %257 = vst [vmem:[%s203 + $0xd8] sm:$0xff] %v256
                %v258 = vld [vmem:[%s202 + $0x1a8] sm:$0xff]
                %259 = vst [vmem:[%s203 + $0xe0] sm:$0xff] %v258
                %v260 = vld [vmem:[%s202 + $0x1b0] sm:$0xff]
                %261 = vst [vmem:[%s203 + $0xe8] sm:$0xff] %v260
                %v262 = vld [vmem:[%s202 + $0x1b8] sm:$0xff]
                %263 = vst [vmem:[%s203 + $0xf0] sm:$0xff] %v262
                %v264 = vld [vmem:[%s202 + $0x1c0] sm:$0xff]
                %265 = vst [vmem:[%s203 + $0xf8] sm:$0xff] %v264
                %v266 = vld [vmem:[%s202 + $0x1c8] sm:$0xff]
                %267 = vst [vmem:[%s203 + $0x100] sm:$0xff] %v266
                %v268 = vld [vmem:[%s202 + $0x1d0] sm:$0xff]
                %269 = vst [vmem:[%s203 + $0x108] sm:$0xff] %v268
                %v270 = vld [vmem:[%s202 + $0x1d8] sm:$0xff]
                %271 = vst [vmem:[%s203 + $0x110] sm:$0xff] %v270
                %v272 = vld [vmem:[%s202 + $0x1e0] sm:$0xff]
                %273 = vst [vmem:[%s203 + $0x118] sm:$0xff] %v272
                %v274 = vld [vmem:[%s202 + $0x1e8] sm:$0xff]
                %275 = vst [vmem:[%s203 + $0x120] sm:$0xff] %v274
                %v276 = vld [vmem:[%s202 + $0x258] sm:$0xff]
                %277 = vst [vmem:[%s203 + $0x12c] sm:$0xff] %v276
                %v278 = vld [vmem:[%s202 + $0x260] sm:$0xff]
                %279 = vst [vmem:[%s203 + $0x134] sm:$0xff] %v278
                %v280 = vld [vmem:[%s202 + $0x268] sm:$0xff]
                %281 = vst [vmem:[%s203 + $0x13c] sm:$0xff] %v280
                %v282 = vld [vmem:[%s202 + $0x270] sm:$0xff]
                %283 = vst [vmem:[%s203 + $0x144] sm:$0xff] %v282
                %v284 = vld [vmem:[%s202 + $0x278] sm:$0xff]
                %285 = vst [vmem:[%s203 + $0x14c] sm:$0xff] %v284
                %v286 = vld [vmem:[%s202 + $0x280] sm:$0xff]
                %287 = vst [vmem:[%s203 + $0x154] sm:$0xff] %v286
                %v288 = vld [vmem:[%s202 + $0x288] sm:$0xff]
                %289 = vst [vmem:[%s203 + $0x15c] sm:$0xff] %v288
                %v290 = vld [vmem:[%s202 + $0x290] sm:$0xff]
                %291 = vst [vmem:[%s203 + $0x164] sm:$0xff] %v290
                %v292 = vld [vmem:[%s202 + $0x298] sm:$0xff]
                %293 = vst [vmem:[%s203 + $0x16c] sm:$0xff] %v292
                %v294 = vld [vmem:[%s202 + $0x2a0] sm:$0xff]
                %295 = vst [vmem:[%s203 + $0x174] sm:$0xff] %v294
                %v296 = vld [vmem:[%s202 + $0x2a8] sm:$0xff]
                %297 = vst [vmem:[%s203 + $0x17c] sm:$0xff] %v296
                %v298 = vld [vmem:[%s202 + $0x2b0] sm:$0xff]
                %299 = vst [vmem:[%s203 + $0x184] sm:$0xff] %v298
                %v300 = vld [vmem:[%s202 + $0x320] sm:$0xff]
                %301 = vst [vmem:[%s203 + $0x190] sm:$0xff] %v300
                %v302 = vld [vmem:[%s202 + $0x328] sm:$0xff]
                %303 = vst [vmem:[%s203 + $0x198] sm:$0xff] %v302
                %v304 = vld [vmem:[%s202 + $0x330] sm:$0xff]
                %305 = vst [vmem:[%s203 + $0x1a0] sm:$0xff] %v304
                %v306 = vld [vmem:[%s202 + $0x338] sm:$0xff]
                %307 = vst [vmem:[%s203 + $0x1a8] sm:$0xff] %v306
                %v308 = vld [vmem:[%s202 + $0x340] sm:$0xff]
                %309 = vst [vmem:[%s203 + $0x1b0] sm:$0xff] %v308
                %v310 = vld [vmem:[%s202 + $0x348] sm:$0xff]
                %311 = vst [vmem:[%s203 + $0x1b8] sm:$0xff] %v310
                %v312 = vld [vmem:[%s202 + $0x350] sm:$0xff]
                %313 = vst [vmem:[%s203 + $0x1c0] sm:$0xff] %v312
                %v314 = vld [vmem:[%s202 + $0x358] sm:$0xff]
                %315 = vst [vmem:[%s203 + $0x1c8] sm:$0xff] %v314
                %v316 = vld [vmem:[%s202 + $0x360] sm:$0xff]
                %317 = vst [vmem:[%s203 + $0x1d0] sm:$0xff] %v316
                %v318 = vld [vmem:[%s202 + $0x368] sm:$0xff]
                %319 = vst [vmem:[%s203 + $0x1d8] sm:$0xff] %v318
                %v320 = vld [vmem:[%s202 + $0x370] sm:$0xff]
                %321 = vst [vmem:[%s203 + $0x1e0] sm:$0xff] %v320
                %v322 = vld [vmem:[%s202 + $0x378] sm:$0xff]
                %323 = vst [vmem:[%s203 + $0x1e8] sm:$0xff] %v322
                %v324 = vld [vmem:[%s202 + $0x3e8] sm:$0xff]
                %325 = vst [vmem:[%s203 + $0x1f4] sm:$0xff] %v324
                %v326 = vld [vmem:[%s202 + $0x3f0] sm:$0xff]
                %327 = vst [vmem:[%s203 + $0x1fc] sm:$0xff] %v326
                %v328 = vld [vmem:[%s202 + $0x3f8] sm:$0xff]
                %329 = vst [vmem:[%s203 + $0x204] sm:$0xff] %v328
                %v330 = vld [vmem:[%s202 + $0x400] sm:$0xff]
                %331 = vst [vmem:[%s203 + $0x20c] sm:$0xff] %v330
                %v332 = vld [vmem:[%s202 + $0x408] sm:$0xff]
                %333 = vst [vmem:[%s203 + $0x214] sm:$0xff] %v332
                %v334 = vld [vmem:[%s202 + $0x410] sm:$0xff]
                %335 = vst [vmem:[%s203 + $0x21c] sm:$0xff] %v334
                %v336 = vld [vmem:[%s202 + $0x418] sm:$0xff]
                %337 = vst [vmem:[%s203 + $0x224] sm:$0xff] %v336
                %v338 = vld [vmem:[%s202 + $0x420] sm:$0xff]
                %339 = vst [vmem:[%s203 + $0x22c] sm:$0xff] %v338
                %v340 = vld [vmem:[%s202 + $0x428] sm:$0xff]
                %341 = vst [vmem:[%s203 + $0x234] sm:$0xff] %v340
                %v342 = vld [vmem:[%s202 + $0x430] sm:$0xff]
                %343 = vst [vmem:[%s203 + $0x23c] sm:$0xff] %v342
                %v344 = vld [vmem:[%s202 + $0x438] sm:$0xff]
                %345 = vst [vmem:[%s203 + $0x244] sm:$0xff] %v344
                %v346 = vld [vmem:[%s202 + $0x440] sm:$0xff]
                %347 = vst [vmem:[%s203 + $0x24c] sm:$0xff] %v346
                %v348 = vld [vmem:[%s202 + $0x4b0] sm:$0xff]
                %349 = vst [vmem:[%s203 + $0x258] sm:$0xff] %v348
                %v350 = vld [vmem:[%s202 + $0x4b8] sm:$0xff]
                %351 = vst [vmem:[%s203 + $0x260] sm:$0xff] %v350
                %v352 = vld [vmem:[%s202 + $0x4c0] sm:$0xff]
                %353 = vst [vmem:[%s203 + $0x268] sm:$0xff] %v352
                %v354 = vld [vmem:[%s202 + $0x4c8] sm:$0xff]
                %355 = vst [vmem:[%s203 + $0x270] sm:$0xff] %v354
                %v356 = vld [vmem:[%s202 + $0x4d0] sm:$0xff]
                %357 = vst [vmem:[%s203 + $0x278] sm:$0xff] %v356
                %v358 = vld [vmem:[%s202 + $0x4d8] sm:$0xff]
                %359 = vst [vmem:[%s203 + $0x280] sm:$0xff] %v358
                %v360 = vld [vmem:[%s202 + $0x4e0] sm:$0xff]
                %361 = vst [vmem:[%s203 + $0x288] sm:$0xff] %v360
                %v362 = vld [vmem:[%s202 + $0x4e8] sm:$0xff]
                %363 = vst [vmem:[%s203 + $0x290] sm:$0xff] %v362
                %v364 = vld [vmem:[%s202 + $0x4f0] sm:$0xff]
                %365 = vst [vmem:[%s203 + $0x298] sm:$0xff] %v364
                %v366 = vld [vmem:[%s202 + $0x4f8] sm:$0xff]
                %367 = vst [vmem:[%s203 + $0x2a0] sm:$0xff] %v366
                %v368 = vld [vmem:[%s202 + $0x500] sm:$0xff]
                %369 = vst [vmem:[%s203 + $0x2a8] sm:$0xff] %v368
                %v370 = vld [vmem:[%s202 + $0x508] sm:$0xff]
                %371 = vst [vmem:[%s203 + $0x2b0] sm:$0xff] %v370
                %v372 = vld [vmem:[%s202 + $0x578] sm:$0xff]
                %373 = vst [vmem:[%s203 + $0x2bc] sm:$0xff] %v372
                %v374 = vld [vmem:[%s202 + $0x580] sm:$0xff]
                %375 = vst [vmem:[%s203 + $0x2c4] sm:$0xff] %v374
                %v376 = vld [vmem:[%s202 + $0x588] sm:$0xff]
                %377 = vst [vmem:[%s203 + $0x2cc] sm:$0xff] %v376
                %v378 = vld [vmem:[%s202 + $0x590] sm:$0xff]
                %379 = vst [vmem:[%s203 + $0x2d4] sm:$0xff] %v378
                %v380 = vld [vmem:[%s202 + $0x598] sm:$0xff]
                %381 = vst [vmem:[%s203 + $0x2dc] sm:$0xff] %v380
                %v382 = vld [vmem:[%s202 + $0x5a0] sm:$0xff]
                %383 = vst [vmem:[%s203 + $0x2e4] sm:$0xff] %v382
                %v384 = vld [vmem:[%s202 + $0x5a8] sm:$0xff]
                %385 = vst [vmem:[%s203 + $0x2ec] sm:$0xff] %v384
                %v386 = vld [vmem:[%s202 + $0x5b0] sm:$0xff]
                %387 = vst [vmem:[%s203 + $0x2f4] sm:$0xff] %v386
                %v388 = vld [vmem:[%s202 + $0x5b8] sm:$0xff]
                %389 = vst [vmem:[%s203 + $0x2fc] sm:$0xff] %v388
                %v390 = vld [vmem:[%s202 + $0x5c0] sm:$0xff]
                %391 = vst [vmem:[%s203 + $0x304] sm:$0xff] %v390
                %v392 = vld [vmem:[%s202 + $0x5c8] sm:$0xff]
                %393 = vst [vmem:[%s203 + $0x30c] sm:$0xff] %v392
                %v394 = vld [vmem:[%s202 + $0x5d0] sm:$0xff]
                %395 = vst [vmem:[%s203 + $0x314] sm:$0xff] %v394
                %v396 = vld [vmem:[%s202 + $0x640] sm:$0xff]
                %397 = vst [vmem:[%s203 + $0x320] sm:$0xff] %v396
                %v398 = vld [vmem:[%s202 + $0x648] sm:$0xff]
                %399 = vst [vmem:[%s203 + $0x328] sm:$0xff] %v398
                %v400 = vld [vmem:[%s202 + $0x650] sm:$0xff]
                %401 = vst [vmem:[%s203 + $0x330] sm:$0xff] %v400
                %v402 = vld [vmem:[%s202 + $0x658] sm:$0xff]
                %403 = vst [vmem:[%s203 + $0x338] sm:$0xff] %v402
                %v404 = vld [vmem:[%s202 + $0x660] sm:$0xff]
                %405 = vst [vmem:[%s203 + $0x340] sm:$0xff] %v404
                %v406 = vld [vmem:[%s202 + $0x668] sm:$0xff]
                %407 = vst [vmem:[%s203 + $0x348] sm:$0xff] %v406
                %v408 = vld [vmem:[%s202 + $0x670] sm:$0xff]
                %409 = vst [vmem:[%s203 + $0x350] sm:$0xff] %v408
                %v410 = vld [vmem:[%s202 + $0x678] sm:$0xff]
                %411 = vst [vmem:[%s203 + $0x358] sm:$0xff] %v410
                %v412 = vld [vmem:[%s202 + $0x680] sm:$0xff]
                %413 = vst [vmem:[%s203 + $0x360] sm:$0xff] %v412
                %v414 = vld [vmem:[%s202 + $0x688] sm:$0xff]
                %415 = vst [vmem:[%s203 + $0x368] sm:$0xff] %v414
                %v416 = vld [vmem:[%s202 + $0x690] sm:$0xff]
                %417 = vst [vmem:[%s203 + $0x370] sm:$0xff] %v416
                %v418 = vld [vmem:[%s202 + $0x698] sm:$0xff]
                %419 = vst [vmem:[%s203 + $0x378] sm:$0xff] %v418
                %v420 = vld [vmem:[%s202 + $0x708] sm:$0xff]
                %421 = vst [vmem:[%s203 + $0x384] sm:$0xff] %v420
                %v422 = vld [vmem:[%s202 + $0x710] sm:$0xff]
                %423 = vst [vmem:[%s203 + $0x38c] sm:$0xff] %v422
                %v424 = vld [vmem:[%s202 + $0x718] sm:$0xff]
                %425 = vst [vmem:[%s203 + $0x394] sm:$0xff] %v424
                %v426 = vld [vmem:[%s202 + $0x720] sm:$0xff]
                %427 = vst [vmem:[%s203 + $0x39c] sm:$0xff] %v426
                %v428 = vld [vmem:[%s202 + $0x728] sm:$0xff]
                %429 = vst [vmem:[%s203 + $0x3a4] sm:$0xff] %v428
                %v430 = vld [vmem:[%s202 + $0x730] sm:$0xff]
                %431 = vst [vmem:[%s203 + $0x3ac] sm:$0xff] %v430
                %v432 = vld [vmem:[%s202 + $0x738] sm:$0xff]
                %433 = vst [vmem:[%s203 + $0x3b4] sm:$0xff] %v432
                %v434 = vld [vmem:[%s202 + $0x740] sm:$0xff]
                %435 = vst [vmem:[%s203 + $0x3bc] sm:$0xff] %v434
                %v436 = vld [vmem:[%s202 + $0x748] sm:$0xff]
                %437 = vst [vmem:[%s203 + $0x3c4] sm:$0xff] %v436
                %v438 = vld [vmem:[%s202 + $0x750] sm:$0xff]
                %439 = vst [vmem:[%s203 + $0x3cc] sm:$0xff] %v438
                %v440 = vld [vmem:[%s202 + $0x758] sm:$0xff]
                %441 = vst [vmem:[%s203 + $0x3d4] sm:$0xff] %v440
                %v442 = vld [vmem:[%s202 + $0x760] sm:$0xff]
                %443 = vst [vmem:[%s203 + $0x3dc] sm:$0xff] %v442
                %v444 = vld [vmem:[%s202 + $0x7d0] sm:$0xff]
                %445 = vst [vmem:[%s203 + $0x3e8] sm:$0xff] %v444
                %v446 = vld [vmem:[%s202 + $0x7d8] sm:$0xff]
                %447 = vst [vmem:[%s203 + $0x3f0] sm:$0xff] %v446
                %v448 = vld [vmem:[%s202 + $0x7e0] sm:$0xff]
                %449 = vst [vmem:[%s203 + $0x3f8] sm:$0xff] %v448
                %v450 = vld [vmem:[%s202 + $0x7e8] sm:$0xff]
                %451 = vst [vmem:[%s203 + $0x400] sm:$0xff] %v450
                %v452 = vld [vmem:[%s202 + $0x7f0] sm:$0xff]
                %453 = vst [vmem:[%s203 + $0x408] sm:$0xff] %v452
                %v454 = vld [vmem:[%s202 + $0x7f8] sm:$0xff]
                %455 = vst [vmem:[%s203 + $0x410] sm:$0xff] %v454
                %v456 = vld [vmem:[%s202 + $0x800] sm:$0xff]
                %457 = vst [vmem:[%s203 + $0x418] sm:$0xff] %v456
                %v458 = vld [vmem:[%s202 + $0x808] sm:$0xff]
                %459 = vst [vmem:[%s203 + $0x420] sm:$0xff] %v458
                %v460 = vld [vmem:[%s202 + $0x810] sm:$0xff]
                %461 = vst [vmem:[%s203 + $0x428] sm:$0xff] %v460
                %v462 = vld [vmem:[%s202 + $0x818] sm:$0xff]
                %463 = vst [vmem:[%s203 + $0x430] sm:$0xff] %v462
                %v464 = vld [vmem:[%s202 + $0x820] sm:$0xff]
                %465 = vst [vmem:[%s203 + $0x438] sm:$0xff] %v464
                %v466 = vld [vmem:[%s202 + $0x828] sm:$0xff]
                %467 = vst [vmem:[%s203 + $0x440] sm:$0xff] %v466
                %v468 = vld [vmem:[%s202 + $0x898] sm:$0xff]
                %469 = vst [vmem:[%s203 + $0x44c] sm:$0xff] %v468
                %v470 = vld [vmem:[%s202 + $0x8a0] sm:$0xff]
                %471 = vst [vmem:[%s203 + $0x454] sm:$0xff] %v470
                %v472 = vld [vmem:[%s202 + $0x8a8] sm:$0xff]
                %473 = vst [vmem:[%s203 + $0x45c] sm:$0xff] %v472
                %v474 = vld [vmem:[%s202 + $0x8b0] sm:$0xff]
                %475 = vst [vmem:[%s203 + $0x464] sm:$0xff] %v474
                %v476 = vld [vmem:[%s202 + $0x8b8] sm:$0xff]
                %477 = vst [vmem:[%s203 + $0x46c] sm:$0xff] %v476
                %v478 = vld [vmem:[%s202 + $0x8c0] sm:$0xff]
                %479 = vst [vmem:[%s203 + $0x474] sm:$0xff] %v478
                %v480 = vld [vmem:[%s202 + $0x8c8] sm:$0xff]
                %481 = vst [vmem:[%s203 + $0x47c] sm:$0xff] %v480
                %v482 = vld [vmem:[%s202 + $0x8d0] sm:$0xff]
                %483 = vst [vmem:[%s203 + $0x484] sm:$0xff] %v482
                %v484 = vld [vmem:[%s202 + $0x8d8] sm:$0xff]
                %485 = vst [vmem:[%s203 + $0x48c] sm:$0xff] %v484
                %v486 = vld [vmem:[%s202 + $0x8e0] sm:$0xff]
                %487 = vst [vmem:[%s203 + $0x494] sm:$0xff] %v486
                %v488 = vld [vmem:[%s202 + $0x8e8] sm:$0xff]
                %489 = vst [vmem:[%s203 + $0x49c] sm:$0xff] %v488
                %v490 = vld [vmem:[%s202 + $0x8f0] sm:$0xff]
                %491 = vst [vmem:[%s203 + $0x4a4] sm:$0xff] %v490
                %v492 = vld [vmem:[%s202 + $0x960] sm:$0xff]
                %493 = vst [vmem:[%s203 + $0x4b0] sm:$0xff] %v492
                %v494 = vld [vmem:[%s202 + $0x968] sm:$0xff]
                %495 = vst [vmem:[%s203 + $0x4b8] sm:$0xff] %v494
                %v496 = vld [vmem:[%s202 + $0x970] sm:$0xff]
                %497 = vst [vmem:[%s203 + $0x4c0] sm:$0xff] %v496
                %v498 = vld [vmem:[%s202 + $0x978] sm:$0xff]
                %499 = vst [vmem:[%s203 + $0x4c8] sm:$0xff] %v498
                %v500 = vld [vmem:[%s202 + $0x980] sm:$0xff]
                %501 = vst [vmem:[%s203 + $0x4d0] sm:$0xff] %v500
                %v502 = vld [vmem:[%s202 + $0x988] sm:$0xff]
                %503 = vst [vmem:[%s203 + $0x4d8] sm:$0xff] %v502
                %v504 = vld [vmem:[%s202 + $0x990] sm:$0xff]
                %505 = vst [vmem:[%s203 + $0x4e0] sm:$0xff] %v504
                %v506 = vld [vmem:[%s202 + $0x998] sm:$0xff]
                %507 = vst [vmem:[%s203 + $0x4e8] sm:$0xff] %v506
                %v508 = vld [vmem:[%s202 + $0x9a0] sm:$0xff]
                %509 = vst [vmem:[%s203 + $0x4f0] sm:$0xff] %v508
                %v510 = vld [vmem:[%s202 + $0x9a8] sm:$0xff]
                %511 = vst [vmem:[%s203 + $0x4f8] sm:$0xff] %v510
                %v512 = vld [vmem:[%s202 + $0x9b0] sm:$0xff]
                %513 = vst [vmem:[%s203 + $0x500] sm:$0xff] %v512
                %v514 = vld [vmem:[%s202 + $0x9b8] sm:$0xff]
                %515 = vst [vmem:[%s203 + $0x508] sm:$0xff] %v514
                %v516 = vld [vmem:[%s202 + $0xa28] sm:$0xff]
                %517 = vst [vmem:[%s203 + $0x514] sm:$0xff] %v516
                %v518 = vld [vmem:[%s202 + $0xa30] sm:$0xff]
                %519 = vst [vmem:[%s203 + $0x51c] sm:$0xff] %v518
                %v520 = vld [vmem:[%s202 + $0xa38] sm:$0xff]
                %521 = vst [vmem:[%s203 + $0x524] sm:$0xff] %v520
                %v522 = vld [vmem:[%s202 + $0xa40] sm:$0xff]
                %523 = vst [vmem:[%s203 + $0x52c] sm:$0xff] %v522
                %v524 = vld [vmem:[%s202 + $0xa48] sm:$0xff]
                %525 = vst [vmem:[%s203 + $0x534] sm:$0xff] %v524
                %v526 = vld [vmem:[%s202 + $0xa50] sm:$0xff]
                %527 = vst [vmem:[%s203 + $0x53c] sm:$0xff] %v526
                %v528 = vld [vmem:[%s202 + $0xa58] sm:$0xff]
                %529 = vst [vmem:[%s203 + $0x544] sm:$0xff] %v528
                %v530 = vld [vmem:[%s202 + $0xa60] sm:$0xff]
                %531 = vst [vmem:[%s203 + $0x54c] sm:$0xff] %v530
                %v532 = vld [vmem:[%s202 + $0xa68] sm:$0xff]
                %533 = vst [vmem:[%s203 + $0x554] sm:$0xff] %v532
                %v534 = vld [vmem:[%s202 + $0xa70] sm:$0xff]
                %535 = vst [vmem:[%s203 + $0x55c] sm:$0xff] %v534
                %v536 = vld [vmem:[%s202 + $0xa78] sm:$0xff]
                %537 = vst [vmem:[%s203 + $0x564] sm:$0xff] %v536
                %v538 = vld [vmem:[%s202 + $0xa80] sm:$0xff]
                %539 = vst [vmem:[%s203 + $0x56c] sm:$0xff] %v538
                %v540 = vld [vmem:[%s202 + $0xaf0] sm:$0xff]
                %541 = vst [vmem:[%s203 + $0x578] sm:$0xff] %v540
                %v542 = vld [vmem:[%s202 + $0xaf8] sm:$0xff]
                %543 = vst [vmem:[%s203 + $0x580] sm:$0xff] %v542
                %v544 = vld [vmem:[%s202 + $0xb00] sm:$0xff]
                %545 = vst [vmem:[%s203 + $0x588] sm:$0xff] %v544
                %v546 = vld [vmem:[%s202 + $0xb08] sm:$0xff]
                %547 = vst [vmem:[%s203 + $0x590] sm:$0xff] %v546
                %v548 = vld [vmem:[%s202 + $0xb10] sm:$0xff]
                %549 = vst [vmem:[%s203 + $0x598] sm:$0xff] %v548
                %v550 = vld [vmem:[%s202 + $0xb18] sm:$0xff]
                %551 = vst [vmem:[%s203 + $0x5a0] sm:$0xff] %v550
                %v552 = vld [vmem:[%s202 + $0xb20] sm:$0xff]
                %553 = vst [vmem:[%s203 + $0x5a8] sm:$0xff] %v552
                %v554 = vld [vmem:[%s202 + $0xb28] sm:$0xff]
                %555 = vst [vmem:[%s203 + $0x5b0] sm:$0xff] %v554
                %v556 = vld [vmem:[%s202 + $0xb30] sm:$0xff]
                %557 = vst [vmem:[%s203 + $0x5b8] sm:$0xff] %v556
                %v558 = vld [vmem:[%s202 + $0xb38] sm:$0xff]
                %559 = vst [vmem:[%s203 + $0x5c0] sm:$0xff] %v558
                %v560 = vld [vmem:[%s202 + $0xb40] sm:$0xff]
                %561 = vst [vmem:[%s203 + $0x5c8] sm:$0xff] %v560
                %v562 = vld [vmem:[%s202 + $0xb48] sm:$0xff]
                %563 = vst [vmem:[%s203 + $0x5d0] sm:$0xff] %v562
                %v564 = vld [vmem:[%s202 + $0xbb8] sm:$0xff]
                %565 = vst [vmem:[%s203 + $0x5dc] sm:$0xff] %v564
                %v566 = vld [vmem:[%s202 + $0xbc0] sm:$0xff]
                %567 = vst [vmem:[%s203 + $0x5e4] sm:$0xff] %v566
                %v568 = vld [vmem:[%s202 + $0xbc8] sm:$0xff]
                %569 = vst [vmem:[%s203 + $0x5ec] sm:$0xff] %v568
                %v570 = vld [vmem:[%s202 + $0xbd0] sm:$0xff]
                %571 = vst [vmem:[%s203 + $0x5f4] sm:$0xff] %v570
                %v572 = vld [vmem:[%s202 + $0xbd8] sm:$0xff]
                %573 = vst [vmem:[%s203 + $0x5fc] sm:$0xff] %v572
                %v574 = vld [vmem:[%s202 + $0xbe0] sm:$0xff]
                %575 = vst [vmem:[%s203 + $0x604] sm:$0xff] %v574
                %v576 = vld [vmem:[%s202 + $0xbe8] sm:$0xff]
                %577 = vst [vmem:[%s203 + $0x60c] sm:$0xff] %v576
                %v578 = vld [vmem:[%s202 + $0xbf0] sm:$0xff]
                %579 = vst [vmem:[%s203 + $0x614] sm:$0xff] %v578
                %v580 = vld [vmem:[%s202 + $0xbf8] sm:$0xff]
                %581 = vst [vmem:[%s203 + $0x61c] sm:$0xff] %v580
                %v582 = vld [vmem:[%s202 + $0xc00] sm:$0xff]
                %583 = vst [vmem:[%s203 + $0x624] sm:$0xff] %v582
                %v584 = vld [vmem:[%s202 + $0xc08] sm:$0xff]
                %585 = vst [vmem:[%s203 + $0x62c] sm:$0xff] %v584
                %v586 = vld [vmem:[%s202 + $0xc10] sm:$0xff]
                %587 = vst [vmem:[%s203 + $0x634] sm:$0xff] %v586
                %v588 = vld [vmem:[%s202 + $0xc80] sm:$0xff]
                %589 = vst [vmem:[%s203 + $0x640] sm:$0xff] %v588
                %v590 = vld [vmem:[%s202 + $0xc88] sm:$0xff]
                %591 = vst [vmem:[%s203 + $0x648] sm:$0xff] %v590
                %v592 = vld [vmem:[%s202 + $0xc90] sm:$0xff]
                %593 = vst [vmem:[%s203 + $0x650] sm:$0xff] %v592
                %v594 = vld [vmem:[%s202 + $0xc98] sm:$0xff]
                %595 = vst [vmem:[%s203 + $0x658] sm:$0xff] %v594
                %v596 = vld [vmem:[%s202 + $0xca0] sm:$0xff]
                %597 = vst [vmem:[%s203 + $0x660] sm:$0xff] %v596
                %v598 = vld [vmem:[%s202 + $0xca8] sm:$0xff]
                %599 = vst [vmem:[%s203 + $0x668] sm:$0xff] %v598
                %v600 = vld [vmem:[%s202 + $0xcb0] sm:$0xff]
                %601 = vst [vmem:[%s203 + $0x670] sm:$0xff] %v600
                %v602 = vld [vmem:[%s202 + $0xcb8] sm:$0xff]
                %603 = vst [vmem:[%s203 + $0x678] sm:$0xff] %v602
                %v604 = vld [vmem:[%s202 + $0xcc0] sm:$0xff]
                %605 = vst [vmem:[%s203 + $0x680] sm:$0xff] %v604
                %v606 = vld [vmem:[%s202 + $0xcc8] sm:$0xff]
                %607 = vst [vmem:[%s203 + $0x688] sm:$0xff] %v606
                %v608 = vld [vmem:[%s202 + $0xcd0] sm:$0xff]
                %609 = vst [vmem:[%s203 + $0x690] sm:$0xff] %v608
                %v610 = vld [vmem:[%s202 + $0xcd8] sm:$0xff]
                %611 = vst [vmem:[%s203 + $0x698] sm:$0xff] %v610
                %v612 = vld [vmem:[%s202 + $0xd48] sm:$0xff]
                %613 = vst [vmem:[%s203 + $0x6a4] sm:$0xff] %v612
                %v614 = vld [vmem:[%s202 + $0xd50] sm:$0xff]
                %615 = vst [vmem:[%s203 + $0x6ac] sm:$0xff] %v614
                %v616 = vld [vmem:[%s202 + $0xd58] sm:$0xff]
                %617 = vst [vmem:[%s203 + $0x6b4] sm:$0xff] %v616
                %v618 = vld [vmem:[%s202 + $0xd60] sm:$0xff]
                %619 = vst [vmem:[%s203 + $0x6bc] sm:$0xff] %v618
                %v620 = vld [vmem:[%s202 + $0xd68] sm:$0xff]
                %621 = vst [vmem:[%s203 + $0x6c4] sm:$0xff] %v620
                %v622 = vld [vmem:[%s202 + $0xd70] sm:$0xff]
                %623 = vst [vmem:[%s203 + $0x6cc] sm:$0xff] %v622
                %v624 = vld [vmem:[%s202 + $0xd78] sm:$0xff]
                %625 = vst [vmem:[%s203 + $0x6d4] sm:$0xff] %v624
                %v626 = vld [vmem:[%s202 + $0xd80] sm:$0xff]
                %627 = vst [vmem:[%s203 + $0x6dc] sm:$0xff] %v626
                %v628 = vld [vmem:[%s202 + $0xd88] sm:$0xff]
                %629 = vst [vmem:[%s203 + $0x6e4] sm:$0xff] %v628
                %v630 = vld [vmem:[%s202 + $0xd90] sm:$0xff]
                %631 = vst [vmem:[%s203 + $0x6ec] sm:$0xff] %v630
                %v632 = vld [vmem:[%s202 + $0xd98] sm:$0xff]
                %633 = vst [vmem:[%s203 + $0x6f4] sm:$0xff] %v632
                %v634 = vld [vmem:[%s202 + $0xda0] sm:$0xff]
                %635 = vst [vmem:[%s203 + $0x6fc] sm:$0xff] %v634
                %v636 = vld [vmem:[%s202 + $0xe10] sm:$0xff]
                %637 = vst [vmem:[%s203 + $0x708] sm:$0xff] %v636
                %v638 = vld [vmem:[%s202 + $0xe18] sm:$0xff]
                %639 = vst [vmem:[%s203 + $0x710] sm:$0xff] %v638
                %v640 = vld [vmem:[%s202 + $0xe20] sm:$0xff]
                %641 = vst [vmem:[%s203 + $0x718] sm:$0xff] %v640
                %v642 = vld [vmem:[%s202 + $0xe28] sm:$0xff]
                %643 = vst [vmem:[%s203 + $0x720] sm:$0xff] %v642
                %v644 = vld [vmem:[%s202 + $0xe30] sm:$0xff]
                %645 = vst [vmem:[%s203 + $0x728] sm:$0xff] %v644
                %v646 = vld [vmem:[%s202 + $0xe38] sm:$0xff]
                %647 = vst [vmem:[%s203 + $0x730] sm:$0xff] %v646
                %v648 = vld [vmem:[%s202 + $0xe40] sm:$0xff]
                %649 = vst [vmem:[%s203 + $0x738] sm:$0xff] %v648
                %v650 = vld [vmem:[%s202 + $0xe48] sm:$0xff]
                %651 = vst [vmem:[%s203 + $0x740] sm:$0xff] %v650
                %v652 = vld [vmem:[%s202 + $0xe50] sm:$0xff]
                %653 = vst [vmem:[%s203 + $0x748] sm:$0xff] %v652
                %v654 = vld [vmem:[%s202 + $0xe58] sm:$0xff]
                %655 = vst [vmem:[%s203 + $0x750] sm:$0xff] %v654
                %v656 = vld [vmem:[%s202 + $0xe60] sm:$0xff]
                %657 = vst [vmem:[%s203 + $0x758] sm:$0xff] %v656
                %v658 = vld [vmem:[%s202 + $0xe68] sm:$0xff]
                %659 = vst [vmem:[%s203 + $0x760] sm:$0xff] %v658
                %v660 = vld [vmem:[%s202 + $0xed8] sm:$0xff]
                %661 = vst [vmem:[%s203 + $0x76c] sm:$0xff] %v660
                %v662 = vld [vmem:[%s202 + $0xee0] sm:$0xff]
                %663 = vst [vmem:[%s203 + $0x774] sm:$0xff] %v662
                %v664 = vld [vmem:[%s202 + $0xee8] sm:$0xff]
                %665 = vst [vmem:[%s203 + $0x77c] sm:$0xff] %v664
                %v666 = vld [vmem:[%s202 + $0xef0] sm:$0xff]
                %667 = vst [vmem:[%s203 + $0x784] sm:$0xff] %v666
                %v668 = vld [vmem:[%s202 + $0xef8] sm:$0xff]
                %669 = vst [vmem:[%s203 + $0x78c] sm:$0xff] %v668
                %v670 = vld [vmem:[%s202 + $0xf00] sm:$0xff]
                %671 = vst [vmem:[%s203 + $0x794] sm:$0xff] %v670
                %v672 = vld [vmem:[%s202 + $0xf08] sm:$0xff]
                %673 = vst [vmem:[%s203 + $0x79c] sm:$0xff] %v672
                %v674 = vld [vmem:[%s202 + $0xf10] sm:$0xff]
                %675 = vst [vmem:[%s203 + $0x7a4] sm:$0xff] %v674
                %v676 = vld [vmem:[%s202 + $0xf18] sm:$0xff]
                %677 = vst [vmem:[%s203 + $0x7ac] sm:$0xff] %v676
                %v678 = vld [vmem:[%s202 + $0xf20] sm:$0xff]
                %679 = vst [vmem:[%s203 + $0x7b4] sm:$0xff] %v678
                %v680 = vld [vmem:[%s202 + $0xf28] sm:$0xff]
                %681 = vst [vmem:[%s203 + $0x7bc] sm:$0xff] %v680
                %v682 = vld [vmem:[%s202 + $0xf30] sm:$0xff]
                %683 = vst [vmem:[%s203 + $0x7c4] sm:$0xff] %v682
                %v684 = vld [vmem:[%s202 + $0xfa0] sm:$0xff]
                %685 = vst [vmem:[%s203 + $0x7d0] sm:$0xff] %v684
                %v686 = vld [vmem:[%s202 + $0xfa8] sm:$0xff]
                %687 = vst [vmem:[%s203 + $0x7d8] sm:$0xff] %v686
                %v688 = vld [vmem:[%s202 + $0xfb0] sm:$0xff]
                %689 = vst [vmem:[%s203 + $0x7e0] sm:$0xff] %v688
                %v690 = vld [vmem:[%s202 + $0xfb8] sm:$0xff]
                %691 = vst [vmem:[%s203 + $0x7e8] sm:$0xff] %v690
                %v692 = vld [vmem:[%s202 + $0xfc0] sm:$0xff]
                %693 = vst [vmem:[%s203 + $0x7f0] sm:$0xff] %v692
                %v694 = vld [vmem:[%s202 + $0xfc8] sm:$0xff]
                %695 = vst [vmem:[%s203 + $0x7f8] sm:$0xff] %v694
                %v696 = vld [vmem:[%s202 + $0xfd0] sm:$0xff]
                %697 = vst [vmem:[%s203 + $0x800] sm:$0xff] %v696
                %v698 = vld [vmem:[%s202 + $0xfd8] sm:$0xff]
                %699 = vst [vmem:[%s203 + $0x808] sm:$0xff] %v698
                %v700 = vld [vmem:[%s202 + $0xfe0] sm:$0xff]
                %701 = vst [vmem:[%s203 + $0x810] sm:$0xff] %v700
                %v702 = vld [vmem:[%s202 + $0xfe8] sm:$0xff]
                %703 = vst [vmem:[%s203 + $0x818] sm:$0xff] %v702
                %v704 = vld [vmem:[%s202 + $0xff0] sm:$0xff]
                %705 = vst [vmem:[%s203 + $0x820] sm:$0xff] %v704
                %v706 = vld [vmem:[%s202 + $0xff8] sm:$0xff]
                %707 = vst [vmem:[%s203 + $0x828] sm:$0xff] %v706
                %v708 = vld [vmem:[%s202 + $0x1068] sm:$0xff]
                %709 = vst [vmem:[%s203 + $0x834] sm:$0xff] %v708
                %v710 = vld [vmem:[%s202 + $0x1070] sm:$0xff]
                %711 = vst [vmem:[%s203 + $0x83c] sm:$0xff] %v710
                %v712 = vld [vmem:[%s202 + $0x1078] sm:$0xff]
                %713 = vst [vmem:[%s203 + $0x844] sm:$0xff] %v712
                %v714 = vld [vmem:[%s202 + $0x1080] sm:$0xff]
                %715 = vst [vmem:[%s203 + $0x84c] sm:$0xff] %v714
                %v716 = vld [vmem:[%s202 + $0x1088] sm:$0xff]
                %717 = vst [vmem:[%s203 + $0x854] sm:$0xff] %v716
                %v718 = vld [vmem:[%s202 + $0x1090] sm:$0xff]
                %719 = vst [vmem:[%s203 + $0x85c] sm:$0xff] %v718
                %v720 = vld [vmem:[%s202 + $0x1098] sm:$0xff]
                %721 = vst [vmem:[%s203 + $0x864] sm:$0xff] %v720
                %v722 = vld [vmem:[%s202 + $0x10a0] sm:$0xff]
                %723 = vst [vmem:[%s203 + $0x86c] sm:$0xff] %v722
                %v724 = vld [vmem:[%s202 + $0x10a8] sm:$0xff]
                %725 = vst [vmem:[%s203 + $0x874] sm:$0xff] %v724
                %v726 = vld [vmem:[%s202 + $0x10b0] sm:$0xff]
                %727 = vst [vmem:[%s203 + $0x87c] sm:$0xff] %v726
                %v728 = vld [vmem:[%s202 + $0x10b8] sm:$0xff]
                %729 = vst [vmem:[%s203 + $0x884] sm:$0xff] %v728
                %v730 = vld [vmem:[%s202 + $0x10c0] sm:$0xff]
                %731 = vst [vmem:[%s203 + $0x88c] sm:$0xff] %v730
                %v732 = vld [vmem:[%s202 + $0x1130] sm:$0xff]
                %733 = vst [vmem:[%s203 + $0x898] sm:$0xff] %v732
                %v734 = vld [vmem:[%s202 + $0x1138] sm:$0xff]
                %735 = vst [vmem:[%s203 + $0x8a0] sm:$0xff] %v734
                %v736 = vld [vmem:[%s202 + $0x1140] sm:$0xff]
                %737 = vst [vmem:[%s203 + $0x8a8] sm:$0xff] %v736
                %v738 = vld [vmem:[%s202 + $0x1148] sm:$0xff]
                %739 = vst [vmem:[%s203 + $0x8b0] sm:$0xff] %v738
                %v740 = vld [vmem:[%s202 + $0x1150] sm:$0xff]
                %741 = vst [vmem:[%s203 + $0x8b8] sm:$0xff] %v740
                %v742 = vld [vmem:[%s202 + $0x1158] sm:$0xff]
                %743 = vst [vmem:[%s203 + $0x8c0] sm:$0xff] %v742
                %v744 = vld [vmem:[%s202 + $0x1160] sm:$0xff]
                %745 = vst [vmem:[%s203 + $0x8c8] sm:$0xff] %v744
                %v746 = vld [vmem:[%s202 + $0x1168] sm:$0xff]
                %747 = vst [vmem:[%s203 + $0x8d0] sm:$0xff] %v746
                %v748 = vld [vmem:[%s202 + $0x1170] sm:$0xff]
                %749 = vst [vmem:[%s203 + $0x8d8] sm:$0xff] %v748
                %v750 = vld [vmem:[%s202 + $0x1178] sm:$0xff]
                %751 = vst [vmem:[%s203 + $0x8e0] sm:$0xff] %v750
                %v752 = vld [vmem:[%s202 + $0x1180] sm:$0xff]
                %753 = vst [vmem:[%s203 + $0x8e8] sm:$0xff] %v752
                %v754 = vld [vmem:[%s202 + $0x1188] sm:$0xff]
                %755 = vst [vmem:[%s203 + $0x8f0] sm:$0xff] %v754
                %v756 = vld [vmem:[%s202 + $0x11f8] sm:$0xff]
                %757 = vst [vmem:[%s203 + $0x8fc] sm:$0xff] %v756
                %v758 = vld [vmem:[%s202 + $0x1200] sm:$0xff]
                %759 = vst [vmem:[%s203 + $0x904] sm:$0xff] %v758
                %v760 = vld [vmem:[%s202 + $0x1208] sm:$0xff]
                %761 = vst [vmem:[%s203 + $0x90c] sm:$0xff] %v760
                %v762 = vld [vmem:[%s202 + $0x1210] sm:$0xff]
                %763 = vst [vmem:[%s203 + $0x914] sm:$0xff] %v762
                %v764 = vld [vmem:[%s202 + $0x1218] sm:$0xff]
                %765 = vst [vmem:[%s203 + $0x91c] sm:$0xff] %v764
                %v766 = vld [vmem:[%s202 + $0x1220] sm:$0xff]
                %767 = vst [vmem:[%s203 + $0x924] sm:$0xff] %v766
                %v768 = vld [vmem:[%s202 + $0x1228] sm:$0xff]
                %769 = vst [vmem:[%s203 + $0x92c] sm:$0xff] %v768
                %v770 = vld [vmem:[%s202 + $0x1230] sm:$0xff]
                %771 = vst [vmem:[%s203 + $0x934] sm:$0xff] %v770
                %v772 = vld [vmem:[%s202 + $0x1238] sm:$0xff]
                %773 = vst [vmem:[%s203 + $0x93c] sm:$0xff] %v772
                %v774 = vld [vmem:[%s202 + $0x1240] sm:$0xff]
                %775 = vst [vmem:[%s203 + $0x944] sm:$0xff] %v774
                %v776 = vld [vmem:[%s202 + $0x1248] sm:$0xff]
                %777 = vst [vmem:[%s203 + $0x94c] sm:$0xff] %v776
                %v778 = vld [vmem:[%s202 + $0x1250] sm:$0xff]
                %779 = vst [vmem:[%s203 + $0x954] sm:$0xff] %v778
                %v780 = vld [vmem:[%s202 + $0x12c0] sm:$0xff]
                %781 = vst [vmem:[%s203 + $0x960] sm:$0xff] %v780
                %v782 = vld [vmem:[%s202 + $0x12c8] sm:$0xff]
                %783 = vst [vmem:[%s203 + $0x968] sm:$0xff] %v782
                %v784 = vld [vmem:[%s202 + $0x12d0] sm:$0xff]
                %785 = vst [vmem:[%s203 + $0x970] sm:$0xff] %v784
                %v786 = vld [vmem:[%s202 + $0x12d8] sm:$0xff]
                %787 = vst [vmem:[%s203 + $0x978] sm:$0xff] %v786
                %v788 = vld [vmem:[%s202 + $0x12e0] sm:$0xff]
                %789 = vst [vmem:[%s203 + $0x980] sm:$0xff] %v788
                %v790 = vld [vmem:[%s202 + $0x12e8] sm:$0xff]
                %791 = vst [vmem:[%s203 + $0x988] sm:$0xff] %v790
                %v792 = vld [vmem:[%s202 + $0x12f0] sm:$0xff]
                %793 = vst [vmem:[%s203 + $0x990] sm:$0xff] %v792
                %v794 = vld [vmem:[%s202 + $0x12f8] sm:$0xff]
                %795 = vst [vmem:[%s203 + $0x998] sm:$0xff] %v794
                %v796 = vld [vmem:[%s202 + $0x1300] sm:$0xff]
                %797 = vst [vmem:[%s203 + $0x9a0] sm:$0xff] %v796
                %v798 = vld [vmem:[%s202 + $0x1308] sm:$0xff]
                %799 = vst [vmem:[%s203 + $0x9a8] sm:$0xff] %v798
                %v800 = vld [vmem:[%s202 + $0x1310] sm:$0xff]
                %801 = vst [vmem:[%s203 + $0x9b0] sm:$0xff] %v800
                %v802 = vld [vmem:[%s202 + $0x1318] sm:$0xff]
                %803 = vst [vmem:[%s203 + $0x9b8] sm:$0xff] %v802
                %v804 = vld [vmem:[%s202 + $0x1388] sm:$0xff]
                %805 = vst [vmem:[%s203 + $0x9c4] sm:$0xff] %v804
                %v806 = vld [vmem:[%s202 + $0x1390] sm:$0xff]
                %807 = vst [vmem:[%s203 + $0x9cc] sm:$0xff] %v806
                %v808 = vld [vmem:[%s202 + $0x1398] sm:$0xff]
                %809 = vst [vmem:[%s203 + $0x9d4] sm:$0xff] %v808
                %v810 = vld [vmem:[%s202 + $0x13a0] sm:$0xff]
                %811 = vst [vmem:[%s203 + $0x9dc] sm:$0xff] %v810
                %v812 = vld [vmem:[%s202 + $0x13a8] sm:$0xff]
                %813 = vst [vmem:[%s203 + $0x9e4] sm:$0xff] %v812
                %v814 = vld [vmem:[%s202 + $0x13b0] sm:$0xff]
                %815 = vst [vmem:[%s203 + $0x9ec] sm:$0xff] %v814
                %v816 = vld [vmem:[%s202 + $0x13b8] sm:$0xff]
                %817 = vst [vmem:[%s203 + $0x9f4] sm:$0xff] %v816
                %v818 = vld [vmem:[%s202 + $0x13c0] sm:$0xff]
                %819 = vst [vmem:[%s203 + $0x9fc] sm:$0xff] %v818
                %v820 = vld [vmem:[%s202 + $0x13c8] sm:$0xff]
                %821 = vst [vmem:[%s203 + $0xa04] sm:$0xff] %v820
                %v822 = vld [vmem:[%s202 + $0x13d0] sm:$0xff]
                %823 = vst [vmem:[%s203 + $0xa0c] sm:$0xff] %v822
                %v824 = vld [vmem:[%s202 + $0x13d8] sm:$0xff]
                %825 = vst [vmem:[%s203 + $0xa14] sm:$0xff] %v824
                %v826 = vld [vmem:[%s202 + $0x13e0] sm:$0xff]
                %827 = vst [vmem:[%s203 + $0xa1c] sm:$0xff] %v826
                %v828 = vld [vmem:[%s202 + $0x1450] sm:$0xff]
                %829 = vst [vmem:[%s203 + $0xa28] sm:$0xff] %v828
                %v830 = vld [vmem:[%s202 + $0x1458] sm:$0xff]
                %831 = vst [vmem:[%s203 + $0xa30] sm:$0xff] %v830
                %v832 = vld [vmem:[%s202 + $0x1460] sm:$0xff]
                %833 = vst [vmem:[%s203 + $0xa38] sm:$0xff] %v832
                %v834 = vld [vmem:[%s202 + $0x1468] sm:$0xff]
                %835 = vst [vmem:[%s203 + $0xa40] sm:$0xff] %v834
                %v836 = vld [vmem:[%s202 + $0x1470] sm:$0xff]
                %837 = vst [vmem:[%s203 + $0xa48] sm:$0xff] %v836
                %v838 = vld [vmem:[%s202 + $0x1478] sm:$0xff]
                %839 = vst [vmem:[%s203 + $0xa50] sm:$0xff] %v838
                %v840 = vld [vmem:[%s202 + $0x1480] sm:$0xff]
                %841 = vst [vmem:[%s203 + $0xa58] sm:$0xff] %v840
                %v842 = vld [vmem:[%s202 + $0x1488] sm:$0xff]
                %843 = vst [vmem:[%s203 + $0xa60] sm:$0xff] %v842
                %v844 = vld [vmem:[%s202 + $0x1490] sm:$0xff]
                %845 = vst [vmem:[%s203 + $0xa68] sm:$0xff] %v844
                %v846 = vld [vmem:[%s202 + $0x1498] sm:$0xff]
                %847 = vst [vmem:[%s203 + $0xa70] sm:$0xff] %v846
                %v848 = vld [vmem:[%s202 + $0x14a0] sm:$0xff]
                %849 = vst [vmem:[%s203 + $0xa78] sm:$0xff] %v848
                %v850 = vld [vmem:[%s202 + $0x14a8] sm:$0xff]
                %851 = vst [vmem:[%s203 + $0xa80] sm:$0xff] %v850
                %v852 = vld [vmem:[%s202 + $0x1518] sm:$0xff]
                %853 = vst [vmem:[%s203 + $0xa8c] sm:$0xff] %v852
                %v854 = vld [vmem:[%s202 + $0x1520] sm:$0xff]
                %855 = vst [vmem:[%s203 + $0xa94] sm:$0xff] %v854
                %v856 = vld [vmem:[%s202 + $0x1528] sm:$0xff]
                %857 = vst [vmem:[%s203 + $0xa9c] sm:$0xff] %v856
                %v858 = vld [vmem:[%s202 + $0x1530] sm:$0xff]
                %859 = vst [vmem:[%s203 + $0xaa4] sm:$0xff] %v858
                %v860 = vld [vmem:[%s202 + $0x1538] sm:$0xff]
                %861 = vst [vmem:[%s203 + $0xaac] sm:$0xff] %v860
                %v862 = vld [vmem:[%s202 + $0x1540] sm:$0xff]
                %863 = vst [vmem:[%s203 + $0xab4] sm:$0xff] %v862
                %v864 = vld [vmem:[%s202 + $0x1548] sm:$0xff]
                %865 = vst [vmem:[%s203 + $0xabc] sm:$0xff] %v864
                %v866 = vld [vmem:[%s202 + $0x1550] sm:$0xff]
                %867 = vst [vmem:[%s203 + $0xac4] sm:$0xff] %v866
                %v868 = vld [vmem:[%s202 + $0x1558] sm:$0xff]
                %869 = vst [vmem:[%s203 + $0xacc] sm:$0xff] %v868
                %v870 = vld [vmem:[%s202 + $0x1560] sm:$0xff]
                %871 = vst [vmem:[%s203 + $0xad4] sm:$0xff] %v870
                %v872 = vld [vmem:[%s202 + $0x1568] sm:$0xff]
                %873 = vst [vmem:[%s203 + $0xadc] sm:$0xff] %v872
                %v874 = vld [vmem:[%s202 + $0x1570] sm:$0xff]
                %875 = vst [vmem:[%s203 + $0xae4] sm:$0xff] %v874
                %v876 = vld [vmem:[%s202 + $0x15e0] sm:$0xff]
                %877 = vst [vmem:[%s203 + $0xaf0] sm:$0xff] %v876
                %v878 = vld [vmem:[%s202 + $0x15e8] sm:$0xff]
                %879 = vst [vmem:[%s203 + $0xaf8] sm:$0xff] %v878
                %v880 = vld [vmem:[%s202 + $0x15f0] sm:$0xff]
                %881 = vst [vmem:[%s203 + $0xb00] sm:$0xff] %v880
                %v882 = vld [vmem:[%s202 + $0x15f8] sm:$0xff]
                %883 = vst [vmem:[%s203 + $0xb08] sm:$0xff] %v882
                %v884 = vld [vmem:[%s202 + $0x1600] sm:$0xff]
                %885 = vst [vmem:[%s203 + $0xb10] sm:$0xff] %v884
                %v886 = vld [vmem:[%s202 + $0x1608] sm:$0xff]
                %887 = vst [vmem:[%s203 + $0xb18] sm:$0xff] %v886
                %v888 = vld [vmem:[%s202 + $0x1610] sm:$0xff]
                %889 = vst [vmem:[%s203 + $0xb20] sm:$0xff] %v888
                %v890 = vld [vmem:[%s202 + $0x1618] sm:$0xff]
                %891 = vst [vmem:[%s203 + $0xb28] sm:$0xff] %v890
                %v892 = vld [vmem:[%s202 + $0x1620] sm:$0xff]
                %893 = vst [vmem:[%s203 + $0xb30] sm:$0xff] %v892
                %v894 = vld [vmem:[%s202 + $0x1628] sm:$0xff]
                %895 = vst [vmem:[%s203 + $0xb38] sm:$0xff] %v894
                %v896 = vld [vmem:[%s202 + $0x1630] sm:$0xff]
                %897 = vst [vmem:[%s203 + $0xb40] sm:$0xff] %v896
                %v898 = vld [vmem:[%s202 + $0x1638] sm:$0xff]
                %899 = vst [vmem:[%s203 + $0xb48] sm:$0xff] %v898
                %v900 = vld [vmem:[%s202 + $0x16a8] sm:$0xff]
                %901 = vst [vmem:[%s203 + $0xb54] sm:$0xff] %v900
                %v902 = vld [vmem:[%s202 + $0x16b0] sm:$0xff]
                %903 = vst [vmem:[%s203 + $0xb5c] sm:$0xff] %v902
                %v904 = vld [vmem:[%s202 + $0x16b8] sm:$0xff]
                %905 = vst [vmem:[%s203 + $0xb64] sm:$0xff] %v904
                %v906 = vld [vmem:[%s202 + $0x16c0] sm:$0xff]
                %907 = vst [vmem:[%s203 + $0xb6c] sm:$0xff] %v906
                %v908 = vld [vmem:[%s202 + $0x16c8] sm:$0xff]
                %909 = vst [vmem:[%s203 + $0xb74] sm:$0xff] %v908
                %v910 = vld [vmem:[%s202 + $0x16d0] sm:$0xff]
                %911 = vst [vmem:[%s203 + $0xb7c] sm:$0xff] %v910
                %v912 = vld [vmem:[%s202 + $0x16d8] sm:$0xff]
                %913 = vst [vmem:[%s203 + $0xb84] sm:$0xff] %v912
                %v914 = vld [vmem:[%s202 + $0x16e0] sm:$0xff]
                %915 = vst [vmem:[%s203 + $0xb8c] sm:$0xff] %v914
                %v916 = vld [vmem:[%s202 + $0x16e8] sm:$0xff]
                %917 = vst [vmem:[%s203 + $0xb94] sm:$0xff] %v916
                %v918 = vld [vmem:[%s202 + $0x16f0] sm:$0xff]
                %919 = vst [vmem:[%s203 + $0xb9c] sm:$0xff] %v918
                %v920 = vld [vmem:[%s202 + $0x16f8] sm:$0xff]
                %921 = vst [vmem:[%s203 + $0xba4] sm:$0xff] %v920
                %v922 = vld [vmem:[%s202 + $0x1700] sm:$0xff]
                %923 = vst [vmem:[%s203 + $0xbac] sm:$0xff] %v922
                %v924 = vld [vmem:[%s202 + $0x1770] sm:$0xff]
                %925 = vst [vmem:[%s203 + $0xbb8] sm:$0xff] %v924
                %v926 = vld [vmem:[%s202 + $0x1778] sm:$0xff]
                %927 = vst [vmem:[%s203 + $0xbc0] sm:$0xff] %v926
                %v928 = vld [vmem:[%s202 + $0x1780] sm:$0xff]
                %929 = vst [vmem:[%s203 + $0xbc8] sm:$0xff] %v928
                %v930 = vld [vmem:[%s202 + $0x1788] sm:$0xff]
                %931 = vst [vmem:[%s203 + $0xbd0] sm:$0xff] %v930
                %v932 = vld [vmem:[%s202 + $0x1790] sm:$0xff]
                %933 = vst [vmem:[%s203 + $0xbd8] sm:$0xff] %v932
                %v934 = vld [vmem:[%s202 + $0x1798] sm:$0xff]
                %935 = vst [vmem:[%s203 + $0xbe0] sm:$0xff] %v934
                %v936 = vld [vmem:[%s202 + $0x17a0] sm:$0xff]
                %937 = vst [vmem:[%s203 + $0xbe8] sm:$0xff] %v936
                %v938 = vld [vmem:[%s202 + $0x17a8] sm:$0xff]
                %939 = vst [vmem:[%s203 + $0xbf0] sm:$0xff] %v938
                %v940 = vld [vmem:[%s202 + $0x17b0] sm:$0xff]
                %941 = vst [vmem:[%s203 + $0xbf8] sm:$0xff] %v940
                %v942 = vld [vmem:[%s202 + $0x17b8] sm:$0xff]
                %943 = vst [vmem:[%s203 + $0xc00] sm:$0xff] %v942
                %v944 = vld [vmem:[%s202 + $0x17c0] sm:$0xff]
                %945 = vst [vmem:[%s203 + $0xc08] sm:$0xff] %v944
                %v946 = vld [vmem:[%s202 + $0x17c8] sm:$0xff]
                %947 = vst [vmem:[%s203 + $0xc10] sm:$0xff] %v946
                %v948 = vld [vmem:[%s202 + $0x1838] sm:$0xff]
                %949 = vst [vmem:[%s203 + $0xc1c] sm:$0xff] %v948
                %v950 = vld [vmem:[%s202 + $0x1840] sm:$0xff]
                %951 = vst [vmem:[%s203 + $0xc24] sm:$0xff] %v950
                %v952 = vld [vmem:[%s202 + $0x1848] sm:$0xff]
                %953 = vst [vmem:[%s203 + $0xc2c] sm:$0xff] %v952
                %v954 = vld [vmem:[%s202 + $0x1850] sm:$0xff]
                %955 = vst [vmem:[%s203 + $0xc34] sm:$0xff] %v954
                %v956 = vld [vmem:[%s202 + $0x1858] sm:$0xff]
                %957 = vst [vmem:[%s203 + $0xc3c] sm:$0xff] %v956
                %v958 = vld [vmem:[%s202 + $0x1860] sm:$0xff]
                %959 = vst [vmem:[%s203 + $0xc44] sm:$0xff] %v958
                %v960 = vld [vmem:[%s202 + $0x1868] sm:$0xff]
                %961 = vst [vmem:[%s203 + $0xc4c] sm:$0xff] %v960
                %v962 = vld [vmem:[%s202 + $0x1870] sm:$0xff]
                %963 = vst [vmem:[%s203 + $0xc54] sm:$0xff] %v962
                %v964 = vld [vmem:[%s202 + $0x1878] sm:$0xff]
                %965 = vst [vmem:[%s203 + $0xc5c] sm:$0xff] %v964
                %v966 = vld [vmem:[%s202 + $0x1880] sm:$0xff]
                %967 = vst [vmem:[%s203 + $0xc64] sm:$0xff] %v966
                %v968 = vld [vmem:[%s202 + $0x1888] sm:$0xff]
                %969 = vst [vmem:[%s203 + $0xc6c] sm:$0xff] %v968
                %v970 = vld [vmem:[%s202 + $0x1890] sm:$0xff]
                %971 = vst [vmem:[%s203 + $0xc74] sm:$0xff] %v970
                %v972 = vld [vmem:[%s202 + $0x1900] sm:$0xff]
                %973 = vst [vmem:[%s203 + $0xc80] sm:$0xff] %v972
                %v974 = vld [vmem:[%s202 + $0x1908] sm:$0xff]
                %975 = vst [vmem:[%s203 + $0xc88] sm:$0xff] %v974
                %v976 = vld [vmem:[%s202 + $0x1910] sm:$0xff]
                %977 = vst [vmem:[%s203 + $0xc90] sm:$0xff] %v976
                %v978 = vld [vmem:[%s202 + $0x1918] sm:$0xff]
                %979 = vst [vmem:[%s203 + $0xc98] sm:$0xff] %v978
                %v980 = vld [vmem:[%s202 + $0x1920] sm:$0xff]
                %981 = vst [vmem:[%s203 + $0xca0] sm:$0xff] %v980
                %v982 = vld [vmem:[%s202 + $0x1928] sm:$0xff]
                %983 = vst [vmem:[%s203 + $0xca8] sm:$0xff] %v982
                %v984 = vld [vmem:[%s202 + $0x1930] sm:$0xff]
                %985 = vst [vmem:[%s203 + $0xcb0] sm:$0xff] %v984
                %v986 = vld [vmem:[%s202 + $0x1938] sm:$0xff]
                %987 = vst [vmem:[%s203 + $0xcb8] sm:$0xff] %v986
                %v988 = vld [vmem:[%s202 + $0x1940] sm:$0xff]
                %989 = vst [vmem:[%s203 + $0xcc0] sm:$0xff] %v988
                %v990 = vld [vmem:[%s202 + $0x1948] sm:$0xff]
                %991 = vst [vmem:[%s203 + $0xcc8] sm:$0xff] %v990
                %v992 = vld [vmem:[%s202 + $0x1950] sm:$0xff]
                %993 = vst [vmem:[%s203 + $0xcd0] sm:$0xff] %v992
                %v994 = vld [vmem:[%s202 + $0x1958] sm:$0xff]
                %995 = vst [vmem:[%s203 + $0xcd8] sm:$0xff] %v994
                %v996 = vld [vmem:[%s202 + $0x19c8] sm:$0xff]
                %997 = vst [vmem:[%s203 + $0xce4] sm:$0xff] %v996
                %v998 = vld [vmem:[%s202 + $0x19d0] sm:$0xff]
                %999 = vst [vmem:[%s203 + $0xcec] sm:$0xff] %v998
                %v1000 = vld [vmem:[%s202 + $0x19d8] sm:$0xff]
                %1001 = vst [vmem:[%s203 + $0xcf4] sm:$0xff] %v1000
                %v1002 = vld [vmem:[%s202 + $0x19e0] sm:$0xff]
                %1003 = vst [vmem:[%s203 + $0xcfc] sm:$0xff] %v1002
                %v1004 = vld [vmem:[%s202 + $0x19e8] sm:$0xff]
                %1005 = vst [vmem:[%s203 + $0xd04] sm:$0xff] %v1004
                %v1006 = vld [vmem:[%s202 + $0x19f0] sm:$0xff]
                %1007 = vst [vmem:[%s203 + $0xd0c] sm:$0xff] %v1006
                %v1008 = vld [vmem:[%s202 + $0x19f8] sm:$0xff]
                %1009 = vst [vmem:[%s203 + $0xd14] sm:$0xff] %v1008
                %v1010 = vld [vmem:[%s202 + $0x1a00] sm:$0xff]
                %1011 = vst [vmem:[%s203 + $0xd1c] sm:$0xff] %v1010
                %v1012 = vld [vmem:[%s202 + $0x1a08] sm:$0xff]
                %1013 = vst [vmem:[%s203 + $0xd24] sm:$0xff] %v1012
                %v1014 = vld [vmem:[%s202 + $0x1a10] sm:$0xff]
                %1015 = vst [vmem:[%s203 + $0xd2c] sm:$0xff] %v1014
                %v1016 = vld [vmem:[%s202 + $0x1a18] sm:$0xff]
                %1017 = vst [vmem:[%s203 + $0xd34] sm:$0xff] %v1016
                %v1018 = vld [vmem:[%s202 + $0x1a20] sm:$0xff]
                %1019 = vst [vmem:[%s203 + $0xd3c] sm:$0xff] %v1018
                %v1020 = vld [vmem:[%s202 + $0x1a90] sm:$0xff]
                %1021 = vst [vmem:[%s203 + $0xd48] sm:$0xff] %v1020
                %v1022 = vld [vmem:[%s202 + $0x1a98] sm:$0xff]
                %1023 = vst [vmem:[%s203 + $0xd50] sm:$0xff] %v1022
                %v1024 = vld [vmem:[%s202 + $0x1aa0] sm:$0xff]
                %1025 = vst [vmem:[%s203 + $0xd58] sm:$0xff] %v1024
                %v1026 = vld [vmem:[%s202 + $0x1aa8] sm:$0xff]
                %1027 = vst [vmem:[%s203 + $0xd60] sm:$0xff] %v1026
                %v1028 = vld [vmem:[%s202 + $0x1ab0] sm:$0xff]
                %1029 = vst [vmem:[%s203 + $0xd68] sm:$0xff] %v1028
                %v1030 = vld [vmem:[%s202 + $0x1ab8] sm:$0xff]
                %1031 = vst [vmem:[%s203 + $0xd70] sm:$0xff] %v1030
                %v1032 = vld [vmem:[%s202 + $0x1ac0] sm:$0xff]
                %1033 = vst [vmem:[%s203 + $0xd78] sm:$0xff] %v1032
                %v1034 = vld [vmem:[%s202 + $0x1ac8] sm:$0xff]
                %1035 = vst [vmem:[%s203 + $0xd80] sm:$0xff] %v1034
                %v1036 = vld [vmem:[%s202 + $0x1ad0] sm:$0xff]
                %1037 = vst [vmem:[%s203 + $0xd88] sm:$0xff] %v1036
                %v1038 = vld [vmem:[%s202 + $0x1ad8] sm:$0xff]
                %1039 = vst [vmem:[%s203 + $0xd90] sm:$0xff] %v1038
                %v1040 = vld [vmem:[%s202 + $0x1ae0] sm:$0xff]
                %1041 = vst [vmem:[%s203 + $0xd98] sm:$0xff] %v1040
                %v1042 = vld [vmem:[%s202 + $0x1ae8] sm:$0xff]
                %1043 = vst [vmem:[%s203 + $0xda0] sm:$0xff] %v1042
                %v1044 = vld [vmem:[%s202 + $0x1b58] sm:$0xff]
                %1045 = vst [vmem:[%s203 + $0xdac] sm:$0xff] %v1044
                %v1046 = vld [vmem:[%s202 + $0x1b60] sm:$0xff]
                %1047 = vst [vmem:[%s203 + $0xdb4] sm:$0xff] %v1046
                %v1048 = vld [vmem:[%s202 + $0x1b68] sm:$0xff]
                %1049 = vst [vmem:[%s203 + $0xdbc] sm:$0xff] %v1048
                %v1050 = vld [vmem:[%s202 + $0x1b70] sm:$0xff]
                %1051 = vst [vmem:[%s203 + $0xdc4] sm:$0xff] %v1050
                %v1052 = vld [vmem:[%s202 + $0x1b78] sm:$0xff]
                %1053 = vst [vmem:[%s203 + $0xdcc] sm:$0xff] %v1052
                %v1054 = vld [vmem:[%s202 + $0x1b80] sm:$0xff]
                %1055 = vst [vmem:[%s203 + $0xdd4] sm:$0xff] %v1054
                %v1056 = vld [vmem:[%s202 + $0x1b88] sm:$0xff]
                %1057 = vst [vmem:[%s203 + $0xddc] sm:$0xff] %v1056
                %v1058 = vld [vmem:[%s202 + $0x1b90] sm:$0xff]
                %1059 = vst [vmem:[%s203 + $0xde4] sm:$0xff] %v1058
                %v1060 = vld [vmem:[%s202 + $0x1b98] sm:$0xff]
                %1061 = vst [vmem:[%s203 + $0xdec] sm:$0xff] %v1060
                %v1062 = vld [vmem:[%s202 + $0x1ba0] sm:$0xff]
                %1063 = vst [vmem:[%s203 + $0xdf4] sm:$0xff] %v1062
                %v1064 = vld [vmem:[%s202 + $0x1ba8] sm:$0xff]
                %1065 = vst [vmem:[%s203 + $0xdfc] sm:$0xff] %v1064
                %v1066 = vld [vmem:[%s202 + $0x1bb0] sm:$0xff]
                %1067 = vst [vmem:[%s203 + $0xe04] sm:$0xff] %v1066
                %v1068 = vld [vmem:[%s202 + $0x1c20] sm:$0xff]
                %1069 = vst [vmem:[%s203 + $0xe10] sm:$0xff] %v1068
                %v1070 = vld [vmem:[%s202 + $0x1c28] sm:$0xff]
                %1071 = vst [vmem:[%s203 + $0xe18] sm:$0xff] %v1070
                %v1072 = vld [vmem:[%s202 + $0x1c30] sm:$0xff]
                %1073 = vst [vmem:[%s203 + $0xe20] sm:$0xff] %v1072
                %v1074 = vld [vmem:[%s202 + $0x1c38] sm:$0xff]
                %1075 = vst [vmem:[%s203 + $0xe28] sm:$0xff] %v1074
                %v1076 = vld [vmem:[%s202 + $0x1c40] sm:$0xff]
                %1077 = vst [vmem:[%s203 + $0xe30] sm:$0xff] %v1076
                %v1078 = vld [vmem:[%s202 + $0x1c48] sm:$0xff]
                %1079 = vst [vmem:[%s203 + $0xe38] sm:$0xff] %v1078
                %v1080 = vld [vmem:[%s202 + $0x1c50] sm:$0xff]
                %1081 = vst [vmem:[%s203 + $0xe40] sm:$0xff] %v1080
                %v1082 = vld [vmem:[%s202 + $0x1c58] sm:$0xff]
                %1083 = vst [vmem:[%s203 + $0xe48] sm:$0xff] %v1082
                %v1084 = vld [vmem:[%s202 + $0x1c60] sm:$0xff]
                %1085 = vst [vmem:[%s203 + $0xe50] sm:$0xff] %v1084
                %v1086 = vld [vmem:[%s202 + $0x1c68] sm:$0xff]
                %1087 = vst [vmem:[%s203 + $0xe58] sm:$0xff] %v1086
                %v1088 = vld [vmem:[%s202 + $0x1c70] sm:$0xff]
                %1089 = vst [vmem:[%s203 + $0xe60] sm:$0xff] %v1088
                %v1090 = vld [vmem:[%s202 + $0x1c78] sm:$0xff]
                %1091 = vst [vmem:[%s203 + $0xe68] sm:$0xff] %v1090
                %v1092 = vld [vmem:[%s202 + $0x1ce8] sm:$0xff]
                %1093 = vst [vmem:[%s203 + $0xe74] sm:$0xff] %v1092
                %v1094 = vld [vmem:[%s202 + $0x1cf0] sm:$0xff]
                %1095 = vst [vmem:[%s203 + $0xe7c] sm:$0xff] %v1094
                %v1096 = vld [vmem:[%s202 + $0x1cf8] sm:$0xff]
                %1097 = vst [vmem:[%s203 + $0xe84] sm:$0xff] %v1096
                %v1098 = vld [vmem:[%s202 + $0x1d00] sm:$0xff]
                %1099 = vst [vmem:[%s203 + $0xe8c] sm:$0xff] %v1098
                %v1100 = vld [vmem:[%s202 + $0x1d08] sm:$0xff]
                %1101 = vst [vmem:[%s203 + $0xe94] sm:$0xff] %v1100
                %v1102 = vld [vmem:[%s202 + $0x1d10] sm:$0xff]
                %1103 = vst [vmem:[%s203 + $0xe9c] sm:$0xff] %v1102
                %v1104 = vld [vmem:[%s202 + $0x1d18] sm:$0xff]
                %1105 = vst [vmem:[%s203 + $0xea4] sm:$0xff] %v1104
                %v1106 = vld [vmem:[%s202 + $0x1d20] sm:$0xff]
                %1107 = vst [vmem:[%s203 + $0xeac] sm:$0xff] %v1106
                %v1108 = vld [vmem:[%s202 + $0x1d28] sm:$0xff]
                %1109 = vst [vmem:[%s203 + $0xeb4] sm:$0xff] %v1108
                %v1110 = vld [vmem:[%s202 + $0x1d30] sm:$0xff]
                %1111 = vst [vmem:[%s203 + $0xebc] sm:$0xff] %v1110
                %v1112 = vld [vmem:[%s202 + $0x1d38] sm:$0xff]
                %1113 = vst [vmem:[%s203 + $0xec4] sm:$0xff] %v1112
                %v1114 = vld [vmem:[%s202 + $0x1d40] sm:$0xff]
                %1115 = vst [vmem:[%s203 + $0xecc] sm:$0xff] %v1114
                %v1116 = vld [vmem:[%s202 + $0x1db0] sm:$0xff]
                %1117 = vst [vmem:[%s203 + $0xed8] sm:$0xff] %v1116
                %v1118 = vld [vmem:[%s202 + $0x1db8] sm:$0xff]
                %1119 = vst [vmem:[%s203 + $0xee0] sm:$0xff] %v1118
                %v1120 = vld [vmem:[%s202 + $0x1dc0] sm:$0xff]
                %1121 = vst [vmem:[%s203 + $0xee8] sm:$0xff] %v1120
                %v1122 = vld [vmem:[%s202 + $0x1dc8] sm:$0xff]
                %1123 = vst [vmem:[%s203 + $0xef0] sm:$0xff] %v1122
                %v1124 = vld [vmem:[%s202 + $0x1dd0] sm:$0xff]
                %1125 = vst [vmem:[%s203 + $0xef8] sm:$0xff] %v1124
                %v1126 = vld [vmem:[%s202 + $0x1dd8] sm:$0xff]
                %1127 = vst [vmem:[%s203 + $0xf00] sm:$0xff] %v1126
                %v1128 = vld [vmem:[%s202 + $0x1de0] sm:$0xff]
                %1129 = vst [vmem:[%s203 + $0xf08] sm:$0xff] %v1128
                %v1130 = vld [vmem:[%s202 + $0x1de8] sm:$0xff]
                %1131 = vst [vmem:[%s203 + $0xf10] sm:$0xff] %v1130
                %v1132 = vld [vmem:[%s202 + $0x1df0] sm:$0xff]
                %1133 = vst [vmem:[%s203 + $0xf18] sm:$0xff] %v1132
                %v1134 = vld [vmem:[%s202 + $0x1df8] sm:$0xff]
                %1135 = vst [vmem:[%s203 + $0xf20] sm:$0xff] %v1134
                %v1136 = vld [vmem:[%s202 + $0x1e00] sm:$0xff]
                %1137 = vst [vmem:[%s203 + $0xf28] sm:$0xff] %v1136
                %v1138 = vld [vmem:[%s202 + $0x1e08] sm:$0xff]
                %1139 = vst [vmem:[%s203 + $0xf30] sm:$0xff] %v1138
                %v1140 = vld [vmem:[%s202 + $0x1e78] sm:$0xff]
                %1141 = vst [vmem:[%s203 + $0xf3c] sm:$0xff] %v1140
                %v1142 = vld [vmem:[%s202 + $0x1e80] sm:$0xff]
                %1143 = vst [vmem:[%s203 + $0xf44] sm:$0xff] %v1142
                %v1144 = vld [vmem:[%s202 + $0x1e88] sm:$0xff]
                %1145 = vst [vmem:[%s203 + $0xf4c] sm:$0xff] %v1144
                %v1146 = vld [vmem:[%s202 + $0x1e90] sm:$0xff]
                %1147 = vst [vmem:[%s203 + $0xf54] sm:$0xff] %v1146
                %v1148 = vld [vmem:[%s202 + $0x1e98] sm:$0xff]
                %1149 = vst [vmem:[%s203 + $0xf5c] sm:$0xff] %v1148
                %v1150 = vld [vmem:[%s202 + $0x1ea0] sm:$0xff]
                %1151 = vst [vmem:[%s203 + $0xf64] sm:$0xff] %v1150
                %v1152 = vld [vmem:[%s202 + $0x1ea8] sm:$0xff]
                %1153 = vst [vmem:[%s203 + $0xf6c] sm:$0xff] %v1152
                %v1154 = vld [vmem:[%s202 + $0x1eb0] sm:$0xff]
                %1155 = vst [vmem:[%s203 + $0xf74] sm:$0xff] %v1154
                %v1156 = vld [vmem:[%s202 + $0x1eb8] sm:$0xff]
                %1157 = vst [vmem:[%s203 + $0xf7c] sm:$0xff] %v1156
                %v1158 = vld [vmem:[%s202 + $0x1ec0] sm:$0xff]
                %1159 = vst [vmem:[%s203 + $0xf84] sm:$0xff] %v1158
                %v1160 = vld [vmem:[%s202 + $0x1ec8] sm:$0xff]
                %1161 = vst [vmem:[%s203 + $0xf8c] sm:$0xff] %v1160
                %v1162 = vld [vmem:[%s202 + $0x1ed0] sm:$0xff]
                %1163 = vst [vmem:[%s203 + $0xf94] sm:$0xff] %v1162
                %v1164 = vld [vmem:[%s202 + $0x1f40] sm:$0xff]
                %1165 = vst [vmem:[%s203 + $0xfa0] sm:$0xff] %v1164
                %v1166 = vld [vmem:[%s202 + $0x1f48] sm:$0xff]
                %1167 = vst [vmem:[%s203 + $0xfa8] sm:$0xff] %v1166
                %v1168 = vld [vmem:[%s202 + $0x1f50] sm:$0xff]
                %1169 = vst [vmem:[%s203 + $0xfb0] sm:$0xff] %v1168
                %v1170 = vld [vmem:[%s202 + $0x1f58] sm:$0xff]
                %1171 = vst [vmem:[%s203 + $0xfb8] sm:$0xff] %v1170
                %v1172 = vld [vmem:[%s202 + $0x1f60] sm:$0xff]
                %1173 = vst [vmem:[%s203 + $0xfc0] sm:$0xff] %v1172
                %v1174 = vld [vmem:[%s202 + $0x1f68] sm:$0xff]
                %1175 = vst [vmem:[%s203 + $0xfc8] sm:$0xff] %v1174
                %v1176 = vld [vmem:[%s202 + $0x1f70] sm:$0xff]
                %1177 = vst [vmem:[%s203 + $0xfd0] sm:$0xff] %v1176
                %v1178 = vld [vmem:[%s202 + $0x1f78] sm:$0xff]
                %1179 = vst [vmem:[%s203 + $0xfd8] sm:$0xff] %v1178
                %v1180 = vld [vmem:[%s202 + $0x1f80] sm:$0xff]
                %1181 = vst [vmem:[%s203 + $0xfe0] sm:$0xff] %v1180
                %v1182 = vld [vmem:[%s202 + $0x1f88] sm:$0xff]
                %1183 = vst [vmem:[%s203 + $0xfe8] sm:$0xff] %v1182
                %v1184 = vld [vmem:[%s202 + $0x1f90] sm:$0xff]
                %1185 = vst [vmem:[%s203 + $0xff0] sm:$0xff] %v1184
                %v1186 = vld [vmem:[%s202 + $0x1f98] sm:$0xff]
                %1187 = vst [vmem:[%s203 + $0xff8] sm:$0xff] %v1186
                %v1188 = vld [vmem:[%s202 + $0x2008] sm:$0xff]
                %1189 = vst [vmem:[%s203 + $0x1004] sm:$0xff] %v1188
                %v1190 = vld [vmem:[%s202 + $0x2010] sm:$0xff]
                %1191 = vst [vmem:[%s203 + $0x100c] sm:$0xff] %v1190
                %v1192 = vld [vmem:[%s202 + $0x2018] sm:$0xff]
                %1193 = vst [vmem:[%s203 + $0x1014] sm:$0xff] %v1192
                %v1194 = vld [vmem:[%s202 + $0x2020] sm:$0xff]
                %1195 = vst [vmem:[%s203 + $0x101c] sm:$0xff] %v1194
                %v1196 = vld [vmem:[%s202 + $0x2028] sm:$0xff]
                %1197 = vst [vmem:[%s203 + $0x1024] sm:$0xff] %v1196
                %v1198 = vld [vmem:[%s202 + $0x2030] sm:$0xff]
                %1199 = vst [vmem:[%s203 + $0x102c] sm:$0xff] %v1198
                %v1200 = vld [vmem:[%s202 + $0x2038] sm:$0xff]
                %1201 = vst [vmem:[%s203 + $0x1034] sm:$0xff] %v1200
                %v1202 = vld [vmem:[%s202 + $0x2040] sm:$0xff]
                %1203 = vst [vmem:[%s203 + $0x103c] sm:$0xff] %v1202
                %v1204 = vld [vmem:[%s202 + $0x2048] sm:$0xff]
                %1205 = vst [vmem:[%s203 + $0x1044] sm:$0xff] %v1204
                %v1206 = vld [vmem:[%s202 + $0x2050] sm:$0xff]
                %1207 = vst [vmem:[%s203 + $0x104c] sm:$0xff] %v1206
                %v1208 = vld [vmem:[%s202 + $0x2058] sm:$0xff]
                %1209 = vst [vmem:[%s203 + $0x1054] sm:$0xff] %v1208
                %v1210 = vld [vmem:[%s202 + $0x2060] sm:$0xff]
                %1211 = vst [vmem:[%s203 + $0x105c] sm:$0xff] %v1210
                %v1212 = vld [vmem:[%s202 + $0x20d0] sm:$0xff]
                %1213 = vst [vmem:[%s203 + $0x1068] sm:$0xff] %v1212
                %v1214 = vld [vmem:[%s202 + $0x20d8] sm:$0xff]
                %1215 = vst [vmem:[%s203 + $0x1070] sm:$0xff] %v1214
                %v1216 = vld [vmem:[%s202 + $0x20e0] sm:$0xff]
                %1217 = vst [vmem:[%s203 + $0x1078] sm:$0xff] %v1216
                %v1218 = vld [vmem:[%s202 + $0x20e8] sm:$0xff]
                %1219 = vst [vmem:[%s203 + $0x1080] sm:$0xff] %v1218
                %v1220 = vld [vmem:[%s202 + $0x20f0] sm:$0xff]
                %1221 = vst [vmem:[%s203 + $0x1088] sm:$0xff] %v1220
                %v1222 = vld [vmem:[%s202 + $0x20f8] sm:$0xff]
                %1223 = vst [vmem:[%s203 + $0x1090] sm:$0xff] %v1222
                %v1224 = vld [vmem:[%s202 + $0x2100] sm:$0xff]
                %1225 = vst [vmem:[%s203 + $0x1098] sm:$0xff] %v1224
                %v1226 = vld [vmem:[%s202 + $0x2108] sm:$0xff]
                %1227 = vst [vmem:[%s203 + $0x10a0] sm:$0xff] %v1226
                %v1228 = vld [vmem:[%s202 + $0x2110] sm:$0xff]
                %1229 = vst [vmem:[%s203 + $0x10a8] sm:$0xff] %v1228
                %v1230 = vld [vmem:[%s202 + $0x2118] sm:$0xff]
                %1231 = vst [vmem:[%s203 + $0x10b0] sm:$0xff] %v1230
                %v1232 = vld [vmem:[%s202 + $0x2120] sm:$0xff]
                %1233 = vst [vmem:[%s203 + $0x10b8] sm:$0xff] %v1232
                %v1234 = vld [vmem:[%s202 + $0x2128] sm:$0xff]
                %1235 = vst [vmem:[%s203 + $0x10c0] sm:$0xff] %v1234
                %v1236 = vld [vmem:[%s202 + $0x2198] sm:$0xff]
                %1237 = vst [vmem:[%s203 + $0x10cc] sm:$0xff] %v1236
                %v1238 = vld [vmem:[%s202 + $0x21a0] sm:$0xff]
                %1239 = vst [vmem:[%s203 + $0x10d4] sm:$0xff] %v1238
                %v1240 = vld [vmem:[%s202 + $0x21a8] sm:$0xff]
                %1241 = vst [vmem:[%s203 + $0x10dc] sm:$0xff] %v1240
                %v1242 = vld [vmem:[%s202 + $0x21b0] sm:$0xff]
                %1243 = vst [vmem:[%s203 + $0x10e4] sm:$0xff] %v1242
                %v1244 = vld [vmem:[%s202 + $0x21b8] sm:$0xff]
                %1245 = vst [vmem:[%s203 + $0x10ec] sm:$0xff] %v1244
                %v1246 = vld [vmem:[%s202 + $0x21c0] sm:$0xff]
                %1247 = vst [vmem:[%s203 + $0x10f4] sm:$0xff] %v1246
                %v1248 = vld [vmem:[%s202 + $0x21c8] sm:$0xff]
                %1249 = vst [vmem:[%s203 + $0x10fc] sm:$0xff] %v1248
                %v1250 = vld [vmem:[%s202 + $0x21d0] sm:$0xff]
                %1251 = vst [vmem:[%s203 + $0x1104] sm:$0xff] %v1250
                %v1252 = vld [vmem:[%s202 + $0x21d8] sm:$0xff]
                %1253 = vst [vmem:[%s203 + $0x110c] sm:$0xff] %v1252
                %v1254 = vld [vmem:[%s202 + $0x21e0] sm:$0xff]
                %1255 = vst [vmem:[%s203 + $0x1114] sm:$0xff] %v1254
                %v1256 = vld [vmem:[%s202 + $0x21e8] sm:$0xff]
                %1257 = vst [vmem:[%s203 + $0x111c] sm:$0xff] %v1256
                %v1258 = vld [vmem:[%s202 + $0x21f0] sm:$0xff]
                %1259 = vst [vmem:[%s203 + $0x1124] sm:$0xff] %v1258
                %v1260 = vld [vmem:[%s202 + $0x2260] sm:$0xff]
                %1261 = vst [vmem:[%s203 + $0x1130] sm:$0xff] %v1260
                %v1262 = vld [vmem:[%s202 + $0x2268] sm:$0xff]
                %1263 = vst [vmem:[%s203 + $0x1138] sm:$0xff] %v1262
                %v1264 = vld [vmem:[%s202 + $0x2270] sm:$0xff]
                %1265 = vst [vmem:[%s203 + $0x1140] sm:$0xff] %v1264
                %v1266 = vld [vmem:[%s202 + $0x2278] sm:$0xff]
                %1267 = vst [vmem:[%s203 + $0x1148] sm:$0xff] %v1266
                %v1268 = vld [vmem:[%s202 + $0x2280] sm:$0xff]
                %1269 = vst [vmem:[%s203 + $0x1150] sm:$0xff] %v1268
                %v1270 = vld [vmem:[%s202 + $0x2288] sm:$0xff]
                %1271 = vst [vmem:[%s203 + $0x1158] sm:$0xff] %v1270
                %v1272 = vld [vmem:[%s202 + $0x2290] sm:$0xff]
                %1273 = vst [vmem:[%s203 + $0x1160] sm:$0xff] %v1272
                %v1274 = vld [vmem:[%s202 + $0x2298] sm:$0xff]
                %1275 = vst [vmem:[%s203 + $0x1168] sm:$0xff] %v1274
                %v1276 = vld [vmem:[%s202 + $0x22a0] sm:$0xff]
                %1277 = vst [vmem:[%s203 + $0x1170] sm:$0xff] %v1276
                %v1278 = vld [vmem:[%s202 + $0x22a8] sm:$0xff]
                %1279 = vst [vmem:[%s203 + $0x1178] sm:$0xff] %v1278
                %v1280 = vld [vmem:[%s202 + $0x22b0] sm:$0xff]
                %1281 = vst [vmem:[%s203 + $0x1180] sm:$0xff] %v1280
                %v1282 = vld [vmem:[%s202 + $0x22b8] sm:$0xff]
                %1283 = vst [vmem:[%s203 + $0x1188] sm:$0xff] %v1282
                %v1284 = vld [vmem:[%s202 + $0x2328] sm:$0xff]
                %1285 = vst [vmem:[%s203 + $0x1194] sm:$0xff] %v1284
                %v1286 = vld [vmem:[%s202 + $0x2330] sm:$0xff]
                %1287 = vst [vmem:[%s203 + $0x119c] sm:$0xff] %v1286
                %v1288 = vld [vmem:[%s202 + $0x2338] sm:$0xff]
                %1289 = vst [vmem:[%s203 + $0x11a4] sm:$0xff] %v1288
                %v1290 = vld [vmem:[%s202 + $0x2340] sm:$0xff]
                %1291 = vst [vmem:[%s203 + $0x11ac] sm:$0xff] %v1290
                %v1292 = vld [vmem:[%s202 + $0x2348] sm:$0xff]
                %1293 = vst [vmem:[%s203 + $0x11b4] sm:$0xff] %v1292
                %v1294 = vld [vmem:[%s202 + $0x2350] sm:$0xff]
                %1295 = vst [vmem:[%s203 + $0x11bc] sm:$0xff] %v1294
                %v1296 = vld [vmem:[%s202 + $0x2358] sm:$0xff]
                %1297 = vst [vmem:[%s203 + $0x11c4] sm:$0xff] %v1296
                %v1298 = vld [vmem:[%s202 + $0x2360] sm:$0xff]
                %1299 = vst [vmem:[%s203 + $0x11cc] sm:$0xff] %v1298
                %v1300 = vld [vmem:[%s202 + $0x2368] sm:$0xff]
                %1301 = vst [vmem:[%s203 + $0x11d4] sm:$0xff] %v1300
                %v1302 = vld [vmem:[%s202 + $0x2370] sm:$0xff]
                %1303 = vst [vmem:[%s203 + $0x11dc] sm:$0xff] %v1302
                %v1304 = vld [vmem:[%s202 + $0x2378] sm:$0xff]
                %1305 = vst [vmem:[%s203 + $0x11e4] sm:$0xff] %v1304
                %v1306 = vld [vmem:[%s202 + $0x2380] sm:$0xff]
                %1307 = vst [vmem:[%s203 + $0x11ec] sm:$0xff] %v1306
                %v1308 = vld [vmem:[%s202 + $0x23f0] sm:$0xff]
                %1309 = vst [vmem:[%s203 + $0x11f8] sm:$0xff] %v1308
                %v1310 = vld [vmem:[%s202 + $0x23f8] sm:$0xff]
                %1311 = vst [vmem:[%s203 + $0x1200] sm:$0xff] %v1310
                %v1312 = vld [vmem:[%s202 + $0x2400] sm:$0xff]
                %1313 = vst [vmem:[%s203 + $0x1208] sm:$0xff] %v1312
                %v1314 = vld [vmem:[%s202 + $0x2408] sm:$0xff]
                %1315 = vst [vmem:[%s203 + $0x1210] sm:$0xff] %v1314
                %v1316 = vld [vmem:[%s202 + $0x2410] sm:$0xff]
                %1317 = vst [vmem:[%s203 + $0x1218] sm:$0xff] %v1316
                %v1318 = vld [vmem:[%s202 + $0x2418] sm:$0xff]
                %1319 = vst [vmem:[%s203 + $0x1220] sm:$0xff] %v1318
                %v1320 = vld [vmem:[%s202 + $0x2420] sm:$0xff]
                %1321 = vst [vmem:[%s203 + $0x1228] sm:$0xff] %v1320
                %v1322 = vld [vmem:[%s202 + $0x2428] sm:$0xff]
                %1323 = vst [vmem:[%s203 + $0x1230] sm:$0xff] %v1322
                %v1324 = vld [vmem:[%s202 + $0x2430] sm:$0xff]
                %1325 = vst [vmem:[%s203 + $0x1238] sm:$0xff] %v1324
                %v1326 = vld [vmem:[%s202 + $0x2438] sm:$0xff]
                %1327 = vst [vmem:[%s203 + $0x1240] sm:$0xff] %v1326
                %v1328 = vld [vmem:[%s202 + $0x2440] sm:$0xff]
                %1329 = vst [vmem:[%s203 + $0x1248] sm:$0xff] %v1328
                %v1330 = vld [vmem:[%s202 + $0x2448] sm:$0xff]
                %1331 = vst [vmem:[%s203 + $0x1250] sm:$0xff] %v1330
                %v1332 = vld [vmem:[%s202 + $0x24b8] sm:$0xff]
                %1333 = vst [vmem:[%s203 + $0x125c] sm:$0xff] %v1332
                %v1334 = vld [vmem:[%s202 + $0x24c0] sm:$0xff]
                %1335 = vst [vmem:[%s203 + $0x1264] sm:$0xff] %v1334
                %v1336 = vld [vmem:[%s202 + $0x24c8] sm:$0xff]
                %1337 = vst [vmem:[%s203 + $0x126c] sm:$0xff] %v1336
                %v1338 = vld [vmem:[%s202 + $0x24d0] sm:$0xff]
                %1339 = vst [vmem:[%s203 + $0x1274] sm:$0xff] %v1338
                %v1340 = vld [vmem:[%s202 + $0x24d8] sm:$0xff]
                %1341 = vst [vmem:[%s203 + $0x127c] sm:$0xff] %v1340
                %v1342 = vld [vmem:[%s202 + $0x24e0] sm:$0xff]
                %1343 = vst [vmem:[%s203 + $0x1284] sm:$0xff] %v1342
                %v1344 = vld [vmem:[%s202 + $0x24e8] sm:$0xff]
                %1345 = vst [vmem:[%s203 + $0x128c] sm:$0xff] %v1344
                %v1346 = vld [vmem:[%s202 + $0x24f0] sm:$0xff]
                %1347 = vst [vmem:[%s203 + $0x1294] sm:$0xff] %v1346
                %v1348 = vld [vmem:[%s202 + $0x24f8] sm:$0xff]
                %1349 = vst [vmem:[%s203 + $0x129c] sm:$0xff] %v1348
                %v1350 = vld [vmem:[%s202 + $0x2500] sm:$0xff]
                %1351 = vst [vmem:[%s203 + $0x12a4] sm:$0xff] %v1350
                %v1352 = vld [vmem:[%s202 + $0x2508] sm:$0xff]
                %1353 = vst [vmem:[%s203 + $0x12ac] sm:$0xff] %v1352
                %v1354 = vld [vmem:[%s202 + $0x2510] sm:$0xff]
                %1355 = vst [vmem:[%s203 + $0x12b4] sm:$0xff] %v1354
                %v1356 = vld [vmem:[%s202 + $0x2580] sm:$0xff]
                %1357 = vst [vmem:[%s203 + $0x12c0] sm:$0xff] %v1356
                %v1358 = vld [vmem:[%s202 + $0x2588] sm:$0xff]
                %1359 = vst [vmem:[%s203 + $0x12c8] sm:$0xff] %v1358
                %v1360 = vld [vmem:[%s202 + $0x2590] sm:$0xff]
                %1361 = vst [vmem:[%s203 + $0x12d0] sm:$0xff] %v1360
                %v1362 = vld [vmem:[%s202 + $0x2598] sm:$0xff]
                %1363 = vst [vmem:[%s203 + $0x12d8] sm:$0xff] %v1362
                %v1364 = vld [vmem:[%s202 + $0x25a0] sm:$0xff]
                %1365 = vst [vmem:[%s203 + $0x12e0] sm:$0xff] %v1364
                %v1366 = vld [vmem:[%s202 + $0x25a8] sm:$0xff]
                %1367 = vst [vmem:[%s203 + $0x12e8] sm:$0xff] %v1366
                %v1368 = vld [vmem:[%s202 + $0x25b0] sm:$0xff]
                %1369 = vst [vmem:[%s203 + $0x12f0] sm:$0xff] %v1368
                %v1370 = vld [vmem:[%s202 + $0x25b8] sm:$0xff]
                %1371 = vst [vmem:[%s203 + $0x12f8] sm:$0xff] %v1370
                %v1372 = vld [vmem:[%s202 + $0x25c0] sm:$0xff]
                %1373 = vst [vmem:[%s203 + $0x1300] sm:$0xff] %v1372
                %v1374 = vld [vmem:[%s202 + $0x25c8] sm:$0xff]
                %1375 = vst [vmem:[%s203 + $0x1308] sm:$0xff] %v1374
                %v1376 = vld [vmem:[%s202 + $0x25d0] sm:$0xff]
                %1377 = vst [vmem:[%s203 + $0x1310] sm:$0xff] %v1376
                %v1378 = vld [vmem:[%s202 + $0x25d8] sm:$0xff]
                %1379 = vst [vmem:[%s203 + $0x1318] sm:$0xff] %v1378
                %v1380 = vld [vmem:[%s202 + $0x2648] sm:$0xff]
                %1381 = vst [vmem:[%s203 + $0x1324] sm:$0xff] %v1380
                %v1382 = vld [vmem:[%s202 + $0x2650] sm:$0xff]
                %1383 = vst [vmem:[%s203 + $0x132c] sm:$0xff] %v1382
                %v1384 = vld [vmem:[%s202 + $0x2658] sm:$0xff]
                %1385 = vst [vmem:[%s203 + $0x1334] sm:$0xff] %v1384
                %v1386 = vld [vmem:[%s202 + $0x2660] sm:$0xff]
                %1387 = vst [vmem:[%s203 + $0x133c] sm:$0xff] %v1386
                %v1388 = vld [vmem:[%s202 + $0x2668] sm:$0xff]
                %1389 = vst [vmem:[%s203 + $0x1344] sm:$0xff] %v1388
                %v1390 = vld [vmem:[%s202 + $0x2670] sm:$0xff]
                %1391 = vst [vmem:[%s203 + $0x134c] sm:$0xff] %v1390
                %v1392 = vld [vmem:[%s202 + $0x2678] sm:$0xff]
                %1393 = vst [vmem:[%s203 + $0x1354] sm:$0xff] %v1392
                %v1394 = vld [vmem:[%s202 + $0x2680] sm:$0xff]
                %1395 = vst [vmem:[%s203 + $0x135c] sm:$0xff] %v1394
                %v1396 = vld [vmem:[%s202 + $0x2688] sm:$0xff]
                %1397 = vst [vmem:[%s203 + $0x1364] sm:$0xff] %v1396
                %v1398 = vld [vmem:[%s202 + $0x2690] sm:$0xff]
                %1399 = vst [vmem:[%s203 + $0x136c] sm:$0xff] %v1398
                %v1400 = vld [vmem:[%s202 + $0x2698] sm:$0xff]
                %1401 = vst [vmem:[%s203 + $0x1374] sm:$0xff] %v1400
                %v1402 = vld [vmem:[%s202 + $0x26a0] sm:$0xff]
                %1403 = vst [vmem:[%s203 + $0x137c] sm:$0xff] %v1402
                %v1404 = vld [vmem:[%s202 + $0x2710] sm:$0xff]
                %1405 = vst [vmem:[%s203 + $0x1388] sm:$0xff] %v1404
                %v1406 = vld [vmem:[%s202 + $0x2718] sm:$0xff]
                %1407 = vst [vmem:[%s203 + $0x1390] sm:$0xff] %v1406
                %v1408 = vld [vmem:[%s202 + $0x2720] sm:$0xff]
                %1409 = vst [vmem:[%s203 + $0x1398] sm:$0xff] %v1408
                %v1410 = vld [vmem:[%s202 + $0x2728] sm:$0xff]
                %1411 = vst [vmem:[%s203 + $0x13a0] sm:$0xff] %v1410
                %v1412 = vld [vmem:[%s202 + $0x2730] sm:$0xff]
                %1413 = vst [vmem:[%s203 + $0x13a8] sm:$0xff] %v1412
                %v1414 = vld [vmem:[%s202 + $0x2738] sm:$0xff]
                %1415 = vst [vmem:[%s203 + $0x13b0] sm:$0xff] %v1414
                %v1416 = vld [vmem:[%s202 + $0x2740] sm:$0xff]
                %1417 = vst [vmem:[%s203 + $0x13b8] sm:$0xff] %v1416
                %v1418 = vld [vmem:[%s202 + $0x2748] sm:$0xff]
                %1419 = vst [vmem:[%s203 + $0x13c0] sm:$0xff] %v1418
                %v1420 = vld [vmem:[%s202 + $0x2750] sm:$0xff]
                %1421 = vst [vmem:[%s203 + $0x13c8] sm:$0xff] %v1420
                %v1422 = vld [vmem:[%s202 + $0x2758] sm:$0xff]
                %1423 = vst [vmem:[%s203 + $0x13d0] sm:$0xff] %v1422
                %v1424 = vld [vmem:[%s202 + $0x2760] sm:$0xff]
                %1425 = vst [vmem:[%s203 + $0x13d8] sm:$0xff] %v1424
                %v1426 = vld [vmem:[%s202 + $0x2768] sm:$0xff]
                %1427 = vst [vmem:[%s203 + $0x13e0] sm:$0xff] %v1426
                %v1428 = vld [vmem:[%s202 + $0x27d8] sm:$0xff]
                %1429 = vst [vmem:[%s203 + $0x13ec] sm:$0xff] %v1428
                %v1430 = vld [vmem:[%s202 + $0x27e0] sm:$0xff]
                %1431 = vst [vmem:[%s203 + $0x13f4] sm:$0xff] %v1430
                %v1432 = vld [vmem:[%s202 + $0x27e8] sm:$0xff]
                %1433 = vst [vmem:[%s203 + $0x13fc] sm:$0xff] %v1432
                %v1434 = vld [vmem:[%s202 + $0x27f0] sm:$0xff]
                %1435 = vst [vmem:[%s203 + $0x1404] sm:$0xff] %v1434
                %v1436 = vld [vmem:[%s202 + $0x27f8] sm:$0xff]
                %1437 = vst [vmem:[%s203 + $0x140c] sm:$0xff] %v1436
                %v1438 = vld [vmem:[%s202 + $0x2800] sm:$0xff]
                %1439 = vst [vmem:[%s203 + $0x1414] sm:$0xff] %v1438
                %v1440 = vld [vmem:[%s202 + $0x2808] sm:$0xff]
                %1441 = vst [vmem:[%s203 + $0x141c] sm:$0xff] %v1440
                %v1442 = vld [vmem:[%s202 + $0x2810] sm:$0xff]
                %1443 = vst [vmem:[%s203 + $0x1424] sm:$0xff] %v1442
                %v1444 = vld [vmem:[%s202 + $0x2818] sm:$0xff]
                %1445 = vst [vmem:[%s203 + $0x142c] sm:$0xff] %v1444
                %v1446 = vld [vmem:[%s202 + $0x2820] sm:$0xff]
                %1447 = vst [vmem:[%s203 + $0x1434] sm:$0xff] %v1446
                %v1448 = vld [vmem:[%s202 + $0x2828] sm:$0xff]
                %1449 = vst [vmem:[%s203 + $0x143c] sm:$0xff] %v1448
                %v1450 = vld [vmem:[%s202 + $0x2830] sm:$0xff]
                %1451 = vst [vmem:[%s203 + $0x1444] sm:$0xff] %v1450
                %v1452 = vld [vmem:[%s202 + $0x28a0] sm:$0xff]
                %1453 = vst [vmem:[%s203 + $0x1450] sm:$0xff] %v1452
                %v1454 = vld [vmem:[%s202 + $0x28a8] sm:$0xff]
                %1455 = vst [vmem:[%s203 + $0x1458] sm:$0xff] %v1454
                %v1456 = vld [vmem:[%s202 + $0x28b0] sm:$0xff]
                %1457 = vst [vmem:[%s203 + $0x1460] sm:$0xff] %v1456
                %v1458 = vld [vmem:[%s202 + $0x28b8] sm:$0xff]
                %1459 = vst [vmem:[%s203 + $0x1468] sm:$0xff] %v1458
                %v1460 = vld [vmem:[%s202 + $0x28c0] sm:$0xff]
                %1461 = vst [vmem:[%s203 + $0x1470] sm:$0xff] %v1460
                %v1462 = vld [vmem:[%s202 + $0x28c8] sm:$0xff]
                %1463 = vst [vmem:[%s203 + $0x1478] sm:$0xff] %v1462
                %v1464 = vld [vmem:[%s202 + $0x28d0] sm:$0xff]
                %1465 = vst [vmem:[%s203 + $0x1480] sm:$0xff] %v1464
                %v1466 = vld [vmem:[%s202 + $0x28d8] sm:$0xff]
                %1467 = vst [vmem:[%s203 + $0x1488] sm:$0xff] %v1466
                %v1468 = vld [vmem:[%s202 + $0x28e0] sm:$0xff]
                %1469 = vst [vmem:[%s203 + $0x1490] sm:$0xff] %v1468
                %v1470 = vld [vmem:[%s202 + $0x28e8] sm:$0xff]
                %1471 = vst [vmem:[%s203 + $0x1498] sm:$0xff] %v1470
                %v1472 = vld [vmem:[%s202 + $0x28f0] sm:$0xff]
                %1473 = vst [vmem:[%s203 + $0x14a0] sm:$0xff] %v1472
                %v1474 = vld [vmem:[%s202 + $0x28f8] sm:$0xff]
                %1475 = vst [vmem:[%s203 + $0x14a8] sm:$0xff] %v1474
                %v1476 = vld [vmem:[%s202 + $0x2968] sm:$0xff]
                %1477 = vst [vmem:[%s203 + $0x14b4] sm:$0xff] %v1476
                %v1478 = vld [vmem:[%s202 + $0x2970] sm:$0xff]
                %1479 = vst [vmem:[%s203 + $0x14bc] sm:$0xff] %v1478
                %v1480 = vld [vmem:[%s202 + $0x2978] sm:$0xff]
                %1481 = vst [vmem:[%s203 + $0x14c4] sm:$0xff] %v1480
                %v1482 = vld [vmem:[%s202 + $0x2980] sm:$0xff]
                %1483 = vst [vmem:[%s203 + $0x14cc] sm:$0xff] %v1482
                %v1484 = vld [vmem:[%s202 + $0x2988] sm:$0xff]
                %1485 = vst [vmem:[%s203 + $0x14d4] sm:$0xff] %v1484
                %v1486 = vld [vmem:[%s202 + $0x2990] sm:$0xff]
                %1487 = vst [vmem:[%s203 + $0x14dc] sm:$0xff] %v1486
                %v1488 = vld [vmem:[%s202 + $0x2998] sm:$0xff]
                %1489 = vst [vmem:[%s203 + $0x14e4] sm:$0xff] %v1488
                %v1490 = vld [vmem:[%s202 + $0x29a0] sm:$0xff]
                %1491 = vst [vmem:[%s203 + $0x14ec] sm:$0xff] %v1490
                %v1492 = vld [vmem:[%s202 + $0x29a8] sm:$0xff]
                %1493 = vst [vmem:[%s203 + $0x14f4] sm:$0xff] %v1492
                %v1494 = vld [vmem:[%s202 + $0x29b0] sm:$0xff]
                %1495 = vst [vmem:[%s203 + $0x14fc] sm:$0xff] %v1494
                %v1496 = vld [vmem:[%s202 + $0x29b8] sm:$0xff]
                %1497 = vst [vmem:[%s203 + $0x1504] sm:$0xff] %v1496
                %v1498 = vld [vmem:[%s202 + $0x29c0] sm:$0xff]
                %1499 = vst [vmem:[%s203 + $0x150c] sm:$0xff] %v1498
                %v1500 = vld [vmem:[%s202 + $0x2a30] sm:$0xff]
                %1501 = vst [vmem:[%s203 + $0x1518] sm:$0xff] %v1500
                %v1502 = vld [vmem:[%s202 + $0x2a38] sm:$0xff]
                %1503 = vst [vmem:[%s203 + $0x1520] sm:$0xff] %v1502
                %v1504 = vld [vmem:[%s202 + $0x2a40] sm:$0xff]
                %1505 = vst [vmem:[%s203 + $0x1528] sm:$0xff] %v1504
                %v1506 = vld [vmem:[%s202 + $0x2a48] sm:$0xff]
                %1507 = vst [vmem:[%s203 + $0x1530] sm:$0xff] %v1506
                %v1508 = vld [vmem:[%s202 + $0x2a50] sm:$0xff]
                %1509 = vst [vmem:[%s203 + $0x1538] sm:$0xff] %v1508
                %v1510 = vld [vmem:[%s202 + $0x2a58] sm:$0xff]
                %1511 = vst [vmem:[%s203 + $0x1540] sm:$0xff] %v1510
                %v1512 = vld [vmem:[%s202 + $0x2a60] sm:$0xff]
                %1513 = vst [vmem:[%s203 + $0x1548] sm:$0xff] %v1512
                %v1514 = vld [vmem:[%s202 + $0x2a68] sm:$0xff]
                %1515 = vst [vmem:[%s203 + $0x1550] sm:$0xff] %v1514
                %v1516 = vld [vmem:[%s202 + $0x2a70] sm:$0xff]
                %1517 = vst [vmem:[%s203 + $0x1558] sm:$0xff] %v1516
                %v1518 = vld [vmem:[%s202 + $0x2a78] sm:$0xff]
                %1519 = vst [vmem:[%s203 + $0x1560] sm:$0xff] %v1518
                %v1520 = vld [vmem:[%s202 + $0x2a80] sm:$0xff]
                %1521 = vst [vmem:[%s203 + $0x1568] sm:$0xff] %v1520
                %v1522 = vld [vmem:[%s202 + $0x2a88] sm:$0xff]
                %1523 = vst [vmem:[%s203 + $0x1570] sm:$0xff] %v1522
                %v1524 = vld [vmem:[%s202 + $0x2af8] sm:$0xff]
                %1525 = vst [vmem:[%s203 + $0x157c] sm:$0xff] %v1524
                %v1526 = vld [vmem:[%s202 + $0x2b00] sm:$0xff]
                %1527 = vst [vmem:[%s203 + $0x1584] sm:$0xff] %v1526
                %v1528 = vld [vmem:[%s202 + $0x2b08] sm:$0xff]
                %1529 = vst [vmem:[%s203 + $0x158c] sm:$0xff] %v1528
                %v1530 = vld [vmem:[%s202 + $0x2b10] sm:$0xff]
                %1531 = vst [vmem:[%s203 + $0x1594] sm:$0xff] %v1530
                %v1532 = vld [vmem:[%s202 + $0x2b18] sm:$0xff]
                %1533 = vst [vmem:[%s203 + $0x159c] sm:$0xff] %v1532
                %v1534 = vld [vmem:[%s202 + $0x2b20] sm:$0xff]
                %1535 = vst [vmem:[%s203 + $0x15a4] sm:$0xff] %v1534
                %v1536 = vld [vmem:[%s202 + $0x2b28] sm:$0xff]
                %1537 = vst [vmem:[%s203 + $0x15ac] sm:$0xff] %v1536
                %v1538 = vld [vmem:[%s202 + $0x2b30] sm:$0xff]
                %1539 = vst [vmem:[%s203 + $0x15b4] sm:$0xff] %v1538
                %v1540 = vld [vmem:[%s202 + $0x2b38] sm:$0xff]
                %1541 = vst [vmem:[%s203 + $0x15bc] sm:$0xff] %v1540
                %v1542 = vld [vmem:[%s202 + $0x2b40] sm:$0xff]
                %1543 = vst [vmem:[%s203 + $0x15c4] sm:$0xff] %v1542
                %v1544 = vld [vmem:[%s202 + $0x2b48] sm:$0xff]
                %1545 = vst [vmem:[%s203 + $0x15cc] sm:$0xff] %v1544
                %v1546 = vld [vmem:[%s202 + $0x2b50] sm:$0xff]
                %1547 = vst [vmem:[%s203 + $0x15d4] sm:$0xff] %v1546
                %v1548 = vld [vmem:[%s202 + $0x2bc0] sm:$0xff]
                %1549 = vst [vmem:[%s203 + $0x15e0] sm:$0xff] %v1548
                %v1550 = vld [vmem:[%s202 + $0x2bc8] sm:$0xff]
                %1551 = vst [vmem:[%s203 + $0x15e8] sm:$0xff] %v1550
                %v1552 = vld [vmem:[%s202 + $0x2bd0] sm:$0xff]
                %1553 = vst [vmem:[%s203 + $0x15f0] sm:$0xff] %v1552
                %v1554 = vld [vmem:[%s202 + $0x2bd8] sm:$0xff]
                %1555 = vst [vmem:[%s203 + $0x15f8] sm:$0xff] %v1554
                %v1556 = vld [vmem:[%s202 + $0x2be0] sm:$0xff]
                %1557 = vst [vmem:[%s203 + $0x1600] sm:$0xff] %v1556
                %v1558 = vld [vmem:[%s202 + $0x2be8] sm:$0xff]
                %1559 = vst [vmem:[%s203 + $0x1608] sm:$0xff] %v1558
                %v1560 = vld [vmem:[%s202 + $0x2bf0] sm:$0xff]
                %1561 = vst [vmem:[%s203 + $0x1610] sm:$0xff] %v1560
                %v1562 = vld [vmem:[%s202 + $0x2bf8] sm:$0xff]
                %1563 = vst [vmem:[%s203 + $0x1618] sm:$0xff] %v1562
                %v1564 = vld [vmem:[%s202 + $0x2c00] sm:$0xff]
                %1565 = vst [vmem:[%s203 + $0x1620] sm:$0xff] %v1564
                %v1566 = vld [vmem:[%s202 + $0x2c08] sm:$0xff]
                %1567 = vst [vmem:[%s203 + $0x1628] sm:$0xff] %v1566
                %v1568 = vld [vmem:[%s202 + $0x2c10] sm:$0xff]
                %1569 = vst [vmem:[%s203 + $0x1630] sm:$0xff] %v1568
                %v1570 = vld [vmem:[%s202 + $0x2c18] sm:$0xff]
                %1571 = vst [vmem:[%s203 + $0x1638] sm:$0xff] %v1570
                %v1572 = vld [vmem:[%s202 + $0x2c88] sm:$0xff]
                %1573 = vst [vmem:[%s203 + $0x1644] sm:$0xff] %v1572
                %v1574 = vld [vmem:[%s202 + $0x2c90] sm:$0xff]
                %1575 = vst [vmem:[%s203 + $0x164c] sm:$0xff] %v1574
                %v1576 = vld [vmem:[%s202 + $0x2c98] sm:$0xff]
                %1577 = vst [vmem:[%s203 + $0x1654] sm:$0xff] %v1576
                %v1578 = vld [vmem:[%s202 + $0x2ca0] sm:$0xff]
                %1579 = vst [vmem:[%s203 + $0x165c] sm:$0xff] %v1578
                %v1580 = vld [vmem:[%s202 + $0x2ca8] sm:$0xff]
                %1581 = vst [vmem:[%s203 + $0x1664] sm:$0xff] %v1580
                %v1582 = vld [vmem:[%s202 + $0x2cb0] sm:$0xff]
                %1583 = vst [vmem:[%s203 + $0x166c] sm:$0xff] %v1582
                %v1584 = vld [vmem:[%s202 + $0x2cb8] sm:$0xff]
                %1585 = vst [vmem:[%s203 + $0x1674] sm:$0xff] %v1584
                %v1586 = vld [vmem:[%s202 + $0x2cc0] sm:$0xff]
                %1587 = vst [vmem:[%s203 + $0x167c] sm:$0xff] %v1586
                %v1588 = vld [vmem:[%s202 + $0x2cc8] sm:$0xff]
                %1589 = vst [vmem:[%s203 + $0x1684] sm:$0xff] %v1588
                %v1590 = vld [vmem:[%s202 + $0x2cd0] sm:$0xff]
                %1591 = vst [vmem:[%s203 + $0x168c] sm:$0xff] %v1590
                %v1592 = vld [vmem:[%s202 + $0x2cd8] sm:$0xff]
                %1593 = vst [vmem:[%s203 + $0x1694] sm:$0xff] %v1592
                %v1594 = vld [vmem:[%s202 + $0x2ce0] sm:$0xff]
                %1595 = vst [vmem:[%s203 + $0x169c] sm:$0xff] %v1594
                %v1596 = vld [vmem:[%s202 + $0x2d50] sm:$0xff]
                %1597 = vst [vmem:[%s203 + $0x16a8] sm:$0xff] %v1596
                %v1598 = vld [vmem:[%s202 + $0x2d58] sm:$0xff]
                %1599 = vst [vmem:[%s203 + $0x16b0] sm:$0xff] %v1598
                %v1600 = vld [vmem:[%s202 + $0x2d60] sm:$0xff]
                %1601 = vst [vmem:[%s203 + $0x16b8] sm:$0xff] %v1600
                %v1602 = vld [vmem:[%s202 + $0x2d68] sm:$0xff]
                %1603 = vst [vmem:[%s203 + $0x16c0] sm:$0xff] %v1602
                %v1604 = vld [vmem:[%s202 + $0x2d70] sm:$0xff]
                %1605 = vst [vmem:[%s203 + $0x16c8] sm:$0xff] %v1604
                %v1606 = vld [vmem:[%s202 + $0x2d78] sm:$0xff]
                %1607 = vst [vmem:[%s203 + $0x16d0] sm:$0xff] %v1606
                %v1608 = vld [vmem:[%s202 + $0x2d80] sm:$0xff]
                %1609 = vst [vmem:[%s203 + $0x16d8] sm:$0xff] %v1608
                %v1610 = vld [vmem:[%s202 + $0x2d88] sm:$0xff]
                %1611 = vst [vmem:[%s203 + $0x16e0] sm:$0xff] %v1610
                %v1612 = vld [vmem:[%s202 + $0x2d90] sm:$0xff]
                %1613 = vst [vmem:[%s203 + $0x16e8] sm:$0xff] %v1612
                %v1614 = vld [vmem:[%s202 + $0x2d98] sm:$0xff]
                %1615 = vst [vmem:[%s203 + $0x16f0] sm:$0xff] %v1614
                %v1616 = vld [vmem:[%s202 + $0x2da0] sm:$0xff]
                %1617 = vst [vmem:[%s203 + $0x16f8] sm:$0xff] %v1616
                %v1618 = vld [vmem:[%s202 + $0x2da8] sm:$0xff]
                %1619 = vst [vmem:[%s203 + $0x1700] sm:$0xff] %v1618
                %v1620 = vld [vmem:[%s202 + $0x2e18] sm:$0xff]
                %1621 = vst [vmem:[%s203 + $0x170c] sm:$0xff] %v1620
                %v1622 = vld [vmem:[%s202 + $0x2e20] sm:$0xff]
                %1623 = vst [vmem:[%s203 + $0x1714] sm:$0xff] %v1622
                %v1624 = vld [vmem:[%s202 + $0x2e28] sm:$0xff]
                %1625 = vst [vmem:[%s203 + $0x171c] sm:$0xff] %v1624
                %v1626 = vld [vmem:[%s202 + $0x2e30] sm:$0xff]
                %1627 = vst [vmem:[%s203 + $0x1724] sm:$0xff] %v1626
                %v1628 = vld [vmem:[%s202 + $0x2e38] sm:$0xff]
                %1629 = vst [vmem:[%s203 + $0x172c] sm:$0xff] %v1628
                %v1630 = vld [vmem:[%s202 + $0x2e40] sm:$0xff]
                %1631 = vst [vmem:[%s203 + $0x1734] sm:$0xff] %v1630
                %v1632 = vld [vmem:[%s202 + $0x2e48] sm:$0xff]
                %1633 = vst [vmem:[%s203 + $0x173c] sm:$0xff] %v1632
                %v1634 = vld [vmem:[%s202 + $0x2e50] sm:$0xff]
                %1635 = vst [vmem:[%s203 + $0x1744] sm:$0xff] %v1634
                %v1636 = vld [vmem:[%s202 + $0x2e58] sm:$0xff]
                %1637 = vst [vmem:[%s203 + $0x174c] sm:$0xff] %v1636
                %v1638 = vld [vmem:[%s202 + $0x2e60] sm:$0xff]
                %1639 = vst [vmem:[%s203 + $0x1754] sm:$0xff] %v1638
                %v1640 = vld [vmem:[%s202 + $0x2e68] sm:$0xff]
                %1641 = vst [vmem:[%s203 + $0x175c] sm:$0xff] %v1640
                %v1642 = vld [vmem:[%s202 + $0x2e70] sm:$0xff]
                %1643 = vst [vmem:[%s203 + $0x1764] sm:$0xff] %v1642
                %v1644 = vld [vmem:[%s202 + $0x2ee0] sm:$0xff]
                %1645 = vst [vmem:[%s203 + $0x1770] sm:$0xff] %v1644
                %v1646 = vld [vmem:[%s202 + $0x2ee8] sm:$0xff]
                %1647 = vst [vmem:[%s203 + $0x1778] sm:$0xff] %v1646
                %v1648 = vld [vmem:[%s202 + $0x2ef0] sm:$0xff]
                %1649 = vst [vmem:[%s203 + $0x1780] sm:$0xff] %v1648
                %v1650 = vld [vmem:[%s202 + $0x2ef8] sm:$0xff]
                %1651 = vst [vmem:[%s203 + $0x1788] sm:$0xff] %v1650
                %v1652 = vld [vmem:[%s202 + $0x2f00] sm:$0xff]
                %1653 = vst [vmem:[%s203 + $0x1790] sm:$0xff] %v1652
                %v1654 = vld [vmem:[%s202 + $0x2f08] sm:$0xff]
                %1655 = vst [vmem:[%s203 + $0x1798] sm:$0xff] %v1654
                %v1656 = vld [vmem:[%s202 + $0x2f10] sm:$0xff]
                %1657 = vst [vmem:[%s203 + $0x17a0] sm:$0xff] %v1656
                %v1658 = vld [vmem:[%s202 + $0x2f18] sm:$0xff]
                %1659 = vst [vmem:[%s203 + $0x17a8] sm:$0xff] %v1658
                %v1660 = vld [vmem:[%s202 + $0x2f20] sm:$0xff]
                %1661 = vst [vmem:[%s203 + $0x17b0] sm:$0xff] %v1660
                %v1662 = vld [vmem:[%s202 + $0x2f28] sm:$0xff]
                %1663 = vst [vmem:[%s203 + $0x17b8] sm:$0xff] %v1662
                %v1664 = vld [vmem:[%s202 + $0x2f30] sm:$0xff]
                %1665 = vst [vmem:[%s203 + $0x17c0] sm:$0xff] %v1664
                %v1666 = vld [vmem:[%s202 + $0x2f38] sm:$0xff]
                %1667 = vst [vmem:[%s203 + $0x17c8] sm:$0xff] %v1666
                %v1668 = vld [vmem:[%s202 + $0x2fa8] sm:$0xff]
                %1669 = vst [vmem:[%s203 + $0x17d4] sm:$0xff] %v1668
                %v1670 = vld [vmem:[%s202 + $0x2fb0] sm:$0xff]
                %1671 = vst [vmem:[%s203 + $0x17dc] sm:$0xff] %v1670
                %v1672 = vld [vmem:[%s202 + $0x2fb8] sm:$0xff]
                %1673 = vst [vmem:[%s203 + $0x17e4] sm:$0xff] %v1672
                %v1674 = vld [vmem:[%s202 + $0x2fc0] sm:$0xff]
                %1675 = vst [vmem:[%s203 + $0x17ec] sm:$0xff] %v1674
                %v1676 = vld [vmem:[%s202 + $0x2fc8] sm:$0xff]
                %1677 = vst [vmem:[%s203 + $0x17f4] sm:$0xff] %v1676
                %v1678 = vld [vmem:[%s202 + $0x2fd0] sm:$0xff]
                %1679 = vst [vmem:[%s203 + $0x17fc] sm:$0xff] %v1678
                %v1680 = vld [vmem:[%s202 + $0x2fd8] sm:$0xff]
                %1681 = vst [vmem:[%s203 + $0x1804] sm:$0xff] %v1680
                %v1682 = vld [vmem:[%s202 + $0x2fe0] sm:$0xff]
                %1683 = vst [vmem:[%s203 + $0x180c] sm:$0xff] %v1682
                %v1684 = vld [vmem:[%s202 + $0x2fe8] sm:$0xff]
                %1685 = vst [vmem:[%s203 + $0x1814] sm:$0xff] %v1684
                %v1686 = vld [vmem:[%s202 + $0x2ff0] sm:$0xff]
                %1687 = vst [vmem:[%s203 + $0x181c] sm:$0xff] %v1686
                %v1688 = vld [vmem:[%s202 + $0x2ff8] sm:$0xff]
                %1689 = vst [vmem:[%s203 + $0x1824] sm:$0xff] %v1688
                %v1690 = vld [vmem:[%s202 + $0x3000] sm:$0xff]
                %1691 = vst [vmem:[%s203 + $0x182c] sm:$0xff] %v1690
                %v1692 = vld [vmem:[%s202 + $0x3070] sm:$0xff]
                %1693 = vst [vmem:[%s203 + $0x1838] sm:$0xff] %v1692
                %v1694 = vld [vmem:[%s202 + $0x3078] sm:$0xff]
                %1695 = vst [vmem:[%s203 + $0x1840] sm:$0xff] %v1694
                %v1696 = vld [vmem:[%s202 + $0x3080] sm:$0xff]
                %1697 = vst [vmem:[%s203 + $0x1848] sm:$0xff] %v1696
                %v1698 = vld [vmem:[%s202 + $0x3088] sm:$0xff]
                %1699 = vst [vmem:[%s203 + $0x1850] sm:$0xff] %v1698
                %v1700 = vld [vmem:[%s202 + $0x3090] sm:$0xff]
                %1701 = vst [vmem:[%s203 + $0x1858] sm:$0xff] %v1700
                %v1702 = vld [vmem:[%s202 + $0x3098] sm:$0xff]
                %1703 = vst [vmem:[%s203 + $0x1860] sm:$0xff] %v1702
                %v1704 = vld [vmem:[%s202 + $0x30a0] sm:$0xff]
                %1705 = vst [vmem:[%s203 + $0x1868] sm:$0xff] %v1704
                %v1706 = vld [vmem:[%s202 + $0x30a8] sm:$0xff]
                %1707 = vst [vmem:[%s203 + $0x1870] sm:$0xff] %v1706
                %v1708 = vld [vmem:[%s202 + $0x30b0] sm:$0xff]
                %1709 = vst [vmem:[%s203 + $0x1878] sm:$0xff] %v1708
                %v1710 = vld [vmem:[%s202 + $0x30b8] sm:$0xff]
                %1711 = vst [vmem:[%s203 + $0x1880] sm:$0xff] %v1710
                %v1712 = vld [vmem:[%s202 + $0x30c0] sm:$0xff]
                %1713 = vst [vmem:[%s203 + $0x1888] sm:$0xff] %v1712
                %v1714 = vld [vmem:[%s202 + $0x30c8] sm:$0xff]
                %1715 = vst [vmem:[%s203 + $0x1890] sm:$0xff] %v1714
                %v1716 = vld [vmem:[%s202 + $0x3138] sm:$0xff]
                %1717 = vst [vmem:[%s203 + $0x189c] sm:$0xff] %v1716
                %v1718 = vld [vmem:[%s202 + $0x3140] sm:$0xff]
                %1719 = vst [vmem:[%s203 + $0x18a4] sm:$0xff] %v1718
                %v1720 = vld [vmem:[%s202 + $0x3148] sm:$0xff]
                %1721 = vst [vmem:[%s203 + $0x18ac] sm:$0xff] %v1720
                %v1722 = vld [vmem:[%s202 + $0x3150] sm:$0xff]
                %1723 = vst [vmem:[%s203 + $0x18b4] sm:$0xff] %v1722
                %v1724 = vld [vmem:[%s202 + $0x3158] sm:$0xff]
                %1725 = vst [vmem:[%s203 + $0x18bc] sm:$0xff] %v1724
                %v1726 = vld [vmem:[%s202 + $0x3160] sm:$0xff]
                %1727 = vst [vmem:[%s203 + $0x18c4] sm:$0xff] %v1726
                %v1728 = vld [vmem:[%s202 + $0x3168] sm:$0xff]
                %1729 = vst [vmem:[%s203 + $0x18cc] sm:$0xff] %v1728
                %v1730 = vld [vmem:[%s202 + $0x3170] sm:$0xff]
                %1731 = vst [vmem:[%s203 + $0x18d4] sm:$0xff] %v1730
                %v1732 = vld [vmem:[%s202 + $0x3178] sm:$0xff]
                %1733 = vst [vmem:[%s203 + $0x18dc] sm:$0xff] %v1732
                %v1734 = vld [vmem:[%s202 + $0x3180] sm:$0xff]
                %1735 = vst [vmem:[%s203 + $0x18e4] sm:$0xff] %v1734
                %v1736 = vld [vmem:[%s202 + $0x3188] sm:$0xff]
                %1737 = vst [vmem:[%s203 + $0x18ec] sm:$0xff] %v1736
                %v1738 = vld [vmem:[%s202 + $0x3190] sm:$0xff]
                %1739 = vst [vmem:[%s203 + $0x18f4] sm:$0xff] %v1738
              $region45: #{_lambda_.4} parent=39 // loop_footer
                %s201 = sadd.s32 1, %s197
              $region46: #{_lambda_.4} parent=39 // loop_footer_branch
                %196 = sbr.rel target = $region42
              $region47: #{_lambda_.4} parent=39 // loop_exit
                _
              loop: start=0, step=1, limit=1
              $region48: #{_lambda_.4} parent=39 // loop_pre_header
                _
              $region49: #{_lambda_.4} parent=39 // loop_header
                %s1742 = sphi 0, %s1746
                %p1743 = scmp.ge.s32.totalorder %s1742, 1
                %s1747 = sphi %s194, %s194
                %s1748 = sphi %s195, %s195
              $region50: #{_lambda_.4} parent=39 // loop_header_branch
                %1745 = sbr.rel (%p1743) target = $region54
              $region51: #{_lambda_.4} parent=39 // loop_body
                %v1749 = vld [vmem:[%s1747] sm:$0xf]
                %1750 = vst [vmem:[%s1748] sm:$0xf] %v1749
                %v1751 = vld [vmem:[%s1747 + $0xc8] sm:$0xf]
                %1752 = vst [vmem:[%s1748 + $0x64] sm:$0xf] %v1751
                %v1753 = vld [vmem:[%s1747 + $0x190] sm:$0xf]
                %1754 = vst [vmem:[%s1748 + $0xc8] sm:$0xf] %v1753
                %v1755 = vld [vmem:[%s1747 + $0x258] sm:$0xf]
                %1756 = vst [vmem:[%s1748 + $0x12c] sm:$0xf] %v1755
                %v1757 = vld [vmem:[%s1747 + $0x320] sm:$0xf]
                %1758 = vst [vmem:[%s1748 + $0x190] sm:$0xf] %v1757
                %v1759 = vld [vmem:[%s1747 + $0x3e8] sm:$0xf]
                %1760 = vst [vmem:[%s1748 + $0x1f4] sm:$0xf] %v1759
                %v1761 = vld [vmem:[%s1747 + $0x4b0] sm:$0xf]
                %1762 = vst [vmem:[%s1748 + $0x258] sm:$0xf] %v1761
                %v1763 = vld [vmem:[%s1747 + $0x578] sm:$0xf]
                %1764 = vst [vmem:[%s1748 + $0x2bc] sm:$0xf] %v1763
                %v1765 = vld [vmem:[%s1747 + $0x640] sm:$0xf]
                %1766 = vst [vmem:[%s1748 + $0x320] sm:$0xf] %v1765
                %v1767 = vld [vmem:[%s1747 + $0x708] sm:$0xf]
                %1768 = vst [vmem:[%s1748 + $0x384] sm:$0xf] %v1767
                %v1769 = vld [vmem:[%s1747 + $0x7d0] sm:$0xf]
                %1770 = vst [vmem:[%s1748 + $0x3e8] sm:$0xf] %v1769
                %v1771 = vld [vmem:[%s1747 + $0x898] sm:$0xf]
                %1772 = vst [vmem:[%s1748 + $0x44c] sm:$0xf] %v1771
                %v1773 = vld [vmem:[%s1747 + $0x960] sm:$0xf]
                %1774 = vst [vmem:[%s1748 + $0x4b0] sm:$0xf] %v1773
                %v1775 = vld [vmem:[%s1747 + $0xa28] sm:$0xf]
                %1776 = vst [vmem:[%s1748 + $0x514] sm:$0xf] %v1775
                %v1777 = vld [vmem:[%s1747 + $0xaf0] sm:$0xf]
                %1778 = vst [vmem:[%s1748 + $0x578] sm:$0xf] %v1777
                %v1779 = vld [vmem:[%s1747 + $0xbb8] sm:$0xf]
                %1780 = vst [vmem:[%s1748 + $0x5dc] sm:$0xf] %v1779
                %v1781 = vld [vmem:[%s1747 + $0xc80] sm:$0xf]
                %1782 = vst [vmem:[%s1748 + $0x640] sm:$0xf] %v1781
                %v1783 = vld [vmem:[%s1747 + $0xd48] sm:$0xf]
                %1784 = vst [vmem:[%s1748 + $0x6a4] sm:$0xf] %v1783
                %v1785 = vld [vmem:[%s1747 + $0xe10] sm:$0xf]
                %1786 = vst [vmem:[%s1748 + $0x708] sm:$0xf] %v1785
                %v1787 = vld [vmem:[%s1747 + $0xed8] sm:$0xf]
                %1788 = vst [vmem:[%s1748 + $0x76c] sm:$0xf] %v1787
                %v1789 = vld [vmem:[%s1747 + $0xfa0] sm:$0xf]
                %1790 = vst [vmem:[%s1748 + $0x7d0] sm:$0xf] %v1789
                %v1791 = vld [vmem:[%s1747 + $0x1068] sm:$0xf]
                %1792 = vst [vmem:[%s1748 + $0x834] sm:$0xf] %v1791
                %v1793 = vld [vmem:[%s1747 + $0x1130] sm:$0xf]
                %1794 = vst [vmem:[%s1748 + $0x898] sm:$0xf] %v1793
                %v1795 = vld [vmem:[%s1747 + $0x11f8] sm:$0xf]
                %1796 = vst [vmem:[%s1748 + $0x8fc] sm:$0xf] %v1795
                %v1797 = vld [vmem:[%s1747 + $0x12c0] sm:$0xf]
                %1798 = vst [vmem:[%s1748 + $0x960] sm:$0xf] %v1797
                %v1799 = vld [vmem:[%s1747 + $0x1388] sm:$0xf]
                %1800 = vst [vmem:[%s1748 + $0x9c4] sm:$0xf] %v1799
                %v1801 = vld [vmem:[%s1747 + $0x1450] sm:$0xf]
                %1802 = vst [vmem:[%s1748 + $0xa28] sm:$0xf] %v1801
                %v1803 = vld [vmem:[%s1747 + $0x1518] sm:$0xf]
                %1804 = vst [vmem:[%s1748 + $0xa8c] sm:$0xf] %v1803
                %v1805 = vld [vmem:[%s1747 + $0x15e0] sm:$0xf]
                %1806 = vst [vmem:[%s1748 + $0xaf0] sm:$0xf] %v1805
                %v1807 = vld [vmem:[%s1747 + $0x16a8] sm:$0xf]
                %1808 = vst [vmem:[%s1748 + $0xb54] sm:$0xf] %v1807
                %v1809 = vld [vmem:[%s1747 + $0x1770] sm:$0xf]
                %1810 = vst [vmem:[%s1748 + $0xbb8] sm:$0xf] %v1809
                %v1811 = vld [vmem:[%s1747 + $0x1838] sm:$0xf]
                %1812 = vst [vmem:[%s1748 + $0xc1c] sm:$0xf] %v1811
                %v1813 = vld [vmem:[%s1747 + $0x1900] sm:$0xf]
                %1814 = vst [vmem:[%s1748 + $0xc80] sm:$0xf] %v1813
                %v1815 = vld [vmem:[%s1747 + $0x19c8] sm:$0xf]
                %1816 = vst [vmem:[%s1748 + $0xce4] sm:$0xf] %v1815
                %v1817 = vld [vmem:[%s1747 + $0x1a90] sm:$0xf]
                %1818 = vst [vmem:[%s1748 + $0xd48] sm:$0xf] %v1817
                %v1819 = vld [vmem:[%s1747 + $0x1b58] sm:$0xf]
                %1820 = vst [vmem:[%s1748 + $0xdac] sm:$0xf] %v1819
                %v1821 = vld [vmem:[%s1747 + $0x1c20] sm:$0xf]
                %1822 = vst [vmem:[%s1748 + $0xe10] sm:$0xf] %v1821
                %v1823 = vld [vmem:[%s1747 + $0x1ce8] sm:$0xf]
                %1824 = vst [vmem:[%s1748 + $0xe74] sm:$0xf] %v1823
                %v1825 = vld [vmem:[%s1747 + $0x1db0] sm:$0xf]
                %1826 = vst [vmem:[%s1748 + $0xed8] sm:$0xf] %v1825
                %v1827 = vld [vmem:[%s1747 + $0x1e78] sm:$0xf]
                %1828 = vst [vmem:[%s1748 + $0xf3c] sm:$0xf] %v1827
                %v1829 = vld [vmem:[%s1747 + $0x1f40] sm:$0xf]
                %1830 = vst [vmem:[%s1748 + $0xfa0] sm:$0xf] %v1829
                %v1831 = vld [vmem:[%s1747 + $0x2008] sm:$0xf]
                %1832 = vst [vmem:[%s1748 + $0x1004] sm:$0xf] %v1831
                %v1833 = vld [vmem:[%s1747 + $0x20d0] sm:$0xf]
                %1834 = vst [vmem:[%s1748 + $0x1068] sm:$0xf] %v1833
                %v1835 = vld [vmem:[%s1747 + $0x2198] sm:$0xf]
                %1836 = vst [vmem:[%s1748 + $0x10cc] sm:$0xf] %v1835
                %v1837 = vld [vmem:[%s1747 + $0x2260] sm:$0xf]
                %1838 = vst [vmem:[%s1748 + $0x1130] sm:$0xf] %v1837
                %v1839 = vld [vmem:[%s1747 + $0x2328] sm:$0xf]
                %1840 = vst [vmem:[%s1748 + $0x1194] sm:$0xf] %v1839
                %v1841 = vld [vmem:[%s1747 + $0x23f0] sm:$0xf]
                %1842 = vst [vmem:[%s1748 + $0x11f8] sm:$0xf] %v1841
                %v1843 = vld [vmem:[%s1747 + $0x24b8] sm:$0xf]
                %1844 = vst [vmem:[%s1748 + $0x125c] sm:$0xf] %v1843
                %v1845 = vld [vmem:[%s1747 + $0x2580] sm:$0xf]
                %1846 = vst [vmem:[%s1748 + $0x12c0] sm:$0xf] %v1845
                %v1847 = vld [vmem:[%s1747 + $0x2648] sm:$0xf]
                %1848 = vst [vmem:[%s1748 + $0x1324] sm:$0xf] %v1847
                %v1849 = vld [vmem:[%s1747 + $0x2710] sm:$0xf]
                %1850 = vst [vmem:[%s1748 + $0x1388] sm:$0xf] %v1849
                %v1851 = vld [vmem:[%s1747 + $0x27d8] sm:$0xf]
                %1852 = vst [vmem:[%s1748 + $0x13ec] sm:$0xf] %v1851
                %v1853 = vld [vmem:[%s1747 + $0x28a0] sm:$0xf]
                %1854 = vst [vmem:[%s1748 + $0x1450] sm:$0xf] %v1853
                %v1855 = vld [vmem:[%s1747 + $0x2968] sm:$0xf]
                %1856 = vst [vmem:[%s1748 + $0x14b4] sm:$0xf] %v1855
                %v1857 = vld [vmem:[%s1747 + $0x2a30] sm:$0xf]
                %1858 = vst [vmem:[%s1748 + $0x1518] sm:$0xf] %v1857
                %v1859 = vld [vmem:[%s1747 + $0x2af8] sm:$0xf]
                %1860 = vst [vmem:[%s1748 + $0x157c] sm:$0xf] %v1859
                %v1861 = vld [vmem:[%s1747 + $0x2bc0] sm:$0xf]
                %1862 = vst [vmem:[%s1748 + $0x15e0] sm:$0xf] %v1861
                %v1863 = vld [vmem:[%s1747 + $0x2c88] sm:$0xf]
                %1864 = vst [vmem:[%s1748 + $0x1644] sm:$0xf] %v1863
                %v1865 = vld [vmem:[%s1747 + $0x2d50] sm:$0xf]
                %1866 = vst [vmem:[%s1748 + $0x16a8] sm:$0xf] %v1865
                %v1867 = vld [vmem:[%s1747 + $0x2e18] sm:$0xf]
                %1868 = vst [vmem:[%s1748 + $0x170c] sm:$0xf] %v1867
                %v1869 = vld [vmem:[%s1747 + $0x2ee0] sm:$0xf]
                %1870 = vst [vmem:[%s1748 + $0x1770] sm:$0xf] %v1869
                %v1871 = vld [vmem:[%s1747 + $0x2fa8] sm:$0xf]
                %1872 = vst [vmem:[%s1748 + $0x17d4] sm:$0xf] %v1871
                %v1873 = vld [vmem:[%s1747 + $0x3070] sm:$0xf]
                %1874 = vst [vmem:[%s1748 + $0x1838] sm:$0xf] %v1873
                %v1875 = vld [vmem:[%s1747 + $0x3138] sm:$0xf]
                %1876 = vst [vmem:[%s1748 + $0x189c] sm:$0xf] %v1875
              $region52: #{_lambda_.4} parent=39 // loop_footer
                %s1746 = sadd.s32 1, %s1742
              $region53: #{_lambda_.4} parent=39 // loop_footer_branch
                %1741 = sbr.rel target = $region49
              $region54: #{_lambda_.4} parent=39 // loop_exit
                _
            $region40: #{_lambda_.4} parent=35 // pred_fallthru
              _
          $region36: #{_lambda_.4} parent=31 // pred_fallthru
            _
          %1877 = vnop
        $region32: #{_lambda_.4} parent=27 // pred_fallthru
          _
        // Predicated region
        $region55: #{_lambda_.4} parent=27 // pred_check
          %p1878 = pneg %p120
        $region56: #{_lambda_.4} parent=27 // pred_check_branch
          %1880 = sbr.rel (%p1878) target = $region58
        $region57: #{_lambda_.4} parent=27 // pred_region
          %s1881 = smul.u32 25, %s11
          %p1882 = scmp.lt.s32.totalorder %s1881, 49
          %s1883 = scalar_select %p1882, %s1881, 49
          %s1884 = scalar_lea.vmem %s4, %s1883
          %s1885 = smul.u32 25, %s11
        $region58: #{_lambda_.4} parent=27 // pred_fallthru
          _
      $region28: #{_lambda_.4} parent=5 // pred_fallthru
        _
      %p1886 = scmp.le.s32.totalorder 1, %s11
      %p1887 = scmp.lt.s32.totalorder %s11, 3
      %p1888 = pnand %p1886, %p1887
      %p1889 = pneg %p1888
      // Predicated region
      $region59: #{_lambda_.4} parent=5 // pred_check
        _
      $region60: #{_lambda_.4} parent=5 // pred_check_branch
        %1891 = sbr.rel (%p1888) target = $region62
      $region61: #{_lambda_.4} parent=5 // pred_region
        %s1892 = ssub.s32 %s11, 1
        %s1893 = sand.u32 %s87, 1
        %s1894 = sand.u32 %s87, 1
        %s1895 = smul.addr %s1894, 6400
        %s1896 = scalar_lea.vmem [#allocation2], %s1895
        // Predicated region
        $region63: #{_lambda_.4} parent=61 // pred_check
          %p1897 = pneg %p100
        $region64: #{_lambda_.4} parent=61 // pred_check_branch
          %1899 = sbr.rel (%p1897) target = $region66
        $region65: #{_lambda_.4} parent=61 // pred_region
          _
        $region66: #{_lambda_.4} parent=61 // pred_fallthru
          _
        %p1900 = pneg %p32
        %p1901 = pneg %p29
        %p1902 = pneg %p53
        %p1903 = pneg %p50
        %p1904 = pneg %p74
        %p1905 = pneg %p71
        %s1906 = sand.u32 %s87, 1
        %s1907 = sand.u32 %s87, 1
        %s1908 = smul.addr %s1907, 6400
        %s1909 = scalar_lea.vmem [#allocation2], %s1908
        %p1910 = pneg %p100
        %p1911 = pneg %p97
        %s1912 = smul.u32 25, %s16
        %p1913 = scmp.lt.s32.totalorder %s1912, 49
        %s1914 = scalar_select %p1913, %s1912, 49
        %s1915 = scalar_lea.vmem %s4, %s1914
        %p1916 = pneg %p126
        %p1917 = pneg %p123
        %p1918 = pneg %p152
        %p1919 = pneg %p149
        %s1920 = smul.u32 25, %s16
        %p1921 = scmp.lt.s32.totalorder %s1920, 49
        %s1922 = scalar_select %p1921, %s1920, 49
        %s1923 = scalar_lea.vmem %s5, %s1922
        %s1924 = smul.u32 25, %s16
        %s1925 = smul.u32 25, %s16
        %p1926 = scmp.lt.s32.totalorder %s1925, 49
        %s1927 = scalar_select %p1926, %s1925, 49
        %s1928 = scalar_lea.vmem %s4, %s1927
        %s1929 = smul.u32 25, %s16
        %s1930 = smul.u32 25, %s16
        %p1931 = scmp.lt.s32.totalorder %s1930, 49
        %s1932 = scalar_select %p1931, %s1930, 49
        %s1933 = scalar_lea.vmem %s5, %s1932
        %s1934 = smul.u32 25, %s16
        %v1936 = vld [vmem:[%s0] sm:$0x1]
        %v1937 = vld [vmem:[%s1] sm:$0xff]
        %v1938 = vld [vmem:[%s1 + $0x8] sm:$0xff]
        %v1939 = vld [vmem:[%s1 + $0x10] sm:$0xff]
        %v1940 = vld [vmem:[%s1 + $0x18] sm:$0xff]
        %v1941 = vld [vmem:[%s1 + $0x20] sm:$0xff]
        %v1942 = vld [vmem:[%s1 + $0x28] sm:$0xff]
        %v1943 = vld [vmem:[%s1 + $0x30] sm:$0xff]
        %v1944 = vld [vmem:[%s1 + $0x38] sm:$0xff]
        %v1945 = vld [vmem:[%s2] sm:$0xf]
        %v1947 = vlaneseq
        %v1948 = vshrl.u32 %v1947, 7
        %v1949 = vsub.s32 0, %v1948
        %v1950 = vrot.slane %v1945, %v1949
        %v1951 = vlaneseq
        %v1952 = vshrl.u32 %v1951, 7
        %v1953 = vsub.s32 1, %v1952
        %v1954 = vrot.slane %v1945, %v1953
        %v1955 = vlaneseq
        %v1956 = vshrl.u32 %v1955, 7
        %v1957 = vsub.s32 2, %v1956
        %v1958 = vrot.slane %v1945, %v1957
        %v1959 = vlaneseq
        %v1960 = vshrl.u32 %v1959, 7
        %v1961 = vsub.s32 3, %v1960
        %v1962 = vrot.slane %v1945, %v1961
        %v1975 = vunpack.c.l.b16 %v1937
        %v1976 = vunpack.c.h.b16 %v1937
        %v1977 = vunpack.c.l.b16 %v1938
        %v1978 = vunpack.c.h.b16 %v1938
        %v1979 = vunpack.c.l.b16 %v1939
        %v1980 = vunpack.c.h.b16 %v1939
        %v1981 = vunpack.c.l.b16 %v1940
        %v1982 = vunpack.c.h.b16 %v1940
        %v1983 = vunpack.c.l.b16 %v1941
        %v1984 = vunpack.c.h.b16 %v1941
        %v1985 = vunpack.c.l.b16 %v1942
        %v1986 = vunpack.c.h.b16 %v1942
        %v1987 = vunpack.c.l.b16 %v1943
        %v1988 = vunpack.c.h.b16 %v1943
        %v1989 = vunpack.c.l.b16 %v1944
        %v1990 = vunpack.c.h.b16 %v1944
        %v1991 = vpack.c.b16 %v1979, %v1975
        %v1992 = vpack.c.b16 %v1980, %v1976
        %v1993 = vpack.c.b16 %v1981, %v1977
        %v1994 = vpack.c.b16 %v1982, %v1978
        %v1995 = vpack.c.b16 %v1987, %v1983
        %v1996 = vpack.c.b16 %v1988, %v1984
        %v1997 = vpack.c.b16 %v1989, %v1985
        %v1998 = vpack.c.b16 %v1990, %v1986
        %vm2007 = vcmask 261120
        %v2009 = vsel %vm2007, %v1936, 0
        %2011 = vmatprep.subr.bf16.mxu0 %v1992
        %2012 = vmatpush1.bf16.msra.mxu0 %v1991
        %2013 = vmatprep.subr.bf16.mxu0 %v1996
        %2014 = vmatpush1.bf16.msra.mxu0 %v1995
        %2015 = vmatprep.subr.bf16.mxu0 0
        %2016 = vmatpush1.bf16.msra.mxu0 0
        %2017 = vmatprep.subr.bf16.mxu0 0
        %2018 = vmatpush1.bf16.msra.mxu0 0
        %2019 = vmatprep.subr.bf16.mxu0 0
        %2020 = vmatpush1.bf16.msra.mxu0 0
        %2021 = vmatprep.subr.bf16.mxu0 0
        %2022 = vmatpush1.bf16.msra.mxu0 0
        %2023 = vmatprep.subr.bf16.mxu0 0
        %2024 = vmatpush1.bf16.msra.mxu0 0
        %2025 = vmatprep.subr.bf16.mxu0 0
        %2026 = vmatpush1.bf16.msra.mxu0 0
        %2027 = vmatprep.subr.bf16.mxu0 0
        %2028 = vmatpush1.bf16.msra.mxu0 0
        %2029 = vmatprep.subr.bf16.mxu0 0
        %2030 = vmatpush1.bf16.msra.mxu0 0
        %2031 = vmatprep.subr.bf16.mxu0 0
        %2032 = vmatpush1.bf16.msra.mxu0 0
        %2033 = vmatprep.subr.bf16.mxu0 0
        %2034 = vmatpush1.bf16.msra.mxu0 0
        %2035 = vmatprep.subr.bf16.mxu0 0
        %2036 = vmatpush1.bf16.msra.mxu0 0
        %2037 = vmatprep.subr.bf16.mxu0 0
        %2038 = vmatpush1.bf16.msra.mxu0 0
        %2039 = vmatprep.subr.bf16.mxu0 0
        %2040 = vmatpush1.bf16.msra.mxu0 0
        %2041 = vmatprep.subr.bf16.mxu0 0
        %2042 = vmatpush1.bf16.msra.mxu0 0
        %2043 = vmatprep.mubr.bf16.mxu0 0
        %2044 = vmatmul.mubr.bf16.gmra.mrb[0].mxu0 %v2009
        %v2045 = vpop.f32.mrb[0].mxu0
        %v2046 = vadd.f32 %v1950, %v2045
        %v2047 = vpop.f32.mrb[0].mxu0
        %v2048 = vadd.f32 %v1954, %v2047
        %v2049 = vpop.f32.mrb[0].mxu0
        %v2050 = vpop.f32.mrb[0].mxu0
        %2051 = vdwg.mxu0
        %2052 = vmatprep.subr.bf16.mxu0 %v1994
        %2053 = vmatpush1.bf16.msra.mxu0 %v1993
        %2054 = vmatprep.subr.bf16.mxu0 %v1998
        %2055 = vmatpush1.bf16.msra.mxu0 %v1997
        %2056 = vmatprep.subr.bf16.mxu0 0
        %2057 = vmatpush1.bf16.msra.mxu0 0
        %2058 = vmatprep.subr.bf16.mxu0 0
        %2059 = vmatpush1.bf16.msra.mxu0 0
        %2060 = vmatprep.subr.bf16.mxu0 0
        %2061 = vmatpush1.bf16.msra.mxu0 0
        %2062 = vmatprep.subr.bf16.mxu0 0
        %2063 = vmatpush1.bf16.msra.mxu0 0
        %2064 = vmatprep.subr.bf16.mxu0 0
        %2065 = vmatpush1.bf16.msra.mxu0 0
        %2066 = vmatprep.subr.bf16.mxu0 0
        %2067 = vmatpush1.bf16.msra.mxu0 0
        %2068 = vmatprep.subr.bf16.mxu0 0
        %2069 = vmatpush1.bf16.msra.mxu0 0
        %2070 = vmatprep.subr.bf16.mxu0 0
        %2071 = vmatpush1.bf16.msra.mxu0 0
        %2072 = vmatprep.subr.bf16.mxu0 0
        %2073 = vmatpush1.bf16.msra.mxu0 0
        %2074 = vmatprep.subr.bf16.mxu0 0
        %2075 = vmatpush1.bf16.msra.mxu0 0
        %2076 = vmatprep.subr.bf16.mxu0 0
        %2077 = vmatpush1.bf16.msra.mxu0 0
        %2078 = vmatprep.subr.bf16.mxu0 0
        %2079 = vmatpush1.bf16.msra.mxu0 0
        %2080 = vmatprep.subr.bf16.mxu0 0
        %2081 = vmatpush1.bf16.msra.mxu0 0
        %2082 = vmatprep.subr.bf16.mxu0 0
        %2083 = vmatpush1.bf16.msra.mxu0 0
        %2084 = vmatprep.mubr.bf16.mxu0 0
        %2085 = vmatmul.mubr.bf16.gmra.mrb[0].mxu0 %v2009
        %v2086 = vpop.f32.mrb[0].mxu0
        %v2087 = vadd.f32 %v1958, %v2086
        %v2088 = vpop.f32.mrb[0].mxu0
        %v2089 = vadd.f32 %v1962, %v2088
        %v2090 = vpop.f32.mrb[0].mxu0
        %v2091 = vpop.f32.mrb[0].mxu0
        %2092 = vdwg.mxu0
        %v2093 = vmax.f32 %v2046, 0.0
        %v2094 = vmax.f32 %v2048, 0.0
        %v2095 = vmax.f32 %v2087, 0.0
        %v2096 = vmax.f32 %v2089, 0.0
        %v2097 = vpack.c.bf16 %v2093, %v2093
        %v2098 = vpack.c.bf16 %v2094, %v2094
        %v2099 = vpack.c.bf16 %v2095, %v2095
        %v2100 = vpack.c.bf16 %v2096, %v2096
        %v2101 = vld [vmem:[%s1896] sm:$0xff]
        %v2102 = vld [vmem:[%s1896 + $0x8] sm:$0xff]
        %v2103 = vld [vmem:[%s1896 + $0x10] sm:$0xff]
        %v2104 = vld [vmem:[%s1896 + $0x18] sm:$0xff]
        %v2105 = vld [vmem:[%s1896 + $0x20] sm:$0xff]
        %v2106 = vld [vmem:[%s1896 + $0x28] sm:$0xff]
        %v2107 = vld [vmem:[%s1896 + $0x30] sm:$0xff]
        %v2108 = vld [vmem:[%s1896 + $0x38] sm:$0xff]
        %v2109 = vld [vmem:[%s1896 + $0x40] sm:$0xff]
        %v2110 = vld [vmem:[%s1896 + $0x48] sm:$0xff]
        %v2111 = vld [vmem:[%s1896 + $0x50] sm:$0xff]
        %v2112 = vld [vmem:[%s1896 + $0x58] sm:$0xff]
        %v2113 = vld [vmem:[%s1896 + $0x60] sm:$0xf]
        %v2114 = vld [vmem:[%s1896 + $0x64] sm:$0xff]
        %v2115 = vld [vmem:[%s1896 + $0x6c] sm:$0xff]
        %v2116 = vld [vmem:[%s1896 + $0x74] sm:$0xff]
        %v2117 = vld [vmem:[%s1896 + $0x7c] sm:$0xff]
        %v2118 = vld [vmem:[%s1896 + $0x84] sm:$0xff]
        %v2119 = vld [vmem:[%s1896 + $0x8c] sm:$0xff]
        %v2120 = vld [vmem:[%s1896 + $0x94] sm:$0xff]
        %v2121 = vld [vmem:[%s1896 + $0x9c] sm:$0xff]
        %v2122 = vld [vmem:[%s1896 + $0xa4] sm:$0xff]
        %v2123 = vld [vmem:[%s1896 + $0xac] sm:$0xff]
        %v2124 = vld [vmem:[%s1896 + $0xb4] sm:$0xff]
        %v2125 = vld [vmem:[%s1896 + $0xbc] sm:$0xff]
        %v2126 = vld [vmem:[%s1896 + $0xc4] sm:$0xf]
        %v2127 = vld [vmem:[%s1896 + $0xc8] sm:$0xff]
        %v2128 = vld [vmem:[%s1896 + $0xd0] sm:$0xff]
        %v2129 = vld [vmem:[%s1896 + $0xd8] sm:$0xff]
        %v2130 = vld [vmem:[%s1896 + $0xe0] sm:$0xff]
        %v2131 = vld [vmem:[%s1896 + $0xe8] sm:$0xff]
        %v2132 = vld [vmem:[%s1896 + $0xf0] sm:$0xff]
        %v2133 = vld [vmem:[%s1896 + $0xf8] sm:$0xff]
        %v2134 = vld [vmem:[%s1896 + $0x100] sm:$0xff]
        %v2135 = vld [vmem:[%s1896 + $0x108] sm:$0xff]
        %v2136 = vld [vmem:[%s1896 + $0x110] sm:$0xff]
        %v2137 = vld [vmem:[%s1896 + $0x118] sm:$0xff]
        %v2138 = vld [vmem:[%s1896 + $0x120] sm:$0xff]
        %v2139 = vld [vmem:[%s1896 + $0x128] sm:$0xf]
        %v2140 = vld [vmem:[%s1896 + $0x12c] sm:$0xff]
        %v2141 = vld [vmem:[%s1896 + $0x134] sm:$0xff]
        %v2142 = vld [vmem:[%s1896 + $0x13c] sm:$0xff]
        %v2143 = vld [vmem:[%s1896 + $0x144] sm:$0xff]
        %v2144 = vld [vmem:[%s1896 + $0x14c] sm:$0xff]
        %v2145 = vld [vmem:[%s1896 + $0x154] sm:$0xff]
        %v2146 = vld [vmem:[%s1896 + $0x15c] sm:$0xff]
        %v2147 = vld [vmem:[%s1896 + $0x164] sm:$0xff]
        %v2148 = vld [vmem:[%s1896 + $0x16c] sm:$0xff]
        %v2149 = vld [vmem:[%s1896 + $0x174] sm:$0xff]
        %v2150 = vld [vmem:[%s1896 + $0x17c] sm:$0xff]
        %v2151 = vld [vmem:[%s1896 + $0x184] sm:$0xff]
        %v2152 = vld [vmem:[%s1896 + $0x18c] sm:$0xf]
        %v2153 = vld [vmem:[%s1896 + $0x190] sm:$0xff]
        %v2154 = vld [vmem:[%s1896 + $0x198] sm:$0xff]
        %v2155 = vld [vmem:[%s1896 + $0x1a0] sm:$0xff]
        %v2156 = vld [vmem:[%s1896 + $0x1a8] sm:$0xff]
        %v2157 = vld [vmem:[%s1896 + $0x1b0] sm:$0xff]
        %v2158 = vld [vmem:[%s1896 + $0x1b8] sm:$0xff]
        %v2159 = vld [vmem:[%s1896 + $0x1c0] sm:$0xff]
        %v2160 = vld [vmem:[%s1896 + $0x1c8] sm:$0xff]
        %v2161 = vld [vmem:[%s1896 + $0x1d0] sm:$0xff]
        %v2162 = vld [vmem:[%s1896 + $0x1d8] sm:$0xff]
        %v2163 = vld [vmem:[%s1896 + $0x1e0] sm:$0xff]
        %v2164 = vld [vmem:[%s1896 + $0x1e8] sm:$0xff]
        %v2165 = vld [vmem:[%s1896 + $0x1f0] sm:$0xf]
        %v2166 = vld [vmem:[%s1896 + $0x1f4] sm:$0xff]
        %v2167 = vld [vmem:[%s1896 + $0x1fc] sm:$0xff]
        %v2168 = vld [vmem:[%s1896 + $0x204] sm:$0xff]
        %v2169 = vld [vmem:[%s1896 + $0x20c] sm:$0xff]
        %v2170 = vld [vmem:[%s1896 + $0x214] sm:$0xff]
        %v2171 = vld [vmem:[%s1896 + $0x21c] sm:$0xff]
        %v2172 = vld [vmem:[%s1896 + $0x224] sm:$0xff]
        %v2173 = vld [vmem:[%s1896 + $0x22c] sm:$0xff]
        %v2174 = vld [vmem:[%s1896 + $0x234] sm:$0xff]
        %v2175 = vld [vmem:[%s1896 + $0x23c] sm:$0xff]
        %v2176 = vld [vmem:[%s1896 + $0x244] sm:$0xff]
        %v2177 = vld [vmem:[%s1896 + $0x24c] sm:$0xff]
        %v2178 = vld [vmem:[%s1896 + $0x254] sm:$0xf]
        %v2179 = vld [vmem:[%s1896 + $0x258] sm:$0xff]
        %v2180 = vld [vmem:[%s1896 + $0x260] sm:$0xff]
        %v2181 = vld [vmem:[%s1896 + $0x268] sm:$0xff]
        %v2182 = vld [vmem:[%s1896 + $0x270] sm:$0xff]
        %v2183 = vld [vmem:[%s1896 + $0x278] sm:$0xff]
        %v2184 = vld [vmem:[%s1896 + $0x280] sm:$0xff]
        %v2185 = vld [vmem:[%s1896 + $0x288] sm:$0xff]
        %v2186 = vld [vmem:[%s1896 + $0x290] sm:$0xff]
        %v2187 = vld [vmem:[%s1896 + $0x298] sm:$0xff]
        %v2188 = vld [vmem:[%s1896 + $0x2a0] sm:$0xff]
        %v2189 = vld [vmem:[%s1896 + $0x2a8] sm:$0xff]
        %v2190 = vld [vmem:[%s1896 + $0x2b0] sm:$0xff]
        %v2191 = vld [vmem:[%s1896 + $0x2b8] sm:$0xf]
        %v2192 = vld [vmem:[%s1896 + $0x2bc] sm:$0xff]
        %v2193 = vld [vmem:[%s1896 + $0x2c4] sm:$0xff]
        %v2194 = vld [vmem:[%s1896 + $0x2cc] sm:$0xff]
        %v2195 = vld [vmem:[%s1896 + $0x2d4] sm:$0xff]
        %v2196 = vld [vmem:[%s1896 + $0x2dc] sm:$0xff]
        %v2197 = vld [vmem:[%s1896 + $0x2e4] sm:$0xff]
        %v2198 = vld [vmem:[%s1896 + $0x2ec] sm:$0xff]
        %v2199 = vld [vmem:[%s1896 + $0x2f4] sm:$0xff]
        %v2200 = vld [vmem:[%s1896 + $0x2fc] sm:$0xff]
        %v2201 = vld [vmem:[%s1896 + $0x304] sm:$0xff]
        %v2202 = vld [vmem:[%s1896 + $0x30c] sm:$0xff]
        %v2203 = vld [vmem:[%s1896 + $0x314] sm:$0xff]
        %v2204 = vld [vmem:[%s1896 + $0x31c] sm:$0xf]
        %v2205 = vld [vmem:[%s1896 + $0x320] sm:$0xff]
        %v2206 = vld [vmem:[%s1896 + $0x328] sm:$0xff]
        %v2207 = vld [vmem:[%s1896 + $0x330] sm:$0xff]
        %v2208 = vld [vmem:[%s1896 + $0x338] sm:$0xff]
        %v2209 = vld [vmem:[%s1896 + $0x340] sm:$0xff]
        %v2210 = vld [vmem:[%s1896 + $0x348] sm:$0xff]
        %v2211 = vld [vmem:[%s1896 + $0x350] sm:$0xff]
        %v2212 = vld [vmem:[%s1896 + $0x358] sm:$0xff]
        %v2213 = vld [vmem:[%s1896 + $0x360] sm:$0xff]
        %v2214 = vld [vmem:[%s1896 + $0x368] sm:$0xff]
        %v2215 = vld [vmem:[%s1896 + $0x370] sm:$0xff]
        %v2216 = vld [vmem:[%s1896 + $0x378] sm:$0xff]
        %v2217 = vld [vmem:[%s1896 + $0x380] sm:$0xf]
        %v2218 = vld [vmem:[%s1896 + $0x384] sm:$0xff]
        %v2219 = vld [vmem:[%s1896 + $0x38c] sm:$0xff]
        %v2220 = vld [vmem:[%s1896 + $0x394] sm:$0xff]
        %v2221 = vld [vmem:[%s1896 + $0x39c] sm:$0xff]
        %v2222 = vld [vmem:[%s1896 + $0x3a4] sm:$0xff]
        %v2223 = vld [vmem:[%s1896 + $0x3ac] sm:$0xff]
        %v2224 = vld [vmem:[%s1896 + $0x3b4] sm:$0xff]
        %v2225 = vld [vmem:[%s1896 + $0x3bc] sm:$0xff]
        %v2226 = vld [vmem:[%s1896 + $0x3c4] sm:$0xff]
        %v2227 = vld [vmem:[%s1896 + $0x3cc] sm:$0xff]
        %v2228 = vld [vmem:[%s1896 + $0x3d4] sm:$0xff]
        %v2229 = vld [vmem:[%s1896 + $0x3dc] sm:$0xff]
        %v2230 = vld [vmem:[%s1896 + $0x3e4] sm:$0xf]
        %v2231 = vld [vmem:[%s1896 + $0x3e8] sm:$0xff]
        %v2232 = vld [vmem:[%s1896 + $0x3f0] sm:$0xff]
        %v2233 = vld [vmem:[%s1896 + $0x3f8] sm:$0xff]
        %v2234 = vld [vmem:[%s1896 + $0x400] sm:$0xff]
        %v2235 = vld [vmem:[%s1896 + $0x408] sm:$0xff]
        %v2236 = vld [vmem:[%s1896 + $0x410] sm:$0xff]
        %v2237 = vld [vmem:[%s1896 + $0x418] sm:$0xff]
        %v2238 = vld [vmem:[%s1896 + $0x420] sm:$0xff]
        %v2239 = vld [vmem:[%s1896 + $0x428] sm:$0xff]
        %v2240 = vld [vmem:[%s1896 + $0x430] sm:$0xff]
        %v2241 = vld [vmem:[%s1896 + $0x438] sm:$0xff]
        %v2242 = vld [vmem:[%s1896 + $0x440] sm:$0xff]
        %v2243 = vld [vmem:[%s1896 + $0x448] sm:$0xf]
        %v2244 = vld [vmem:[%s1896 + $0x44c] sm:$0xff]
        %v2245 = vld [vmem:[%s1896 + $0x454] sm:$0xff]
        %v2246 = vld [vmem:[%s1896 + $0x45c] sm:$0xff]
        %v2247 = vld [vmem:[%s1896 + $0x464] sm:$0xff]
        %v2248 = vld [vmem:[%s1896 + $0x46c] sm:$0xff]
        %v2249 = vld [vmem:[%s1896 + $0x474] sm:$0xff]
        %v2250 = vld [vmem:[%s1896 + $0x47c] sm:$0xff]
        %v2251 = vld [vmem:[%s1896 + $0x484] sm:$0xff]
        %v2252 = vld [vmem:[%s1896 + $0x48c] sm:$0xff]
        %v2253 = vld [vmem:[%s1896 + $0x494] sm:$0xff]
        %v2254 = vld [vmem:[%s1896 + $0x49c] sm:$0xff]
        %v2255 = vld [vmem:[%s1896 + $0x4a4] sm:$0xff]
        %v2256 = vld [vmem:[%s1896 + $0x4ac] sm:$0xf]
        %v2257 = vld [vmem:[%s1896 + $0x4b0] sm:$0xff]
        %v2258 = vld [vmem:[%s1896 + $0x4b8] sm:$0xff]
        %v2259 = vld [vmem:[%s1896 + $0x4c0] sm:$0xff]
        %v2260 = vld [vmem:[%s1896 + $0x4c8] sm:$0xff]
        %v2261 = vld [vmem:[%s1896 + $0x4d0] sm:$0xff]
        %v2262 = vld [vmem:[%s1896 + $0x4d8] sm:$0xff]
        %v2263 = vld [vmem:[%s1896 + $0x4e0] sm:$0xff]
        %v2264 = vld [vmem:[%s1896 + $0x4e8] sm:$0xff]
        %v2265 = vld [vmem:[%s1896 + $0x4f0] sm:$0xff]
        %v2266 = vld [vmem:[%s1896 + $0x4f8] sm:$0xff]
        %v2267 = vld [vmem:[%s1896 + $0x500] sm:$0xff]
        %v2268 = vld [vmem:[%s1896 + $0x508] sm:$0xff]
        %v2269 = vld [vmem:[%s1896 + $0x510] sm:$0xf]
        %v2270 = vld [vmem:[%s1896 + $0x514] sm:$0xff]
        %v2271 = vld [vmem:[%s1896 + $0x51c] sm:$0xff]
        %v2272 = vld [vmem:[%s1896 + $0x524] sm:$0xff]
        %v2273 = vld [vmem:[%s1896 + $0x52c] sm:$0xff]
        %v2274 = vld [vmem:[%s1896 + $0x534] sm:$0xff]
        %v2275 = vld [vmem:[%s1896 + $0x53c] sm:$0xff]
        %v2276 = vld [vmem:[%s1896 + $0x544] sm:$0xff]
        %v2277 = vld [vmem:[%s1896 + $0x54c] sm:$0xff]
        %v2278 = vld [vmem:[%s1896 + $0x554] sm:$0xff]
        %v2279 = vld [vmem:[%s1896 + $0x55c] sm:$0xff]
        %v2280 = vld [vmem:[%s1896 + $0x564] sm:$0xff]
        %v2281 = vld [vmem:[%s1896 + $0x56c] sm:$0xff]
        %v2282 = vld [vmem:[%s1896 + $0x574] sm:$0xf]
        %v2283 = vld [vmem:[%s1896 + $0x578] sm:$0xff]
        %v2284 = vld [vmem:[%s1896 + $0x580] sm:$0xff]
        %v2285 = vld [vmem:[%s1896 + $0x588] sm:$0xff]
        %v2286 = vld [vmem:[%s1896 + $0x590] sm:$0xff]
        %v2287 = vld [vmem:[%s1896 + $0x598] sm:$0xff]
        %v2288 = vld [vmem:[%s1896 + $0x5a0] sm:$0xff]
        %v2289 = vld [vmem:[%s1896 + $0x5a8] sm:$0xff]
        %v2290 = vld [vmem:[%s1896 + $0x5b0] sm:$0xff]
        %v2291 = vld [vmem:[%s1896 + $0x5b8] sm:$0xff]
        %v2292 = vld [vmem:[%s1896 + $0x5c0] sm:$0xff]
        %v2293 = vld [vmem:[%s1896 + $0x5c8] sm:$0xff]
        %v2294 = vld [vmem:[%s1896 + $0x5d0] sm:$0xff]
        %v2295 = vld [vmem:[%s1896 + $0x5d8] sm:$0xf]
        %v2296 = vld [vmem:[%s1896 + $0x5dc] sm:$0xff]
        %v2297 = vld [vmem:[%s1896 + $0x5e4] sm:$0xff]
        %v2298 = vld [vmem:[%s1896 + $0x5ec] sm:$0xff]
        %v2299 = vld [vmem:[%s1896 + $0x5f4] sm:$0xff]
        %v2300 = vld [vmem:[%s1896 + $0x5fc] sm:$0xff]
        %v2301 = vld [vmem:[%s1896 + $0x604] sm:$0xff]
        %v2302 = vld [vmem:[%s1896 + $0x60c] sm:$0xff]
        %v2303 = vld [vmem:[%s1896 + $0x614] sm:$0xff]
        %v2304 = vld [vmem:[%s1896 + $0x61c] sm:$0xff]
        %v2305 = vld [vmem:[%s1896 + $0x624] sm:$0xff]
        %v2306 = vld [vmem:[%s1896 + $0x62c] sm:$0xff]
        %v2307 = vld [vmem:[%s1896 + $0x634] sm:$0xff]
        %v2308 = vld [vmem:[%s1896 + $0x63c] sm:$0xf]
        %v2309 = vld [vmem:[%s1896 + $0x640] sm:$0xff]
        %v2310 = vld [vmem:[%s1896 + $0x648] sm:$0xff]
        %v2311 = vld [vmem:[%s1896 + $0x650] sm:$0xff]
        %v2312 = vld [vmem:[%s1896 + $0x658] sm:$0xff]
        %v2313 = vld [vmem:[%s1896 + $0x660] sm:$0xff]
        %v2314 = vld [vmem:[%s1896 + $0x668] sm:$0xff]
        %v2315 = vld [vmem:[%s1896 + $0x670] sm:$0xff]
        %v2316 = vld [vmem:[%s1896 + $0x678] sm:$0xff]
        %v2317 = vld [vmem:[%s1896 + $0x680] sm:$0xff]
        %v2318 = vld [vmem:[%s1896 + $0x688] sm:$0xff]
        %v2319 = vld [vmem:[%s1896 + $0x690] sm:$0xff]
        %v2320 = vld [vmem:[%s1896 + $0x698] sm:$0xff]
        %v2321 = vld [vmem:[%s1896 + $0x6a0] sm:$0xf]
        %v2322 = vld [vmem:[%s1896 + $0x6a4] sm:$0xff]
        %v2323 = vld [vmem:[%s1896 + $0x6ac] sm:$0xff]
        %v2324 = vld [vmem:[%s1896 + $0x6b4] sm:$0xff]
        %v2325 = vld [vmem:[%s1896 + $0x6bc] sm:$0xff]
        %v2326 = vld [vmem:[%s1896 + $0x6c4] sm:$0xff]
        %v2327 = vld [vmem:[%s1896 + $0x6cc] sm:$0xff]
        %v2328 = vld [vmem:[%s1896 + $0x6d4] sm:$0xff]
        %v2329 = vld [vmem:[%s1896 + $0x6dc] sm:$0xff]
        %v2330 = vld [vmem:[%s1896 + $0x6e4] sm:$0xff]
        %v2331 = vld [vmem:[%s1896 + $0x6ec] sm:$0xff]
        %v2332 = vld [vmem:[%s1896 + $0x6f4] sm:$0xff]
        %v2333 = vld [vmem:[%s1896 + $0x6fc] sm:$0xff]
        %v2334 = vld [vmem:[%s1896 + $0x704] sm:$0xf]
        %v2335 = vld [vmem:[%s1896 + $0x708] sm:$0xff]
        %v2336 = vld [vmem:[%s1896 + $0x710] sm:$0xff]
        %v2337 = vld [vmem:[%s1896 + $0x718] sm:$0xff]
        %v2338 = vld [vmem:[%s1896 + $0x720] sm:$0xff]
        %v2339 = vld [vmem:[%s1896 + $0x728] sm:$0xff]
        %v2340 = vld [vmem:[%s1896 + $0x730] sm:$0xff]
        %v2341 = vld [vmem:[%s1896 + $0x738] sm:$0xff]
        %v2342 = vld [vmem:[%s1896 + $0x740] sm:$0xff]
        %v2343 = vld [vmem:[%s1896 + $0x748] sm:$0xff]
        %v2344 = vld [vmem:[%s1896 + $0x750] sm:$0xff]
        %v2345 = vld [vmem:[%s1896 + $0x758] sm:$0xff]
        %v2346 = vld [vmem:[%s1896 + $0x760] sm:$0xff]
        %v2347 = vld [vmem:[%s1896 + $0x768] sm:$0xf]
        %v2348 = vld [vmem:[%s1896 + $0x76c] sm:$0xff]
        %v2349 = vld [vmem:[%s1896 + $0x774] sm:$0xff]
        %v2350 = vld [vmem:[%s1896 + $0x77c] sm:$0xff]
        %v2351 = vld [vmem:[%s1896 + $0x784] sm:$0xff]
        %v2352 = vld [vmem:[%s1896 + $0x78c] sm:$0xff]
        %v2353 = vld [vmem:[%s1896 + $0x794] sm:$0xff]
        %v2354 = vld [vmem:[%s1896 + $0x79c] sm:$0xff]
        %v2355 = vld [vmem:[%s1896 + $0x7a4] sm:$0xff]
        %v2356 = vld [vmem:[%s1896 + $0x7ac] sm:$0xff]
        %v2357 = vld [vmem:[%s1896 + $0x7b4] sm:$0xff]
        %v2358 = vld [vmem:[%s1896 + $0x7bc] sm:$0xff]
        %v2359 = vld [vmem:[%s1896 + $0x7c4] sm:$0xff]
        %v2360 = vld [vmem:[%s1896 + $0x7cc] sm:$0xf]
        %v2361 = vld [vmem:[%s1896 + $0x7d0] sm:$0xff]
        %v2362 = vld [vmem:[%s1896 + $0x7d8] sm:$0xff]
        %v2363 = vld [vmem:[%s1896 + $0x7e0] sm:$0xff]
        %v2364 = vld [vmem:[%s1896 + $0x7e8] sm:$0xff]
        %v2365 = vld [vmem:[%s1896 + $0x7f0] sm:$0xff]
        %v2366 = vld [vmem:[%s1896 + $0x7f8] sm:$0xff]
        %v2367 = vld [vmem:[%s1896 + $0x800] sm:$0xff]
        %v2368 = vld [vmem:[%s1896 + $0x808] sm:$0xff]
        %v2369 = vld [vmem:[%s1896 + $0x810] sm:$0xff]
        %v2370 = vld [vmem:[%s1896 + $0x818] sm:$0xff]
        %v2371 = vld [vmem:[%s1896 + $0x820] sm:$0xff]
        %v2372 = vld [vmem:[%s1896 + $0x828] sm:$0xff]
        %v2373 = vld [vmem:[%s1896 + $0x830] sm:$0xf]
        %v2374 = vld [vmem:[%s1896 + $0x834] sm:$0xff]
        %v2375 = vld [vmem:[%s1896 + $0x83c] sm:$0xff]
        %v2376 = vld [vmem:[%s1896 + $0x844] sm:$0xff]
        %v2377 = vld [vmem:[%s1896 + $0x84c] sm:$0xff]
        %v2378 = vld [vmem:[%s1896 + $0x854] sm:$0xff]
        %v2379 = vld [vmem:[%s1896 + $0x85c] sm:$0xff]
        %v2380 = vld [vmem:[%s1896 + $0x864] sm:$0xff]
        %v2381 = vld [vmem:[%s1896 + $0x86c] sm:$0xff]
        %v2382 = vld [vmem:[%s1896 + $0x874] sm:$0xff]
        %v2383 = vld [vmem:[%s1896 + $0x87c] sm:$0xff]
        %v2384 = vld [vmem:[%s1896 + $0x884] sm:$0xff]
        %v2385 = vld [vmem:[%s1896 + $0x88c] sm:$0xff]
        %v2386 = vld [vmem:[%s1896 + $0x894] sm:$0xf]
        %v2387 = vld [vmem:[%s1896 + $0x898] sm:$0xff]
        %v2388 = vld [vmem:[%s1896 + $0x8a0] sm:$0xff]
        %v2389 = vld [vmem:[%s1896 + $0x8a8] sm:$0xff]
        %v2390 = vld [vmem:[%s1896 + $0x8b0] sm:$0xff]
        %v2391 = vld [vmem:[%s1896 + $0x8b8] sm:$0xff]
        %v2392 = vld [vmem:[%s1896 + $0x8c0] sm:$0xff]
        %v2393 = vld [vmem:[%s1896 + $0x8c8] sm:$0xff]
        %v2394 = vld [vmem:[%s1896 + $0x8d0] sm:$0xff]
        %v2395 = vld [vmem:[%s1896 + $0x8d8] sm:$0xff]
        %v2396 = vld [vmem:[%s1896 + $0x8e0] sm:$0xff]
        %v2397 = vld [vmem:[%s1896 + $0x8e8] sm:$0xff]
        %v2398 = vld [vmem:[%s1896 + $0x8f0] sm:$0xff]
        %v2399 = vld [vmem:[%s1896 + $0x8f8] sm:$0xf]
        %v2400 = vld [vmem:[%s1896 + $0x8fc] sm:$0xff]
        %v2401 = vld [vmem:[%s1896 + $0x904] sm:$0xff]
        %v2402 = vld [vmem:[%s1896 + $0x90c] sm:$0xff]
        %v2403 = vld [vmem:[%s1896 + $0x914] sm:$0xff]
        %v2404 = vld [vmem:[%s1896 + $0x91c] sm:$0xff]
        %v2405 = vld [vmem:[%s1896 + $0x924] sm:$0xff]
        %v2406 = vld [vmem:[%s1896 + $0x92c] sm:$0xff]
        %v2407 = vld [vmem:[%s1896 + $0x934] sm:$0xff]
        %v2408 = vld [vmem:[%s1896 + $0x93c] sm:$0xff]
        %v2409 = vld [vmem:[%s1896 + $0x944] sm:$0xff]
        %v2410 = vld [vmem:[%s1896 + $0x94c] sm:$0xff]
        %v2411 = vld [vmem:[%s1896 + $0x954] sm:$0xff]
        %v2412 = vld [vmem:[%s1896 + $0x95c] sm:$0xf]
        %v2413 = vld [vmem:[%s1896 + $0x960] sm:$0xff]
        %v2414 = vld [vmem:[%s1896 + $0x968] sm:$0xff]
        %v2415 = vld [vmem:[%s1896 + $0x970] sm:$0xff]
        %v2416 = vld [vmem:[%s1896 + $0x978] sm:$0xff]
        %v2417 = vld [vmem:[%s1896 + $0x980] sm:$0xff]
        %v2418 = vld [vmem:[%s1896 + $0x988] sm:$0xff]
        %v2419 = vld [vmem:[%s1896 + $0x990] sm:$0xff]
        %v2420 = vld [vmem:[%s1896 + $0x998] sm:$0xff]
        %v2421 = vld [vmem:[%s1896 + $0x9a0] sm:$0xff]
        %v2422 = vld [vmem:[%s1896 + $0x9a8] sm:$0xff]
        %v2423 = vld [vmem:[%s1896 + $0x9b0] sm:$0xff]
        %v2424 = vld [vmem:[%s1896 + $0x9b8] sm:$0xff]
        %v2425 = vld [vmem:[%s1896 + $0x9c0] sm:$0xf]
        %v2426 = vld [vmem:[%s1896 + $0x9c4] sm:$0xff]
        %v2427 = vld [vmem:[%s1896 + $0x9cc] sm:$0xff]
        %v2428 = vld [vmem:[%s1896 + $0x9d4] sm:$0xff]
        %v2429 = vld [vmem:[%s1896 + $0x9dc] sm:$0xff]
        %v2430 = vld [vmem:[%s1896 + $0x9e4] sm:$0xff]
        %v2431 = vld [vmem:[%s1896 + $0x9ec] sm:$0xff]
        %v2432 = vld [vmem:[%s1896 + $0x9f4] sm:$0xff]
        %v2433 = vld [vmem:[%s1896 + $0x9fc] sm:$0xff]
        %v2434 = vld [vmem:[%s1896 + $0xa04] sm:$0xff]
        %v2435 = vld [vmem:[%s1896 + $0xa0c] sm:$0xff]
        %v2436 = vld [vmem:[%s1896 + $0xa14] sm:$0xff]
        %v2437 = vld [vmem:[%s1896 + $0xa1c] sm:$0xff]
        %v2438 = vld [vmem:[%s1896 + $0xa24] sm:$0xf]
        %v2439 = vld [vmem:[%s1896 + $0xa28] sm:$0xff]
        %v2440 = vld [vmem:[%s1896 + $0xa30] sm:$0xff]
        %v2441 = vld [vmem:[%s1896 + $0xa38] sm:$0xff]
        %v2442 = vld [vmem:[%s1896 + $0xa40] sm:$0xff]
        %v2443 = vld [vmem:[%s1896 + $0xa48] sm:$0xff]
        %v2444 = vld [vmem:[%s1896 + $0xa50] sm:$0xff]
        %v2445 = vld [vmem:[%s1896 + $0xa58] sm:$0xff]
        %v2446 = vld [vmem:[%s1896 + $0xa60] sm:$0xff]
        %v2447 = vld [vmem:[%s1896 + $0xa68] sm:$0xff]
        %v2448 = vld [vmem:[%s1896 + $0xa70] sm:$0xff]
        %v2449 = vld [vmem:[%s1896 + $0xa78] sm:$0xff]
        %v2450 = vld [vmem:[%s1896 + $0xa80] sm:$0xff]
        %v2451 = vld [vmem:[%s1896 + $0xa88] sm:$0xf]
        %v2452 = vld [vmem:[%s1896 + $0xa8c] sm:$0xff]
        %v2453 = vld [vmem:[%s1896 + $0xa94] sm:$0xff]
        %v2454 = vld [vmem:[%s1896 + $0xa9c] sm:$0xff]
        %v2455 = vld [vmem:[%s1896 + $0xaa4] sm:$0xff]
        %v2456 = vld [vmem:[%s1896 + $0xaac] sm:$0xff]
        %v2457 = vld [vmem:[%s1896 + $0xab4] sm:$0xff]
        %v2458 = vld [vmem:[%s1896 + $0xabc] sm:$0xff]
        %v2459 = vld [vmem:[%s1896 + $0xac4] sm:$0xff]
        %v2460 = vld [vmem:[%s1896 + $0xacc] sm:$0xff]
        %v2461 = vld [vmem:[%s1896 + $0xad4] sm:$0xff]
        %v2462 = vld [vmem:[%s1896 + $0xadc] sm:$0xff]
        %v2463 = vld [vmem:[%s1896 + $0xae4] sm:$0xff]
        %v2464 = vld [vmem:[%s1896 + $0xaec] sm:$0xf]
        %v2465 = vld [vmem:[%s1896 + $0xaf0] sm:$0xff]
        %v2466 = vld [vmem:[%s1896 + $0xaf8] sm:$0xff]
        %v2467 = vld [vmem:[%s1896 + $0xb00] sm:$0xff]
        %v2468 = vld [vmem:[%s1896 + $0xb08] sm:$0xff]
        %v2469 = vld [vmem:[%s1896 + $0xb10] sm:$0xff]
        %v2470 = vld [vmem:[%s1896 + $0xb18] sm:$0xff]
        %v2471 = vld [vmem:[%s1896 + $0xb20] sm:$0xff]
        %v2472 = vld [vmem:[%s1896 + $0xb28] sm:$0xff]
        %v2473 = vld [vmem:[%s1896 + $0xb30] sm:$0xff]
        %v2474 = vld [vmem:[%s1896 + $0xb38] sm:$0xff]
        %v2475 = vld [vmem:[%s1896 + $0xb40] sm:$0xff]
        %v2476 = vld [vmem:[%s1896 + $0xb48] sm:$0xff]
        %v2477 = vld [vmem:[%s1896 + $0xb50] sm:$0xf]
        %v2478 = vld [vmem:[%s1896 + $0xb54] sm:$0xff]
        %v2479 = vld [vmem:[%s1896 + $0xb5c] sm:$0xff]
        %v2480 = vld [vmem:[%s1896 + $0xb64] sm:$0xff]
        %v2481 = vld [vmem:[%s1896 + $0xb6c] sm:$0xff]
        %v2482 = vld [vmem:[%s1896 + $0xb74] sm:$0xff]
        %v2483 = vld [vmem:[%s1896 + $0xb7c] sm:$0xff]
        %v2484 = vld [vmem:[%s1896 + $0xb84] sm:$0xff]
        %v2485 = vld [vmem:[%s1896 + $0xb8c] sm:$0xff]
        %v2486 = vld [vmem:[%s1896 + $0xb94] sm:$0xff]
        %v2487 = vld [vmem:[%s1896 + $0xb9c] sm:$0xff]
        %v2488 = vld [vmem:[%s1896 + $0xba4] sm:$0xff]
        %v2489 = vld [vmem:[%s1896 + $0xbac] sm:$0xff]
        %v2490 = vld [vmem:[%s1896 + $0xbb4] sm:$0xf]
        %v2491 = vld [vmem:[%s1896 + $0xbb8] sm:$0xff]
        %v2492 = vld [vmem:[%s1896 + $0xbc0] sm:$0xff]
        %v2493 = vld [vmem:[%s1896 + $0xbc8] sm:$0xff]
        %v2494 = vld [vmem:[%s1896 + $0xbd0] sm:$0xff]
        %v2495 = vld [vmem:[%s1896 + $0xbd8] sm:$0xff]
        %v2496 = vld [vmem:[%s1896 + $0xbe0] sm:$0xff]
        %v2497 = vld [vmem:[%s1896 + $0xbe8] sm:$0xff]
        %v2498 = vld [vmem:[%s1896 + $0xbf0] sm:$0xff]
        %v2499 = vld [vmem:[%s1896 + $0xbf8] sm:$0xff]
        %v2500 = vld [vmem:[%s1896 + $0xc00] sm:$0xff]
        %v2501 = vld [vmem:[%s1896 + $0xc08] sm:$0xff]
        %v2502 = vld [vmem:[%s1896 + $0xc10] sm:$0xff]
        %v2503 = vld [vmem:[%s1896 + $0xc18] sm:$0xf]
        %v2504 = vld [vmem:[%s1896 + $0xc1c] sm:$0xff]
        %v2505 = vld [vmem:[%s1896 + $0xc24] sm:$0xff]
        %v2506 = vld [vmem:[%s1896 + $0xc2c] sm:$0xff]
        %v2507 = vld [vmem:[%s1896 + $0xc34] sm:$0xff]
        %v2508 = vld [vmem:[%s1896 + $0xc3c] sm:$0xff]
        %v2509 = vld [vmem:[%s1896 + $0xc44] sm:$0xff]
        %v2510 = vld [vmem:[%s1896 + $0xc4c] sm:$0xff]
        %v2511 = vld [vmem:[%s1896 + $0xc54] sm:$0xff]
        %v2512 = vld [vmem:[%s1896 + $0xc5c] sm:$0xff]
        %v2513 = vld [vmem:[%s1896 + $0xc64] sm:$0xff]
        %v2514 = vld [vmem:[%s1896 + $0xc6c] sm:$0xff]
        %v2515 = vld [vmem:[%s1896 + $0xc74] sm:$0xff]
        %v2516 = vld [vmem:[%s1896 + $0xc7c] sm:$0xf]
        %v2517 = vld [vmem:[%s1896 + $0xc80] sm:$0xff]
        %v2518 = vld [vmem:[%s1896 + $0xc88] sm:$0xff]
        %v2519 = vld [vmem:[%s1896 + $0xc90] sm:$0xff]
        %v2520 = vld [vmem:[%s1896 + $0xc98] sm:$0xff]
        %v2521 = vld [vmem:[%s1896 + $0xca0] sm:$0xff]
        %v2522 = vld [vmem:[%s1896 + $0xca8] sm:$0xff]
        %v2523 = vld [vmem:[%s1896 + $0xcb0] sm:$0xff]
        %v2524 = vld [vmem:[%s1896 + $0xcb8] sm:$0xff]
        %v2525 = vld [vmem:[%s1896 + $0xcc0] sm:$0xff]
        %v2526 = vld [vmem:[%s1896 + $0xcc8] sm:$0xff]
        %v2527 = vld [vmem:[%s1896 + $0xcd0] sm:$0xff]
        %v2528 = vld [vmem:[%s1896 + $0xcd8] sm:$0xff]
        %v2529 = vld [vmem:[%s1896 + $0xce0] sm:$0xf]
        %v2530 = vld [vmem:[%s1896 + $0xce4] sm:$0xff]
        %v2531 = vld [vmem:[%s1896 + $0xcec] sm:$0xff]
        %v2532 = vld [vmem:[%s1896 + $0xcf4] sm:$0xff]
        %v2533 = vld [vmem:[%s1896 + $0xcfc] sm:$0xff]
        %v2534 = vld [vmem:[%s1896 + $0xd04] sm:$0xff]
        %v2535 = vld [vmem:[%s1896 + $0xd0c] sm:$0xff]
        %v2536 = vld [vmem:[%s1896 + $0xd14] sm:$0xff]
        %v2537 = vld [vmem:[%s1896 + $0xd1c] sm:$0xff]
        %v2538 = vld [vmem:[%s1896 + $0xd24] sm:$0xff]
        %v2539 = vld [vmem:[%s1896 + $0xd2c] sm:$0xff]
        %v2540 = vld [vmem:[%s1896 + $0xd34] sm:$0xff]
        %v2541 = vld [vmem:[%s1896 + $0xd3c] sm:$0xff]
        %v2542 = vld [vmem:[%s1896 + $0xd44] sm:$0xf]
        %v2543 = vld [vmem:[%s1896 + $0xd48] sm:$0xff]
        %v2544 = vld [vmem:[%s1896 + $0xd50] sm:$0xff]
        %v2545 = vld [vmem:[%s1896 + $0xd58] sm:$0xff]
        %v2546 = vld [vmem:[%s1896 + $0xd60] sm:$0xff]
        %v2547 = vld [vmem:[%s1896 + $0xd68] sm:$0xff]
        %v2548 = vld [vmem:[%s1896 + $0xd70] sm:$0xff]
        %v2549 = vld [vmem:[%s1896 + $0xd78] sm:$0xff]
        %v2550 = vld [vmem:[%s1896 + $0xd80] sm:$0xff]
        %v2551 = vld [vmem:[%s1896 + $0xd88] sm:$0xff]
        %v2552 = vld [vmem:[%s1896 + $0xd90] sm:$0xff]
        %v2553 = vld [vmem:[%s1896 + $0xd98] sm:$0xff]
        %v2554 = vld [vmem:[%s1896 + $0xda0] sm:$0xff]
        %v2555 = vld [vmem:[%s1896 + $0xda8] sm:$0xf]
        %v2556 = vld [vmem:[%s1896 + $0xdac] sm:$0xff]
        %v2557 = vld [vmem:[%s1896 + $0xdb4] sm:$0xff]
        %v2558 = vld [vmem:[%s1896 + $0xdbc] sm:$0xff]
        %v2559 = vld [vmem:[%s1896 + $0xdc4] sm:$0xff]
        %v2560 = vld [vmem:[%s1896 + $0xdcc] sm:$0xff]
        %v2561 = vld [vmem:[%s1896 + $0xdd4] sm:$0xff]
        %v2562 = vld [vmem:[%s1896 + $0xddc] sm:$0xff]
        %v2563 = vld [vmem:[%s1896 + $0xde4] sm:$0xff]
        %v2564 = vld [vmem:[%s1896 + $0xdec] sm:$0xff]
        %v2565 = vld [vmem:[%s1896 + $0xdf4] sm:$0xff]
        %v2566 = vld [vmem:[%s1896 + $0xdfc] sm:$0xff]
        %v2567 = vld [vmem:[%s1896 + $0xe04] sm:$0xff]
        %v2568 = vld [vmem:[%s1896 + $0xe0c] sm:$0xf]
        %v2569 = vld [vmem:[%s1896 + $0xe10] sm:$0xff]
        %v2570 = vld [vmem:[%s1896 + $0xe18] sm:$0xff]
        %v2571 = vld [vmem:[%s1896 + $0xe20] sm:$0xff]
        %v2572 = vld [vmem:[%s1896 + $0xe28] sm:$0xff]
        %v2573 = vld [vmem:[%s1896 + $0xe30] sm:$0xff]
        %v2574 = vld [vmem:[%s1896 + $0xe38] sm:$0xff]
        %v2575 = vld [vmem:[%s1896 + $0xe40] sm:$0xff]
        %v2576 = vld [vmem:[%s1896 + $0xe48] sm:$0xff]
        %v2577 = vld [vmem:[%s1896 + $0xe50] sm:$0xff]
        %v2578 = vld [vmem:[%s1896 + $0xe58] sm:$0xff]
        %v2579 = vld [vmem:[%s1896 + $0xe60] sm:$0xff]
        %v2580 = vld [vmem:[%s1896 + $0xe68] sm:$0xff]
        %v2581 = vld [vmem:[%s1896 + $0xe70] sm:$0xf]
        %v2582 = vld [vmem:[%s1896 + $0xe74] sm:$0xff]
        %v2583 = vld [vmem:[%s1896 + $0xe7c] sm:$0xff]
        %v2584 = vld [vmem:[%s1896 + $0xe84] sm:$0xff]
        %v2585 = vld [vmem:[%s1896 + $0xe8c] sm:$0xff]
        %v2586 = vld [vmem:[%s1896 + $0xe94] sm:$0xff]
        %v2587 = vld [vmem:[%s1896 + $0xe9c] sm:$0xff]
        %v2588 = vld [vmem:[%s1896 + $0xea4] sm:$0xff]
        %v2589 = vld [vmem:[%s1896 + $0xeac] sm:$0xff]
        %v2590 = vld [vmem:[%s1896 + $0xeb4] sm:$0xff]
        %v2591 = vld [vmem:[%s1896 + $0xebc] sm:$0xff]
        %v2592 = vld [vmem:[%s1896 + $0xec4] sm:$0xff]
        %v2593 = vld [vmem:[%s1896 + $0xecc] sm:$0xff]
        %v2594 = vld [vmem:[%s1896 + $0xed4] sm:$0xf]
        %v2595 = vld [vmem:[%s1896 + $0xed8] sm:$0xff]
        %v2596 = vld [vmem:[%s1896 + $0xee0] sm:$0xff]
        %v2597 = vld [vmem:[%s1896 + $0xee8] sm:$0xff]
        %v2598 = vld [vmem:[%s1896 + $0xef0] sm:$0xff]
        %v2599 = vld [vmem:[%s1896 + $0xef8] sm:$0xff]
        %v2600 = vld [vmem:[%s1896 + $0xf00] sm:$0xff]
        %v2601 = vld [vmem:[%s1896 + $0xf08] sm:$0xff]
        %v2602 = vld [vmem:[%s1896 + $0xf10] sm:$0xff]
        %v2603 = vld [vmem:[%s1896 + $0xf18] sm:$0xff]
        %v2604 = vld [vmem:[%s1896 + $0xf20] sm:$0xff]
        %v2605 = vld [vmem:[%s1896 + $0xf28] sm:$0xff]
        %v2606 = vld [vmem:[%s1896 + $0xf30] sm:$0xff]
        %v2607 = vld [vmem:[%s1896 + $0xf38] sm:$0xf]
        %v2608 = vld [vmem:[%s1896 + $0xf3c] sm:$0xff]
        %v2609 = vld [vmem:[%s1896 + $0xf44] sm:$0xff]
        %v2610 = vld [vmem:[%s1896 + $0xf4c] sm:$0xff]
        %v2611 = vld [vmem:[%s1896 + $0xf54] sm:$0xff]
        %v2612 = vld [vmem:[%s1896 + $0xf5c] sm:$0xff]
        %v2613 = vld [vmem:[%s1896 + $0xf64] sm:$0xff]
        %v2614 = vld [vmem:[%s1896 + $0xf6c] sm:$0xff]
        %v2615 = vld [vmem:[%s1896 + $0xf74] sm:$0xff]
        %v2616 = vld [vmem:[%s1896 + $0xf7c] sm:$0xff]
        %v2617 = vld [vmem:[%s1896 + $0xf84] sm:$0xff]
        %v2618 = vld [vmem:[%s1896 + $0xf8c] sm:$0xff]
        %v2619 = vld [vmem:[%s1896 + $0xf94] sm:$0xff]
        %v2620 = vld [vmem:[%s1896 + $0xf9c] sm:$0xf]
        %v2621 = vld [vmem:[%s1896 + $0xfa0] sm:$0xff]
        %v2622 = vld [vmem:[%s1896 + $0xfa8] sm:$0xff]
        %v2623 = vld [vmem:[%s1896 + $0xfb0] sm:$0xff]
        %v2624 = vld [vmem:[%s1896 + $0xfb8] sm:$0xff]
        %v2625 = vld [vmem:[%s1896 + $0xfc0] sm:$0xff]
        %v2626 = vld [vmem:[%s1896 + $0xfc8] sm:$0xff]
        %v2627 = vld [vmem:[%s1896 + $0xfd0] sm:$0xff]
        %v2628 = vld [vmem:[%s1896 + $0xfd8] sm:$0xff]
        %v2629 = vld [vmem:[%s1896 + $0xfe0] sm:$0xff]
        %v2630 = vld [vmem:[%s1896 + $0xfe8] sm:$0xff]
        %v2631 = vld [vmem:[%s1896 + $0xff0] sm:$0xff]
        %v2632 = vld [vmem:[%s1896 + $0xff8] sm:$0xff]
        %v2633 = vld [vmem:[%s1896 + $0x1000] sm:$0xf]
        %v2634 = vld [vmem:[%s1896 + $0x1004] sm:$0xff]
        %v2635 = vld [vmem:[%s1896 + $0x100c] sm:$0xff]
        %v2636 = vld [vmem:[%s1896 + $0x1014] sm:$0xff]
        %v2637 = vld [vmem:[%s1896 + $0x101c] sm:$0xff]
        %v2638 = vld [vmem:[%s1896 + $0x1024] sm:$0xff]
        %v2639 = vld [vmem:[%s1896 + $0x102c] sm:$0xff]
        %v2640 = vld [vmem:[%s1896 + $0x1034] sm:$0xff]
        %v2641 = vld [vmem:[%s1896 + $0x103c] sm:$0xff]
        %v2642 = vld [vmem:[%s1896 + $0x1044] sm:$0xff]
        %v2643 = vld [vmem:[%s1896 + $0x104c] sm:$0xff]
        %v2644 = vld [vmem:[%s1896 + $0x1054] sm:$0xff]
        %v2645 = vld [vmem:[%s1896 + $0x105c] sm:$0xff]
        %v2646 = vld [vmem:[%s1896 + $0x1064] sm:$0xf]
        %v2647 = vld [vmem:[%s1896 + $0x1068] sm:$0xff]
        %v2648 = vld [vmem:[%s1896 + $0x1070] sm:$0xff]
        %v2649 = vld [vmem:[%s1896 + $0x1078] sm:$0xff]
        %v2650 = vld [vmem:[%s1896 + $0x1080] sm:$0xff]
        %v2651 = vld [vmem:[%s1896 + $0x1088] sm:$0xff]
        %v2652 = vld [vmem:[%s1896 + $0x1090] sm:$0xff]
        %v2653 = vld [vmem:[%s1896 + $0x1098] sm:$0xff]
        %v2654 = vld [vmem:[%s1896 + $0x10a0] sm:$0xff]
        %v2655 = vld [vmem:[%s1896 + $0x10a8] sm:$0xff]
        %v2656 = vld [vmem:[%s1896 + $0x10b0] sm:$0xff]
        %v2657 = vld [vmem:[%s1896 + $0x10b8] sm:$0xff]
        %v2658 = vld [vmem:[%s1896 + $0x10c0] sm:$0xff]
        %v2659 = vld [vmem:[%s1896 + $0x10c8] sm:$0xf]
        %v2660 = vld [vmem:[%s1896 + $0x10cc] sm:$0xff]
        %v2661 = vld [vmem:[%s1896 + $0x10d4] sm:$0xff]
        %v2662 = vld [vmem:[%s1896 + $0x10dc] sm:$0xff]
        %v2663 = vld [vmem:[%s1896 + $0x10e4] sm:$0xff]
        %v2664 = vld [vmem:[%s1896 + $0x10ec] sm:$0xff]
        %v2665 = vld [vmem:[%s1896 + $0x10f4] sm:$0xff]
        %v2666 = vld [vmem:[%s1896 + $0x10fc] sm:$0xff]
        %v2667 = vld [vmem:[%s1896 + $0x1104] sm:$0xff]
        %v2668 = vld [vmem:[%s1896 + $0x110c] sm:$0xff]
        %v2669 = vld [vmem:[%s1896 + $0x1114] sm:$0xff]
        %v2670 = vld [vmem:[%s1896 + $0x111c] sm:$0xff]
        %v2671 = vld [vmem:[%s1896 + $0x1124] sm:$0xff]
        %v2672 = vld [vmem:[%s1896 + $0x112c] sm:$0xf]
        %v2673 = vld [vmem:[%s1896 + $0x1130] sm:$0xff]
        %v2674 = vld [vmem:[%s1896 + $0x1138] sm:$0xff]
        %v2675 = vld [vmem:[%s1896 + $0x1140] sm:$0xff]
        %v2676 = vld [vmem:[%s1896 + $0x1148] sm:$0xff]
        %v2677 = vld [vmem:[%s1896 + $0x1150] sm:$0xff]
        %v2678 = vld [vmem:[%s1896 + $0x1158] sm:$0xff]
        %v2679 = vld [vmem:[%s1896 + $0x1160] sm:$0xff]
        %v2680 = vld [vmem:[%s1896 + $0x1168] sm:$0xff]
        %v2681 = vld [vmem:[%s1896 + $0x1170] sm:$0xff]
        %v2682 = vld [vmem:[%s1896 + $0x1178] sm:$0xff]
        %v2683 = vld [vmem:[%s1896 + $0x1180] sm:$0xff]
        %v2684 = vld [vmem:[%s1896 + $0x1188] sm:$0xff]
        %v2685 = vld [vmem:[%s1896 + $0x1190] sm:$0xf]
        %v2686 = vld [vmem:[%s1896 + $0x1194] sm:$0xff]
        %v2687 = vld [vmem:[%s1896 + $0x119c] sm:$0xff]
        %v2688 = vld [vmem:[%s1896 + $0x11a4] sm:$0xff]
        %v2689 = vld [vmem:[%s1896 + $0x11ac] sm:$0xff]
        %v2690 = vld [vmem:[%s1896 + $0x11b4] sm:$0xff]
        %v2691 = vld [vmem:[%s1896 + $0x11bc] sm:$0xff]
        %v2692 = vld [vmem:[%s1896 + $0x11c4] sm:$0xff]
        %v2693 = vld [vmem:[%s1896 + $0x11cc] sm:$0xff]
        %v2694 = vld [vmem:[%s1896 + $0x11d4] sm:$0xff]
        %v2695 = vld [vmem:[%s1896 + $0x11dc] sm:$0xff]
        %v2696 = vld [vmem:[%s1896 + $0x11e4] sm:$0xff]
        %v2697 = vld [vmem:[%s1896 + $0x11ec] sm:$0xff]
        %v2698 = vld [vmem:[%s1896 + $0x11f4] sm:$0xf]
        %v2699 = vld [vmem:[%s1896 + $0x11f8] sm:$0xff]
        %v2700 = vld [vmem:[%s1896 + $0x1200] sm:$0xff]
        %v2701 = vld [vmem:[%s1896 + $0x1208] sm:$0xff]
        %v2702 = vld [vmem:[%s1896 + $0x1210] sm:$0xff]
        %v2703 = vld [vmem:[%s1896 + $0x1218] sm:$0xff]
        %v2704 = vld [vmem:[%s1896 + $0x1220] sm:$0xff]
        %v2705 = vld [vmem:[%s1896 + $0x1228] sm:$0xff]
        %v2706 = vld [vmem:[%s1896 + $0x1230] sm:$0xff]
        %v2707 = vld [vmem:[%s1896 + $0x1238] sm:$0xff]
        %v2708 = vld [vmem:[%s1896 + $0x1240] sm:$0xff]
        %v2709 = vld [vmem:[%s1896 + $0x1248] sm:$0xff]
        %v2710 = vld [vmem:[%s1896 + $0x1250] sm:$0xff]
        %v2711 = vld [vmem:[%s1896 + $0x1258] sm:$0xf]
        %v2712 = vld [vmem:[%s1896 + $0x125c] sm:$0xff]
        %v2713 = vld [vmem:[%s1896 + $0x1264] sm:$0xff]
        %v2714 = vld [vmem:[%s1896 + $0x126c] sm:$0xff]
        %v2715 = vld [vmem:[%s1896 + $0x1274] sm:$0xff]
        %v2716 = vld [vmem:[%s1896 + $0x127c] sm:$0xff]
        %v2717 = vld [vmem:[%s1896 + $0x1284] sm:$0xff]
        %v2718 = vld [vmem:[%s1896 + $0x128c] sm:$0xff]
        %v2719 = vld [vmem:[%s1896 + $0x1294] sm:$0xff]
        %v2720 = vld [vmem:[%s1896 + $0x129c] sm:$0xff]
        %v2721 = vld [vmem:[%s1896 + $0x12a4] sm:$0xff]
        %v2722 = vld [vmem:[%s1896 + $0x12ac] sm:$0xff]
        %v2723 = vld [vmem:[%s1896 + $0x12b4] sm:$0xff]
        %v2724 = vld [vmem:[%s1896 + $0x12bc] sm:$0xf]
        %v2725 = vld [vmem:[%s1896 + $0x12c0] sm:$0xff]
        %v2726 = vld [vmem:[%s1896 + $0x12c8] sm:$0xff]
        %v2727 = vld [vmem:[%s1896 + $0x12d0] sm:$0xff]
        %v2728 = vld [vmem:[%s1896 + $0x12d8] sm:$0xff]
        %v2729 = vld [vmem:[%s1896 + $0x12e0] sm:$0xff]
        %v2730 = vld [vmem:[%s1896 + $0x12e8] sm:$0xff]
        %v2731 = vld [vmem:[%s1896 + $0x12f0] sm:$0xff]
        %v2732 = vld [vmem:[%s1896 + $0x12f8] sm:$0xff]
        %v2733 = vld [vmem:[%s1896 + $0x1300] sm:$0xff]
        %v2734 = vld [vmem:[%s1896 + $0x1308] sm:$0xff]
        %v2735 = vld [vmem:[%s1896 + $0x1310] sm:$0xff]
        %v2736 = vld [vmem:[%s1896 + $0x1318] sm:$0xff]
        %v2737 = vld [vmem:[%s1896 + $0x1320] sm:$0xf]
        %v2738 = vld [vmem:[%s1896 + $0x1324] sm:$0xff]
        %v2739 = vld [vmem:[%s1896 + $0x132c] sm:$0xff]
        %v2740 = vld [vmem:[%s1896 + $0x1334] sm:$0xff]
        %v2741 = vld [vmem:[%s1896 + $0x133c] sm:$0xff]
        %v2742 = vld [vmem:[%s1896 + $0x1344] sm:$0xff]
        %v2743 = vld [vmem:[%s1896 + $0x134c] sm:$0xff]
        %v2744 = vld [vmem:[%s1896 + $0x1354] sm:$0xff]
        %v2745 = vld [vmem:[%s1896 + $0x135c] sm:$0xff]
        %v2746 = vld [vmem:[%s1896 + $0x1364] sm:$0xff]
        %v2747 = vld [vmem:[%s1896 + $0x136c] sm:$0xff]
        %v2748 = vld [vmem:[%s1896 + $0x1374] sm:$0xff]
        %v2749 = vld [vmem:[%s1896 + $0x137c] sm:$0xff]
        %v2750 = vld [vmem:[%s1896 + $0x1384] sm:$0xf]
        %v2751 = vld [vmem:[%s1896 + $0x1388] sm:$0xff]
        %v2752 = vld [vmem:[%s1896 + $0x1390] sm:$0xff]
        %v2753 = vld [vmem:[%s1896 + $0x1398] sm:$0xff]
        %v2754 = vld [vmem:[%s1896 + $0x13a0] sm:$0xff]
        %v2755 = vld [vmem:[%s1896 + $0x13a8] sm:$0xff]
        %v2756 = vld [vmem:[%s1896 + $0x13b0] sm:$0xff]
        %v2757 = vld [vmem:[%s1896 + $0x13b8] sm:$0xff]
        %v2758 = vld [vmem:[%s1896 + $0x13c0] sm:$0xff]
        %v2759 = vld [vmem:[%s1896 + $0x13c8] sm:$0xff]
        %v2760 = vld [vmem:[%s1896 + $0x13d0] sm:$0xff]
        %v2761 = vld [vmem:[%s1896 + $0x13d8] sm:$0xff]
        %v2762 = vld [vmem:[%s1896 + $0x13e0] sm:$0xff]
        %v2763 = vld [vmem:[%s1896 + $0x13e8] sm:$0xf]
        %v2764 = vld [vmem:[%s1896 + $0x13ec] sm:$0xff]
        %v2765 = vld [vmem:[%s1896 + $0x13f4] sm:$0xff]
        %v2766 = vld [vmem:[%s1896 + $0x13fc] sm:$0xff]
        %v2767 = vld [vmem:[%s1896 + $0x1404] sm:$0xff]
        %v2768 = vld [vmem:[%s1896 + $0x140c] sm:$0xff]
        %v2769 = vld [vmem:[%s1896 + $0x1414] sm:$0xff]
        %v2770 = vld [vmem:[%s1896 + $0x141c] sm:$0xff]
        %v2771 = vld [vmem:[%s1896 + $0x1424] sm:$0xff]
        %v2772 = vld [vmem:[%s1896 + $0x142c] sm:$0xff]
        %v2773 = vld [vmem:[%s1896 + $0x1434] sm:$0xff]
        %v2774 = vld [vmem:[%s1896 + $0x143c] sm:$0xff]
        %v2775 = vld [vmem:[%s1896 + $0x1444] sm:$0xff]
        %v2776 = vld [vmem:[%s1896 + $0x144c] sm:$0xf]
        %v2777 = vld [vmem:[%s1896 + $0x1450] sm:$0xff]
        %v2778 = vld [vmem:[%s1896 + $0x1458] sm:$0xff]
        %v2779 = vld [vmem:[%s1896 + $0x1460] sm:$0xff]
        %v2780 = vld [vmem:[%s1896 + $0x1468] sm:$0xff]
        %v2781 = vld [vmem:[%s1896 + $0x1470] sm:$0xff]
        %v2782 = vld [vmem:[%s1896 + $0x1478] sm:$0xff]
        %v2783 = vld [vmem:[%s1896 + $0x1480] sm:$0xff]
        %v2784 = vld [vmem:[%s1896 + $0x1488] sm:$0xff]
        %v2785 = vld [vmem:[%s1896 + $0x1490] sm:$0xff]
        %v2786 = vld [vmem:[%s1896 + $0x1498] sm:$0xff]
        %v2787 = vld [vmem:[%s1896 + $0x14a0] sm:$0xff]
        %v2788 = vld [vmem:[%s1896 + $0x14a8] sm:$0xff]
        %v2789 = vld [vmem:[%s1896 + $0x14b0] sm:$0xf]
        %v2790 = vld [vmem:[%s1896 + $0x14b4] sm:$0xff]
        %v2791 = vld [vmem:[%s1896 + $0x14bc] sm:$0xff]
        %v2792 = vld [vmem:[%s1896 + $0x14c4] sm:$0xff]
        %v2793 = vld [vmem:[%s1896 + $0x14cc] sm:$0xff]
        %v2794 = vld [vmem:[%s1896 + $0x14d4] sm:$0xff]
        %v2795 = vld [vmem:[%s1896 + $0x14dc] sm:$0xff]
        %v2796 = vld [vmem:[%s1896 + $0x14e4] sm:$0xff]
        %v2797 = vld [vmem:[%s1896 + $0x14ec] sm:$0xff]
        %v2798 = vld [vmem:[%s1896 + $0x14f4] sm:$0xff]
        %v2799 = vld [vmem:[%s1896 + $0x14fc] sm:$0xff]
        %v2800 = vld [vmem:[%s1896 + $0x1504] sm:$0xff]
        %v2801 = vld [vmem:[%s1896 + $0x150c] sm:$0xff]
        %v2802 = vld [vmem:[%s1896 + $0x1514] sm:$0xf]
        %v2803 = vld [vmem:[%s1896 + $0x1518] sm:$0xff]
        %v2804 = vld [vmem:[%s1896 + $0x1520] sm:$0xff]
        %v2805 = vld [vmem:[%s1896 + $0x1528] sm:$0xff]
        %v2806 = vld [vmem:[%s1896 + $0x1530] sm:$0xff]
        %v2807 = vld [vmem:[%s1896 + $0x1538] sm:$0xff]
        %v2808 = vld [vmem:[%s1896 + $0x1540] sm:$0xff]
        %v2809 = vld [vmem:[%s1896 + $0x1548] sm:$0xff]
        %v2810 = vld [vmem:[%s1896 + $0x1550] sm:$0xff]
        %v2811 = vld [vmem:[%s1896 + $0x1558] sm:$0xff]
        %v2812 = vld [vmem:[%s1896 + $0x1560] sm:$0xff]
        %v2813 = vld [vmem:[%s1896 + $0x1568] sm:$0xff]
        %v2814 = vld [vmem:[%s1896 + $0x1570] sm:$0xff]
        %v2815 = vld [vmem:[%s1896 + $0x1578] sm:$0xf]
        %v2816 = vld [vmem:[%s1896 + $0x157c] sm:$0xff]
        %v2817 = vld [vmem:[%s1896 + $0x1584] sm:$0xff]
        %v2818 = vld [vmem:[%s1896 + $0x158c] sm:$0xff]
        %v2819 = vld [vmem:[%s1896 + $0x1594] sm:$0xff]
        %v2820 = vld [vmem:[%s1896 + $0x159c] sm:$0xff]
        %v2821 = vld [vmem:[%s1896 + $0x15a4] sm:$0xff]
        %v2822 = vld [vmem:[%s1896 + $0x15ac] sm:$0xff]
        %v2823 = vld [vmem:[%s1896 + $0x15b4] sm:$0xff]
        %v2824 = vld [vmem:[%s1896 + $0x15bc] sm:$0xff]
        %v2825 = vld [vmem:[%s1896 + $0x15c4] sm:$0xff]
        %v2826 = vld [vmem:[%s1896 + $0x15cc] sm:$0xff]
        %v2827 = vld [vmem:[%s1896 + $0x15d4] sm:$0xff]
        %v2828 = vld [vmem:[%s1896 + $0x15dc] sm:$0xf]
        %v2829 = vld [vmem:[%s1896 + $0x15e0] sm:$0xff]
        %v2830 = vld [vmem:[%s1896 + $0x15e8] sm:$0xff]
        %v2831 = vld [vmem:[%s1896 + $0x15f0] sm:$0xff]
        %v2832 = vld [vmem:[%s1896 + $0x15f8] sm:$0xff]
        %v2833 = vld [vmem:[%s1896 + $0x1600] sm:$0xff]
        %v2834 = vld [vmem:[%s1896 + $0x1608] sm:$0xff]
        %v2835 = vld [vmem:[%s1896 + $0x1610] sm:$0xff]
        %v2836 = vld [vmem:[%s1896 + $0x1618] sm:$0xff]
        %v2837 = vld [vmem:[%s1896 + $0x1620] sm:$0xff]
        %v2838 = vld [vmem:[%s1896 + $0x1628] sm:$0xff]
        %v2839 = vld [vmem:[%s1896 + $0x1630] sm:$0xff]
        %v2840 = vld [vmem:[%s1896 + $0x1638] sm:$0xff]
        %v2841 = vld [vmem:[%s1896 + $0x1640] sm:$0xf]
        %v2842 = vld [vmem:[%s1896 + $0x1644] sm:$0xff]
        %v2843 = vld [vmem:[%s1896 + $0x164c] sm:$0xff]
        %v2844 = vld [vmem:[%s1896 + $0x1654] sm:$0xff]
        %v2845 = vld [vmem:[%s1896 + $0x165c] sm:$0xff]
        %v2846 = vld [vmem:[%s1896 + $0x1664] sm:$0xff]
        %v2847 = vld [vmem:[%s1896 + $0x166c] sm:$0xff]
        %v2848 = vld [vmem:[%s1896 + $0x1674] sm:$0xff]
        %v2849 = vld [vmem:[%s1896 + $0x167c] sm:$0xff]
        %v2850 = vld [vmem:[%s1896 + $0x1684] sm:$0xff]
        %v2851 = vld [vmem:[%s1896 + $0x168c] sm:$0xff]
        %v2852 = vld [vmem:[%s1896 + $0x1694] sm:$0xff]
        %v2853 = vld [vmem:[%s1896 + $0x169c] sm:$0xff]
        %v2854 = vld [vmem:[%s1896 + $0x16a4] sm:$0xf]
        %v2855 = vld [vmem:[%s1896 + $0x16a8] sm:$0xff]
        %v2856 = vld [vmem:[%s1896 + $0x16b0] sm:$0xff]
        %v2857 = vld [vmem:[%s1896 + $0x16b8] sm:$0xff]
        %v2858 = vld [vmem:[%s1896 + $0x16c0] sm:$0xff]
        %v2859 = vld [vmem:[%s1896 + $0x16c8] sm:$0xff]
        %v2860 = vld [vmem:[%s1896 + $0x16d0] sm:$0xff]
        %v2861 = vld [vmem:[%s1896 + $0x16d8] sm:$0xff]
        %v2862 = vld [vmem:[%s1896 + $0x16e0] sm:$0xff]
        %v2863 = vld [vmem:[%s1896 + $0x16e8] sm:$0xff]
        %v2864 = vld [vmem:[%s1896 + $0x16f0] sm:$0xff]
        %v2865 = vld [vmem:[%s1896 + $0x16f8] sm:$0xff]
        %v2866 = vld [vmem:[%s1896 + $0x1700] sm:$0xff]
        %v2867 = vld [vmem:[%s1896 + $0x1708] sm:$0xf]
        %v2868 = vld [vmem:[%s1896 + $0x170c] sm:$0xff]
        %v2869 = vld [vmem:[%s1896 + $0x1714] sm:$0xff]
        %v2870 = vld [vmem:[%s1896 + $0x171c] sm:$0xff]
        %v2871 = vld [vmem:[%s1896 + $0x1724] sm:$0xff]
        %v2872 = vld [vmem:[%s1896 + $0x172c] sm:$0xff]
        %v2873 = vld [vmem:[%s1896 + $0x1734] sm:$0xff]
        %v2874 = vld [vmem:[%s1896 + $0x173c] sm:$0xff]
        %v2875 = vld [vmem:[%s1896 + $0x1744] sm:$0xff]
        %v2876 = vld [vmem:[%s1896 + $0x174c] sm:$0xff]
        %v2877 = vld [vmem:[%s1896 + $0x1754] sm:$0xff]
        %v2878 = vld [vmem:[%s1896 + $0x175c] sm:$0xff]
        %v2879 = vld [vmem:[%s1896 + $0x1764] sm:$0xff]
        %v2880 = vld [vmem:[%s1896 + $0x176c] sm:$0xf]
        %v2881 = vld [vmem:[%s1896 + $0x1770] sm:$0xff]
        %v2882 = vld [vmem:[%s1896 + $0x1778] sm:$0xff]
        %v2883 = vld [vmem:[%s1896 + $0x1780] sm:$0xff]
        %v2884 = vld [vmem:[%s1896 + $0x1788] sm:$0xff]
        %v2885 = vld [vmem:[%s1896 + $0x1790] sm:$0xff]
        %v2886 = vld [vmem:[%s1896 + $0x1798] sm:$0xff]
        %v2887 = vld [vmem:[%s1896 + $0x17a0] sm:$0xff]
        %v2888 = vld [vmem:[%s1896 + $0x17a8] sm:$0xff]
        %v2889 = vld [vmem:[%s1896 + $0x17b0] sm:$0xff]
        %v2890 = vld [vmem:[%s1896 + $0x17b8] sm:$0xff]
        %v2891 = vld [vmem:[%s1896 + $0x17c0] sm:$0xff]
        %v2892 = vld [vmem:[%s1896 + $0x17c8] sm:$0xff]
        %v2893 = vld [vmem:[%s1896 + $0x17d0] sm:$0xf]
        %v2894 = vld [vmem:[%s1896 + $0x17d4] sm:$0xff]
        %v2895 = vld [vmem:[%s1896 + $0x17dc] sm:$0xff]
        %v2896 = vld [vmem:[%s1896 + $0x17e4] sm:$0xff]
        %v2897 = vld [vmem:[%s1896 + $0x17ec] sm:$0xff]
        %v2898 = vld [vmem:[%s1896 + $0x17f4] sm:$0xff]
        %v2899 = vld [vmem:[%s1896 + $0x17fc] sm:$0xff]
        %v2900 = vld [vmem:[%s1896 + $0x1804] sm:$0xff]
        %v2901 = vld [vmem:[%s1896 + $0x180c] sm:$0xff]
        %v2902 = vld [vmem:[%s1896 + $0x1814] sm:$0xff]
        %v2903 = vld [vmem:[%s1896 + $0x181c] sm:$0xff]
        %v2904 = vld [vmem:[%s1896 + $0x1824] sm:$0xff]
        %v2905 = vld [vmem:[%s1896 + $0x182c] sm:$0xff]
        %v2906 = vld [vmem:[%s1896 + $0x1834] sm:$0xf]
        %v2907 = vld [vmem:[%s1896 + $0x1838] sm:$0xff]
        %v2908 = vld [vmem:[%s1896 + $0x1840] sm:$0xff]
        %v2909 = vld [vmem:[%s1896 + $0x1848] sm:$0xff]
        %v2910 = vld [vmem:[%s1896 + $0x1850] sm:$0xff]
        %v2911 = vld [vmem:[%s1896 + $0x1858] sm:$0xff]
        %v2912 = vld [vmem:[%s1896 + $0x1860] sm:$0xff]
        %v2913 = vld [vmem:[%s1896 + $0x1868] sm:$0xff]
        %v2914 = vld [vmem:[%s1896 + $0x1870] sm:$0xff]
        %v2915 = vld [vmem:[%s1896 + $0x1878] sm:$0xff]
        %v2916 = vld [vmem:[%s1896 + $0x1880] sm:$0xff]
        %v2917 = vld [vmem:[%s1896 + $0x1888] sm:$0xff]
        %v2918 = vld [vmem:[%s1896 + $0x1890] sm:$0xff]
        %v2919 = vld [vmem:[%s1896 + $0x1898] sm:$0xf]
        %v2920 = vld [vmem:[%s1896 + $0x189c] sm:$0xff]
        %v2921 = vld [vmem:[%s1896 + $0x18a4] sm:$0xff]
        %v2922 = vld [vmem:[%s1896 + $0x18ac] sm:$0xff]
        %v2923 = vld [vmem:[%s1896 + $0x18b4] sm:$0xff]
        %v2924 = vld [vmem:[%s1896 + $0x18bc] sm:$0xff]
        %v2925 = vld [vmem:[%s1896 + $0x18c4] sm:$0xff]
        %v2926 = vld [vmem:[%s1896 + $0x18cc] sm:$0xff]
        %v2927 = vld [vmem:[%s1896 + $0x18d4] sm:$0xff]
        %v2928 = vld [vmem:[%s1896 + $0x18dc] sm:$0xff]
        %v2929 = vld [vmem:[%s1896 + $0x18e4] sm:$0xff]
        %v2930 = vld [vmem:[%s1896 + $0x18ec] sm:$0xff]
        %v2931 = vld [vmem:[%s1896 + $0x18f4] sm:$0xff]
        %v2932 = vld [vmem:[%s1896 + $0x18fc] sm:$0xf]
        %v2933 = vld [vmem:[%s1928] sm:$0xff]
        %v2934 = vld [vmem:[%s1928 + $0x8] sm:$0xff]
        %v2935 = vld [vmem:[%s1928 + $0x10] sm:$0xff]
        %v2936 = vld [vmem:[%s1928 + $0x18] sm:$0x1]
        %v2941 = vlaneseq
        %v2942 = vshrl.u32 %v2941, 7
        %v2943 = vsub.s32 0, %v2942
        %v2944 = vrot.slane %v2933, %v2943
        %v2945 = vlaneseq
        %v2946 = vshrl.u32 %v2945, 7
        %v2947 = vsub.s32 1, %v2946
        %v2948 = vrot.slane %v2933, %v2947
        %v2949 = vlaneseq
        %v2950 = vshrl.u32 %v2949, 7
        %v2951 = vsub.s32 2, %v2950
        %v2952 = vrot.slane %v2933, %v2951
        %v2953 = vlaneseq
        %v2954 = vshrl.u32 %v2953, 7
        %v2955 = vsub.s32 3, %v2954
        %v2956 = vrot.slane %v2933, %v2955
        %v2957 = vlaneseq
        %v2958 = vshrl.u32 %v2957, 7
        %v2959 = vsub.s32 4, %v2958
        %v2960 = vrot.slane %v2933, %v2959
        %v2961 = vlaneseq
        %v2962 = vshrl.u32 %v2961, 7
        %v2963 = vsub.s32 5, %v2962
        %v2964 = vrot.slane %v2933, %v2963
        %v2965 = vlaneseq
        %v2966 = vshrl.u32 %v2965, 7
        %v2967 = vsub.s32 6, %v2966
        %v2968 = vrot.slane %v2933, %v2967
        %v2969 = vlaneseq
        %v2970 = vshrl.u32 %v2969, 7
        %v2971 = vsub.s32 7, %v2970
        %v2972 = vrot.slane %v2933, %v2971
        %v2973 = vlaneseq
        %v2974 = vshrl.u32 %v2973, 7
        %v2975 = vsub.s32 0, %v2974
        %v2976 = vrot.slane %v2934, %v2975
        %v2977 = vlaneseq
        %v2978 = vshrl.u32 %v2977, 7
        %v2979 = vsub.s32 1, %v2978
        %v2980 = vrot.slane %v2934, %v2979
        %v2981 = vlaneseq
        %v2982 = vshrl.u32 %v2981, 7
        %v2983 = vsub.s32 2, %v2982
        %v2984 = vrot.slane %v2934, %v2983
        %v2985 = vlaneseq
        %v2986 = vshrl.u32 %v2985, 7
        %v2987 = vsub.s32 3, %v2986
        %v2988 = vrot.slane %v2934, %v2987
        %v2989 = vlaneseq
        %v2990 = vshrl.u32 %v2989, 7
        %v2991 = vsub.s32 4, %v2990
        %v2992 = vrot.slane %v2934, %v2991
        %v2993 = vlaneseq
        %v2994 = vshrl.u32 %v2993, 7
        %v2995 = vsub.s32 5, %v2994
        %v2996 = vrot.slane %v2934, %v2995
        %v2997 = vlaneseq
        %v2998 = vshrl.u32 %v2997, 7
        %v2999 = vsub.s32 6, %v2998
        %v3000 = vrot.slane %v2934, %v2999
        %v3001 = vlaneseq
        %v3002 = vshrl.u32 %v3001, 7
        %v3003 = vsub.s32 7, %v3002
        %v3004 = vrot.slane %v2934, %v3003
        %v3005 = vlaneseq
        %v3006 = vshrl.u32 %v3005, 7
        %v3007 = vsub.s32 0, %v3006
        %v3008 = vrot.slane %v2935, %v3007
        %v3009 = vlaneseq
        %v3010 = vshrl.u32 %v3009, 7
        %v3011 = vsub.s32 1, %v3010
        %v3012 = vrot.slane %v2935, %v3011
        %v3013 = vlaneseq
        %v3014 = vshrl.u32 %v3013, 7
        %v3015 = vsub.s32 2, %v3014
        %v3016 = vrot.slane %v2935, %v3015
        %v3017 = vlaneseq
        %v3018 = vshrl.u32 %v3017, 7
        %v3019 = vsub.s32 3, %v3018
        %v3020 = vrot.slane %v2935, %v3019
        %v3021 = vlaneseq
        %v3022 = vshrl.u32 %v3021, 7
        %v3023 = vsub.s32 4, %v3022
        %v3024 = vrot.slane %v2935, %v3023
        %v3025 = vlaneseq
        %v3026 = vshrl.u32 %v3025, 7
        %v3027 = vsub.s32 5, %v3026
        %v3028 = vrot.slane %v2935, %v3027
        %v3029 = vlaneseq
        %v3030 = vshrl.u32 %v3029, 7
        %v3031 = vsub.s32 6, %v3030
        %v3032 = vrot.slane %v2935, %v3031
        %v3033 = vlaneseq
        %v3034 = vshrl.u32 %v3033, 7
        %v3035 = vsub.s32 7, %v3034
        %v3036 = vrot.slane %v2935, %v3035
        %v3037 = vlaneseq
        %v3038 = vshrl.u32 %v3037, 7
        %v3039 = vsub.s32 0, %v3038
        %v3040 = vrot.slane %v2936, %v3039
        %v3898 = vunpack.c.l.b16 %v2101
        %v3899 = vunpack.c.h.b16 %v2101
        %v3900 = vunpack.c.l.b16 %v2102
        %v3901 = vunpack.c.h.b16 %v2102
        %v3902 = vunpack.c.l.b16 %v2103
        %v3903 = vunpack.c.h.b16 %v2103
        %v3904 = vunpack.c.l.b16 %v2104
        %v3905 = vunpack.c.h.b16 %v2104
        %v3906 = vunpack.c.l.b16 %v2105
        %v3907 = vunpack.c.h.b16 %v2105
        %v3908 = vunpack.c.l.b16 %v2106
        %v3909 = vunpack.c.h.b16 %v2106
        %v3910 = vunpack.c.l.b16 %v2107
        %v3911 = vunpack.c.h.b16 %v2107
        %v3912 = vunpack.c.l.b16 %v2108
        %v3913 = vunpack.c.h.b16 %v2108
        %v3914 = vunpack.c.l.b16 %v2109
        %v3915 = vunpack.c.h.b16 %v2109
        %v3916 = vunpack.c.l.b16 %v2110
        %v3917 = vunpack.c.h.b16 %v2110
        %v3918 = vunpack.c.l.b16 %v2111
        %v3919 = vunpack.c.h.b16 %v2111
        %v3920 = vunpack.c.l.b16 %v2112
        %v3921 = vunpack.c.h.b16 %v2112
        %v3922 = vunpack.c.l.b16 %v2113
        %v3923 = vunpack.c.l.b16 %v2114
        %v3924 = vunpack.c.h.b16 %v2114
        %v3925 = vunpack.c.l.b16 %v2115
        %v3926 = vunpack.c.h.b16 %v2115
        %v3927 = vunpack.c.l.b16 %v2116
        %v3928 = vunpack.c.h.b16 %v2116
        %v3929 = vunpack.c.l.b16 %v2117
        %v3930 = vunpack.c.h.b16 %v2117
        %v3931 = vunpack.c.l.b16 %v2118
        %v3932 = vunpack.c.h.b16 %v2118
        %v3933 = vunpack.c.l.b16 %v2119
        %v3934 = vunpack.c.h.b16 %v2119
        %v3935 = vunpack.c.l.b16 %v2120
        %v3936 = vunpack.c.h.b16 %v2120
        %v3937 = vunpack.c.l.b16 %v2121
        %v3938 = vunpack.c.h.b16 %v2121
        %v3939 = vunpack.c.l.b16 %v2122
        %v3940 = vunpack.c.h.b16 %v2122
        %v3941 = vunpack.c.l.b16 %v2123
        %v3942 = vunpack.c.h.b16 %v2123
        %v3943 = vunpack.c.l.b16 %v2124
        %v3944 = vunpack.c.h.b16 %v2124
        %v3945 = vunpack.c.l.b16 %v2125
        %v3946 = vunpack.c.h.b16 %v2125
        %v3947 = vunpack.c.l.b16 %v2126
        %v3948 = vunpack.c.l.b16 %v2127
        %v3949 = vunpack.c.h.b16 %v2127
        %v3950 = vunpack.c.l.b16 %v2128
        %v3951 = vunpack.c.h.b16 %v2128
        %v3952 = vunpack.c.l.b16 %v2129
        %v3953 = vunpack.c.h.b16 %v2129
        %v3954 = vunpack.c.l.b16 %v2130
        %v3955 = vunpack.c.h.b16 %v2130
        %v3956 = vunpack.c.l.b16 %v2131
        %v3957 = vunpack.c.h.b16 %v2131
        %v3958 = vunpack.c.l.b16 %v2132
        %v3959 = vunpack.c.h.b16 %v2132
        %v3960 = vunpack.c.l.b16 %v2133
        %v3961 = vunpack.c.h.b16 %v2133
        %v3962 = vunpack.c.l.b16 %v2134
        %v3963 = vunpack.c.h.b16 %v2134
        %v3964 = vunpack.c.l.b16 %v2135
        %v3965 = vunpack.c.h.b16 %v2135
        %v3966 = vunpack.c.l.b16 %v2136
        %v3967 = vunpack.c.h.b16 %v2136
        %v3968 = vunpack.c.l.b16 %v2137
        %v3969 = vunpack.c.h.b16 %v2137
        %v3970 = vunpack.c.l.b16 %v2138
        %v3971 = vunpack.c.h.b16 %v2138
        %v3972 = vunpack.c.l.b16 %v2139
        %v3973 = vunpack.c.l.b16 %v2140
        %v3974 = vunpack.c.h.b16 %v2140
        %v3975 = vunpack.c.l.b16 %v2141
        %v3976 = vunpack.c.h.b16 %v2141
        %v3977 = vunpack.c.l.b16 %v2142
        %v3978 = vunpack.c.h.b16 %v2142
        %v3979 = vunpack.c.l.b16 %v2143
        %v3980 = vunpack.c.h.b16 %v2143
        %v3981 = vunpack.c.l.b16 %v2144
        %v3982 = vunpack.c.h.b16 %v2144
        %v3983 = vunpack.c.l.b16 %v2145
        %v3984 = vunpack.c.h.b16 %v2145
        %v3985 = vunpack.c.l.b16 %v2146
        %v3986 = vunpack.c.h.b16 %v2146
        %v3987 = vunpack.c.l.b16 %v2147
        %v3988 = vunpack.c.h.b16 %v2147
        %v3989 = vunpack.c.l.b16 %v2148
        %v3990 = vunpack.c.h.b16 %v2148
        %v3991 = vunpack.c.l.b16 %v2149
        %v3992 = vunpack.c.h.b16 %v2149
        %v3993 = vunpack.c.l.b16 %v2150
        %v3994 = vunpack.c.h.b16 %v2150
        %v3995 = vunpack.c.l.b16 %v2151
        %v3996 = vunpack.c.h.b16 %v2151
        %v3997 = vunpack.c.l.b16 %v2152
        %v3998 = vunpack.c.l.b16 %v2153
        %v3999 = vunpack.c.h.b16 %v2153
        %v4000 = vunpack.c.l.b16 %v2154
        %v4001 = vunpack.c.h.b16 %v2154
        %v4002 = vunpack.c.l.b16 %v2155
        %v4003 = vunpack.c.h.b16 %v2155
        %v4004 = vunpack.c.l.b16 %v2156
        %v4005 = vunpack.c.h.b16 %v2156
        %v4006 = vunpack.c.l.b16 %v2157
        %v4007 = vunpack.c.h.b16 %v2157
        %v4008 = vunpack.c.l.b16 %v2158
        %v4009 = vunpack.c.h.b16 %v2158
        %v4010 = vunpack.c.l.b16 %v2159
        %v4011 = vunpack.c.h.b16 %v2159
        %v4012 = vunpack.c.l.b16 %v2160
        %v4013 = vunpack.c.h.b16 %v2160
        %v4014 = vunpack.c.l.b16 %v2161
        %v4015 = vunpack.c.h.b16 %v2161
        %v4016 = vunpack.c.l.b16 %v2162
        %v4017 = vunpack.c.h.b16 %v2162
        %v4018 = vunpack.c.l.b16 %v2163
        %v4019 = vunpack.c.h.b16 %v2163
        %v4020 = vunpack.c.l.b16 %v2164
        %v4021 = vunpack.c.h.b16 %v2164
        %v4022 = vunpack.c.l.b16 %v2165
        %v4023 = vunpack.c.l.b16 %v2166
        %v4024 = vunpack.c.h.b16 %v2166
        %v4025 = vunpack.c.l.b16 %v2167
        %v4026 = vunpack.c.h.b16 %v2167
        %v4027 = vunpack.c.l.b16 %v2168
        %v4028 = vunpack.c.h.b16 %v2168
        %v4029 = vunpack.c.l.b16 %v2169
        %v4030 = vunpack.c.h.b16 %v2169
        %v4031 = vunpack.c.l.b16 %v2170
        %v4032 = vunpack.c.h.b16 %v2170
        %v4033 = vunpack.c.l.b16 %v2171
        %v4034 = vunpack.c.h.b16 %v2171
        %v4035 = vunpack.c.l.b16 %v2172
        %v4036 = vunpack.c.h.b16 %v2172
        %v4037 = vunpack.c.l.b16 %v2173
        %v4038 = vunpack.c.h.b16 %v2173
        %v4039 = vunpack.c.l.b16 %v2174
        %v4040 = vunpack.c.h.b16 %v2174
        %v4041 = vunpack.c.l.b16 %v2175
        %v4042 = vunpack.c.h.b16 %v2175
        %v4043 = vunpack.c.l.b16 %v2176
        %v4044 = vunpack.c.h.b16 %v2176
        %v4045 = vunpack.c.l.b16 %v2177
        %v4046 = vunpack.c.h.b16 %v2177
        %v4047 = vunpack.c.l.b16 %v2178
        %v4048 = vunpack.c.l.b16 %v2179
        %v4049 = vunpack.c.h.b16 %v2179
        %v4050 = vunpack.c.l.b16 %v2180
        %v4051 = vunpack.c.h.b16 %v2180
        %v4052 = vunpack.c.l.b16 %v2181
        %v4053 = vunpack.c.h.b16 %v2181
        %v4054 = vunpack.c.l.b16 %v2182
        %v4055 = vunpack.c.h.b16 %v2182
        %v4056 = vunpack.c.l.b16 %v2183
        %v4057 = vunpack.c.h.b16 %v2183
        %v4058 = vunpack.c.l.b16 %v2184
        %v4059 = vunpack.c.h.b16 %v2184
        %v4060 = vunpack.c.l.b16 %v2185
        %v4061 = vunpack.c.h.b16 %v2185
        %v4062 = vunpack.c.l.b16 %v2186
        %v4063 = vunpack.c.h.b16 %v2186
        %v4064 = vunpack.c.l.b16 %v2187
        %v4065 = vunpack.c.h.b16 %v2187
        %v4066 = vunpack.c.l.b16 %v2188
        %v4067 = vunpack.c.h.b16 %v2188
        %v4068 = vunpack.c.l.b16 %v2189
        %v4069 = vunpack.c.h.b16 %v2189
        %v4070 = vunpack.c.l.b16 %v2190
        %v4071 = vunpack.c.h.b16 %v2190
        %v4072 = vunpack.c.l.b16 %v2191
        %v4073 = vunpack.c.l.b16 %v2192
        %v4074 = vunpack.c.h.b16 %v2192
        %v4075 = vunpack.c.l.b16 %v2193
        %v4076 = vunpack.c.h.b16 %v2193
        %v4077 = vunpack.c.l.b16 %v2194
        %v4078 = vunpack.c.h.b16 %v2194
        %v4079 = vunpack.c.l.b16 %v2195
        %v4080 = vunpack.c.h.b16 %v2195
        %v4081 = vunpack.c.l.b16 %v2196
        %v4082 = vunpack.c.h.b16 %v2196
        %v4083 = vunpack.c.l.b16 %v2197
        %v4084 = vunpack.c.h.b16 %v2197
        %v4085 = vunpack.c.l.b16 %v2198
        %v4086 = vunpack.c.h.b16 %v2198
        %v4087 = vunpack.c.l.b16 %v2199
        %v4088 = vunpack.c.h.b16 %v2199
        %v4089 = vunpack.c.l.b16 %v2200
        %v4090 = vunpack.c.h.b16 %v2200
        %v4091 = vunpack.c.l.b16 %v2201
        %v4092 = vunpack.c.h.b16 %v2201
        %v4093 = vunpack.c.l.b16 %v2202
        %v4094 = vunpack.c.h.b16 %v2202
        %v4095 = vunpack.c.l.b16 %v2203
        %v4096 = vunpack.c.h.b16 %v2203
        %v4097 = vunpack.c.l.b16 %v2204
        %v4098 = vunpack.c.l.b16 %v2205
        %v4099 = vunpack.c.h.b16 %v2205
        %v4100 = vunpack.c.l.b16 %v2206
        %v4101 = vunpack.c.h.b16 %v2206
        %v4102 = vunpack.c.l.b16 %v2207
        %v4103 = vunpack.c.h.b16 %v2207
        %v4104 = vunpack.c.l.b16 %v2208
        %v4105 = vunpack.c.h.b16 %v2208
        %v4106 = vunpack.c.l.b16 %v2209
        %v4107 = vunpack.c.h.b16 %v2209
        %v4108 = vunpack.c.l.b16 %v2210
        %v4109 = vunpack.c.h.b16 %v2210
        %v4110 = vunpack.c.l.b16 %v2211
        %v4111 = vunpack.c.h.b16 %v2211
        %v4112 = vunpack.c.l.b16 %v2212
        %v4113 = vunpack.c.h.b16 %v2212
        %v4114 = vunpack.c.l.b16 %v2213
        %v4115 = vunpack.c.h.b16 %v2213
        %v4116 = vunpack.c.l.b16 %v2214
        %v4117 = vunpack.c.h.b16 %v2214
        %v4118 = vunpack.c.l.b16 %v2215
        %v4119 = vunpack.c.h.b16 %v2215
        %v4120 = vunpack.c.l.b16 %v2216
        %v4121 = vunpack.c.h.b16 %v2216
        %v4122 = vunpack.c.l.b16 %v2217
        %v4123 = vunpack.c.l.b16 %v2218
        %v4124 = vunpack.c.h.b16 %v2218
        %v4125 = vunpack.c.l.b16 %v2219
        %v4126 = vunpack.c.h.b16 %v2219
        %v4127 = vunpack.c.l.b16 %v2220
        %v4128 = vunpack.c.h.b16 %v2220
        %v4129 = vunpack.c.l.b16 %v2221
        %v4130 = vunpack.c.h.b16 %v2221
        %v4131 = vunpack.c.l.b16 %v2222
        %v4132 = vunpack.c.h.b16 %v2222
        %v4133 = vunpack.c.l.b16 %v2223
        %v4134 = vunpack.c.h.b16 %v2223
        %v4135 = vunpack.c.l.b16 %v2224
        %v4136 = vunpack.c.h.b16 %v2224
        %v4137 = vunpack.c.l.b16 %v2225
        %v4138 = vunpack.c.h.b16 %v2225
        %v4139 = vunpack.c.l.b16 %v2226
        %v4140 = vunpack.c.h.b16 %v2226
        %v4141 = vunpack.c.l.b16 %v2227
        %v4142 = vunpack.c.h.b16 %v2227
        %v4143 = vunpack.c.l.b16 %v2228
        %v4144 = vunpack.c.h.b16 %v2228
        %v4145 = vunpack.c.l.b16 %v2229
        %v4146 = vunpack.c.h.b16 %v2229
        %v4147 = vunpack.c.l.b16 %v2230
        %v4148 = vunpack.c.l.b16 %v2231
        %v4149 = vunpack.c.h.b16 %v2231
        %v4150 = vunpack.c.l.b16 %v2232
        %v4151 = vunpack.c.h.b16 %v2232
        %v4152 = vunpack.c.l.b16 %v2233
        %v4153 = vunpack.c.h.b16 %v2233
        %v4154 = vunpack.c.l.b16 %v2234
        %v4155 = vunpack.c.h.b16 %v2234
        %v4156 = vunpack.c.l.b16 %v2235
        %v4157 = vunpack.c.h.b16 %v2235
        %v4158 = vunpack.c.l.b16 %v2236
        %v4159 = vunpack.c.h.b16 %v2236
        %v4160 = vunpack.c.l.b16 %v2237
        %v4161 = vunpack.c.h.b16 %v2237
        %v4162 = vunpack.c.l.b16 %v2238
        %v4163 = vunpack.c.h.b16 %v2238
        %v4164 = vunpack.c.l.b16 %v2239
        %v4165 = vunpack.c.h.b16 %v2239
        %v4166 = vunpack.c.l.b16 %v2240
        %v4167 = vunpack.c.h.b16 %v2240
        %v4168 = vunpack.c.l.b16 %v2241
        %v4169 = vunpack.c.h.b16 %v2241
        %v4170 = vunpack.c.l.b16 %v2242
        %v4171 = vunpack.c.h.b16 %v2242
        %v4172 = vunpack.c.l.b16 %v2243
        %v4173 = vunpack.c.l.b16 %v2244
        %v4174 = vunpack.c.h.b16 %v2244
        %v4175 = vunpack.c.l.b16 %v2245
        %v4176 = vunpack.c.h.b16 %v2245
        %v4177 = vunpack.c.l.b16 %v2246
        %v4178 = vunpack.c.h.b16 %v2246
        %v4179 = vunpack.c.l.b16 %v2247
        %v4180 = vunpack.c.h.b16 %v2247
        %v4181 = vunpack.c.l.b16 %v2248
        %v4182 = vunpack.c.h.b16 %v2248
        %v4183 = vunpack.c.l.b16 %v2249
        %v4184 = vunpack.c.h.b16 %v2249
        %v4185 = vunpack.c.l.b16 %v2250
        %v4186 = vunpack.c.h.b16 %v2250
        %v4187 = vunpack.c.l.b16 %v2251
        %v4188 = vunpack.c.h.b16 %v2251
        %v4189 = vunpack.c.l.b16 %v2252
        %v4190 = vunpack.c.h.b16 %v2252
        %v4191 = vunpack.c.l.b16 %v2253
        %v4192 = vunpack.c.h.b16 %v2253
        %v4193 = vunpack.c.l.b16 %v2254
        %v4194 = vunpack.c.h.b16 %v2254
        %v4195 = vunpack.c.l.b16 %v2255
        %v4196 = vunpack.c.h.b16 %v2255
        %v4197 = vunpack.c.l.b16 %v2256
        %v4198 = vunpack.c.l.b16 %v2257
        %v4199 = vunpack.c.h.b16 %v2257
        %v4200 = vunpack.c.l.b16 %v2258
        %v4201 = vunpack.c.h.b16 %v2258
        %v4202 = vunpack.c.l.b16 %v2259
        %v4203 = vunpack.c.h.b16 %v2259
        %v4204 = vunpack.c.l.b16 %v2260
        %v4205 = vunpack.c.h.b16 %v2260
        %v4206 = vunpack.c.l.b16 %v2261
        %v4207 = vunpack.c.h.b16 %v2261
        %v4208 = vunpack.c.l.b16 %v2262
        %v4209 = vunpack.c.h.b16 %v2262
        %v4210 = vunpack.c.l.b16 %v2263
        %v4211 = vunpack.c.h.b16 %v2263
        %v4212 = vunpack.c.l.b16 %v2264
        %v4213 = vunpack.c.h.b16 %v2264
        %v4214 = vunpack.c.l.b16 %v2265
        %v4215 = vunpack.c.h.b16 %v2265
        %v4216 = vunpack.c.l.b16 %v2266
        %v4217 = vunpack.c.h.b16 %v2266
        %v4218 = vunpack.c.l.b16 %v2267
        %v4219 = vunpack.c.h.b16 %v2267
        %v4220 = vunpack.c.l.b16 %v2268
        %v4221 = vunpack.c.h.b16 %v2268
        %v4222 = vunpack.c.l.b16 %v2269
        %v4223 = vunpack.c.l.b16 %v2270
        %v4224 = vunpack.c.h.b16 %v2270
        %v4225 = vunpack.c.l.b16 %v2271
        %v4226 = vunpack.c.h.b16 %v2271
        %v4227 = vunpack.c.l.b16 %v2272
        %v4228 = vunpack.c.h.b16 %v2272
        %v4229 = vunpack.c.l.b16 %v2273
        %v4230 = vunpack.c.h.b16 %v2273
        %v4231 = vunpack.c.l.b16 %v2274
        %v4232 = vunpack.c.h.b16 %v2274
        %v4233 = vunpack.c.l.b16 %v2275
        %v4234 = vunpack.c.h.b16 %v2275
        %v4235 = vunpack.c.l.b16 %v2276
        %v4236 = vunpack.c.h.b16 %v2276
        %v4237 = vunpack.c.l.b16 %v2277
        %v4238 = vunpack.c.h.b16 %v2277
        %v4239 = vunpack.c.l.b16 %v2278
        %v4240 = vunpack.c.h.b16 %v2278
        %v4241 = vunpack.c.l.b16 %v2279
        %v4242 = vunpack.c.h.b16 %v2279
        %v4243 = vunpack.c.l.b16 %v2280
        %v4244 = vunpack.c.h.b16 %v2280
        %v4245 = vunpack.c.l.b16 %v2281
        %v4246 = vunpack.c.h.b16 %v2281
        %v4247 = vunpack.c.l.b16 %v2282
        %v4248 = vunpack.c.l.b16 %v2283
        %v4249 = vunpack.c.h.b16 %v2283
        %v4250 = vunpack.c.l.b16 %v2284
        %v4251 = vunpack.c.h.b16 %v2284
        %v4252 = vunpack.c.l.b16 %v2285
        %v4253 = vunpack.c.h.b16 %v2285
        %v4254 = vunpack.c.l.b16 %v2286
        %v4255 = vunpack.c.h.b16 %v2286
        %v4256 = vunpack.c.l.b16 %v2287
        %v4257 = vunpack.c.h.b16 %v2287
        %v4258 = vunpack.c.l.b16 %v2288
        %v4259 = vunpack.c.h.b16 %v2288
        %v4260 = vunpack.c.l.b16 %v2289
        %v4261 = vunpack.c.h.b16 %v2289
        %v4262 = vunpack.c.l.b16 %v2290
        %v4263 = vunpack.c.h.b16 %v2290
        %v4264 = vunpack.c.l.b16 %v2291
        %v4265 = vunpack.c.h.b16 %v2291
        %v4266 = vunpack.c.l.b16 %v2292
        %v4267 = vunpack.c.h.b16 %v2292
        %v4268 = vunpack.c.l.b16 %v2293
        %v4269 = vunpack.c.h.b16 %v2293
        %v4270 = vunpack.c.l.b16 %v2294
        %v4271 = vunpack.c.h.b16 %v2294
        %v4272 = vunpack.c.l.b16 %v2295
        %v4273 = vunpack.c.l.b16 %v2296
        %v4274 = vunpack.c.h.b16 %v2296
        %v4275 = vunpack.c.l.b16 %v2297
        %v4276 = vunpack.c.h.b16 %v2297
        %v4277 = vunpack.c.l.b16 %v2298
        %v4278 = vunpack.c.h.b16 %v2298
        %v4279 = vunpack.c.l.b16 %v2299
        %v4280 = vunpack.c.h.b16 %v2299
        %v4281 = vunpack.c.l.b16 %v2300
        %v4282 = vunpack.c.h.b16 %v2300
        %v4283 = vunpack.c.l.b16 %v2301
        %v4284 = vunpack.c.h.b16 %v2301
        %v4285 = vunpack.c.l.b16 %v2302
        %v4286 = vunpack.c.h.b16 %v2302
        %v4287 = vunpack.c.l.b16 %v2303
        %v4288 = vunpack.c.h.b16 %v2303
        %v4289 = vunpack.c.l.b16 %v2304
        %v4290 = vunpack.c.h.b16 %v2304
        %v4291 = vunpack.c.l.b16 %v2305
        %v4292 = vunpack.c.h.b16 %v2305
        %v4293 = vunpack.c.l.b16 %v2306
        %v4294 = vunpack.c.h.b16 %v2306
        %v4295 = vunpack.c.l.b16 %v2307
        %v4296 = vunpack.c.h.b16 %v2307
        %v4297 = vunpack.c.l.b16 %v2308
        %v4298 = vunpack.c.l.b16 %v2309
        %v4299 = vunpack.c.h.b16 %v2309
        %v4300 = vunpack.c.l.b16 %v2310
        %v4301 = vunpack.c.h.b16 %v2310
        %v4302 = vunpack.c.l.b16 %v2311
        %v4303 = vunpack.c.h.b16 %v2311
        %v4304 = vunpack.c.l.b16 %v2312
        %v4305 = vunpack.c.h.b16 %v2312
        %v4306 = vunpack.c.l.b16 %v2313
        %v4307 = vunpack.c.h.b16 %v2313
        %v4308 = vunpack.c.l.b16 %v2314
        %v4309 = vunpack.c.h.b16 %v2314
        %v4310 = vunpack.c.l.b16 %v2315
        %v4311 = vunpack.c.h.b16 %v2315
        %v4312 = vunpack.c.l.b16 %v2316
        %v4313 = vunpack.c.h.b16 %v2316
        %v4314 = vunpack.c.l.b16 %v2317
        %v4315 = vunpack.c.h.b16 %v2317
        %v4316 = vunpack.c.l.b16 %v2318
        %v4317 = vunpack.c.h.b16 %v2318
        %v4318 = vunpack.c.l.b16 %v2319
        %v4319 = vunpack.c.h.b16 %v2319
        %v4320 = vunpack.c.l.b16 %v2320
        %v4321 = vunpack.c.h.b16 %v2320
        %v4322 = vunpack.c.l.b16 %v2321
        %v4323 = vunpack.c.l.b16 %v2322
        %v4324 = vunpack.c.h.b16 %v2322
        %v4325 = vunpack.c.l.b16 %v2323
        %v4326 = vunpack.c.h.b16 %v2323
        %v4327 = vunpack.c.l.b16 %v2324
        %v4328 = vunpack.c.h.b16 %v2324
        %v4329 = vunpack.c.l.b16 %v2325
        %v4330 = vunpack.c.h.b16 %v2325
        %v4331 = vunpack.c.l.b16 %v2326
        %v4332 = vunpack.c.h.b16 %v2326
        %v4333 = vunpack.c.l.b16 %v2327
        %v4334 = vunpack.c.h.b16 %v2327
        %v4335 = vunpack.c.l.b16 %v2328
        %v4336 = vunpack.c.h.b16 %v2328
        %v4337 = vunpack.c.l.b16 %v2329
        %v4338 = vunpack.c.h.b16 %v2329
        %v4339 = vunpack.c.l.b16 %v2330
        %v4340 = vunpack.c.h.b16 %v2330
        %v4341 = vunpack.c.l.b16 %v2331
        %v4342 = vunpack.c.h.b16 %v2331
        %v4343 = vunpack.c.l.b16 %v2332
        %v4344 = vunpack.c.h.b16 %v2332
        %v4345 = vunpack.c.l.b16 %v2333
        %v4346 = vunpack.c.h.b16 %v2333
        %v4347 = vunpack.c.l.b16 %v2334
        %v4348 = vunpack.c.l.b16 %v2335
        %v4349 = vunpack.c.h.b16 %v2335
        %v4350 = vunpack.c.l.b16 %v2336
        %v4351 = vunpack.c.h.b16 %v2336
        %v4352 = vunpack.c.l.b16 %v2337
        %v4353 = vunpack.c.h.b16 %v2337
        %v4354 = vunpack.c.l.b16 %v2338
        %v4355 = vunpack.c.h.b16 %v2338
        %v4356 = vunpack.c.l.b16 %v2339
        %v4357 = vunpack.c.h.b16 %v2339
        %v4358 = vunpack.c.l.b16 %v2340
        %v4359 = vunpack.c.h.b16 %v2340
        %v4360 = vunpack.c.l.b16 %v2341
        %v4361 = vunpack.c.h.b16 %v2341
        %v4362 = vunpack.c.l.b16 %v2342
        %v4363 = vunpack.c.h.b16 %v2342
        %v4364 = vunpack.c.l.b16 %v2343
        %v4365 = vunpack.c.h.b16 %v2343
        %v4366 = vunpack.c.l.b16 %v2344
        %v4367 = vunpack.c.h.b16 %v2344
        %v4368 = vunpack.c.l.b16 %v2345
        %v4369 = vunpack.c.h.b16 %v2345
        %v4370 = vunpack.c.l.b16 %v2346
        %v4371 = vunpack.c.h.b16 %v2346
        %v4372 = vunpack.c.l.b16 %v2347
        %v4373 = vunpack.c.l.b16 %v2348
        %v4374 = vunpack.c.h.b16 %v2348
        %v4375 = vunpack.c.l.b16 %v2349
        %v4376 = vunpack.c.h.b16 %v2349
        %v4377 = vunpack.c.l.b16 %v2350
        %v4378 = vunpack.c.h.b16 %v2350
        %v4379 = vunpack.c.l.b16 %v2351
        %v4380 = vunpack.c.h.b16 %v2351
        %v4381 = vunpack.c.l.b16 %v2352
        %v4382 = vunpack.c.h.b16 %v2352
        %v4383 = vunpack.c.l.b16 %v2353
        %v4384 = vunpack.c.h.b16 %v2353
        %v4385 = vunpack.c.l.b16 %v2354
        %v4386 = vunpack.c.h.b16 %v2354
        %v4387 = vunpack.c.l.b16 %v2355
        %v4388 = vunpack.c.h.b16 %v2355
        %v4389 = vunpack.c.l.b16 %v2356
        %v4390 = vunpack.c.h.b16 %v2356
        %v4391 = vunpack.c.l.b16 %v2357
        %v4392 = vunpack.c.h.b16 %v2357
        %v4393 = vunpack.c.l.b16 %v2358
        %v4394 = vunpack.c.h.b16 %v2358
        %v4395 = vunpack.c.l.b16 %v2359
        %v4396 = vunpack.c.h.b16 %v2359
        %v4397 = vunpack.c.l.b16 %v2360
        %v4398 = vunpack.c.l.b16 %v2361
        %v4399 = vunpack.c.h.b16 %v2361
        %v4400 = vunpack.c.l.b16 %v2362
        %v4401 = vunpack.c.h.b16 %v2362
        %v4402 = vunpack.c.l.b16 %v2363
        %v4403 = vunpack.c.h.b16 %v2363
        %v4404 = vunpack.c.l.b16 %v2364
        %v4405 = vunpack.c.h.b16 %v2364
        %v4406 = vunpack.c.l.b16 %v2365
        %v4407 = vunpack.c.h.b16 %v2365
        %v4408 = vunpack.c.l.b16 %v2366
        %v4409 = vunpack.c.h.b16 %v2366
        %v4410 = vunpack.c.l.b16 %v2367
        %v4411 = vunpack.c.h.b16 %v2367
        %v4412 = vunpack.c.l.b16 %v2368
        %v4413 = vunpack.c.h.b16 %v2368
        %v4414 = vunpack.c.l.b16 %v2369
        %v4415 = vunpack.c.h.b16 %v2369
        %v4416 = vunpack.c.l.b16 %v2370
        %v4417 = vunpack.c.h.b16 %v2370
        %v4418 = vunpack.c.l.b16 %v2371
        %v4419 = vunpack.c.h.b16 %v2371
        %v4420 = vunpack.c.l.b16 %v2372
        %v4421 = vunpack.c.h.b16 %v2372
        %v4422 = vunpack.c.l.b16 %v2373
        %v4423 = vunpack.c.l.b16 %v2374
        %v4424 = vunpack.c.h.b16 %v2374
        %v4425 = vunpack.c.l.b16 %v2375
        %v4426 = vunpack.c.h.b16 %v2375
        %v4427 = vunpack.c.l.b16 %v2376
        %v4428 = vunpack.c.h.b16 %v2376
        %v4429 = vunpack.c.l.b16 %v2377
        %v4430 = vunpack.c.h.b16 %v2377
        %v4431 = vunpack.c.l.b16 %v2378
        %v4432 = vunpack.c.h.b16 %v2378
        %v4433 = vunpack.c.l.b16 %v2379
        %v4434 = vunpack.c.h.b16 %v2379
        %v4435 = vunpack.c.l.b16 %v2380
        %v4436 = vunpack.c.h.b16 %v2380
        %v4437 = vunpack.c.l.b16 %v2381
        %v4438 = vunpack.c.h.b16 %v2381
        %v4439 = vunpack.c.l.b16 %v2382
        %v4440 = vunpack.c.h.b16 %v2382
        %v4441 = vunpack.c.l.b16 %v2383
        %v4442 = vunpack.c.h.b16 %v2383
        %v4443 = vunpack.c.l.b16 %v2384
        %v4444 = vunpack.c.h.b16 %v2384
        %v4445 = vunpack.c.l.b16 %v2385
        %v4446 = vunpack.c.h.b16 %v2385
        %v4447 = vunpack.c.l.b16 %v2386
        %v4448 = vunpack.c.l.b16 %v2387
        %v4449 = vunpack.c.h.b16 %v2387
        %v4450 = vunpack.c.l.b16 %v2388
        %v4451 = vunpack.c.h.b16 %v2388
        %v4452 = vunpack.c.l.b16 %v2389
        %v4453 = vunpack.c.h.b16 %v2389
        %v4454 = vunpack.c.l.b16 %v2390
        %v4455 = vunpack.c.h.b16 %v2390
        %v4456 = vunpack.c.l.b16 %v2391
        %v4457 = vunpack.c.h.b16 %v2391
        %v4458 = vunpack.c.l.b16 %v2392
        %v4459 = vunpack.c.h.b16 %v2392
        %v4460 = vunpack.c.l.b16 %v2393
        %v4461 = vunpack.c.h.b16 %v2393
        %v4462 = vunpack.c.l.b16 %v2394
        %v4463 = vunpack.c.h.b16 %v2394
        %v4464 = vunpack.c.l.b16 %v2395
        %v4465 = vunpack.c.h.b16 %v2395
        %v4466 = vunpack.c.l.b16 %v2396
        %v4467 = vunpack.c.h.b16 %v2396
        %v4468 = vunpack.c.l.b16 %v2397
        %v4469 = vunpack.c.h.b16 %v2397
        %v4470 = vunpack.c.l.b16 %v2398
        %v4471 = vunpack.c.h.b16 %v2398
        %v4472 = vunpack.c.l.b16 %v2399
        %v4473 = vunpack.c.l.b16 %v2400
        %v4474 = vunpack.c.h.b16 %v2400
        %v4475 = vunpack.c.l.b16 %v2401
        %v4476 = vunpack.c.h.b16 %v2401
        %v4477 = vunpack.c.l.b16 %v2402
        %v4478 = vunpack.c.h.b16 %v2402
        %v4479 = vunpack.c.l.b16 %v2403
        %v4480 = vunpack.c.h.b16 %v2403
        %v4481 = vunpack.c.l.b16 %v2404
        %v4482 = vunpack.c.h.b16 %v2404
        %v4483 = vunpack.c.l.b16 %v2405
        %v4484 = vunpack.c.h.b16 %v2405
        %v4485 = vunpack.c.l.b16 %v2406
        %v4486 = vunpack.c.h.b16 %v2406
        %v4487 = vunpack.c.l.b16 %v2407
        %v4488 = vunpack.c.h.b16 %v2407
        %v4489 = vunpack.c.l.b16 %v2408
        %v4490 = vunpack.c.h.b16 %v2408
        %v4491 = vunpack.c.l.b16 %v2409
        %v4492 = vunpack.c.h.b16 %v2409
        %v4493 = vunpack.c.l.b16 %v2410
        %v4494 = vunpack.c.h.b16 %v2410
        %v4495 = vunpack.c.l.b16 %v2411
        %v4496 = vunpack.c.h.b16 %v2411
        %v4497 = vunpack.c.l.b16 %v2412
        %v4498 = vunpack.c.l.b16 %v2413
        %v4499 = vunpack.c.h.b16 %v2413
        %v4500 = vunpack.c.l.b16 %v2414
        %v4501 = vunpack.c.h.b16 %v2414
        %v4502 = vunpack.c.l.b16 %v2415
        %v4503 = vunpack.c.h.b16 %v2415
        %v4504 = vunpack.c.l.b16 %v2416
        %v4505 = vunpack.c.h.b16 %v2416
        %v4506 = vunpack.c.l.b16 %v2417
        %v4507 = vunpack.c.h.b16 %v2417
        %v4508 = vunpack.c.l.b16 %v2418
        %v4509 = vunpack.c.h.b16 %v2418
        %v4510 = vunpack.c.l.b16 %v2419
        %v4511 = vunpack.c.h.b16 %v2419
        %v4512 = vunpack.c.l.b16 %v2420
        %v4513 = vunpack.c.h.b16 %v2420
        %v4514 = vunpack.c.l.b16 %v2421
        %v4515 = vunpack.c.h.b16 %v2421
        %v4516 = vunpack.c.l.b16 %v2422
        %v4517 = vunpack.c.h.b16 %v2422
        %v4518 = vunpack.c.l.b16 %v2423
        %v4519 = vunpack.c.h.b16 %v2423
        %v4520 = vunpack.c.l.b16 %v2424
        %v4521 = vunpack.c.h.b16 %v2424
        %v4522 = vunpack.c.l.b16 %v2425
        %v4523 = vunpack.c.l.b16 %v2426
        %v4524 = vunpack.c.h.b16 %v2426
        %v4525 = vunpack.c.l.b16 %v2427
        %v4526 = vunpack.c.h.b16 %v2427
        %v4527 = vunpack.c.l.b16 %v2428
        %v4528 = vunpack.c.h.b16 %v2428
        %v4529 = vunpack.c.l.b16 %v2429
        %v4530 = vunpack.c.h.b16 %v2429
        %v4531 = vunpack.c.l.b16 %v2430
        %v4532 = vunpack.c.h.b16 %v2430
        %v4533 = vunpack.c.l.b16 %v2431
        %v4534 = vunpack.c.h.b16 %v2431
        %v4535 = vunpack.c.l.b16 %v2432
        %v4536 = vunpack.c.h.b16 %v2432
        %v4537 = vunpack.c.l.b16 %v2433
        %v4538 = vunpack.c.h.b16 %v2433
        %v4539 = vunpack.c.l.b16 %v2434
        %v4540 = vunpack.c.h.b16 %v2434
        %v4541 = vunpack.c.l.b16 %v2435
        %v4542 = vunpack.c.h.b16 %v2435
        %v4543 = vunpack.c.l.b16 %v2436
        %v4544 = vunpack.c.h.b16 %v2436
        %v4545 = vunpack.c.l.b16 %v2437
        %v4546 = vunpack.c.h.b16 %v2437
        %v4547 = vunpack.c.l.b16 %v2438
        %v4548 = vunpack.c.l.b16 %v2439
        %v4549 = vunpack.c.h.b16 %v2439
        %v4550 = vunpack.c.l.b16 %v2440
        %v4551 = vunpack.c.h.b16 %v2440
        %v4552 = vunpack.c.l.b16 %v2441
        %v4553 = vunpack.c.h.b16 %v2441
        %v4554 = vunpack.c.l.b16 %v2442
        %v4555 = vunpack.c.h.b16 %v2442
        %v4556 = vunpack.c.l.b16 %v2443
        %v4557 = vunpack.c.h.b16 %v2443
        %v4558 = vunpack.c.l.b16 %v2444
        %v4559 = vunpack.c.h.b16 %v2444
        %v4560 = vunpack.c.l.b16 %v2445
        %v4561 = vunpack.c.h.b16 %v2445
        %v4562 = vunpack.c.l.b16 %v2446
        %v4563 = vunpack.c.h.b16 %v2446
        %v4564 = vunpack.c.l.b16 %v2447
        %v4565 = vunpack.c.h.b16 %v2447
        %v4566 = vunpack.c.l.b16 %v2448
        %v4567 = vunpack.c.h.b16 %v2448
        %v4568 = vunpack.c.l.b16 %v2449
        %v4569 = vunpack.c.h.b16 %v2449
        %v4570 = vunpack.c.l.b16 %v2450
        %v4571 = vunpack.c.h.b16 %v2450
        %v4572 = vunpack.c.l.b16 %v2451
        %v4573 = vunpack.c.l.b16 %v2452
        %v4574 = vunpack.c.h.b16 %v2452
        %v4575 = vunpack.c.l.b16 %v2453
        %v4576 = vunpack.c.h.b16 %v2453
        %v4577 = vunpack.c.l.b16 %v2454
        %v4578 = vunpack.c.h.b16 %v2454
        %v4579 = vunpack.c.l.b16 %v2455
        %v4580 = vunpack.c.h.b16 %v2455
        %v4581 = vunpack.c.l.b16 %v2456
        %v4582 = vunpack.c.h.b16 %v2456
        %v4583 = vunpack.c.l.b16 %v2457
        %v4584 = vunpack.c.h.b16 %v2457
        %v4585 = vunpack.c.l.b16 %v2458
        %v4586 = vunpack.c.h.b16 %v2458
        %v4587 = vunpack.c.l.b16 %v2459
        %v4588 = vunpack.c.h.b16 %v2459
        %v4589 = vunpack.c.l.b16 %v2460
        %v4590 = vunpack.c.h.b16 %v2460
        %v4591 = vunpack.c.l.b16 %v2461
        %v4592 = vunpack.c.h.b16 %v2461
        %v4593 = vunpack.c.l.b16 %v2462
        %v4594 = vunpack.c.h.b16 %v2462
        %v4595 = vunpack.c.l.b16 %v2463
        %v4596 = vunpack.c.h.b16 %v2463
        %v4597 = vunpack.c.l.b16 %v2464
        %v4598 = vunpack.c.l.b16 %v2465
        %v4599 = vunpack.c.h.b16 %v2465
        %v4600 = vunpack.c.l.b16 %v2466
        %v4601 = vunpack.c.h.b16 %v2466
        %v4602 = vunpack.c.l.b16 %v2467
        %v4603 = vunpack.c.h.b16 %v2467
        %v4604 = vunpack.c.l.b16 %v2468
        %v4605 = vunpack.c.h.b16 %v2468
        %v4606 = vunpack.c.l.b16 %v2469
        %v4607 = vunpack.c.h.b16 %v2469
        %v4608 = vunpack.c.l.b16 %v2470
        %v4609 = vunpack.c.h.b16 %v2470
        %v4610 = vunpack.c.l.b16 %v2471
        %v4611 = vunpack.c.h.b16 %v2471
        %v4612 = vunpack.c.l.b16 %v2472
        %v4613 = vunpack.c.h.b16 %v2472
        %v4614 = vunpack.c.l.b16 %v2473
        %v4615 = vunpack.c.h.b16 %v2473
        %v4616 = vunpack.c.l.b16 %v2474
        %v4617 = vunpack.c.h.b16 %v2474
        %v4618 = vunpack.c.l.b16 %v2475
        %v4619 = vunpack.c.h.b16 %v2475
        %v4620 = vunpack.c.l.b16 %v2476
        %v4621 = vunpack.c.h.b16 %v2476
        %v4622 = vunpack.c.l.b16 %v2477
        %v4623 = vunpack.c.l.b16 %v2478
        %v4624 = vunpack.c.h.b16 %v2478
        %v4625 = vunpack.c.l.b16 %v2479
        %v4626 = vunpack.c.h.b16 %v2479
        %v4627 = vunpack.c.l.b16 %v2480
        %v4628 = vunpack.c.h.b16 %v2480
        %v4629 = vunpack.c.l.b16 %v2481
        %v4630 = vunpack.c.h.b16 %v2481
        %v4631 = vunpack.c.l.b16 %v2482
        %v4632 = vunpack.c.h.b16 %v2482
        %v4633 = vunpack.c.l.b16 %v2483
        %v4634 = vunpack.c.h.b16 %v2483
        %v4635 = vunpack.c.l.b16 %v2484
        %v4636 = vunpack.c.h.b16 %v2484
        %v4637 = vunpack.c.l.b16 %v2485
        %v4638 = vunpack.c.h.b16 %v2485
        %v4639 = vunpack.c.l.b16 %v2486
        %v4640 = vunpack.c.h.b16 %v2486
        %v4641 = vunpack.c.l.b16 %v2487
        %v4642 = vunpack.c.h.b16 %v2487
        %v4643 = vunpack.c.l.b16 %v2488
        %v4644 = vunpack.c.h.b16 %v2488
        %v4645 = vunpack.c.l.b16 %v2489
        %v4646 = vunpack.c.h.b16 %v2489
        %v4647 = vunpack.c.l.b16 %v2490
        %v4648 = vunpack.c.l.b16 %v2491
        %v4649 = vunpack.c.h.b16 %v2491
        %v4650 = vunpack.c.l.b16 %v2492
        %v4651 = vunpack.c.h.b16 %v2492
        %v4652 = vunpack.c.l.b16 %v2493
        %v4653 = vunpack.c.h.b16 %v2493
        %v4654 = vunpack.c.l.b16 %v2494
        %v4655 = vunpack.c.h.b16 %v2494
        %v4656 = vunpack.c.l.b16 %v2495
        %v4657 = vunpack.c.h.b16 %v2495
        %v4658 = vunpack.c.l.b16 %v2496
        %v4659 = vunpack.c.h.b16 %v2496
        %v4660 = vunpack.c.l.b16 %v2497
        %v4661 = vunpack.c.h.b16 %v2497
        %v4662 = vunpack.c.l.b16 %v2498
        %v4663 = vunpack.c.h.b16 %v2498
        %v4664 = vunpack.c.l.b16 %v2499
        %v4665 = vunpack.c.h.b16 %v2499
        %v4666 = vunpack.c.l.b16 %v2500
        %v4667 = vunpack.c.h.b16 %v2500
        %v4668 = vunpack.c.l.b16 %v2501
        %v4669 = vunpack.c.h.b16 %v2501
        %v4670 = vunpack.c.l.b16 %v2502
        %v4671 = vunpack.c.h.b16 %v2502
        %v4672 = vunpack.c.l.b16 %v2503
        %v4673 = vunpack.c.l.b16 %v2504
        %v4674 = vunpack.c.h.b16 %v2504
        %v4675 = vunpack.c.l.b16 %v2505
        %v4676 = vunpack.c.h.b16 %v2505
        %v4677 = vunpack.c.l.b16 %v2506
        %v4678 = vunpack.c.h.b16 %v2506
        %v4679 = vunpack.c.l.b16 %v2507
        %v4680 = vunpack.c.h.b16 %v2507
        %v4681 = vunpack.c.l.b16 %v2508
        %v4682 = vunpack.c.h.b16 %v2508
        %v4683 = vunpack.c.l.b16 %v2509
        %v4684 = vunpack.c.h.b16 %v2509
        %v4685 = vunpack.c.l.b16 %v2510
        %v4686 = vunpack.c.h.b16 %v2510
        %v4687 = vunpack.c.l.b16 %v2511
        %v4688 = vunpack.c.h.b16 %v2511
        %v4689 = vunpack.c.l.b16 %v2512
        %v4690 = vunpack.c.h.b16 %v2512
        %v4691 = vunpack.c.l.b16 %v2513
        %v4692 = vunpack.c.h.b16 %v2513
        %v4693 = vunpack.c.l.b16 %v2514
        %v4694 = vunpack.c.h.b16 %v2514
        %v4695 = vunpack.c.l.b16 %v2515
        %v4696 = vunpack.c.h.b16 %v2515
        %v4697 = vunpack.c.l.b16 %v2516
        %v4698 = vunpack.c.l.b16 %v2517
        %v4699 = vunpack.c.h.b16 %v2517
        %v4700 = vunpack.c.l.b16 %v2518
        %v4701 = vunpack.c.h.b16 %v2518
        %v4702 = vunpack.c.l.b16 %v2519
        %v4703 = vunpack.c.h.b16 %v2519
        %v4704 = vunpack.c.l.b16 %v2520
        %v4705 = vunpack.c.h.b16 %v2520
        %v4706 = vunpack.c.l.b16 %v2521
        %v4707 = vunpack.c.h.b16 %v2521
        %v4708 = vunpack.c.l.b16 %v2522
        %v4709 = vunpack.c.h.b16 %v2522
        %v4710 = vunpack.c.l.b16 %v2523
        %v4711 = vunpack.c.h.b16 %v2523
        %v4712 = vunpack.c.l.b16 %v2524
        %v4713 = vunpack.c.h.b16 %v2524
        %v4714 = vunpack.c.l.b16 %v2525
        %v4715 = vunpack.c.h.b16 %v2525
        %v4716 = vunpack.c.l.b16 %v2526
        %v4717 = vunpack.c.h.b16 %v2526
        %v4718 = vunpack.c.l.b16 %v2527
        %v4719 = vunpack.c.h.b16 %v2527
        %v4720 = vunpack.c.l.b16 %v2528
        %v4721 = vunpack.c.h.b16 %v2528
        %v4722 = vunpack.c.l.b16 %v2529
        %v4723 = vunpack.c.l.b16 %v2530
        %v4724 = vunpack.c.h.b16 %v2530
        %v4725 = vunpack.c.l.b16 %v2531
        %v4726 = vunpack.c.h.b16 %v2531
        %v4727 = vunpack.c.l.b16 %v2532
        %v4728 = vunpack.c.h.b16 %v2532
        %v4729 = vunpack.c.l.b16 %v2533
        %v4730 = vunpack.c.h.b16 %v2533
        %v4731 = vunpack.c.l.b16 %v2534
        %v4732 = vunpack.c.h.b16 %v2534
        %v4733 = vunpack.c.l.b16 %v2535
        %v4734 = vunpack.c.h.b16 %v2535
        %v4735 = vunpack.c.l.b16 %v2536
        %v4736 = vunpack.c.h.b16 %v2536
        %v4737 = vunpack.c.l.b16 %v2537
        %v4738 = vunpack.c.h.b16 %v2537
        %v4739 = vunpack.c.l.b16 %v2538
        %v4740 = vunpack.c.h.b16 %v2538
        %v4741 = vunpack.c.l.b16 %v2539
        %v4742 = vunpack.c.h.b16 %v2539
        %v4743 = vunpack.c.l.b16 %v2540
        %v4744 = vunpack.c.h.b16 %v2540
        %v4745 = vunpack.c.l.b16 %v2541
        %v4746 = vunpack.c.h.b16 %v2541
        %v4747 = vunpack.c.l.b16 %v2542
        %v4748 = vunpack.c.l.b16 %v2543
        %v4749 = vunpack.c.h.b16 %v2543
        %v4750 = vunpack.c.l.b16 %v2544
        %v4751 = vunpack.c.h.b16 %v2544
        %v4752 = vunpack.c.l.b16 %v2545
        %v4753 = vunpack.c.h.b16 %v2545
        %v4754 = vunpack.c.l.b16 %v2546
        %v4755 = vunpack.c.h.b16 %v2546
        %v4756 = vunpack.c.l.b16 %v2547
        %v4757 = vunpack.c.h.b16 %v2547
        %v4758 = vunpack.c.l.b16 %v2548
        %v4759 = vunpack.c.h.b16 %v2548
        %v4760 = vunpack.c.l.b16 %v2549
        %v4761 = vunpack.c.h.b16 %v2549
        %v4762 = vunpack.c.l.b16 %v2550
        %v4763 = vunpack.c.h.b16 %v2550
        %v4764 = vunpack.c.l.b16 %v2551
        %v4765 = vunpack.c.h.b16 %v2551
        %v4766 = vunpack.c.l.b16 %v2552
        %v4767 = vunpack.c.h.b16 %v2552
        %v4768 = vunpack.c.l.b16 %v2553
        %v4769 = vunpack.c.h.b16 %v2553
        %v4770 = vunpack.c.l.b16 %v2554
        %v4771 = vunpack.c.h.b16 %v2554
        %v4772 = vunpack.c.l.b16 %v2555
        %v4773 = vunpack.c.l.b16 %v2556
        %v4774 = vunpack.c.h.b16 %v2556
        %v4775 = vunpack.c.l.b16 %v2557
        %v4776 = vunpack.c.h.b16 %v2557
        %v4777 = vunpack.c.l.b16 %v2558
        %v4778 = vunpack.c.h.b16 %v2558
        %v4779 = vunpack.c.l.b16 %v2559
        %v4780 = vunpack.c.h.b16 %v2559
        %v4781 = vunpack.c.l.b16 %v2560
        %v4782 = vunpack.c.h.b16 %v2560
        %v4783 = vunpack.c.l.b16 %v2561
        %v4784 = vunpack.c.h.b16 %v2561
        %v4785 = vunpack.c.l.b16 %v2562
        %v4786 = vunpack.c.h.b16 %v2562
        %v4787 = vunpack.c.l.b16 %v2563
        %v4788 = vunpack.c.h.b16 %v2563
        %v4789 = vunpack.c.l.b16 %v2564
        %v4790 = vunpack.c.h.b16 %v2564
        %v4791 = vunpack.c.l.b16 %v2565
        %v4792 = vunpack.c.h.b16 %v2565
        %v4793 = vunpack.c.l.b16 %v2566
        %v4794 = vunpack.c.h.b16 %v2566
        %v4795 = vunpack.c.l.b16 %v2567
        %v4796 = vunpack.c.h.b16 %v2567
        %v4797 = vunpack.c.l.b16 %v2568
        %v4798 = vunpack.c.l.b16 %v2569
        %v4799 = vunpack.c.h.b16 %v2569
        %v4800 = vunpack.c.l.b16 %v2570
        %v4801 = vunpack.c.h.b16 %v2570
        %v4802 = vunpack.c.l.b16 %v2571
        %v4803 = vunpack.c.h.b16 %v2571
        %v4804 = vunpack.c.l.b16 %v2572
        %v4805 = vunpack.c.h.b16 %v2572
        %v4806 = vunpack.c.l.b16 %v2573
        %v4807 = vunpack.c.h.b16 %v2573
        %v4808 = vunpack.c.l.b16 %v2574
        %v4809 = vunpack.c.h.b16 %v2574
        %v4810 = vunpack.c.l.b16 %v2575
        %v4811 = vunpack.c.h.b16 %v2575
        %v4812 = vunpack.c.l.b16 %v2576
        %v4813 = vunpack.c.h.b16 %v2576
        %v4814 = vunpack.c.l.b16 %v2577
        %v4815 = vunpack.c.h.b16 %v2577
        %v4816 = vunpack.c.l.b16 %v2578
        %v4817 = vunpack.c.h.b16 %v2578
        %v4818 = vunpack.c.l.b16 %v2579
        %v4819 = vunpack.c.h.b16 %v2579
        %v4820 = vunpack.c.l.b16 %v2580
        %v4821 = vunpack.c.h.b16 %v2580
        %v4822 = vunpack.c.l.b16 %v2581
        %v4823 = vunpack.c.l.b16 %v2582
        %v4824 = vunpack.c.h.b16 %v2582
        %v4825 = vunpack.c.l.b16 %v2583
        %v4826 = vunpack.c.h.b16 %v2583
        %v4827 = vunpack.c.l.b16 %v2584
        %v4828 = vunpack.c.h.b16 %v2584
        %v4829 = vunpack.c.l.b16 %v2585
        %v4830 = vunpack.c.h.b16 %v2585
        %v4831 = vunpack.c.l.b16 %v2586
        %v4832 = vunpack.c.h.b16 %v2586
        %v4833 = vunpack.c.l.b16 %v2587
        %v4834 = vunpack.c.h.b16 %v2587
        %v4835 = vunpack.c.l.b16 %v2588
        %v4836 = vunpack.c.h.b16 %v2588
        %v4837 = vunpack.c.l.b16 %v2589
        %v4838 = vunpack.c.h.b16 %v2589
        %v4839 = vunpack.c.l.b16 %v2590
        %v4840 = vunpack.c.h.b16 %v2590
        %v4841 = vunpack.c.l.b16 %v2591
        %v4842 = vunpack.c.h.b16 %v2591
        %v4843 = vunpack.c.l.b16 %v2592
        %v4844 = vunpack.c.h.b16 %v2592
        %v4845 = vunpack.c.l.b16 %v2593
        %v4846 = vunpack.c.h.b16 %v2593
        %v4847 = vunpack.c.l.b16 %v2594
        %v4848 = vunpack.c.l.b16 %v2595
        %v4849 = vunpack.c.h.b16 %v2595
        %v4850 = vunpack.c.l.b16 %v2596
        %v4851 = vunpack.c.h.b16 %v2596
        %v4852 = vunpack.c.l.b16 %v2597
        %v4853 = vunpack.c.h.b16 %v2597
        %v4854 = vunpack.c.l.b16 %v2598
        %v4855 = vunpack.c.h.b16 %v2598
        %v4856 = vunpack.c.l.b16 %v2599
        %v4857 = vunpack.c.h.b16 %v2599
        %v4858 = vunpack.c.l.b16 %v2600
        %v4859 = vunpack.c.h.b16 %v2600
        %v4860 = vunpack.c.l.b16 %v2601
        %v4861 = vunpack.c.h.b16 %v2601
        %v4862 = vunpack.c.l.b16 %v2602
        %v4863 = vunpack.c.h.b16 %v2602
        %v4864 = vunpack.c.l.b16 %v2603
        %v4865 = vunpack.c.h.b16 %v2603
        %v4866 = vunpack.c.l.b16 %v2604
        %v4867 = vunpack.c.h.b16 %v2604
        %v4868 = vunpack.c.l.b16 %v2605
        %v4869 = vunpack.c.h.b16 %v2605
        %v4870 = vunpack.c.l.b16 %v2606
        %v4871 = vunpack.c.h.b16 %v2606
        %v4872 = vunpack.c.l.b16 %v2607
        %v4873 = vunpack.c.l.b16 %v2608
        %v4874 = vunpack.c.h.b16 %v2608
        %v4875 = vunpack.c.l.b16 %v2609
        %v4876 = vunpack.c.h.b16 %v2609
        %v4877 = vunpack.c.l.b16 %v2610
        %v4878 = vunpack.c.h.b16 %v2610
        %v4879 = vunpack.c.l.b16 %v2611
        %v4880 = vunpack.c.h.b16 %v2611
        %v4881 = vunpack.c.l.b16 %v2612
        %v4882 = vunpack.c.h.b16 %v2612
        %v4883 = vunpack.c.l.b16 %v2613
        %v4884 = vunpack.c.h.b16 %v2613
        %v4885 = vunpack.c.l.b16 %v2614
        %v4886 = vunpack.c.h.b16 %v2614
        %v4887 = vunpack.c.l.b16 %v2615
        %v4888 = vunpack.c.h.b16 %v2615
        %v4889 = vunpack.c.l.b16 %v2616
        %v4890 = vunpack.c.h.b16 %v2616
        %v4891 = vunpack.c.l.b16 %v2617
        %v4892 = vunpack.c.h.b16 %v2617
        %v4893 = vunpack.c.l.b16 %v2618
        %v4894 = vunpack.c.h.b16 %v2618
        %v4895 = vunpack.c.l.b16 %v2619
        %v4896 = vunpack.c.h.b16 %v2619
        %v4897 = vunpack.c.l.b16 %v2620
        %v4898 = vunpack.c.l.b16 %v2621
        %v4899 = vunpack.c.h.b16 %v2621
        %v4900 = vunpack.c.l.b16 %v2622
        %v4901 = vunpack.c.h.b16 %v2622
        %v4902 = vunpack.c.l.b16 %v2623
        %v4903 = vunpack.c.h.b16 %v2623
        %v4904 = vunpack.c.l.b16 %v2624
        %v4905 = vunpack.c.h.b16 %v2624
        %v4906 = vunpack.c.l.b16 %v2625
        %v4907 = vunpack.c.h.b16 %v2625
        %v4908 = vunpack.c.l.b16 %v2626
        %v4909 = vunpack.c.h.b16 %v2626
        %v4910 = vunpack.c.l.b16 %v2627
        %v4911 = vunpack.c.h.b16 %v2627
        %v4912 = vunpack.c.l.b16 %v2628
        %v4913 = vunpack.c.h.b16 %v2628
        %v4914 = vunpack.c.l.b16 %v2629
        %v4915 = vunpack.c.h.b16 %v2629
        %v4916 = vunpack.c.l.b16 %v2630
        %v4917 = vunpack.c.h.b16 %v2630
        %v4918 = vunpack.c.l.b16 %v2631
        %v4919 = vunpack.c.h.b16 %v2631
        %v4920 = vunpack.c.l.b16 %v2632
        %v4921 = vunpack.c.h.b16 %v2632
        %v4922 = vunpack.c.l.b16 %v2633
        %v4923 = vunpack.c.l.b16 %v2634
        %v4924 = vunpack.c.h.b16 %v2634
        %v4925 = vunpack.c.l.b16 %v2635
        %v4926 = vunpack.c.h.b16 %v2635
        %v4927 = vunpack.c.l.b16 %v2636
        %v4928 = vunpack.c.h.b16 %v2636
        %v4929 = vunpack.c.l.b16 %v2637
        %v4930 = vunpack.c.h.b16 %v2637
        %v4931 = vunpack.c.l.b16 %v2638
        %v4932 = vunpack.c.h.b16 %v2638
        %v4933 = vunpack.c.l.b16 %v2639
        %v4934 = vunpack.c.h.b16 %v2639
        %v4935 = vunpack.c.l.b16 %v2640
        %v4936 = vunpack.c.h.b16 %v2640
        %v4937 = vunpack.c.l.b16 %v2641
        %v4938 = vunpack.c.h.b16 %v2641
        %v4939 = vunpack.c.l.b16 %v2642
        %v4940 = vunpack.c.h.b16 %v2642
        %v4941 = vunpack.c.l.b16 %v2643
        %v4942 = vunpack.c.h.b16 %v2643
        %v4943 = vunpack.c.l.b16 %v2644
        %v4944 = vunpack.c.h.b16 %v2644
        %v4945 = vunpack.c.l.b16 %v2645
        %v4946 = vunpack.c.h.b16 %v2645
        %v4947 = vunpack.c.l.b16 %v2646
        %v4948 = vunpack.c.l.b16 %v2647
        %v4949 = vunpack.c.h.b16 %v2647
        %v4950 = vunpack.c.l.b16 %v2648
        %v4951 = vunpack.c.h.b16 %v2648
        %v4952 = vunpack.c.l.b16 %v2649
        %v4953 = vunpack.c.h.b16 %v2649
        %v4954 = vunpack.c.l.b16 %v2650
        %v4955 = vunpack.c.h.b16 %v2650
        %v4956 = vunpack.c.l.b16 %v2651
        %v4957 = vunpack.c.h.b16 %v2651
        %v4958 = vunpack.c.l.b16 %v2652
        %v4959 = vunpack.c.h.b16 %v2652
        %v4960 = vunpack.c.l.b16 %v2653
        %v4961 = vunpack.c.h.b16 %v2653
        %v4962 = vunpack.c.l.b16 %v2654
        %v4963 = vunpack.c.h.b16 %v2654
        %v4964 = vunpack.c.l.b16 %v2655
        %v4965 = vunpack.c.h.b16 %v2655
        %v4966 = vunpack.c.l.b16 %v2656
        %v4967 = vunpack.c.h.b16 %v2656
        %v4968 = vunpack.c.l.b16 %v2657
        %v4969 = vunpack.c.h.b16 %v2657
        %v4970 = vunpack.c.l.b16 %v2658
        %v4971 = vunpack.c.h.b16 %v2658
        %v4972 = vunpack.c.l.b16 %v2659
        %v4973 = vunpack.c.l.b16 %v2660
        %v4974 = vunpack.c.h.b16 %v2660
        %v4975 = vunpack.c.l.b16 %v2661
        %v4976 = vunpack.c.h.b16 %v2661
        %v4977 = vunpack.c.l.b16 %v2662
        %v4978 = vunpack.c.h.b16 %v2662
        %v4979 = vunpack.c.l.b16 %v2663
        %v4980 = vunpack.c.h.b16 %v2663
        %v4981 = vunpack.c.l.b16 %v2664
        %v4982 = vunpack.c.h.b16 %v2664
        %v4983 = vunpack.c.l.b16 %v2665
        %v4984 = vunpack.c.h.b16 %v2665
        %v4985 = vunpack.c.l.b16 %v2666
        %v4986 = vunpack.c.h.b16 %v2666
        %v4987 = vunpack.c.l.b16 %v2667
        %v4988 = vunpack.c.h.b16 %v2667
        %v4989 = vunpack.c.l.b16 %v2668
        %v4990 = vunpack.c.h.b16 %v2668
        %v4991 = vunpack.c.l.b16 %v2669
        %v4992 = vunpack.c.h.b16 %v2669
        %v4993 = vunpack.c.l.b16 %v2670
        %v4994 = vunpack.c.h.b16 %v2670
        %v4995 = vunpack.c.l.b16 %v2671
        %v4996 = vunpack.c.h.b16 %v2671
        %v4997 = vunpack.c.l.b16 %v2672
        %v4998 = vunpack.c.l.b16 %v2673
        %v4999 = vunpack.c.h.b16 %v2673
        %v5000 = vunpack.c.l.b16 %v2674
        %v5001 = vunpack.c.h.b16 %v2674
        %v5002 = vunpack.c.l.b16 %v2675
        %v5003 = vunpack.c.h.b16 %v2675
        %v5004 = vunpack.c.l.b16 %v2676
        %v5005 = vunpack.c.h.b16 %v2676
        %v5006 = vunpack.c.l.b16 %v2677
        %v5007 = vunpack.c.h.b16 %v2677
        %v5008 = vunpack.c.l.b16 %v2678
        %v5009 = vunpack.c.h.b16 %v2678
        %v5010 = vunpack.c.l.b16 %v2679
        %v5011 = vunpack.c.h.b16 %v2679
        %v5012 = vunpack.c.l.b16 %v2680
        %v5013 = vunpack.c.h.b16 %v2680
        %v5014 = vunpack.c.l.b16 %v2681
        %v5015 = vunpack.c.h.b16 %v2681
        %v5016 = vunpack.c.l.b16 %v2682
        %v5017 = vunpack.c.h.b16 %v2682
        %v5018 = vunpack.c.l.b16 %v2683
        %v5019 = vunpack.c.h.b16 %v2683
        %v5020 = vunpack.c.l.b16 %v2684
        %v5021 = vunpack.c.h.b16 %v2684
        %v5022 = vunpack.c.l.b16 %v2685
        %v5023 = vunpack.c.l.b16 %v2686
        %v5024 = vunpack.c.h.b16 %v2686
        %v5025 = vunpack.c.l.b16 %v2687
        %v5026 = vunpack.c.h.b16 %v2687
        %v5027 = vunpack.c.l.b16 %v2688
        %v5028 = vunpack.c.h.b16 %v2688
        %v5029 = vunpack.c.l.b16 %v2689
        %v5030 = vunpack.c.h.b16 %v2689
        %v5031 = vunpack.c.l.b16 %v2690
        %v5032 = vunpack.c.h.b16 %v2690
        %v5033 = vunpack.c.l.b16 %v2691
        %v5034 = vunpack.c.h.b16 %v2691
        %v5035 = vunpack.c.l.b16 %v2692
        %v5036 = vunpack.c.h.b16 %v2692
        %v5037 = vunpack.c.l.b16 %v2693
        %v5038 = vunpack.c.h.b16 %v2693
        %v5039 = vunpack.c.l.b16 %v2694
        %v5040 = vunpack.c.h.b16 %v2694
        %v5041 = vunpack.c.l.b16 %v2695
        %v5042 = vunpack.c.h.b16 %v2695
        %v5043 = vunpack.c.l.b16 %v2696
        %v5044 = vunpack.c.h.b16 %v2696
        %v5045 = vunpack.c.l.b16 %v2697
        %v5046 = vunpack.c.h.b16 %v2697
        %v5047 = vunpack.c.l.b16 %v2698
        %v5048 = vunpack.c.l.b16 %v2699
        %v5049 = vunpack.c.h.b16 %v2699
        %v5050 = vunpack.c.l.b16 %v2700
        %v5051 = vunpack.c.h.b16 %v2700
        %v5052 = vunpack.c.l.b16 %v2701
        %v5053 = vunpack.c.h.b16 %v2701
        %v5054 = vunpack.c.l.b16 %v2702
        %v5055 = vunpack.c.h.b16 %v2702
        %v5056 = vunpack.c.l.b16 %v2703
        %v5057 = vunpack.c.h.b16 %v2703
        %v5058 = vunpack.c.l.b16 %v2704
        %v5059 = vunpack.c.h.b16 %v2704
        %v5060 = vunpack.c.l.b16 %v2705
        %v5061 = vunpack.c.h.b16 %v2705
        %v5062 = vunpack.c.l.b16 %v2706
        %v5063 = vunpack.c.h.b16 %v2706
        %v5064 = vunpack.c.l.b16 %v2707
        %v5065 = vunpack.c.h.b16 %v2707
        %v5066 = vunpack.c.l.b16 %v2708
        %v5067 = vunpack.c.h.b16 %v2708
        %v5068 = vunpack.c.l.b16 %v2709
        %v5069 = vunpack.c.h.b16 %v2709
        %v5070 = vunpack.c.l.b16 %v2710
        %v5071 = vunpack.c.h.b16 %v2710
        %v5072 = vunpack.c.l.b16 %v2711
        %v5073 = vunpack.c.l.b16 %v2712
        %v5074 = vunpack.c.h.b16 %v2712
        %v5075 = vunpack.c.l.b16 %v2713
        %v5076 = vunpack.c.h.b16 %v2713
        %v5077 = vunpack.c.l.b16 %v2714
        %v5078 = vunpack.c.h.b16 %v2714
        %v5079 = vunpack.c.l.b16 %v2715
        %v5080 = vunpack.c.h.b16 %v2715
        %v5081 = vunpack.c.l.b16 %v2716
        %v5082 = vunpack.c.h.b16 %v2716
        %v5083 = vunpack.c.l.b16 %v2717
        %v5084 = vunpack.c.h.b16 %v2717
        %v5085 = vunpack.c.l.b16 %v2718
        %v5086 = vunpack.c.h.b16 %v2718
        %v5087 = vunpack.c.l.b16 %v2719
        %v5088 = vunpack.c.h.b16 %v2719
        %v5089 = vunpack.c.l.b16 %v2720
        %v5090 = vunpack.c.h.b16 %v2720
        %v5091 = vunpack.c.l.b16 %v2721
        %v5092 = vunpack.c.h.b16 %v2721
        %v5093 = vunpack.c.l.b16 %v2722
        %v5094 = vunpack.c.h.b16 %v2722
        %v5095 = vunpack.c.l.b16 %v2723
        %v5096 = vunpack.c.h.b16 %v2723
        %v5097 = vunpack.c.l.b16 %v2724
        %v5098 = vunpack.c.l.b16 %v2725
        %v5099 = vunpack.c.h.b16 %v2725
        %v5100 = vunpack.c.l.b16 %v2726
        %v5101 = vunpack.c.h.b16 %v2726
        %v5102 = vunpack.c.l.b16 %v2727
        %v5103 = vunpack.c.h.b16 %v2727
        %v5104 = vunpack.c.l.b16 %v2728
        %v5105 = vunpack.c.h.b16 %v2728
        %v5106 = vunpack.c.l.b16 %v2729
        %v5107 = vunpack.c.h.b16 %v2729
        %v5108 = vunpack.c.l.b16 %v2730
        %v5109 = vunpack.c.h.b16 %v2730
        %v5110 = vunpack.c.l.b16 %v2731
        %v5111 = vunpack.c.h.b16 %v2731
        %v5112 = vunpack.c.l.b16 %v2732
        %v5113 = vunpack.c.h.b16 %v2732
        %v5114 = vunpack.c.l.b16 %v2733
        %v5115 = vunpack.c.h.b16 %v2733
        %v5116 = vunpack.c.l.b16 %v2734
        %v5117 = vunpack.c.h.b16 %v2734
        %v5118 = vunpack.c.l.b16 %v2735
        %v5119 = vunpack.c.h.b16 %v2735
        %v5120 = vunpack.c.l.b16 %v2736
        %v5121 = vunpack.c.h.b16 %v2736
        %v5122 = vunpack.c.l.b16 %v2737
        %v5123 = vunpack.c.l.b16 %v2738
        %v5124 = vunpack.c.h.b16 %v2738
        %v5125 = vunpack.c.l.b16 %v2739
        %v5126 = vunpack.c.h.b16 %v2739
        %v5127 = vunpack.c.l.b16 %v2740
        %v5128 = vunpack.c.h.b16 %v2740
        %v5129 = vunpack.c.l.b16 %v2741
        %v5130 = vunpack.c.h.b16 %v2741
        %v5131 = vunpack.c.l.b16 %v2742
        %v5132 = vunpack.c.h.b16 %v2742
        %v5133 = vunpack.c.l.b16 %v2743
        %v5134 = vunpack.c.h.b16 %v2743
        %v5135 = vunpack.c.l.b16 %v2744
        %v5136 = vunpack.c.h.b16 %v2744
        %v5137 = vunpack.c.l.b16 %v2745
        %v5138 = vunpack.c.h.b16 %v2745
        %v5139 = vunpack.c.l.b16 %v2746
        %v5140 = vunpack.c.h.b16 %v2746
        %v5141 = vunpack.c.l.b16 %v2747
        %v5142 = vunpack.c.h.b16 %v2747
        %v5143 = vunpack.c.l.b16 %v2748
        %v5144 = vunpack.c.h.b16 %v2748
        %v5145 = vunpack.c.l.b16 %v2749
        %v5146 = vunpack.c.h.b16 %v2749
        %v5147 = vunpack.c.l.b16 %v2750
        %v5148 = vunpack.c.l.b16 %v2751
        %v5149 = vunpack.c.h.b16 %v2751
        %v5150 = vunpack.c.l.b16 %v2752
        %v5151 = vunpack.c.h.b16 %v2752
        %v5152 = vunpack.c.l.b16 %v2753
        %v5153 = vunpack.c.h.b16 %v2753
        %v5154 = vunpack.c.l.b16 %v2754
        %v5155 = vunpack.c.h.b16 %v2754
        %v5156 = vunpack.c.l.b16 %v2755
        %v5157 = vunpack.c.h.b16 %v2755
        %v5158 = vunpack.c.l.b16 %v2756
        %v5159 = vunpack.c.h.b16 %v2756
        %v5160 = vunpack.c.l.b16 %v2757
        %v5161 = vunpack.c.h.b16 %v2757
        %v5162 = vunpack.c.l.b16 %v2758
        %v5163 = vunpack.c.h.b16 %v2758
        %v5164 = vunpack.c.l.b16 %v2759
        %v5165 = vunpack.c.h.b16 %v2759
        %v5166 = vunpack.c.l.b16 %v2760
        %v5167 = vunpack.c.h.b16 %v2760
        %v5168 = vunpack.c.l.b16 %v2761
        %v5169 = vunpack.c.h.b16 %v2761
        %v5170 = vunpack.c.l.b16 %v2762
        %v5171 = vunpack.c.h.b16 %v2762
        %v5172 = vunpack.c.l.b16 %v2763
        %v5173 = vunpack.c.l.b16 %v2764
        %v5174 = vunpack.c.h.b16 %v2764
        %v5175 = vunpack.c.l.b16 %v2765
        %v5176 = vunpack.c.h.b16 %v2765
        %v5177 = vunpack.c.l.b16 %v2766
        %v5178 = vunpack.c.h.b16 %v2766
        %v5179 = vunpack.c.l.b16 %v2767
        %v5180 = vunpack.c.h.b16 %v2767
        %v5181 = vunpack.c.l.b16 %v2768
        %v5182 = vunpack.c.h.b16 %v2768
        %v5183 = vunpack.c.l.b16 %v2769
        %v5184 = vunpack.c.h.b16 %v2769
        %v5185 = vunpack.c.l.b16 %v2770
        %v5186 = vunpack.c.h.b16 %v2770
        %v5187 = vunpack.c.l.b16 %v2771
        %v5188 = vunpack.c.h.b16 %v2771
        %v5189 = vunpack.c.l.b16 %v2772
        %v5190 = vunpack.c.h.b16 %v2772
        %v5191 = vunpack.c.l.b16 %v2773
        %v5192 = vunpack.c.h.b16 %v2773
        %v5193 = vunpack.c.l.b16 %v2774
        %v5194 = vunpack.c.h.b16 %v2774
        %v5195 = vunpack.c.l.b16 %v2775
        %v5196 = vunpack.c.h.b16 %v2775
        %v5197 = vunpack.c.l.b16 %v2776
        %v5198 = vunpack.c.l.b16 %v2777
        %v5199 = vunpack.c.h.b16 %v2777
        %v5200 = vunpack.c.l.b16 %v2778
        %v5201 = vunpack.c.h.b16 %v2778
        %v5202 = vunpack.c.l.b16 %v2779
        %v5203 = vunpack.c.h.b16 %v2779
        %v5204 = vunpack.c.l.b16 %v2780
        %v5205 = vunpack.c.h.b16 %v2780
        %v5206 = vunpack.c.l.b16 %v2781
        %v5207 = vunpack.c.h.b16 %v2781
        %v5208 = vunpack.c.l.b16 %v2782
        %v5209 = vunpack.c.h.b16 %v2782
        %v5210 = vunpack.c.l.b16 %v2783
        %v5211 = vunpack.c.h.b16 %v2783
        %v5212 = vunpack.c.l.b16 %v2784
        %v5213 = vunpack.c.h.b16 %v2784
        %v5214 = vunpack.c.l.b16 %v2785
        %v5215 = vunpack.c.h.b16 %v2785
        %v5216 = vunpack.c.l.b16 %v2786
        %v5217 = vunpack.c.h.b16 %v2786
        %v5218 = vunpack.c.l.b16 %v2787
        %v5219 = vunpack.c.h.b16 %v2787
        %v5220 = vunpack.c.l.b16 %v2788
        %v5221 = vunpack.c.h.b16 %v2788
        %v5222 = vunpack.c.l.b16 %v2789
        %v5223 = vunpack.c.l.b16 %v2790
        %v5224 = vunpack.c.h.b16 %v2790
        %v5225 = vunpack.c.l.b16 %v2791
        %v5226 = vunpack.c.h.b16 %v2791
        %v5227 = vunpack.c.l.b16 %v2792
        %v5228 = vunpack.c.h.b16 %v2792
        %v5229 = vunpack.c.l.b16 %v2793
        %v5230 = vunpack.c.h.b16 %v2793
        %v5231 = vunpack.c.l.b16 %v2794
        %v5232 = vunpack.c.h.b16 %v2794
        %v5233 = vunpack.c.l.b16 %v2795
        %v5234 = vunpack.c.h.b16 %v2795
        %v5235 = vunpack.c.l.b16 %v2796
        %v5236 = vunpack.c.h.b16 %v2796
        %v5237 = vunpack.c.l.b16 %v2797
        %v5238 = vunpack.c.h.b16 %v2797
        %v5239 = vunpack.c.l.b16 %v2798
        %v5240 = vunpack.c.h.b16 %v2798
        %v5241 = vunpack.c.l.b16 %v2799
        %v5242 = vunpack.c.h.b16 %v2799
        %v5243 = vunpack.c.l.b16 %v2800
        %v5244 = vunpack.c.h.b16 %v2800
        %v5245 = vunpack.c.l.b16 %v2801
        %v5246 = vunpack.c.h.b16 %v2801
        %v5247 = vunpack.c.l.b16 %v2802
        %v5248 = vunpack.c.l.b16 %v2803
        %v5249 = vunpack.c.h.b16 %v2803
        %v5250 = vunpack.c.l.b16 %v2804
        %v5251 = vunpack.c.h.b16 %v2804
        %v5252 = vunpack.c.l.b16 %v2805
        %v5253 = vunpack.c.h.b16 %v2805
        %v5254 = vunpack.c.l.b16 %v2806
        %v5255 = vunpack.c.h.b16 %v2806
        %v5256 = vunpack.c.l.b16 %v2807
        %v5257 = vunpack.c.h.b16 %v2807
        %v5258 = vunpack.c.l.b16 %v2808
        %v5259 = vunpack.c.h.b16 %v2808
        %v5260 = vunpack.c.l.b16 %v2809
        %v5261 = vunpack.c.h.b16 %v2809
        %v5262 = vunpack.c.l.b16 %v2810
        %v5263 = vunpack.c.h.b16 %v2810
        %v5264 = vunpack.c.l.b16 %v2811
        %v5265 = vunpack.c.h.b16 %v2811
        %v5266 = vunpack.c.l.b16 %v2812
        %v5267 = vunpack.c.h.b16 %v2812
        %v5268 = vunpack.c.l.b16 %v2813
        %v5269 = vunpack.c.h.b16 %v2813
        %v5270 = vunpack.c.l.b16 %v2814
        %v5271 = vunpack.c.h.b16 %v2814
        %v5272 = vunpack.c.l.b16 %v2815
        %v5273 = vunpack.c.l.b16 %v2816
        %v5274 = vunpack.c.h.b16 %v2816
        %v5275 = vunpack.c.l.b16 %v2817
        %v5276 = vunpack.c.h.b16 %v2817
        %v5277 = vunpack.c.l.b16 %v2818
        %v5278 = vunpack.c.h.b16 %v2818
        %v5279 = vunpack.c.l.b16 %v2819
        %v5280 = vunpack.c.h.b16 %v2819
        %v5281 = vunpack.c.l.b16 %v2820
        %v5282 = vunpack.c.h.b16 %v2820
        %v5283 = vunpack.c.l.b16 %v2821
        %v5284 = vunpack.c.h.b16 %v2821
        %v5285 = vunpack.c.l.b16 %v2822
        %v5286 = vunpack.c.h.b16 %v2822
        %v5287 = vunpack.c.l.b16 %v2823
        %v5288 = vunpack.c.h.b16 %v2823
        %v5289 = vunpack.c.l.b16 %v2824
        %v5290 = vunpack.c.h.b16 %v2824
        %v5291 = vunpack.c.l.b16 %v2825
        %v5292 = vunpack.c.h.b16 %v2825
        %v5293 = vunpack.c.l.b16 %v2826
        %v5294 = vunpack.c.h.b16 %v2826
        %v5295 = vunpack.c.l.b16 %v2827
        %v5296 = vunpack.c.h.b16 %v2827
        %v5297 = vunpack.c.l.b16 %v2828
        %v5298 = vunpack.c.l.b16 %v2829
        %v5299 = vunpack.c.h.b16 %v2829
        %v5300 = vunpack.c.l.b16 %v2830
        %v5301 = vunpack.c.h.b16 %v2830
        %v5302 = vunpack.c.l.b16 %v2831
        %v5303 = vunpack.c.h.b16 %v2831
        %v5304 = vunpack.c.l.b16 %v2832
        %v5305 = vunpack.c.h.b16 %v2832
        %v5306 = vunpack.c.l.b16 %v2833
        %v5307 = vunpack.c.h.b16 %v2833
        %v5308 = vunpack.c.l.b16 %v2834
        %v5309 = vunpack.c.h.b16 %v2834
        %v5310 = vunpack.c.l.b16 %v2835
        %v5311 = vunpack.c.h.b16 %v2835
        %v5312 = vunpack.c.l.b16 %v2836
        %v5313 = vunpack.c.h.b16 %v2836
        %v5314 = vunpack.c.l.b16 %v2837
        %v5315 = vunpack.c.h.b16 %v2837
        %v5316 = vunpack.c.l.b16 %v2838
        %v5317 = vunpack.c.h.b16 %v2838
        %v5318 = vunpack.c.l.b16 %v2839
        %v5319 = vunpack.c.h.b16 %v2839
        %v5320 = vunpack.c.l.b16 %v2840
        %v5321 = vunpack.c.h.b16 %v2840
        %v5322 = vunpack.c.l.b16 %v2841
        %v5323 = vunpack.c.l.b16 %v2842
        %v5324 = vunpack.c.h.b16 %v2842
        %v5325 = vunpack.c.l.b16 %v2843
        %v5326 = vunpack.c.h.b16 %v2843
        %v5327 = vunpack.c.l.b16 %v2844
        %v5328 = vunpack.c.h.b16 %v2844
        %v5329 = vunpack.c.l.b16 %v2845
        %v5330 = vunpack.c.h.b16 %v2845
        %v5331 = vunpack.c.l.b16 %v2846
        %v5332 = vunpack.c.h.b16 %v2846
        %v5333 = vunpack.c.l.b16 %v2847
        %v5334 = vunpack.c.h.b16 %v2847
        %v5335 = vunpack.c.l.b16 %v2848
        %v5336 = vunpack.c.h.b16 %v2848
        %v5337 = vunpack.c.l.b16 %v2849
        %v5338 = vunpack.c.h.b16 %v2849
        %v5339 = vunpack.c.l.b16 %v2850
        %v5340 = vunpack.c.h.b16 %v2850
        %v5341 = vunpack.c.l.b16 %v2851
        %v5342 = vunpack.c.h.b16 %v2851
        %v5343 = vunpack.c.l.b16 %v2852
        %v5344 = vunpack.c.h.b16 %v2852
        %v5345 = vunpack.c.l.b16 %v2853
        %v5346 = vunpack.c.h.b16 %v2853
        %v5347 = vunpack.c.l.b16 %v2854
        %v5348 = vunpack.c.l.b16 %v2855
        %v5349 = vunpack.c.h.b16 %v2855
        %v5350 = vunpack.c.l.b16 %v2856
        %v5351 = vunpack.c.h.b16 %v2856
        %v5352 = vunpack.c.l.b16 %v2857
        %v5353 = vunpack.c.h.b16 %v2857
        %v5354 = vunpack.c.l.b16 %v2858
        %v5355 = vunpack.c.h.b16 %v2858
        %v5356 = vunpack.c.l.b16 %v2859
        %v5357 = vunpack.c.h.b16 %v2859
        %v5358 = vunpack.c.l.b16 %v2860
        %v5359 = vunpack.c.h.b16 %v2860
        %v5360 = vunpack.c.l.b16 %v2861
        %v5361 = vunpack.c.h.b16 %v2861
        %v5362 = vunpack.c.l.b16 %v2862
        %v5363 = vunpack.c.h.b16 %v2862
        %v5364 = vunpack.c.l.b16 %v2863
        %v5365 = vunpack.c.h.b16 %v2863
        %v5366 = vunpack.c.l.b16 %v2864
        %v5367 = vunpack.c.h.b16 %v2864
        %v5368 = vunpack.c.l.b16 %v2865
        %v5369 = vunpack.c.h.b16 %v2865
        %v5370 = vunpack.c.l.b16 %v2866
        %v5371 = vunpack.c.h.b16 %v2866
        %v5372 = vunpack.c.l.b16 %v2867
        %v5373 = vunpack.c.l.b16 %v2868
        %v5374 = vunpack.c.h.b16 %v2868
        %v5375 = vunpack.c.l.b16 %v2869
        %v5376 = vunpack.c.h.b16 %v2869
        %v5377 = vunpack.c.l.b16 %v2870
        %v5378 = vunpack.c.h.b16 %v2870
        %v5379 = vunpack.c.l.b16 %v2871
        %v5380 = vunpack.c.h.b16 %v2871
        %v5381 = vunpack.c.l.b16 %v2872
        %v5382 = vunpack.c.h.b16 %v2872
        %v5383 = vunpack.c.l.b16 %v2873
        %v5384 = vunpack.c.h.b16 %v2873
        %v5385 = vunpack.c.l.b16 %v2874
        %v5386 = vunpack.c.h.b16 %v2874
        %v5387 = vunpack.c.l.b16 %v2875
        %v5388 = vunpack.c.h.b16 %v2875
        %v5389 = vunpack.c.l.b16 %v2876
        %v5390 = vunpack.c.h.b16 %v2876
        %v5391 = vunpack.c.l.b16 %v2877
        %v5392 = vunpack.c.h.b16 %v2877
        %v5393 = vunpack.c.l.b16 %v2878
        %v5394 = vunpack.c.h.b16 %v2878
        %v5395 = vunpack.c.l.b16 %v2879
        %v5396 = vunpack.c.h.b16 %v2879
        %v5397 = vunpack.c.l.b16 %v2880
        %v5398 = vunpack.c.l.b16 %v2881
        %v5399 = vunpack.c.h.b16 %v2881
        %v5400 = vunpack.c.l.b16 %v2882
        %v5401 = vunpack.c.h.b16 %v2882
        %v5402 = vunpack.c.l.b16 %v2883
        %v5403 = vunpack.c.h.b16 %v2883
        %v5404 = vunpack.c.l.b16 %v2884
        %v5405 = vunpack.c.h.b16 %v2884
        %v5406 = vunpack.c.l.b16 %v2885
        %v5407 = vunpack.c.h.b16 %v2885
        %v5408 = vunpack.c.l.b16 %v2886
        %v5409 = vunpack.c.h.b16 %v2886
        %v5410 = vunpack.c.l.b16 %v2887
        %v5411 = vunpack.c.h.b16 %v2887
        %v5412 = vunpack.c.l.b16 %v2888
        %v5413 = vunpack.c.h.b16 %v2888
        %v5414 = vunpack.c.l.b16 %v2889
        %v5415 = vunpack.c.h.b16 %v2889
        %v5416 = vunpack.c.l.b16 %v2890
        %v5417 = vunpack.c.h.b16 %v2890
        %v5418 = vunpack.c.l.b16 %v2891
        %v5419 = vunpack.c.h.b16 %v2891
        %v5420 = vunpack.c.l.b16 %v2892
        %v5421 = vunpack.c.h.b16 %v2892
        %v5422 = vunpack.c.l.b16 %v2893
        %v5423 = vunpack.c.l.b16 %v2894
        %v5424 = vunpack.c.h.b16 %v2894
        %v5425 = vunpack.c.l.b16 %v2895
        %v5426 = vunpack.c.h.b16 %v2895
        %v5427 = vunpack.c.l.b16 %v2896
        %v5428 = vunpack.c.h.b16 %v2896
        %v5429 = vunpack.c.l.b16 %v2897
        %v5430 = vunpack.c.h.b16 %v2897
        %v5431 = vunpack.c.l.b16 %v2898
        %v5432 = vunpack.c.h.b16 %v2898
        %v5433 = vunpack.c.l.b16 %v2899
        %v5434 = vunpack.c.h.b16 %v2899
        %v5435 = vunpack.c.l.b16 %v2900
        %v5436 = vunpack.c.h.b16 %v2900
        %v5437 = vunpack.c.l.b16 %v2901
        %v5438 = vunpack.c.h.b16 %v2901
        %v5439 = vunpack.c.l.b16 %v2902
        %v5440 = vunpack.c.h.b16 %v2902
        %v5441 = vunpack.c.l.b16 %v2903
        %v5442 = vunpack.c.h.b16 %v2903
        %v5443 = vunpack.c.l.b16 %v2904
        %v5444 = vunpack.c.h.b16 %v2904
        %v5445 = vunpack.c.l.b16 %v2905
        %v5446 = vunpack.c.h.b16 %v2905
        %v5447 = vunpack.c.l.b16 %v2906
        %v5448 = vunpack.c.l.b16 %v2907
        %v5449 = vunpack.c.h.b16 %v2907
        %v5450 = vunpack.c.l.b16 %v2908
        %v5451 = vunpack.c.h.b16 %v2908
        %v5452 = vunpack.c.l.b16 %v2909
        %v5453 = vunpack.c.h.b16 %v2909
        %v5454 = vunpack.c.l.b16 %v2910
        %v5455 = vunpack.c.h.b16 %v2910
        %v5456 = vunpack.c.l.b16 %v2911
        %v5457 = vunpack.c.h.b16 %v2911
        %v5458 = vunpack.c.l.b16 %v2912
        %v5459 = vunpack.c.h.b16 %v2912
        %v5460 = vunpack.c.l.b16 %v2913
        %v5461 = vunpack.c.h.b16 %v2913
        %v5462 = vunpack.c.l.b16 %v2914
        %v5463 = vunpack.c.h.b16 %v2914
        %v5464 = vunpack.c.l.b16 %v2915
        %v5465 = vunpack.c.h.b16 %v2915
        %v5466 = vunpack.c.l.b16 %v2916
        %v5467 = vunpack.c.h.b16 %v2916
        %v5468 = vunpack.c.l.b16 %v2917
        %v5469 = vunpack.c.h.b16 %v2917
        %v5470 = vunpack.c.l.b16 %v2918
        %v5471 = vunpack.c.h.b16 %v2918
        %v5472 = vunpack.c.l.b16 %v2919
        %v5473 = vunpack.c.l.b16 %v2920
        %v5474 = vunpack.c.h.b16 %v2920
        %v5475 = vunpack.c.l.b16 %v2921
        %v5476 = vunpack.c.h.b16 %v2921
        %v5477 = vunpack.c.l.b16 %v2922
        %v5478 = vunpack.c.h.b16 %v2922
        %v5479 = vunpack.c.l.b16 %v2923
        %v5480 = vunpack.c.h.b16 %v2923
        %v5481 = vunpack.c.l.b16 %v2924
        %v5482 = vunpack.c.h.b16 %v2924
        %v5483 = vunpack.c.l.b16 %v2925
        %v5484 = vunpack.c.h.b16 %v2925
        %v5485 = vunpack.c.l.b16 %v2926
        %v5486 = vunpack.c.h.b16 %v2926
        %v5487 = vunpack.c.l.b16 %v2927
        %v5488 = vunpack.c.h.b16 %v2927
        %v5489 = vunpack.c.l.b16 %v2928
        %v5490 = vunpack.c.h.b16 %v2928
        %v5491 = vunpack.c.l.b16 %v2929
        %v5492 = vunpack.c.h.b16 %v2929
        %v5493 = vunpack.c.l.b16 %v2930
        %v5494 = vunpack.c.h.b16 %v2930
        %v5495 = vunpack.c.l.b16 %v2931
        %v5496 = vunpack.c.h.b16 %v2931
        %v5497 = vunpack.c.l.b16 %v2932
        %v5498 = vpack.c.b16 %v3923, %v3898
        %v5499 = vpack.c.b16 %v3924, %v3899
        %v5500 = vpack.c.b16 %v3925, %v3900
        %v5501 = vpack.c.b16 %v3926, %v3901
        %v5502 = vpack.c.b16 %v3927, %v3902
        %v5503 = vpack.c.b16 %v3928, %v3903
        %v5504 = vpack.c.b16 %v3929, %v3904
        %v5505 = vpack.c.b16 %v3930, %v3905
        %v5506 = vpack.c.b16 %v3931, %v3906
        %v5507 = vpack.c.b16 %v3932, %v3907
        %v5508 = vpack.c.b16 %v3933, %v3908
        %v5509 = vpack.c.b16 %v3934, %v3909
        %v5510 = vpack.c.b16 %v3935, %v3910
        %v5511 = vpack.c.b16 %v3936, %v3911
        %v5512 = vpack.c.b16 %v3937, %v3912
        %v5513 = vpack.c.b16 %v3938, %v3913
        %v5514 = vpack.c.b16 %v3939, %v3914
        %v5515 = vpack.c.b16 %v3940, %v3915
        %v5516 = vpack.c.b16 %v3941, %v3916
        %v5517 = vpack.c.b16 %v3942, %v3917
        %v5518 = vpack.c.b16 %v3943, %v3918
        %v5519 = vpack.c.b16 %v3944, %v3919
        %v5520 = vpack.c.b16 %v3945, %v3920
        %v5521 = vpack.c.b16 %v3946, %v3921
        %v5522 = vpack.c.b16 %v3947, %v3922
        %v5523 = vpack.c.b16 %v3973, %v3948
        %v5524 = vpack.c.b16 %v3974, %v3949
        %v5525 = vpack.c.b16 %v3975, %v3950
        %v5526 = vpack.c.b16 %v3976, %v3951
        %v5527 = vpack.c.b16 %v3977, %v3952
        %v5528 = vpack.c.b16 %v3978, %v3953
        %v5529 = vpack.c.b16 %v3979, %v3954
        %v5530 = vpack.c.b16 %v3980, %v3955
        %v5531 = vpack.c.b16 %v3981, %v3956
        %v5532 = vpack.c.b16 %v3982, %v3957
        %v5533 = vpack.c.b16 %v3983, %v3958
        %v5534 = vpack.c.b16 %v3984, %v3959
        %v5535 = vpack.c.b16 %v3985, %v3960
        %v5536 = vpack.c.b16 %v3986, %v3961
        %v5537 = vpack.c.b16 %v3987, %v3962
        %v5538 = vpack.c.b16 %v3988, %v3963
        %v5539 = vpack.c.b16 %v3989, %v3964
        %v5540 = vpack.c.b16 %v3990, %v3965
        %v5541 = vpack.c.b16 %v3991, %v3966
        %v5542 = vpack.c.b16 %v3992, %v3967
        %v5543 = vpack.c.b16 %v3993, %v3968
        %v5544 = vpack.c.b16 %v3994, %v3969
        %v5545 = vpack.c.b16 %v3995, %v3970
        %v5546 = vpack.c.b16 %v3996, %v3971
        %v5547 = vpack.c.b16 %v3997, %v3972
        %v5548 = vpack.c.b16 %v4023, %v3998
        %v5549 = vpack.c.b16 %v4024, %v3999
        %v5550 = vpack.c.b16 %v4025, %v4000
        %v5551 = vpack.c.b16 %v4026, %v4001
        %v5552 = vpack.c.b16 %v4027, %v4002
        %v5553 = vpack.c.b16 %v4028, %v4003
        %v5554 = vpack.c.b16 %v4029, %v4004
        %v5555 = vpack.c.b16 %v4030, %v4005
        %v5556 = vpack.c.b16 %v4031, %v4006
        %v5557 = vpack.c.b16 %v4032, %v4007
        %v5558 = vpack.c.b16 %v4033, %v4008
        %v5559 = vpack.c.b16 %v4034, %v4009
        %v5560 = vpack.c.b16 %v4035, %v4010
        %v5561 = vpack.c.b16 %v4036, %v4011
        %v5562 = vpack.c.b16 %v4037, %v4012
        %v5563 = vpack.c.b16 %v4038, %v4013
        %v5564 = vpack.c.b16 %v4039, %v4014
        %v5565 = vpack.c.b16 %v4040, %v4015
        %v5566 = vpack.c.b16 %v4041, %v4016
        %v5567 = vpack.c.b16 %v4042, %v4017
        %v5568 = vpack.c.b16 %v4043, %v4018
        %v5569 = vpack.c.b16 %v4044, %v4019
        %v5570 = vpack.c.b16 %v4045, %v4020
        %v5571 = vpack.c.b16 %v4046, %v4021
        %v5572 = vpack.c.b16 %v4047, %v4022
        %v5573 = vpack.c.b16 %v4073, %v4048
        %v5574 = vpack.c.b16 %v4074, %v4049
        %v5575 = vpack.c.b16 %v4075, %v4050
        %v5576 = vpack.c.b16 %v4076, %v4051
        %v5577 = vpack.c.b16 %v4077, %v4052
        %v5578 = vpack.c.b16 %v4078, %v4053
        %v5579 = vpack.c.b16 %v4079, %v4054
        %v5580 = vpack.c.b16 %v4080, %v4055
        %v5581 = vpack.c.b16 %v4081, %v4056
        %v5582 = vpack.c.b16 %v4082, %v4057
        %v5583 = vpack.c.b16 %v4083, %v4058
        %v5584 = vpack.c.b16 %v4084, %v4059
        %v5585 = vpack.c.b16 %v4085, %v4060
        %v5586 = vpack.c.b16 %v4086, %v4061
        %v5587 = vpack.c.b16 %v4087, %v4062
        %v5588 = vpack.c.b16 %v4088, %v4063
        %v5589 = vpack.c.b16 %v4089, %v4064
        %v5590 = vpack.c.b16 %v4090, %v4065
        %v5591 = vpack.c.b16 %v4091, %v4066
        %v5592 = vpack.c.b16 %v4092, %v4067
        %v5593 = vpack.c.b16 %v4093, %v4068
        %v5594 = vpack.c.b16 %v4094, %v4069
        %v5595 = vpack.c.b16 %v4095, %v4070
        %v5596 = vpack.c.b16 %v4096, %v4071
        %v5597 = vpack.c.b16 %v4097, %v4072
        %v5598 = vpack.c.b16 %v4123, %v4098
        %v5599 = vpack.c.b16 %v4124, %v4099
        %v5600 = vpack.c.b16 %v4125, %v4100
        %v5601 = vpack.c.b16 %v4126, %v4101
        %v5602 = vpack.c.b16 %v4127, %v4102
        %v5603 = vpack.c.b16 %v4128, %v4103
        %v5604 = vpack.c.b16 %v4129, %v4104
        %v5605 = vpack.c.b16 %v4130, %v4105
        %v5606 = vpack.c.b16 %v4131, %v4106
        %v5607 = vpack.c.b16 %v4132, %v4107
        %v5608 = vpack.c.b16 %v4133, %v4108
        %v5609 = vpack.c.b16 %v4134, %v4109
        %v5610 = vpack.c.b16 %v4135, %v4110
        %v5611 = vpack.c.b16 %v4136, %v4111
        %v5612 = vpack.c.b16 %v4137, %v4112
        %v5613 = vpack.c.b16 %v4138, %v4113
        %v5614 = vpack.c.b16 %v4139, %v4114
        %v5615 = vpack.c.b16 %v4140, %v4115
        %v5616 = vpack.c.b16 %v4141, %v4116
        %v5617 = vpack.c.b16 %v4142, %v4117
        %v5618 = vpack.c.b16 %v4143, %v4118
        %v5619 = vpack.c.b16 %v4144, %v4119
        %v5620 = vpack.c.b16 %v4145, %v4120
        %v5621 = vpack.c.b16 %v4146, %v4121
        %v5622 = vpack.c.b16 %v4147, %v4122
        %v5623 = vpack.c.b16 %v4173, %v4148
        %v5624 = vpack.c.b16 %v4174, %v4149
        %v5625 = vpack.c.b16 %v4175, %v4150
        %v5626 = vpack.c.b16 %v4176, %v4151
        %v5627 = vpack.c.b16 %v4177, %v4152
        %v5628 = vpack.c.b16 %v4178, %v4153
        %v5629 = vpack.c.b16 %v4179, %v4154
        %v5630 = vpack.c.b16 %v4180, %v4155
        %v5631 = vpack.c.b16 %v4181, %v4156
        %v5632 = vpack.c.b16 %v4182, %v4157
        %v5633 = vpack.c.b16 %v4183, %v4158
        %v5634 = vpack.c.b16 %v4184, %v4159
        %v5635 = vpack.c.b16 %v4185, %v4160
        %v5636 = vpack.c.b16 %v4186, %v4161
        %v5637 = vpack.c.b16 %v4187, %v4162
        %v5638 = vpack.c.b16 %v4188, %v4163
        %v5639 = vpack.c.b16 %v4189, %v4164
        %v5640 = vpack.c.b16 %v4190, %v4165
        %v5641 = vpack.c.b16 %v4191, %v4166
        %v5642 = vpack.c.b16 %v4192, %v4167
        %v5643 = vpack.c.b16 %v4193, %v4168
        %v5644 = vpack.c.b16 %v4194, %v4169
        %v5645 = vpack.c.b16 %v4195, %v4170
        %v5646 = vpack.c.b16 %v4196, %v4171
        %v5647 = vpack.c.b16 %v4197, %v4172
        %v5648 = vpack.c.b16 %v4223, %v4198
        %v5649 = vpack.c.b16 %v4224, %v4199
        %v5650 = vpack.c.b16 %v4225, %v4200
        %v5651 = vpack.c.b16 %v4226, %v4201
        %v5652 = vpack.c.b16 %v4227, %v4202
        %v5653 = vpack.c.b16 %v4228, %v4203
        %v5654 = vpack.c.b16 %v4229, %v4204
        %v5655 = vpack.c.b16 %v4230, %v4205
        %v5656 = vpack.c.b16 %v4231, %v4206
        %v5657 = vpack.c.b16 %v4232, %v4207
        %v5658 = vpack.c.b16 %v4233, %v4208
        %v5659 = vpack.c.b16 %v4234, %v4209
        %v5660 = vpack.c.b16 %v4235, %v4210
        %v5661 = vpack.c.b16 %v4236, %v4211
        %v5662 = vpack.c.b16 %v4237, %v4212
        %v5663 = vpack.c.b16 %v4238, %v4213
        %v5664 = vpack.c.b16 %v4239, %v4214
        %v5665 = vpack.c.b16 %v4240, %v4215
        %v5666 = vpack.c.b16 %v4241, %v4216
        %v5667 = vpack.c.b16 %v4242, %v4217
        %v5668 = vpack.c.b16 %v4243, %v4218
        %v5669 = vpack.c.b16 %v4244, %v4219
        %v5670 = vpack.c.b16 %v4245, %v4220
        %v5671 = vpack.c.b16 %v4246, %v4221
        %v5672 = vpack.c.b16 %v4247, %v4222
        %v5673 = vpack.c.b16 %v4273, %v4248
        %v5674 = vpack.c.b16 %v4274, %v4249
        %v5675 = vpack.c.b16 %v4275, %v4250
        %v5676 = vpack.c.b16 %v4276, %v4251
        %v5677 = vpack.c.b16 %v4277, %v4252
        %v5678 = vpack.c.b16 %v4278, %v4253
        %v5679 = vpack.c.b16 %v4279, %v4254
        %v5680 = vpack.c.b16 %v4280, %v4255
        %v5681 = vpack.c.b16 %v4281, %v4256
        %v5682 = vpack.c.b16 %v4282, %v4257
        %v5683 = vpack.c.b16 %v4283, %v4258
        %v5684 = vpack.c.b16 %v4284, %v4259
        %v5685 = vpack.c.b16 %v4285, %v4260
        %v5686 = vpack.c.b16 %v4286, %v4261
        %v5687 = vpack.c.b16 %v4287, %v4262
        %v5688 = vpack.c.b16 %v4288, %v4263
        %v5689 = vpack.c.b16 %v4289, %v4264
        %v5690 = vpack.c.b16 %v4290, %v4265
        %v5691 = vpack.c.b16 %v4291, %v4266
        %v5692 = vpack.c.b16 %v4292, %v4267
        %v5693 = vpack.c.b16 %v4293, %v4268
        %v5694 = vpack.c.b16 %v4294, %v4269
        %v5695 = vpack.c.b16 %v4295, %v4270
        %v5696 = vpack.c.b16 %v4296, %v4271
        %v5697 = vpack.c.b16 %v4297, %v4272
        %v5698 = vpack.c.b16 %v4323, %v4298
        %v5699 = vpack.c.b16 %v4324, %v4299
        %v5700 = vpack.c.b16 %v4325, %v4300
        %v5701 = vpack.c.b16 %v4326, %v4301
        %v5702 = vpack.c.b16 %v4327, %v4302
        %v5703 = vpack.c.b16 %v4328, %v4303
        %v5704 = vpack.c.b16 %v4329, %v4304
        %v5705 = vpack.c.b16 %v4330, %v4305
        %v5706 = vpack.c.b16 %v4331, %v4306
        %v5707 = vpack.c.b16 %v4332, %v4307
        %v5708 = vpack.c.b16 %v4333, %v4308
        %v5709 = vpack.c.b16 %v4334, %v4309
        %v5710 = vpack.c.b16 %v4335, %v4310
        %v5711 = vpack.c.b16 %v4336, %v4311
        %v5712 = vpack.c.b16 %v4337, %v4312
        %v5713 = vpack.c.b16 %v4338, %v4313
        %v5714 = vpack.c.b16 %v4339, %v4314
        %v5715 = vpack.c.b16 %v4340, %v4315
        %v5716 = vpack.c.b16 %v4341, %v4316
        %v5717 = vpack.c.b16 %v4342, %v4317
        %v5718 = vpack.c.b16 %v4343, %v4318
        %v5719 = vpack.c.b16 %v4344, %v4319
        %v5720 = vpack.c.b16 %v4345, %v4320
        %v5721 = vpack.c.b16 %v4346, %v4321
        %v5722 = vpack.c.b16 %v4347, %v4322
        %v5723 = vpack.c.b16 %v4373, %v4348
        %v5724 = vpack.c.b16 %v4374, %v4349
        %v5725 = vpack.c.b16 %v4375, %v4350
        %v5726 = vpack.c.b16 %v4376, %v4351
        %v5727 = vpack.c.b16 %v4377, %v4352
        %v5728 = vpack.c.b16 %v4378, %v4353
        %v5729 = vpack.c.b16 %v4379, %v4354
        %v5730 = vpack.c.b16 %v4380, %v4355
        %v5731 = vpack.c.b16 %v4381, %v4356
        %v5732 = vpack.c.b16 %v4382, %v4357
        %v5733 = vpack.c.b16 %v4383, %v4358
        %v5734 = vpack.c.b16 %v4384, %v4359
        %v5735 = vpack.c.b16 %v4385, %v4360
        %v5736 = vpack.c.b16 %v4386, %v4361
        %v5737 = vpack.c.b16 %v4387, %v4362
        %v5738 = vpack.c.b16 %v4388, %v4363
        %v5739 = vpack.c.b16 %v4389, %v4364
        %v5740 = vpack.c.b16 %v4390, %v4365
        %v5741 = vpack.c.b16 %v4391, %v4366
        %v5742 = vpack.c.b16 %v4392, %v4367
        %v5743 = vpack.c.b16 %v4393, %v4368
        %v5744 = vpack.c.b16 %v4394, %v4369
        %v5745 = vpack.c.b16 %v4395, %v4370
        %v5746 = vpack.c.b16 %v4396, %v4371
        %v5747 = vpack.c.b16 %v4397, %v4372
        %v5748 = vpack.c.b16 %v4423, %v4398
        %v5749 = vpack.c.b16 %v4424, %v4399
        %v5750 = vpack.c.b16 %v4425, %v4400
        %v5751 = vpack.c.b16 %v4426, %v4401
        %v5752 = vpack.c.b16 %v4427, %v4402
        %v5753 = vpack.c.b16 %v4428, %v4403
        %v5754 = vpack.c.b16 %v4429, %v4404
        %v5755 = vpack.c.b16 %v4430, %v4405
        %v5756 = vpack.c.b16 %v4431, %v4406
        %v5757 = vpack.c.b16 %v4432, %v4407
        %v5758 = vpack.c.b16 %v4433, %v4408
        %v5759 = vpack.c.b16 %v4434, %v4409
        %v5760 = vpack.c.b16 %v4435, %v4410
        %v5761 = vpack.c.b16 %v4436, %v4411
        %v5762 = vpack.c.b16 %v4437, %v4412
        %v5763 = vpack.c.b16 %v4438, %v4413
        %v5764 = vpack.c.b16 %v4439, %v4414
        %v5765 = vpack.c.b16 %v4440, %v4415
        %v5766 = vpack.c.b16 %v4441, %v4416
        %v5767 = vpack.c.b16 %v4442, %v4417
        %v5768 = vpack.c.b16 %v4443, %v4418
        %v5769 = vpack.c.b16 %v4444, %v4419
        %v5770 = vpack.c.b16 %v4445, %v4420
        %v5771 = vpack.c.b16 %v4446, %v4421
        %v5772 = vpack.c.b16 %v4447, %v4422
        %v5773 = vpack.c.b16 %v4473, %v4448
        %v5774 = vpack.c.b16 %v4474, %v4449
        %v5775 = vpack.c.b16 %v4475, %v4450
        %v5776 = vpack.c.b16 %v4476, %v4451
        %v5777 = vpack.c.b16 %v4477, %v4452
        %v5778 = vpack.c.b16 %v4478, %v4453
        %v5779 = vpack.c.b16 %v4479, %v4454
        %v5780 = vpack.c.b16 %v4480, %v4455
        %v5781 = vpack.c.b16 %v4481, %v4456
        %v5782 = vpack.c.b16 %v4482, %v4457
        %v5783 = vpack.c.b16 %v4483, %v4458
        %v5784 = vpack.c.b16 %v4484, %v4459
        %v5785 = vpack.c.b16 %v4485, %v4460
        %v5786 = vpack.c.b16 %v4486, %v4461
        %v5787 = vpack.c.b16 %v4487, %v4462
        %v5788 = vpack.c.b16 %v4488, %v4463
        %v5789 = vpack.c.b16 %v4489, %v4464
        %v5790 = vpack.c.b16 %v4490, %v4465
        %v5791 = vpack.c.b16 %v4491, %v4466
        %v5792 = vpack.c.b16 %v4492, %v4467
        %v5793 = vpack.c.b16 %v4493, %v4468
        %v5794 = vpack.c.b16 %v4494, %v4469
        %v5795 = vpack.c.b16 %v4495, %v4470
        %v5796 = vpack.c.b16 %v4496, %v4471
        %v5797 = vpack.c.b16 %v4497, %v4472
        %v5798 = vpack.c.b16 %v4523, %v4498
        %v5799 = vpack.c.b16 %v4524, %v4499
        %v5800 = vpack.c.b16 %v4525, %v4500
        %v5801 = vpack.c.b16 %v4526, %v4501
        %v5802 = vpack.c.b16 %v4527, %v4502
        %v5803 = vpack.c.b16 %v4528, %v4503
        %v5804 = vpack.c.b16 %v4529, %v4504
        %v5805 = vpack.c.b16 %v4530, %v4505
        %v5806 = vpack.c.b16 %v4531, %v4506
        %v5807 = vpack.c.b16 %v4532, %v4507
        %v5808 = vpack.c.b16 %v4533, %v4508
        %v5809 = vpack.c.b16 %v4534, %v4509
        %v5810 = vpack.c.b16 %v4535, %v4510
        %v5811 = vpack.c.b16 %v4536, %v4511
        %v5812 = vpack.c.b16 %v4537, %v4512
        %v5813 = vpack.c.b16 %v4538, %v4513
        %v5814 = vpack.c.b16 %v4539, %v4514
        %v5815 = vpack.c.b16 %v4540, %v4515
        %v5816 = vpack.c.b16 %v4541, %v4516
        %v5817 = vpack.c.b16 %v4542, %v4517
        %v5818 = vpack.c.b16 %v4543, %v4518
        %v5819 = vpack.c.b16 %v4544, %v4519
        %v5820 = vpack.c.b16 %v4545, %v4520
        %v5821 = vpack.c.b16 %v4546, %v4521
        %v5822 = vpack.c.b16 %v4547, %v4522
        %v5823 = vpack.c.b16 %v4573, %v4548
        %v5824 = vpack.c.b16 %v4574, %v4549
        %v5825 = vpack.c.b16 %v4575, %v4550
        %v5826 = vpack.c.b16 %v4576, %v4551
        %v5827 = vpack.c.b16 %v4577, %v4552
        %v5828 = vpack.c.b16 %v4578, %v4553
        %v5829 = vpack.c.b16 %v4579, %v4554
        %v5830 = vpack.c.b16 %v4580, %v4555
        %v5831 = vpack.c.b16 %v4581, %v4556
        %v5832 = vpack.c.b16 %v4582, %v4557
        %v5833 = vpack.c.b16 %v4583, %v4558
        %v5834 = vpack.c.b16 %v4584, %v4559
        %v5835 = vpack.c.b16 %v4585, %v4560
        %v5836 = vpack.c.b16 %v4586, %v4561
        %v5837 = vpack.c.b16 %v4587, %v4562
        %v5838 = vpack.c.b16 %v4588, %v4563
        %v5839 = vpack.c.b16 %v4589, %v4564
        %v5840 = vpack.c.b16 %v4590, %v4565
        %v5841 = vpack.c.b16 %v4591, %v4566
        %v5842 = vpack.c.b16 %v4592, %v4567
        %v5843 = vpack.c.b16 %v4593, %v4568
        %v5844 = vpack.c.b16 %v4594, %v4569
        %v5845 = vpack.c.b16 %v4595, %v4570
        %v5846 = vpack.c.b16 %v4596, %v4571
        %v5847 = vpack.c.b16 %v4597, %v4572
        %v5848 = vpack.c.b16 %v4623, %v4598
        %v5849 = vpack.c.b16 %v4624, %v4599
        %v5850 = vpack.c.b16 %v4625, %v4600
        %v5851 = vpack.c.b16 %v4626, %v4601
        %v5852 = vpack.c.b16 %v4627, %v4602
        %v5853 = vpack.c.b16 %v4628, %v4603
        %v5854 = vpack.c.b16 %v4629, %v4604
        %v5855 = vpack.c.b16 %v4630, %v4605
        %v5856 = vpack.c.b16 %v4631, %v4606
        %v5857 = vpack.c.b16 %v4632, %v4607
        %v5858 = vpack.c.b16 %v4633, %v4608
        %v5859 = vpack.c.b16 %v4634, %v4609
        %v5860 = vpack.c.b16 %v4635, %v4610
        %v5861 = vpack.c.b16 %v4636, %v4611
        %v5862 = vpack.c.b16 %v4637, %v4612
        %v5863 = vpack.c.b16 %v4638, %v4613
        %v5864 = vpack.c.b16 %v4639, %v4614
        %v5865 = vpack.c.b16 %v4640, %v4615
        %v5866 = vpack.c.b16 %v4641, %v4616
        %v5867 = vpack.c.b16 %v4642, %v4617
        %v5868 = vpack.c.b16 %v4643, %v4618
        %v5869 = vpack.c.b16 %v4644, %v4619
        %v5870 = vpack.c.b16 %v4645, %v4620
        %v5871 = vpack.c.b16 %v4646, %v4621
        %v5872 = vpack.c.b16 %v4647, %v4622
        %v5873 = vpack.c.b16 %v4673, %v4648
        %v5874 = vpack.c.b16 %v4674, %v4649
        %v5875 = vpack.c.b16 %v4675, %v4650
        %v5876 = vpack.c.b16 %v4676, %v4651
        %v5877 = vpack.c.b16 %v4677, %v4652
        %v5878 = vpack.c.b16 %v4678, %v4653
        %v5879 = vpack.c.b16 %v4679, %v4654
        %v5880 = vpack.c.b16 %v4680, %v4655
        %v5881 = vpack.c.b16 %v4681, %v4656
        %v5882 = vpack.c.b16 %v4682, %v4657
        %v5883 = vpack.c.b16 %v4683, %v4658
        %v5884 = vpack.c.b16 %v4684, %v4659
        %v5885 = vpack.c.b16 %v4685, %v4660
        %v5886 = vpack.c.b16 %v4686, %v4661
        %v5887 = vpack.c.b16 %v4687, %v4662
        %v5888 = vpack.c.b16 %v4688, %v4663
        %v5889 = vpack.c.b16 %v4689, %v4664
        %v5890 = vpack.c.b16 %v4690, %v4665
        %v5891 = vpack.c.b16 %v4691, %v4666
        %v5892 = vpack.c.b16 %v4692, %v4667
        %v5893 = vpack.c.b16 %v4693, %v4668
        %v5894 = vpack.c.b16 %v4694, %v4669
        %v5895 = vpack.c.b16 %v4695, %v4670
        %v5896 = vpack.c.b16 %v4696, %v4671
        %v5897 = vpack.c.b16 %v4697, %v4672
        %v5898 = vpack.c.b16 %v4723, %v4698
        %v5899 = vpack.c.b16 %v4724, %v4699
        %v5900 = vpack.c.b16 %v4725, %v4700
        %v5901 = vpack.c.b16 %v4726, %v4701
        %v5902 = vpack.c.b16 %v4727, %v4702
        %v5903 = vpack.c.b16 %v4728, %v4703
        %v5904 = vpack.c.b16 %v4729, %v4704
        %v5905 = vpack.c.b16 %v4730, %v4705
        %v5906 = vpack.c.b16 %v4731, %v4706
        %v5907 = vpack.c.b16 %v4732, %v4707
        %v5908 = vpack.c.b16 %v4733, %v4708
        %v5909 = vpack.c.b16 %v4734, %v4709
        %v5910 = vpack.c.b16 %v4735, %v4710
        %v5911 = vpack.c.b16 %v4736, %v4711
        %v5912 = vpack.c.b16 %v4737, %v4712
        %v5913 = vpack.c.b16 %v4738, %v4713
        %v5914 = vpack.c.b16 %v4739, %v4714
        %v5915 = vpack.c.b16 %v4740, %v4715
        %v5916 = vpack.c.b16 %v4741, %v4716
        %v5917 = vpack.c.b16 %v4742, %v4717
        %v5918 = vpack.c.b16 %v4743, %v4718
        %v5919 = vpack.c.b16 %v4744, %v4719
        %v5920 = vpack.c.b16 %v4745, %v4720
        %v5921 = vpack.c.b16 %v4746, %v4721
        %v5922 = vpack.c.b16 %v4747, %v4722
        %v5923 = vpack.c.b16 %v4773, %v4748
        %v5924 = vpack.c.b16 %v4774, %v4749
        %v5925 = vpack.c.b16 %v4775, %v4750
        %v5926 = vpack.c.b16 %v4776, %v4751
        %v5927 = vpack.c.b16 %v4777, %v4752
        %v5928 = vpack.c.b16 %v4778, %v4753
        %v5929 = vpack.c.b16 %v4779, %v4754
        %v5930 = vpack.c.b16 %v4780, %v4755
        %v5931 = vpack.c.b16 %v4781, %v4756
        %v5932 = vpack.c.b16 %v4782, %v4757
        %v5933 = vpack.c.b16 %v4783, %v4758
        %v5934 = vpack.c.b16 %v4784, %v4759
        %v5935 = vpack.c.b16 %v4785, %v4760
        %v5936 = vpack.c.b16 %v4786, %v4761
        %v5937 = vpack.c.b16 %v4787, %v4762
        %v5938 = vpack.c.b16 %v4788, %v4763
        %v5939 = vpack.c.b16 %v4789, %v4764
        %v5940 = vpack.c.b16 %v4790, %v4765
        %v5941 = vpack.c.b16 %v4791, %v4766
        %v5942 = vpack.c.b16 %v4792, %v4767
        %v5943 = vpack.c.b16 %v4793, %v4768
        %v5944 = vpack.c.b16 %v4794, %v4769
        %v5945 = vpack.c.b16 %v4795, %v4770
        %v5946 = vpack.c.b16 %v4796, %v4771
        %v5947 = vpack.c.b16 %v4797, %v4772
        %v5948 = vpack.c.b16 %v4823, %v4798
        %v5949 = vpack.c.b16 %v4824, %v4799
        %v5950 = vpack.c.b16 %v4825, %v4800
        %v5951 = vpack.c.b16 %v4826, %v4801
        %v5952 = vpack.c.b16 %v4827, %v4802
        %v5953 = vpack.c.b16 %v4828, %v4803
        %v5954 = vpack.c.b16 %v4829, %v4804
        %v5955 = vpack.c.b16 %v4830, %v4805
        %v5956 = vpack.c.b16 %v4831, %v4806
        %v5957 = vpack.c.b16 %v4832, %v4807
        %v5958 = vpack.c.b16 %v4833, %v4808
        %v5959 = vpack.c.b16 %v4834, %v4809
        %v5960 = vpack.c.b16 %v4835, %v4810
        %v5961 = vpack.c.b16 %v4836, %v4811
        %v5962 = vpack.c.b16 %v4837, %v4812
        %v5963 = vpack.c.b16 %v4838, %v4813
        %v5964 = vpack.c.b16 %v4839, %v4814
        %v5965 = vpack.c.b16 %v4840, %v4815
        %v5966 = vpack.c.b16 %v4841, %v4816
        %v5967 = vpack.c.b16 %v4842, %v4817
        %v5968 = vpack.c.b16 %v4843, %v4818
        %v5969 = vpack.c.b16 %v4844, %v4819
        %v5970 = vpack.c.b16 %v4845, %v4820
        %v5971 = vpack.c.b16 %v4846, %v4821
        %v5972 = vpack.c.b16 %v4847, %v4822
        %v5973 = vpack.c.b16 %v4873, %v4848
        %v5974 = vpack.c.b16 %v4874, %v4849
        %v5975 = vpack.c.b16 %v4875, %v4850
        %v5976 = vpack.c.b16 %v4876, %v4851
        %v5977 = vpack.c.b16 %v4877, %v4852
        %v5978 = vpack.c.b16 %v4878, %v4853
        %v5979 = vpack.c.b16 %v4879, %v4854
        %v5980 = vpack.c.b16 %v4880, %v4855
        %v5981 = vpack.c.b16 %v4881, %v4856
        %v5982 = vpack.c.b16 %v4882, %v4857
        %v5983 = vpack.c.b16 %v4883, %v4858
        %v5984 = vpack.c.b16 %v4884, %v4859
        %v5985 = vpack.c.b16 %v4885, %v4860
        %v5986 = vpack.c.b16 %v4886, %v4861
        %v5987 = vpack.c.b16 %v4887, %v4862
        %v5988 = vpack.c.b16 %v4888, %v4863
        %v5989 = vpack.c.b16 %v4889, %v4864
        %v5990 = vpack.c.b16 %v4890, %v4865
        %v5991 = vpack.c.b16 %v4891, %v4866
        %v5992 = vpack.c.b16 %v4892, %v4867
        %v5993 = vpack.c.b16 %v4893, %v4868
        %v5994 = vpack.c.b16 %v4894, %v4869
        %v5995 = vpack.c.b16 %v4895, %v4870
        %v5996 = vpack.c.b16 %v4896, %v4871
        %v5997 = vpack.c.b16 %v4897, %v4872
        %v5998 = vpack.c.b16 %v4923, %v4898
        %v5999 = vpack.c.b16 %v4924, %v4899
        %v6000 = vpack.c.b16 %v4925, %v4900
        %v6001 = vpack.c.b16 %v4926, %v4901
        %v6002 = vpack.c.b16 %v4927, %v4902
        %v6003 = vpack.c.b16 %v4928, %v4903
        %v6004 = vpack.c.b16 %v4929, %v4904
        %v6005 = vpack.c.b16 %v4930, %v4905
        %v6006 = vpack.c.b16 %v4931, %v4906
        %v6007 = vpack.c.b16 %v4932, %v4907
        %v6008 = vpack.c.b16 %v4933, %v4908
        %v6009 = vpack.c.b16 %v4934, %v4909
        %v6010 = vpack.c.b16 %v4935, %v4910
        %v6011 = vpack.c.b16 %v4936, %v4911
        %v6012 = vpack.c.b16 %v4937, %v4912
        %v6013 = vpack.c.b16 %v4938, %v4913
        %v6014 = vpack.c.b16 %v4939, %v4914
        %v6015 = vpack.c.b16 %v4940, %v4915
        %v6016 = vpack.c.b16 %v4941, %v4916
        %v6017 = vpack.c.b16 %v4942, %v4917
        %v6018 = vpack.c.b16 %v4943, %v4918
        %v6019 = vpack.c.b16 %v4944, %v4919
        %v6020 = vpack.c.b16 %v4945, %v4920
        %v6021 = vpack.c.b16 %v4946, %v4921
        %v6022 = vpack.c.b16 %v4947, %v4922
        %v6023 = vpack.c.b16 %v4973, %v4948
        %v6024 = vpack.c.b16 %v4974, %v4949
        %v6025 = vpack.c.b16 %v4975, %v4950
        %v6026 = vpack.c.b16 %v4976, %v4951
        %v6027 = vpack.c.b16 %v4977, %v4952
        %v6028 = vpack.c.b16 %v4978, %v4953
        %v6029 = vpack.c.b16 %v4979, %v4954
        %v6030 = vpack.c.b16 %v4980, %v4955
        %v6031 = vpack.c.b16 %v4981, %v4956
        %v6032 = vpack.c.b16 %v4982, %v4957
        %v6033 = vpack.c.b16 %v4983, %v4958
        %v6034 = vpack.c.b16 %v4984, %v4959
        %v6035 = vpack.c.b16 %v4985, %v4960
        %v6036 = vpack.c.b16 %v4986, %v4961
        %v6037 = vpack.c.b16 %v4987, %v4962
        %v6038 = vpack.c.b16 %v4988, %v4963
        %v6039 = vpack.c.b16 %v4989, %v4964
        %v6040 = vpack.c.b16 %v4990, %v4965
        %v6041 = vpack.c.b16 %v4991, %v4966
        %v6042 = vpack.c.b16 %v4992, %v4967
        %v6043 = vpack.c.b16 %v4993, %v4968
        %v6044 = vpack.c.b16 %v4994, %v4969
        %v6045 = vpack.c.b16 %v4995, %v4970
        %v6046 = vpack.c.b16 %v4996, %v4971
        %v6047 = vpack.c.b16 %v4997, %v4972
        %v6048 = vpack.c.b16 %v5023, %v4998
        %v6049 = vpack.c.b16 %v5024, %v4999
        %v6050 = vpack.c.b16 %v5025, %v5000
        %v6051 = vpack.c.b16 %v5026, %v5001
        %v6052 = vpack.c.b16 %v5027, %v5002
        %v6053 = vpack.c.b16 %v5028, %v5003
        %v6054 = vpack.c.b16 %v5029, %v5004
        %v6055 = vpack.c.b16 %v5030, %v5005
        %v6056 = vpack.c.b16 %v5031, %v5006
        %v6057 = vpack.c.b16 %v5032, %v5007
        %v6058 = vpack.c.b16 %v5033, %v5008
        %v6059 = vpack.c.b16 %v5034, %v5009
        %v6060 = vpack.c.b16 %v5035, %v5010
        %v6061 = vpack.c.b16 %v5036, %v5011
        %v6062 = vpack.c.b16 %v5037, %v5012
        %v6063 = vpack.c.b16 %v5038, %v5013
        %v6064 = vpack.c.b16 %v5039, %v5014
        %v6065 = vpack.c.b16 %v5040, %v5015
        %v6066 = vpack.c.b16 %v5041, %v5016
        %v6067 = vpack.c.b16 %v5042, %v5017
        %v6068 = vpack.c.b16 %v5043, %v5018
        %v6069 = vpack.c.b16 %v5044, %v5019
        %v6070 = vpack.c.b16 %v5045, %v5020
        %v6071 = vpack.c.b16 %v5046, %v5021
        %v6072 = vpack.c.b16 %v5047, %v5022
        %v6073 = vpack.c.b16 %v5073, %v5048
        %v6074 = vpack.c.b16 %v5074, %v5049
        %v6075 = vpack.c.b16 %v5075, %v5050
        %v6076 = vpack.c.b16 %v5076, %v5051
        %v6077 = vpack.c.b16 %v5077, %v5052
        %v6078 = vpack.c.b16 %v5078, %v5053
        %v6079 = vpack.c.b16 %v5079, %v5054
        %v6080 = vpack.c.b16 %v5080, %v5055
        %v6081 = vpack.c.b16 %v5081, %v5056
        %v6082 = vpack.c.b16 %v5082, %v5057
        %v6083 = vpack.c.b16 %v5083, %v5058
        %v6084 = vpack.c.b16 %v5084, %v5059
        %v6085 = vpack.c.b16 %v5085, %v5060
        %v6086 = vpack.c.b16 %v5086, %v5061
        %v6087 = vpack.c.b16 %v5087, %v5062
        %v6088 = vpack.c.b16 %v5088, %v5063
        %v6089 = vpack.c.b16 %v5089, %v5064
        %v6090 = vpack.c.b16 %v5090, %v5065
        %v6091 = vpack.c.b16 %v5091, %v5066
        %v6092 = vpack.c.b16 %v5092, %v5067
        %v6093 = vpack.c.b16 %v5093, %v5068
        %v6094 = vpack.c.b16 %v5094, %v5069
        %v6095 = vpack.c.b16 %v5095, %v5070
        %v6096 = vpack.c.b16 %v5096, %v5071
        %v6097 = vpack.c.b16 %v5097, %v5072
        %v6098 = vpack.c.b16 %v5123, %v5098
        %v6099 = vpack.c.b16 %v5124, %v5099
        %v6100 = vpack.c.b16 %v5125, %v5100
        %v6101 = vpack.c.b16 %v5126, %v5101
        %v6102 = vpack.c.b16 %v5127, %v5102
        %v6103 = vpack.c.b16 %v5128, %v5103
        %v6104 = vpack.c.b16 %v5129, %v5104
        %v6105 = vpack.c.b16 %v5130, %v5105
        %v6106 = vpack.c.b16 %v5131, %v5106
        %v6107 = vpack.c.b16 %v5132, %v5107
        %v6108 = vpack.c.b16 %v5133, %v5108
        %v6109 = vpack.c.b16 %v5134, %v5109
        %v6110 = vpack.c.b16 %v5135, %v5110
        %v6111 = vpack.c.b16 %v5136, %v5111
        %v6112 = vpack.c.b16 %v5137, %v5112
        %v6113 = vpack.c.b16 %v5138, %v5113
        %v6114 = vpack.c.b16 %v5139, %v5114
        %v6115 = vpack.c.b16 %v5140, %v5115
        %v6116 = vpack.c.b16 %v5141, %v5116
        %v6117 = vpack.c.b16 %v5142, %v5117
        %v6118 = vpack.c.b16 %v5143, %v5118
        %v6119 = vpack.c.b16 %v5144, %v5119
        %v6120 = vpack.c.b16 %v5145, %v5120
        %v6121 = vpack.c.b16 %v5146, %v5121
        %v6122 = vpack.c.b16 %v5147, %v5122
        %v6123 = vpack.c.b16 %v5173, %v5148
        %v6124 = vpack.c.b16 %v5174, %v5149
        %v6125 = vpack.c.b16 %v5175, %v5150
        %v6126 = vpack.c.b16 %v5176, %v5151
        %v6127 = vpack.c.b16 %v5177, %v5152
        %v6128 = vpack.c.b16 %v5178, %v5153
        %v6129 = vpack.c.b16 %v5179, %v5154
        %v6130 = vpack.c.b16 %v5180, %v5155
        %v6131 = vpack.c.b16 %v5181, %v5156
        %v6132 = vpack.c.b16 %v5182, %v5157
        %v6133 = vpack.c.b16 %v5183, %v5158
        %v6134 = vpack.c.b16 %v5184, %v5159
        %v6135 = vpack.c.b16 %v5185, %v5160
        %v6136 = vpack.c.b16 %v5186, %v5161
        %v6137 = vpack.c.b16 %v5187, %v5162
        %v6138 = vpack.c.b16 %v5188, %v5163
        %v6139 = vpack.c.b16 %v5189, %v5164
        %v6140 = vpack.c.b16 %v5190, %v5165
        %v6141 = vpack.c.b16 %v5191, %v5166
        %v6142 = vpack.c.b16 %v5192, %v5167
        %v6143 = vpack.c.b16 %v5193, %v5168
        %v6144 = vpack.c.b16 %v5194, %v5169
        %v6145 = vpack.c.b16 %v5195, %v5170
        %v6146 = vpack.c.b16 %v5196, %v5171
        %v6147 = vpack.c.b16 %v5197, %v5172
        %v6148 = vpack.c.b16 %v5223, %v5198
        %v6149 = vpack.c.b16 %v5224, %v5199
        %v6150 = vpack.c.b16 %v5225, %v5200
        %v6151 = vpack.c.b16 %v5226, %v5201
        %v6152 = vpack.c.b16 %v5227, %v5202
        %v6153 = vpack.c.b16 %v5228, %v5203
        %v6154 = vpack.c.b16 %v5229, %v5204
        %v6155 = vpack.c.b16 %v5230, %v5205
        %v6156 = vpack.c.b16 %v5231, %v5206
        %v6157 = vpack.c.b16 %v5232, %v5207
        %v6158 = vpack.c.b16 %v5233, %v5208
        %v6159 = vpack.c.b16 %v5234, %v5209
        %v6160 = vpack.c.b16 %v5235, %v5210
        %v6161 = vpack.c.b16 %v5236, %v5211
        %v6162 = vpack.c.b16 %v5237, %v5212
        %v6163 = vpack.c.b16 %v5238, %v5213
        %v6164 = vpack.c.b16 %v5239, %v5214
        %v6165 = vpack.c.b16 %v5240, %v5215
        %v6166 = vpack.c.b16 %v5241, %v5216
        %v6167 = vpack.c.b16 %v5242, %v5217
        %v6168 = vpack.c.b16 %v5243, %v5218
        %v6169 = vpack.c.b16 %v5244, %v5219
        %v6170 = vpack.c.b16 %v5245, %v5220
        %v6171 = vpack.c.b16 %v5246, %v5221
        %v6172 = vpack.c.b16 %v5247, %v5222
        %v6173 = vpack.c.b16 %v5273, %v5248
        %v6174 = vpack.c.b16 %v5274, %v5249
        %v6175 = vpack.c.b16 %v5275, %v5250
        %v6176 = vpack.c.b16 %v5276, %v5251
        %v6177 = vpack.c.b16 %v5277, %v5252
        %v6178 = vpack.c.b16 %v5278, %v5253
        %v6179 = vpack.c.b16 %v5279, %v5254
        %v6180 = vpack.c.b16 %v5280, %v5255
        %v6181 = vpack.c.b16 %v5281, %v5256
        %v6182 = vpack.c.b16 %v5282, %v5257
        %v6183 = vpack.c.b16 %v5283, %v5258
        %v6184 = vpack.c.b16 %v5284, %v5259
        %v6185 = vpack.c.b16 %v5285, %v5260
        %v6186 = vpack.c.b16 %v5286, %v5261
        %v6187 = vpack.c.b16 %v5287, %v5262
        %v6188 = vpack.c.b16 %v5288, %v5263
        %v6189 = vpack.c.b16 %v5289, %v5264
        %v6190 = vpack.c.b16 %v5290, %v5265
        %v6191 = vpack.c.b16 %v5291, %v5266
        %v6192 = vpack.c.b16 %v5292, %v5267
        %v6193 = vpack.c.b16 %v5293, %v5268
        %v6194 = vpack.c.b16 %v5294, %v5269
        %v6195 = vpack.c.b16 %v5295, %v5270
        %v6196 = vpack.c.b16 %v5296, %v5271
        %v6197 = vpack.c.b16 %v5297, %v5272
        %v6198 = vpack.c.b16 %v5323, %v5298
        %v6199 = vpack.c.b16 %v5324, %v5299
        %v6200 = vpack.c.b16 %v5325, %v5300
        %v6201 = vpack.c.b16 %v5326, %v5301
        %v6202 = vpack.c.b16 %v5327, %v5302
        %v6203 = vpack.c.b16 %v5328, %v5303
        %v6204 = vpack.c.b16 %v5329, %v5304
        %v6205 = vpack.c.b16 %v5330, %v5305
        %v6206 = vpack.c.b16 %v5331, %v5306
        %v6207 = vpack.c.b16 %v5332, %v5307
        %v6208 = vpack.c.b16 %v5333, %v5308
        %v6209 = vpack.c.b16 %v5334, %v5309
        %v6210 = vpack.c.b16 %v5335, %v5310
        %v6211 = vpack.c.b16 %v5336, %v5311
        %v6212 = vpack.c.b16 %v5337, %v5312
        %v6213 = vpack.c.b16 %v5338, %v5313
        %v6214 = vpack.c.b16 %v5339, %v5314
        %v6215 = vpack.c.b16 %v5340, %v5315
        %v6216 = vpack.c.b16 %v5341, %v5316
        %v6217 = vpack.c.b16 %v5342, %v5317
        %v6218 = vpack.c.b16 %v5343, %v5318
        %v6219 = vpack.c.b16 %v5344, %v5319
        %v6220 = vpack.c.b16 %v5345, %v5320
        %v6221 = vpack.c.b16 %v5346, %v5321
        %v6222 = vpack.c.b16 %v5347, %v5322
        %v6223 = vpack.c.b16 %v5373, %v5348
        %v6224 = vpack.c.b16 %v5374, %v5349
        %v6225 = vpack.c.b16 %v5375, %v5350
        %v6226 = vpack.c.b16 %v5376, %v5351
        %v6227 = vpack.c.b16 %v5377, %v5352
        %v6228 = vpack.c.b16 %v5378, %v5353
        %v6229 = vpack.c.b16 %v5379, %v5354
        %v6230 = vpack.c.b16 %v5380, %v5355
        %v6231 = vpack.c.b16 %v5381, %v5356
        %v6232 = vpack.c.b16 %v5382, %v5357
        %v6233 = vpack.c.b16 %v5383, %v5358
        %v6234 = vpack.c.b16 %v5384, %v5359
        %v6235 = vpack.c.b16 %v5385, %v5360
        %v6236 = vpack.c.b16 %v5386, %v5361
        %v6237 = vpack.c.b16 %v5387, %v5362
        %v6238 = vpack.c.b16 %v5388, %v5363
        %v6239 = vpack.c.b16 %v5389, %v5364
        %v6240 = vpack.c.b16 %v5390, %v5365
        %v6241 = vpack.c.b16 %v5391, %v5366
        %v6242 = vpack.c.b16 %v5392, %v5367
        %v6243 = vpack.c.b16 %v5393, %v5368
        %v6244 = vpack.c.b16 %v5394, %v5369
        %v6245 = vpack.c.b16 %v5395, %v5370
        %v6246 = vpack.c.b16 %v5396, %v5371
        %v6247 = vpack.c.b16 %v5397, %v5372
        %v6248 = vpack.c.b16 %v5423, %v5398
        %v6249 = vpack.c.b16 %v5424, %v5399
        %v6250 = vpack.c.b16 %v5425, %v5400
        %v6251 = vpack.c.b16 %v5426, %v5401
        %v6252 = vpack.c.b16 %v5427, %v5402
        %v6253 = vpack.c.b16 %v5428, %v5403
        %v6254 = vpack.c.b16 %v5429, %v5404
        %v6255 = vpack.c.b16 %v5430, %v5405
        %v6256 = vpack.c.b16 %v5431, %v5406
        %v6257 = vpack.c.b16 %v5432, %v5407
        %v6258 = vpack.c.b16 %v5433, %v5408
        %v6259 = vpack.c.b16 %v5434, %v5409
        %v6260 = vpack.c.b16 %v5435, %v5410
        %v6261 = vpack.c.b16 %v5436, %v5411
        %v6262 = vpack.c.b16 %v5437, %v5412
        %v6263 = vpack.c.b16 %v5438, %v5413
        %v6264 = vpack.c.b16 %v5439, %v5414
        %v6265 = vpack.c.b16 %v5440, %v5415
        %v6266 = vpack.c.b16 %v5441, %v5416
        %v6267 = vpack.c.b16 %v5442, %v5417
        %v6268 = vpack.c.b16 %v5443, %v5418
        %v6269 = vpack.c.b16 %v5444, %v5419
        %v6270 = vpack.c.b16 %v5445, %v5420
        %v6271 = vpack.c.b16 %v5446, %v5421
        %v6272 = vpack.c.b16 %v5447, %v5422
        %v6273 = vpack.c.b16 %v5473, %v5448
        %v6274 = vpack.c.b16 %v5474, %v5449
        %v6275 = vpack.c.b16 %v5475, %v5450
        %v6276 = vpack.c.b16 %v5476, %v5451
        %v6277 = vpack.c.b16 %v5477, %v5452
        %v6278 = vpack.c.b16 %v5478, %v5453
        %v6279 = vpack.c.b16 %v5479, %v5454
        %v6280 = vpack.c.b16 %v5480, %v5455
        %v6281 = vpack.c.b16 %v5481, %v5456
        %v6282 = vpack.c.b16 %v5482, %v5457
        %v6283 = vpack.c.b16 %v5483, %v5458
        %v6284 = vpack.c.b16 %v5484, %v5459
        %v6285 = vpack.c.b16 %v5485, %v5460
        %v6286 = vpack.c.b16 %v5486, %v5461
        %v6287 = vpack.c.b16 %v5487, %v5462
        %v6288 = vpack.c.b16 %v5488, %v5463
        %v6289 = vpack.c.b16 %v5489, %v5464
        %v6290 = vpack.c.b16 %v5490, %v5465
        %v6291 = vpack.c.b16 %v5491, %v5466
        %v6292 = vpack.c.b16 %v5492, %v5467
        %v6293 = vpack.c.b16 %v5493, %v5468
        %v6294 = vpack.c.b16 %v5494, %v5469
        %v6295 = vpack.c.b16 %v5495, %v5470
        %v6296 = vpack.c.b16 %v5496, %v5471
        %v6297 = vpack.c.b16 %v5497, %v5472
        %7098 = vmatprep.subr.bf16.mxu0 %v5499
        %7099 = vmatpush1.bf16.msra.mxu0 %v5498
        %7100 = vmatprep.subr.bf16.mxu0 %v5524
        %7101 = vmatpush1.bf16.msra.mxu0 %v5523
        %7102 = vmatprep.subr.bf16.mxu0 %v5549
        %7103 = vmatpush1.bf16.msra.mxu0 %v5548
        %7104 = vmatprep.subr.bf16.mxu0 %v5574
        %7105 = vmatpush1.bf16.msra.mxu0 %v5573
        %7106 = vmatprep.subr.bf16.mxu0 %v5599
        %7107 = vmatpush1.bf16.msra.mxu0 %v5598
        %7108 = vmatprep.subr.bf16.mxu0 %v5624
        %7109 = vmatpush1.bf16.msra.mxu0 %v5623
        %7110 = vmatprep.subr.bf16.mxu0 %v5649
        %7111 = vmatpush1.bf16.msra.mxu0 %v5648
        %7112 = vmatprep.subr.bf16.mxu0 %v5674
        %7113 = vmatpush1.bf16.msra.mxu0 %v5673
        %7114 = vmatprep.subr.bf16.mxu0 %v5699
        %7115 = vmatpush1.bf16.msra.mxu0 %v5698
        %7116 = vmatprep.subr.bf16.mxu0 %v5724
        %7117 = vmatpush1.bf16.msra.mxu0 %v5723
        %7118 = vmatprep.subr.bf16.mxu0 %v5749
        %7119 = vmatpush1.bf16.msra.mxu0 %v5748
        %7120 = vmatprep.subr.bf16.mxu0 %v5774
        %7121 = vmatpush1.bf16.msra.mxu0 %v5773
        %7122 = vmatprep.subr.bf16.mxu0 %v5799
        %7123 = vmatpush1.bf16.msra.mxu0 %v5798
        %7124 = vmatprep.subr.bf16.mxu0 %v5824
        %7125 = vmatpush1.bf16.msra.mxu0 %v5823
        %7126 = vmatprep.subr.bf16.mxu0 %v5849
        %7127 = vmatpush1.bf16.msra.mxu0 %v5848
        %7128 = vmatprep.subr.bf16.mxu0 %v5874
        %7129 = vmatpush1.bf16.msra.mxu0 %v5873
        %7130 = vmatprep.mubr.bf16.mxu0 %v2098
        %7131 = vmatmul.mubr.bf16.gmra.mrb[0].mxu0 %v2097
        %v7132 = vpop.f32.mrb[0].mxu0
        %v7133 = vadd.f32 %v2944, %v7132
        %v7134 = vpop.f32.mrb[0].mxu0
        %v7135 = vadd.f32 %v2948, %v7134
        %v7136 = vpop.f32.mrb[0].mxu0
        %v7137 = vpop.f32.mrb[0].mxu0
        %7138 = vdwg.mxu0
        %7139 = vmatprep.subr.bf16.mxu0 %v5899
        %7140 = vmatpush1.bf16.msra.mxu0 %v5898
        %7141 = vmatprep.subr.bf16.mxu0 %v5924
        %7142 = vmatpush1.bf16.msra.mxu0 %v5923
        %7143 = vmatprep.subr.bf16.mxu0 %v5949
        %7144 = vmatpush1.bf16.msra.mxu0 %v5948
        %7145 = vmatprep.subr.bf16.mxu0 %v5974
        %7146 = vmatpush1.bf16.msra.mxu0 %v5973
        %7147 = vmatprep.subr.bf16.mxu0 %v5999
        %7148 = vmatpush1.bf16.msra.mxu0 %v5998
        %7149 = vmatprep.subr.bf16.mxu0 %v6024
        %7150 = vmatpush1.bf16.msra.mxu0 %v6023
        %7151 = vmatprep.subr.bf16.mxu0 %v6049
        %7152 = vmatpush1.bf16.msra.mxu0 %v6048
        %7153 = vmatprep.subr.bf16.mxu0 %v6074
        %7154 = vmatpush1.bf16.msra.mxu0 %v6073
        %7155 = vmatprep.subr.bf16.mxu0 %v6099
        %7156 = vmatpush1.bf16.msra.mxu0 %v6098
        %7157 = vmatprep.subr.bf16.mxu0 %v6124
        %7158 = vmatpush1.bf16.msra.mxu0 %v6123
        %7159 = vmatprep.subr.bf16.mxu0 %v6149
        %7160 = vmatpush1.bf16.msra.mxu0 %v6148
        %7161 = vmatprep.subr.bf16.mxu0 %v6174
        %7162 = vmatpush1.bf16.msra.mxu0 %v6173
        %7163 = vmatprep.subr.bf16.mxu0 %v6199
        %7164 = vmatpush1.bf16.msra.mxu0 %v6198
        %7165 = vmatprep.subr.bf16.mxu0 %v6224
        %7166 = vmatpush1.bf16.msra.mxu0 %v6223
        %7167 = vmatprep.subr.bf16.mxu0 %v6249
        %7168 = vmatpush1.bf16.msra.mxu0 %v6248
        %7169 = vmatprep.subr.bf16.mxu0 %v6274
        %7170 = vmatpush1.bf16.msra.mxu0 %v6273
        %7171 = vmatprep.mubr.bf16.mxu0 %v2100
        %7172 = vmatmul.mubr.bf16.gmra.mrb[0].mxu0 %v2099
        %v7173 = vpop.f32.mrb[0].mxu0
        %v7174 = vadd.f32 %v7133, %v7173
        %v7175 = vpop.f32.mrb[0].mxu0
        %v7176 = vadd.f32 %v7135, %v7175
        %v7177 = vpop.f32.mrb[0].mxu0
        %v7178 = vpop.f32.mrb[0].mxu0
        %7179 = vdwg.mxu0
        %7180 = vmatprep.subr.bf16.mxu0 %v5501
        %7181 = vmatpush1.bf16.msra.mxu0 %v5500
        %7182 = vmatprep.subr.bf16.mxu0 %v5526
        %7183 = vmatpush1.bf16.msra.mxu0 %v5525
        %7184 = vmatprep.subr.bf16.mxu0 %v5551
        %7185 = vmatpush1.bf16.msra.mxu0 %v5550
        %7186 = vmatprep.subr.bf16.mxu0 %v5576
        %7187 = vmatpush1.bf16.msra.mxu0 %v5575
        %7188 = vmatprep.subr.bf16.mxu0 %v5601
        %7189 = vmatpush1.bf16.msra.mxu0 %v5600
        %7190 = vmatprep.subr.bf16.mxu0 %v5626
        %7191 = vmatpush1.bf16.msra.mxu0 %v5625
        %7192 = vmatprep.subr.bf16.mxu0 %v5651
        %7193 = vmatpush1.bf16.msra.mxu0 %v5650
        %7194 = vmatprep.subr.bf16.mxu0 %v5676
        %7195 = vmatpush1.bf16.msra.mxu0 %v5675
        %7196 = vmatprep.subr.bf16.mxu0 %v5701
        %7197 = vmatpush1.bf16.msra.mxu0 %v5700
        %7198 = vmatprep.subr.bf16.mxu0 %v5726
        %7199 = vmatpush1.bf16.msra.mxu0 %v5725
        %7200 = vmatprep.subr.bf16.mxu0 %v5751
        %7201 = vmatpush1.bf16.msra.mxu0 %v5750
        %7202 = vmatprep.subr.bf16.mxu0 %v5776
        %7203 = vmatpush1.bf16.msra.mxu0 %v5775
        %7204 = vmatprep.subr.bf16.mxu0 %v5801
        %7205 = vmatpush1.bf16.msra.mxu0 %v5800
        %7206 = vmatprep.subr.bf16.mxu0 %v5826
        %7207 = vmatpush1.bf16.msra.mxu0 %v5825
        %7208 = vmatprep.subr.bf16.mxu0 %v5851
        %7209 = vmatpush1.bf16.msra.mxu0 %v5850
        %7210 = vmatprep.subr.bf16.mxu0 %v5876
        %7211 = vmatpush1.bf16.msra.mxu0 %v5875
        %7212 = vmatprep.mubr.bf16.mxu0 %v2098
        %7213 = vmatmul.mubr.bf16.gmra.mrb[0].mxu0 %v2097
        %v7214 = vpop.f32.mrb[0].mxu0
        %v7215 = vadd.f32 %v2952, %v7214
        %v7216 = vpop.f32.mrb[0].mxu0
        %v7217 = vadd.f32 %v2956, %v7216
        %v7218 = vpop.f32.mrb[0].mxu0
        %v7219 = vpop.f32.mrb[0].mxu0
        %7220 = vdwg.mxu0
        %7221 = vmatprep.subr.bf16.mxu0 %v5901
        %7222 = vmatpush1.bf16.msra.mxu0 %v5900
        %7223 = vmatprep.subr.bf16.mxu0 %v5926
        %7224 = vmatpush1.bf16.msra.mxu0 %v5925
        %7225 = vmatprep.subr.bf16.mxu0 %v5951
        %7226 = vmatpush1.bf16.msra.mxu0 %v5950
        %7227 = vmatprep.subr.bf16.mxu0 %v5976
        %7228 = vmatpush1.bf16.msra.mxu0 %v5975
        %7229 = vmatprep.subr.bf16.mxu0 %v6001
        %7230 = vmatpush1.bf16.msra.mxu0 %v6000
        %7231 = vmatprep.subr.bf16.mxu0 %v6026
        %7232 = vmatpush1.bf16.msra.mxu0 %v6025
        %7233 = vmatprep.subr.bf16.mxu0 %v6051
        %7234 = vmatpush1.bf16.msra.mxu0 %v6050
        %7235 = vmatprep.subr.bf16.mxu0 %v6076
        %7236 = vmatpush1.bf16.msra.mxu0 %v6075
        %7237 = vmatprep.subr.bf16.mxu0 %v6101
        %7238 = vmatpush1.bf16.msra.mxu0 %v6100
        %7239 = vmatprep.subr.bf16.mxu0 %v6126
        %7240 = vmatpush1.bf16.msra.mxu0 %v6125
        %7241 = vmatprep.subr.bf16.mxu0 %v6151
        %7242 = vmatpush1.bf16.msra.mxu0 %v6150
        %7243 = vmatprep.subr.bf16.mxu0 %v6176
        %7244 = vmatpush1.bf16.msra.mxu0 %v6175
        %7245 = vmatprep.subr.bf16.mxu0 %v6201
        %7246 = vmatpush1.bf16.msra.mxu0 %v6200
        %7247 = vmatprep.subr.bf16.mxu0 %v6226
        %7248 = vmatpush1.bf16.msra.mxu0 %v6225
        %7249 = vmatprep.subr.bf16.mxu0 %v6251
        %7250 = vmatpush1.bf16.msra.mxu0 %v6250
        %7251 = vmatprep.subr.bf16.mxu0 %v6276
        %7252 = vmatpush1.bf16.msra.mxu0 %v6275
        %7253 = vmatprep.mubr.bf16.mxu0 %v2100
        %7254 = vmatmul.mubr.bf16.gmra.mrb[0].mxu0 %v2099
        %v7255 = vpop.f32.mrb[0].mxu0
        %v7256 = vadd.f32 %v7215, %v7255
        %v7257 = vpop.f32.mrb[0].mxu0
        %v7258 = vadd.f32 %v7217, %v7257
        %v7259 = vpop.f32.mrb[0].mxu0
        %v7260 = vpop.f32.mrb[0].mxu0
        %7261 = vdwg.mxu0
        %7262 = vmatprep.subr.bf16.mxu0 %v5503
        %7263 = vmatpush1.bf16.msra.mxu0 %v5502
        %7264 = vmatprep.subr.bf16.mxu0 %v5528
        %7265 = vmatpush1.bf16.msra.mxu0 %v5527
        %7266 = vmatprep.subr.bf16.mxu0 %v5553
        %7267 = vmatpush1.bf16.msra.mxu0 %v5552
        %7268 = vmatprep.subr.bf16.mxu0 %v5578
        %7269 = vmatpush1.bf16.msra.mxu0 %v5577
        %7270 = vmatprep.subr.bf16.mxu0 %v5603
        %7271 = vmatpush1.bf16.msra.mxu0 %v5602
        %7272 = vmatprep.subr.bf16.mxu0 %v5628
        %7273 = vmatpush1.bf16.msra.mxu0 %v5627
        %7274 = vmatprep.subr.bf16.mxu0 %v5653
        %7275 = vmatpush1.bf16.msra.mxu0 %v5652
        %7276 = vmatprep.subr.bf16.mxu0 %v5678
        %7277 = vmatpush1.bf16.msra.mxu0 %v5677
        %7278 = vmatprep.subr.bf16.mxu0 %v5703
        %7279 = vmatpush1.bf16.msra.mxu0 %v5702
        %7280 = vmatprep.subr.bf16.mxu0 %v5728
        %7281 = vmatpush1.bf16.msra.mxu0 %v5727
        %7282 = vmatprep.subr.bf16.mxu0 %v5753
        %7283 = vmatpush1.bf16.msra.mxu0 %v5752
        %7284 = vmatprep.subr.bf16.mxu0 %v5778
        %7285 = vmatpush1.bf16.msra.mxu0 %v5777
        %7286 = vmatprep.subr.bf16.mxu0 %v5803
        %7287 = vmatpush1.bf16.msra.mxu0 %v5802
        %7288 = vmatprep.subr.bf16.mxu0 %v5828
        %7289 = vmatpush1.bf16.msra.mxu0 %v5827
        %7290 = vmatprep.subr.bf16.mxu0 %v5853
        %7291 = vmatpush1.bf16.msra.mxu0 %v5852
        %7292 = vmatprep.subr.bf16.mxu0 %v5878
        %7293 = vmatpush1.bf16.msra.mxu0 %v5877
        %7294 = vmatprep.mubr.bf16.mxu0 %v2098
        %7295 = vmatmul.mubr.bf16.gmra.mrb[0].mxu0 %v2097
        %v7296 = vpop.f32.mrb[0].mxu0
        %v7297 = vadd.f32 %v2960, %v7296
        %v7298 = vpop.f32.mrb[0].mxu0
        %v7299 = vadd.f32 %v2964, %v7298
        %v7300 = vpop.f32.mrb[0].mxu0
        %v7301 = vpop.f32.mrb[0].mxu0
        %7302 = vdwg.mxu0
        %7303 = vmatprep.subr.bf16.mxu0 %v5903
        %7304 = vmatpush1.bf16.msra.mxu0 %v5902
        %7305 = vmatprep.subr.bf16.mxu0 %v5928
        %7306 = vmatpush1.bf16.msra.mxu0 %v5927
        %7307 = vmatprep.subr.bf16.mxu0 %v5953
        %7308 = vmatpush1.bf16.msra.mxu0 %v5952
        %7309 = vmatprep.subr.bf16.mxu0 %v5978
        %7310 = vmatpush1.bf16.msra.mxu0 %v5977
        %7311 = vmatprep.subr.bf16.mxu0 %v6003
        %7312 = vmatpush1.bf16.msra.mxu0 %v6002
        %7313 = vmatprep.subr.bf16.mxu0 %v6028
        %7314 = vmatpush1.bf16.msra.mxu0 %v6027
        %7315 = vmatprep.subr.bf16.mxu0 %v6053
        %7316 = vmatpush1.bf16.msra.mxu0 %v6052
        %7317 = vmatprep.subr.bf16.mxu0 %v6078
        %7318 = vmatpush1.bf16.msra.mxu0 %v6077
        %7319 = vmatprep.subr.bf16.mxu0 %v6103
        %7320 = vmatpush1.bf16.msra.mxu0 %v6102
        %7321 = vmatprep.subr.bf16.mxu0 %v6128
        %7322 = vmatpush1.bf16.msra.mxu0 %v6127
        %7323 = vmatprep.subr.bf16.mxu0 %v6153
        %7324 = vmatpush1.bf16.msra.mxu0 %v6152
        %7325 = vmatprep.subr.bf16.mxu0 %v6178
        %7326 = vmatpush1.bf16.msra.mxu0 %v6177
        %7327 = vmatprep.subr.bf16.mxu0 %v6203
        %7328 = vmatpush1.bf16.msra.mxu0 %v6202
        %7329 = vmatprep.subr.bf16.mxu0 %v6228
        %7330 = vmatpush1.bf16.msra.mxu0 %v6227
        %7331 = vmatprep.subr.bf16.mxu0 %v6253
        %7332 = vmatpush1.bf16.msra.mxu0 %v6252
        %7333 = vmatprep.subr.bf16.mxu0 %v6278
        %7334 = vmatpush1.bf16.msra.mxu0 %v6277
        %7335 = vmatprep.mubr.bf16.mxu0 %v2100
        %7336 = vmatmul.mubr.bf16.gmra.mrb[0].mxu0 %v2099
        %v7337 = vpop.f32.mrb[0].mxu0
        %v7338 = vadd.f32 %v7297, %v7337
        %v7339 = vpop.f32.mrb[0].mxu0
        %v7340 = vadd.f32 %v7299, %v7339
        %v7341 = vpop.f32.mrb[0].mxu0
        %v7342 = vpop.f32.mrb[0].mxu0
        %7343 = vdwg.mxu0
        %7344 = vmatprep.subr.bf16.mxu0 %v5505
        %7345 = vmatpush1.bf16.msra.mxu0 %v5504
        %7346 = vmatprep.subr.bf16.mxu0 %v5530
        %7347 = vmatpush1.bf16.msra.mxu0 %v5529
        %7348 = vmatprep.subr.bf16.mxu0 %v5555
        %7349 = vmatpush1.bf16.msra.mxu0 %v5554
        %7350 = vmatprep.subr.bf16.mxu0 %v5580
        %7351 = vmatpush1.bf16.msra.mxu0 %v5579
        %7352 = vmatprep.subr.bf16.mxu0 %v5605
        %7353 = vmatpush1.bf16.msra.mxu0 %v5604
        %7354 = vmatprep.subr.bf16.mxu0 %v5630
        %7355 = vmatpush1.bf16.msra.mxu0 %v5629
        %7356 = vmatprep.subr.bf16.mxu0 %v5655
        %7357 = vmatpush1.bf16.msra.mxu0 %v5654
        %7358 = vmatprep.subr.bf16.mxu0 %v5680
        %7359 = vmatpush1.bf16.msra.mxu0 %v5679
        %7360 = vmatprep.subr.bf16.mxu0 %v5705
        %7361 = vmatpush1.bf16.msra.mxu0 %v5704
        %7362 = vmatprep.subr.bf16.mxu0 %v5730
        %7363 = vmatpush1.bf16.msra.mxu0 %v5729
        %7364 = vmatprep.subr.bf16.mxu0 %v5755
        %7365 = vmatpush1.bf16.msra.mxu0 %v5754
        %7366 = vmatprep.subr.bf16.mxu0 %v5780
        %7367 = vmatpush1.bf16.msra.mxu0 %v5779
        %7368 = vmatprep.subr.bf16.mxu0 %v5805
        %7369 = vmatpush1.bf16.msra.mxu0 %v5804
        %7370 = vmatprep.subr.bf16.mxu0 %v5830
        %7371 = vmatpush1.bf16.msra.mxu0 %v5829
        %7372 = vmatprep.subr.bf16.mxu0 %v5855
        %7373 = vmatpush1.bf16.msra.mxu0 %v5854
        %7374 = vmatprep.subr.bf16.mxu0 %v5880
        %7375 = vmatpush1.bf16.msra.mxu0 %v5879
        %7376 = vmatprep.mubr.bf16.mxu0 %v2098
        %7377 = vmatmul.mubr.bf16.gmra.mrb[0].mxu0 %v2097
        %v7378 = vpop.f32.mrb[0].mxu0
        %v7379 = vadd.f32 %v2968, %v7378
        %v7380 = vpop.f32.mrb[0].mxu0
        %v7381 = vadd.f32 %v2972, %v7380
        %v7382 = vpop.f32.mrb[0].mxu0
        %v7383 = vpop.f32.mrb[0].mxu0
        %7384 = vdwg.mxu0
        %7385 = vmatprep.subr.bf16.mxu0 %v5905
        %7386 = vmatpush1.bf16.msra.mxu0 %v5904
        %7387 = vmatprep.subr.bf16.mxu0 %v5930
        %7388 = vmatpush1.bf16.msra.mxu0 %v5929
        %7389 = vmatprep.subr.bf16.mxu0 %v5955
        %7390 = vmatpush1.bf16.msra.mxu0 %v5954
        %7391 = vmatprep.subr.bf16.mxu0 %v5980
        %7392 = vmatpush1.bf16.msra.mxu0 %v5979
        %7393 = vmatprep.subr.bf16.mxu0 %v6005
        %7394 = vmatpush1.bf16.msra.mxu0 %v6004
        %7395 = vmatprep.subr.bf16.mxu0 %v6030
        %7396 = vmatpush1.bf16.msra.mxu0 %v6029
        %7397 = vmatprep.subr.bf16.mxu0 %v6055
        %7398 = vmatpush1.bf16.msra.mxu0 %v6054
        %7399 = vmatprep.subr.bf16.mxu0 %v6080
        %7400 = vmatpush1.bf16.msra.mxu0 %v6079
        %7401 = vmatprep.subr.bf16.mxu0 %v6105
        %7402 = vmatpush1.bf16.msra.mxu0 %v6104
        %7403 = vmatprep.subr.bf16.mxu0 %v6130
        %7404 = vmatpush1.bf16.msra.mxu0 %v6129
        %7405 = vmatprep.subr.bf16.mxu0 %v6155
        %7406 = vmatpush1.bf16.msra.mxu0 %v6154
        %7407 = vmatprep.subr.bf16.mxu0 %v6180
        %7408 = vmatpush1.bf16.msra.mxu0 %v6179
        %7409 = vmatprep.subr.bf16.mxu0 %v6205
        %7410 = vmatpush1.bf16.msra.mxu0 %v6204
        %7411 = vmatprep.subr.bf16.mxu0 %v6230
        %7412 = vmatpush1.bf16.msra.mxu0 %v6229
        %7413 = vmatprep.subr.bf16.mxu0 %v6255
        %7414 = vmatpush1.bf16.msra.mxu0 %v6254
        %7415 = vmatprep.subr.bf16.mxu0 %v6280
        %7416 = vmatpush1.bf16.msra.mxu0 %v6279
        %7417 = vmatprep.mubr.bf16.mxu0 %v2100
        %7418 = vmatmul.mubr.bf16.gmra.mrb[0].mxu0 %v2099
        %v7419 = vpop.f32.mrb[0].mxu0
        %v7420 = vadd.f32 %v7379, %v7419
        %v7421 = vpop.f32.mrb[0].mxu0
        %v7422 = vadd.f32 %v7381, %v7421
        %v7423 = vpop.f32.mrb[0].mxu0
        %v7424 = vpop.f32.mrb[0].mxu0
        %7425 = vdwg.mxu0
        %7426 = vmatprep.subr.bf16.mxu0 %v5507
        %7427 = vmatpush1.bf16.msra.mxu0 %v5506
        %7428 = vmatprep.subr.bf16.mxu0 %v5532
        %7429 = vmatpush1.bf16.msra.mxu0 %v5531
        %7430 = vmatprep.subr.bf16.mxu0 %v5557
        %7431 = vmatpush1.bf16.msra.mxu0 %v5556
        %7432 = vmatprep.subr.bf16.mxu0 %v5582
        %7433 = vmatpush1.bf16.msra.mxu0 %v5581
        %7434 = vmatprep.subr.bf16.mxu0 %v5607
        %7435 = vmatpush1.bf16.msra.mxu0 %v5606
        %7436 = vmatprep.subr.bf16.mxu0 %v5632
        %7437 = vmatpush1.bf16.msra.mxu0 %v5631
        %7438 = vmatprep.subr.bf16.mxu0 %v5657
        %7439 = vmatpush1.bf16.msra.mxu0 %v5656
        %7440 = vmatprep.subr.bf16.mxu0 %v5682
        %7441 = vmatpush1.bf16.msra.mxu0 %v5681
        %7442 = vmatprep.subr.bf16.mxu0 %v5707
        %7443 = vmatpush1.bf16.msra.mxu0 %v5706
        %7444 = vmatprep.subr.bf16.mxu0 %v5732
        %7445 = vmatpush1.bf16.msra.mxu0 %v5731
        %7446 = vmatprep.subr.bf16.mxu0 %v5757
        %7447 = vmatpush1.bf16.msra.mxu0 %v5756
        %7448 = vmatprep.subr.bf16.mxu0 %v5782
        %7449 = vmatpush1.bf16.msra.mxu0 %v5781
        %7450 = vmatprep.subr.bf16.mxu0 %v5807
        %7451 = vmatpush1.bf16.msra.mxu0 %v5806
        %7452 = vmatprep.subr.bf16.mxu0 %v5832
        %7453 = vmatpush1.bf16.msra.mxu0 %v5831
        %7454 = vmatprep.subr.bf16.mxu0 %v5857
        %7455 = vmatpush1.bf16.msra.mxu0 %v5856
        %7456 = vmatprep.subr.bf16.mxu0 %v5882
        %7457 = vmatpush1.bf16.msra.mxu0 %v5881
        %7458 = vmatprep.mubr.bf16.mxu0 %v2098
        %7459 = vmatmul.mubr.bf16.gmra.mrb[0].mxu0 %v2097
        %v7460 = vpop.f32.mrb[0].mxu0
        %v7461 = vadd.f32 %v2976, %v7460
        %v7462 = vpop.f32.mrb[0].mxu0
        %v7463 = vadd.f32 %v2980, %v7462
        %v7464 = vpop.f32.mrb[0].mxu0
        %v7465 = vpop.f32.mrb[0].mxu0
        %7466 = vdwg.mxu0
        %7467 = vmatprep.subr.bf16.mxu0 %v5907
        %7468 = vmatpush1.bf16.msra.mxu0 %v5906
        %7469 = vmatprep.subr.bf16.mxu0 %v5932
        %7470 = vmatpush1.bf16.msra.mxu0 %v5931
        %7471 = vmatprep.subr.bf16.mxu0 %v5957
        %7472 = vmatpush1.bf16.msra.mxu0 %v5956
        %7473 = vmatprep.subr.bf16.mxu0 %v5982
        %7474 = vmatpush1.bf16.msra.mxu0 %v5981
        %7475 = vmatprep.subr.bf16.mxu0 %v6007
        %7476 = vmatpush1.bf16.msra.mxu0 %v6006
        %7477 = vmatprep.subr.bf16.mxu0 %v6032
        %7478 = vmatpush1.bf16.msra.mxu0 %v6031
        %7479 = vmatprep.subr.bf16.mxu0 %v6057
        %7480 = vmatpush1.bf16.msra.mxu0 %v6056
        %7481 = vmatprep.subr.bf16.mxu0 %v6082
        %7482 = vmatpush1.bf16.msra.mxu0 %v6081
        %7483 = vmatprep.subr.bf16.mxu0 %v6107
        %7484 = vmatpush1.bf16.msra.mxu0 %v6106
        %7485 = vmatprep.subr.bf16.mxu0 %v6132
        %7486 = vmatpush1.bf16.msra.mxu0 %v6131
        %7487 = vmatprep.subr.bf16.mxu0 %v6157
        %7488 = vmatpush1.bf16.msra.mxu0 %v6156
        %7489 = vmatprep.subr.bf16.mxu0 %v6182
        %7490 = vmatpush1.bf16.msra.mxu0 %v6181
        %7491 = vmatprep.subr.bf16.mxu0 %v6207
        %7492 = vmatpush1.bf16.msra.mxu0 %v6206
        %7493 = vmatprep.subr.bf16.mxu0 %v6232
        %7494 = vmatpush1.bf16.msra.mxu0 %v6231
        %7495 = vmatprep.subr.bf16.mxu0 %v6257
        %7496 = vmatpush1.bf16.msra.mxu0 %v6256
        %7497 = vmatprep.subr.bf16.mxu0 %v6282
        %7498 = vmatpush1.bf16.msra.mxu0 %v6281
        %7499 = vmatprep.mubr.bf16.mxu0 %v2100
        %7500 = vmatmul.mubr.bf16.gmra.mrb[0].mxu0 %v2099
        %v7501 = vpop.f32.mrb[0].mxu0
        %v7502 = vadd.f32 %v7461, %v7501
        %v7503 = vpop.f32.mrb[0].mxu0
        %v7504 = vadd.f32 %v7463, %v7503
        %v7505 = vpop.f32.mrb[0].mxu0
        %v7506 = vpop.f32.mrb[0].mxu0
        %7507 = vdwg.mxu0
        %7508 = vmatprep.subr.bf16.mxu0 %v5509
        %7509 = vmatpush1.bf16.msra.mxu0 %v5508
        %7510 = vmatprep.subr.bf16.mxu0 %v5534
        %7511 = vmatpush1.bf16.msra.mxu0 %v5533
        %7512 = vmatprep.subr.bf16.mxu0 %v5559
        %7513 = vmatpush1.bf16.msra.mxu0 %v5558
        %7514 = vmatprep.subr.bf16.mxu0 %v5584
        %7515 = vmatpush1.bf16.msra.mxu0 %v5583
        %7516 = vmatprep.subr.bf16.mxu0 %v5609
        %7517 = vmatpush1.bf16.msra.mxu0 %v5608
        %7518 = vmatprep.subr.bf16.mxu0 %v5634
        %7519 = vmatpush1.bf16.msra.mxu0 %v5633
        %7520 = vmatprep.subr.bf16.mxu0 %v5659
        %7521 = vmatpush1.bf16.msra.mxu0 %v5658
        %7522 = vmatprep.subr.bf16.mxu0 %v5684
        %7523 = vmatpush1.bf16.msra.mxu0 %v5683
        %7524 = vmatprep.subr.bf16.mxu0 %v5709
        %7525 = vmatpush1.bf16.msra.mxu0 %v5708
        %7526 = vmatprep.subr.bf16.mxu0 %v5734
        %7527 = vmatpush1.bf16.msra.mxu0 %v5733
        %7528 = vmatprep.subr.bf16.mxu0 %v5759
        %7529 = vmatpush1.bf16.msra.mxu0 %v5758
        %7530 = vmatprep.subr.bf16.mxu0 %v5784
        %7531 = vmatpush1.bf16.msra.mxu0 %v5783
        %7532 = vmatprep.subr.bf16.mxu0 %v5809
        %7533 = vmatpush1.bf16.msra.mxu0 %v5808
        %7534 = vmatprep.subr.bf16.mxu0 %v5834
        %7535 = vmatpush1.bf16.msra.mxu0 %v5833
        %7536 = vmatprep.subr.bf16.mxu0 %v5859
        %7537 = vmatpush1.bf16.msra.mxu0 %v5858
        %7538 = vmatprep.subr.bf16.mxu0 %v5884
        %7539 = vmatpush1.bf16.msra.mxu0 %v5883
        %7540 = vmatprep.mubr.bf16.mxu0 %v2098
        %7541 = vmatmul.mubr.bf16.gmra.mrb[0].mxu0 %v2097
        %v7542 = vpop.f32.mrb[0].mxu0
        %v7543 = vadd.f32 %v2984, %v7542
        %v7544 = vpop.f32.mrb[0].mxu0
        %v7545 = vadd.f32 %v2988, %v7544
        %v7546 = vpop.f32.mrb[0].mxu0
        %v7547 = vpop.f32.mrb[0].mxu0
        %7548 = vdwg.mxu0
        %7549 = vmatprep.subr.bf16.mxu0 %v5909
        %7550 = vmatpush1.bf16.msra.mxu0 %v5908
        %7551 = vmatprep.subr.bf16.mxu0 %v5934
        %7552 = vmatpush1.bf16.msra.mxu0 %v5933
        %7553 = vmatprep.subr.bf16.mxu0 %v5959
        %7554 = vmatpush1.bf16.msra.mxu0 %v5958
        %7555 = vmatprep.subr.bf16.mxu0 %v5984
        %7556 = vmatpush1.bf16.msra.mxu0 %v5983
        %7557 = vmatprep.subr.bf16.mxu0 %v6009
        %7558 = vmatpush1.bf16.msra.mxu0 %v6008
        %7559 = vmatprep.subr.bf16.mxu0 %v6034
        %7560 = vmatpush1.bf16.msra.mxu0 %v6033
        %7561 = vmatprep.subr.bf16.mxu0 %v6059
        %7562 = vmatpush1.bf16.msra.mxu0 %v6058
        %7563 = vmatprep.subr.bf16.mxu0 %v6084
        %7564 = vmatpush1.bf16.msra.mxu0 %v6083
        %7565 = vmatprep.subr.bf16.mxu0 %v6109
        %7566 = vmatpush1.bf16.msra.mxu0 %v6108
        %7567 = vmatprep.subr.bf16.mxu0 %v6134
        %7568 = vmatpush1.bf16.msra.mxu0 %v6133
        %7569 = vmatprep.subr.bf16.mxu0 %v6159
        %7570 = vmatpush1.bf16.msra.mxu0 %v6158
        %7571 = vmatprep.subr.bf16.mxu0 %v6184
        %7572 = vmatpush1.bf16.msra.mxu0 %v6183
        %7573 = vmatprep.subr.bf16.mxu0 %v6209
        %7574 = vmatpush1.bf16.msra.mxu0 %v6208
        %7575 = vmatprep.subr.bf16.mxu0 %v6234
        %7576 = vmatpush1.bf16.msra.mxu0 %v6233
        %7577 = vmatprep.subr.bf16.mxu0 %v6259
        %7578 = vmatpush1.bf16.msra.mxu0 %v6258
        %7579 = vmatprep.subr.bf16.mxu0 %v6284
        %7580 = vmatpush1.bf16.msra.mxu0 %v6283
        %7581 = vmatprep.mubr.bf16.mxu0 %v2100
        %7582 = vmatmul.mubr.bf16.gmra.mrb[0].mxu0 %v2099
        %v7583 = vpop.f32.mrb[0].mxu0
        %v7584 = vadd.f32 %v7543, %v7583
        %v7585 = vpop.f32.mrb[0].mxu0
        %v7586 = vadd.f32 %v7545, %v7585
        %v7587 = vpop.f32.mrb[0].mxu0
        %v7588 = vpop.f32.mrb[0].mxu0
        %7589 = vdwg.mxu0
        %7590 = vmatprep.subr.bf16.mxu0 %v5511
        %7591 = vmatpush1.bf16.msra.mxu0 %v5510
        %7592 = vmatprep.subr.bf16.mxu0 %v5536
        %7593 = vmatpush1.bf16.msra.mxu0 %v5535
        %7594 = vmatprep.subr.bf16.mxu0 %v5561
        %7595 = vmatpush1.bf16.msra.mxu0 %v5560
        %7596 = vmatprep.subr.bf16.mxu0 %v5586
        %7597 = vmatpush1.bf16.msra.mxu0 %v5585
        %7598 = vmatprep.subr.bf16.mxu0 %v5611
        %7599 = vmatpush1.bf16.msra.mxu0 %v5610
        %7600 = vmatprep.subr.bf16.mxu0 %v5636
        %7601 = vmatpush1.bf16.msra.mxu0 %v5635
        %7602 = vmatprep.subr.bf16.mxu0 %v5661
        %7603 = vmatpush1.bf16.msra.mxu0 %v5660
        %7604 = vmatprep.subr.bf16.mxu0 %v5686
        %7605 = vmatpush1.bf16.msra.mxu0 %v5685
        %7606 = vmatprep.subr.bf16.mxu0 %v5711
        %7607 = vmatpush1.bf16.msra.mxu0 %v5710
        %7608 = vmatprep.subr.bf16.mxu0 %v5736
        %7609 = vmatpush1.bf16.msra.mxu0 %v5735
        %7610 = vmatprep.subr.bf16.mxu0 %v5761
        %7611 = vmatpush1.bf16.msra.mxu0 %v5760
        %7612 = vmatprep.subr.bf16.mxu0 %v5786
        %7613 = vmatpush1.bf16.msra.mxu0 %v5785
        %7614 = vmatprep.subr.bf16.mxu0 %v5811
        %7615 = vmatpush1.bf16.msra.mxu0 %v5810
        %7616 = vmatprep.subr.bf16.mxu0 %v5836
        %7617 = vmatpush1.bf16.msra.mxu0 %v5835
        %7618 = vmatprep.subr.bf16.mxu0 %v5861
        %7619 = vmatpush1.bf16.msra.mxu0 %v5860
        %7620 = vmatprep.subr.bf16.mxu0 %v5886
        %7621 = vmatpush1.bf16.msra.mxu0 %v5885
        %7622 = vmatprep.mubr.bf16.mxu0 %v2098
        %7623 = vmatmul.mubr.bf16.gmra.mrb[0].mxu0 %v2097
        %v7624 = vpop.f32.mrb[0].mxu0
        %v7625 = vadd.f32 %v2992, %v7624
        %v7626 = vpop.f32.mrb[0].mxu0
        %v7627 = vadd.f32 %v2996, %v7626
        %v7628 = vpop.f32.mrb[0].mxu0
        %v7629 = vpop.f32.mrb[0].mxu0
        %7630 = vdwg.mxu0
        %7631 = vmatprep.subr.bf16.mxu0 %v5911
        %7632 = vmatpush1.bf16.msra.mxu0 %v5910
        %7633 = vmatprep.subr.bf16.mxu0 %v5936
        %7634 = vmatpush1.bf16.msra.mxu0 %v5935
        %7635 = vmatprep.subr.bf16.mxu0 %v5961
        %7636 = vmatpush1.bf16.msra.mxu0 %v5960
        %7637 = vmatprep.subr.bf16.mxu0 %v5986
        %7638 = vmatpush1.bf16.msra.mxu0 %v5985
        %7639 = vmatprep.subr.bf16.mxu0 %v6011
        %7640 = vmatpush1.bf16.msra.mxu0 %v6010
        %7641 = vmatprep.subr.bf16.mxu0 %v6036
        %7642 = vmatpush1.bf16.msra.mxu0 %v6035
        %7643 = vmatprep.subr.bf16.mxu0 %v6061
        %7644 = vmatpush1.bf16.msra.mxu0 %v6060
        %7645 = vmatprep.subr.bf16.mxu0 %v6086
        %7646 = vmatpush1.bf16.msra.mxu0 %v6085
        %7647 = vmatprep.subr.bf16.mxu0 %v6111
        %7648 = vmatpush1.bf16.msra.mxu0 %v6110
        %7649 = vmatprep.subr.bf16.mxu0 %v6136
        %7650 = vmatpush1.bf16.msra.mxu0 %v6135
        %7651 = vmatprep.subr.bf16.mxu0 %v6161
        %7652 = vmatpush1.bf16.msra.mxu0 %v6160
        %7653 = vmatprep.subr.bf16.mxu0 %v6186
        %7654 = vmatpush1.bf16.msra.mxu0 %v6185
        %7655 = vmatprep.subr.bf16.mxu0 %v6211
        %7656 = vmatpush1.bf16.msra.mxu0 %v6210
        %7657 = vmatprep.subr.bf16.mxu0 %v6236
        %7658 = vmatpush1.bf16.msra.mxu0 %v6235
        %7659 = vmatprep.subr.bf16.mxu0 %v6261
        %7660 = vmatpush1.bf16.msra.mxu0 %v6260
        %7661 = vmatprep.subr.bf16.mxu0 %v6286
        %7662 = vmatpush1.bf16.msra.mxu0 %v6285
        %7663 = vmatprep.mubr.bf16.mxu0 %v2100
        %7664 = vmatmul.mubr.bf16.gmra.mrb[0].mxu0 %v2099
        %v7665 = vpop.f32.mrb[0].mxu0
        %v7666 = vadd.f32 %v7625, %v7665
        %v7667 = vpop.f32.mrb[0].mxu0
        %v7668 = vadd.f32 %v7627, %v7667
        %v7669 = vpop.f32.mrb[0].mxu0
        %v7670 = vpop.f32.mrb[0].mxu0
        %7671 = vdwg.mxu0
        %7672 = vmatprep.subr.bf16.mxu0 %v5513
        %7673 = vmatpush1.bf16.msra.mxu0 %v5512
        %7674 = vmatprep.subr.bf16.mxu0 %v5538
        %7675 = vmatpush1.bf16.msra.mxu0 %v5537
        %7676 = vmatprep.subr.bf16.mxu0 %v5563
        %7677 = vmatpush1.bf16.msra.mxu0 %v5562
        %7678 = vmatprep.subr.bf16.mxu0 %v5588
        %7679 = vmatpush1.bf16.msra.mxu0 %v5587
        %7680 = vmatprep.subr.bf16.mxu0 %v5613
        %7681 = vmatpush1.bf16.msra.mxu0 %v5612
        %7682 = vmatprep.subr.bf16.mxu0 %v5638
        %7683 = vmatpush1.bf16.msra.mxu0 %v5637
        %7684 = vmatprep.subr.bf16.mxu0 %v5663
        %7685 = vmatpush1.bf16.msra.mxu0 %v5662
        %7686 = vmatprep.subr.bf16.mxu0 %v5688
        %7687 = vmatpush1.bf16.msra.mxu0 %v5687
        %7688 = vmatprep.subr.bf16.mxu0 %v5713
        %7689 = vmatpush1.bf16.msra.mxu0 %v5712
        %7690 = vmatprep.subr.bf16.mxu0 %v5738
        %7691 = vmatpush1.bf16.msra.mxu0 %v5737
        %7692 = vmatprep.subr.bf16.mxu0 %v5763
        %7693 = vmatpush1.bf16.msra.mxu0 %v5762
        %7694 = vmatprep.subr.bf16.mxu0 %v5788
        %7695 = vmatpush1.bf16.msra.mxu0 %v5787
        %7696 = vmatprep.subr.bf16.mxu0 %v5813
        %7697 = vmatpush1.bf16.msra.mxu0 %v5812
        %7698 = vmatprep.subr.bf16.mxu0 %v5838
        %7699 = vmatpush1.bf16.msra.mxu0 %v5837
        %7700 = vmatprep.subr.bf16.mxu0 %v5863
        %7701 = vmatpush1.bf16.msra.mxu0 %v5862
        %7702 = vmatprep.subr.bf16.mxu0 %v5888
        %7703 = vmatpush1.bf16.msra.mxu0 %v5887
        %7704 = vmatprep.mubr.bf16.mxu0 %v2098
        %7705 = vmatmul.mubr.bf16.gmra.mrb[0].mxu0 %v2097
        %v7706 = vpop.f32.mrb[0].mxu0
        %v7707 = vadd.f32 %v3000, %v7706
        %v7708 = vpop.f32.mrb[0].mxu0
        %v7709 = vadd.f32 %v3004, %v7708
        %v7710 = vpop.f32.mrb[0].mxu0
        %v7711 = vpop.f32.mrb[0].mxu0
        %7712 = vdwg.mxu0
        %7713 = vmatprep.subr.bf16.mxu0 %v5913
        %7714 = vmatpush1.bf16.msra.mxu0 %v5912
        %7715 = vmatprep.subr.bf16.mxu0 %v5938
        %7716 = vmatpush1.bf16.msra.mxu0 %v5937
        %7717 = vmatprep.subr.bf16.mxu0 %v5963
        %7718 = vmatpush1.bf16.msra.mxu0 %v5962
        %7719 = vmatprep.subr.bf16.mxu0 %v5988
        %7720 = vmatpush1.bf16.msra.mxu0 %v5987
        %7721 = vmatprep.subr.bf16.mxu0 %v6013
        %7722 = vmatpush1.bf16.msra.mxu0 %v6012
        %7723 = vmatprep.subr.bf16.mxu0 %v6038
        %7724 = vmatpush1.bf16.msra.mxu0 %v6037
        %7725 = vmatprep.subr.bf16.mxu0 %v6063
        %7726 = vmatpush1.bf16.msra.mxu0 %v6062
        %7727 = vmatprep.subr.bf16.mxu0 %v6088
        %7728 = vmatpush1.bf16.msra.mxu0 %v6087
        %7729 = vmatprep.subr.bf16.mxu0 %v6113
        %7730 = vmatpush1.bf16.msra.mxu0 %v6112
        %7731 = vmatprep.subr.bf16.mxu0 %v6138
        %7732 = vmatpush1.bf16.msra.mxu0 %v6137
        %7733 = vmatprep.subr.bf16.mxu0 %v6163
        %7734 = vmatpush1.bf16.msra.mxu0 %v6162
        %7735 = vmatprep.subr.bf16.mxu0 %v6188
        %7736 = vmatpush1.bf16.msra.mxu0 %v6187
        %7737 = vmatprep.subr.bf16.mxu0 %v6213
        %7738 = vmatpush1.bf16.msra.mxu0 %v6212
        %7739 = vmatprep.subr.bf16.mxu0 %v6238
        %7740 = vmatpush1.bf16.msra.mxu0 %v6237
        %7741 = vmatprep.subr.bf16.mxu0 %v6263
        %7742 = vmatpush1.bf16.msra.mxu0 %v6262
        %7743 = vmatprep.subr.bf16.mxu0 %v6288
        %7744 = vmatpush1.bf16.msra.mxu0 %v6287
        %7745 = vmatprep.mubr.bf16.mxu0 %v2100
        %7746 = vmatmul.mubr.bf16.gmra.mrb[0].mxu0 %v2099
        %v7747 = vpop.f32.mrb[0].mxu0
        %v7748 = vadd.f32 %v7707, %v7747
        %v7749 = vpop.f32.mrb[0].mxu0
        %v7750 = vadd.f32 %v7709, %v7749
        %v7751 = vpop.f32.mrb[0].mxu0
        %v7752 = vpop.f32.mrb[0].mxu0
        %7753 = vdwg.mxu0
        %7754 = vmatprep.subr.bf16.mxu0 %v5515
        %7755 = vmatpush1.bf16.msra.mxu0 %v5514
        %7756 = vmatprep.subr.bf16.mxu0 %v5540
        %7757 = vmatpush1.bf16.msra.mxu0 %v5539
        %7758 = vmatprep.subr.bf16.mxu0 %v5565
        %7759 = vmatpush1.bf16.msra.mxu0 %v5564
        %7760 = vmatprep.subr.bf16.mxu0 %v5590
        %7761 = vmatpush1.bf16.msra.mxu0 %v5589
        %7762 = vmatprep.subr.bf16.mxu0 %v5615
        %7763 = vmatpush1.bf16.msra.mxu0 %v5614
        %7764 = vmatprep.subr.bf16.mxu0 %v5640
        %7765 = vmatpush1.bf16.msra.mxu0 %v5639
        %7766 = vmatprep.subr.bf16.mxu0 %v5665
        %7767 = vmatpush1.bf16.msra.mxu0 %v5664
        %7768 = vmatprep.subr.bf16.mxu0 %v5690
        %7769 = vmatpush1.bf16.msra.mxu0 %v5689
        %7770 = vmatprep.subr.bf16.mxu0 %v5715
        %7771 = vmatpush1.bf16.msra.mxu0 %v5714
        %7772 = vmatprep.subr.bf16.mxu0 %v5740
        %7773 = vmatpush1.bf16.msra.mxu0 %v5739
        %7774 = vmatprep.subr.bf16.mxu0 %v5765
        %7775 = vmatpush1.bf16.msra.mxu0 %v5764
        %7776 = vmatprep.subr.bf16.mxu0 %v5790
        %7777 = vmatpush1.bf16.msra.mxu0 %v5789
        %7778 = vmatprep.subr.bf16.mxu0 %v5815
        %7779 = vmatpush1.bf16.msra.mxu0 %v5814
        %7780 = vmatprep.subr.bf16.mxu0 %v5840
        %7781 = vmatpush1.bf16.msra.mxu0 %v5839
        %7782 = vmatprep.subr.bf16.mxu0 %v5865
        %7783 = vmatpush1.bf16.msra.mxu0 %v5864
        %7784 = vmatprep.subr.bf16.mxu0 %v5890
        %7785 = vmatpush1.bf16.msra.mxu0 %v5889
        %7786 = vmatprep.mubr.bf16.mxu0 %v2098
        %7787 = vmatmul.mubr.bf16.gmra.mrb[0].mxu0 %v2097
        %v7788 = vpop.f32.mrb[0].mxu0
        %v7789 = vadd.f32 %v3008, %v7788
        %v7790 = vpop.f32.mrb[0].mxu0
        %v7791 = vadd.f32 %v3012, %v7790
        %v7792 = vpop.f32.mrb[0].mxu0
        %v7793 = vpop.f32.mrb[0].mxu0
        %7794 = vdwg.mxu0
        %7795 = vmatprep.subr.bf16.mxu0 %v5915
        %7796 = vmatpush1.bf16.msra.mxu0 %v5914
        %7797 = vmatprep.subr.bf16.mxu0 %v5940
        %7798 = vmatpush1.bf16.msra.mxu0 %v5939
        %7799 = vmatprep.subr.bf16.mxu0 %v5965
        %7800 = vmatpush1.bf16.msra.mxu0 %v5964
        %7801 = vmatprep.subr.bf16.mxu0 %v5990
        %7802 = vmatpush1.bf16.msra.mxu0 %v5989
        %7803 = vmatprep.subr.bf16.mxu0 %v6015
        %7804 = vmatpush1.bf16.msra.mxu0 %v6014
        %7805 = vmatprep.subr.bf16.mxu0 %v6040
        %7806 = vmatpush1.bf16.msra.mxu0 %v6039
        %7807 = vmatprep.subr.bf16.mxu0 %v6065
        %7808 = vmatpush1.bf16.msra.mxu0 %v6064
        %7809 = vmatprep.subr.bf16.mxu0 %v6090
        %7810 = vmatpush1.bf16.msra.mxu0 %v6089
        %7811 = vmatprep.subr.bf16.mxu0 %v6115
        %7812 = vmatpush1.bf16.msra.mxu0 %v6114
        %7813 = vmatprep.subr.bf16.mxu0 %v6140
        %7814 = vmatpush1.bf16.msra.mxu0 %v6139
        %7815 = vmatprep.subr.bf16.mxu0 %v6165
        %7816 = vmatpush1.bf16.msra.mxu0 %v6164
        %7817 = vmatprep.subr.bf16.mxu0 %v6190
        %7818 = vmatpush1.bf16.msra.mxu0 %v6189
        %7819 = vmatprep.subr.bf16.mxu0 %v6215
        %7820 = vmatpush1.bf16.msra.mxu0 %v6214
        %7821 = vmatprep.subr.bf16.mxu0 %v6240
        %7822 = vmatpush1.bf16.msra.mxu0 %v6239
        %7823 = vmatprep.subr.bf16.mxu0 %v6265
        %7824 = vmatpush1.bf16.msra.mxu0 %v6264
        %7825 = vmatprep.subr.bf16.mxu0 %v6290
        %7826 = vmatpush1.bf16.msra.mxu0 %v6289
        %7827 = vmatprep.mubr.bf16.mxu0 %v2100
        %7828 = vmatmul.mubr.bf16.gmra.mrb[0].mxu0 %v2099
        %v7829 = vpop.f32.mrb[0].mxu0
        %v7830 = vadd.f32 %v7789, %v7829
        %v7831 = vpop.f32.mrb[0].mxu0
        %v7832 = vadd.f32 %v7791, %v7831
        %v7833 = vpop.f32.mrb[0].mxu0
        %v7834 = vpop.f32.mrb[0].mxu0
        %7835 = vdwg.mxu0
        %7836 = vmatprep.subr.bf16.mxu0 %v5517
        %7837 = vmatpush1.bf16.msra.mxu0 %v5516
        %7838 = vmatprep.subr.bf16.mxu0 %v5542
        %7839 = vmatpush1.bf16.msra.mxu0 %v5541
        %7840 = vmatprep.subr.bf16.mxu0 %v5567
        %7841 = vmatpush1.bf16.msra.mxu0 %v5566
        %7842 = vmatprep.subr.bf16.mxu0 %v5592
        %7843 = vmatpush1.bf16.msra.mxu0 %v5591
        %7844 = vmatprep.subr.bf16.mxu0 %v5617
        %7845 = vmatpush1.bf16.msra.mxu0 %v5616
        %7846 = vmatprep.subr.bf16.mxu0 %v5642
        %7847 = vmatpush1.bf16.msra.mxu0 %v5641
        %7848 = vmatprep.subr.bf16.mxu0 %v5667
        %7849 = vmatpush1.bf16.msra.mxu0 %v5666
        %7850 = vmatprep.subr.bf16.mxu0 %v5692
        %7851 = vmatpush1.bf16.msra.mxu0 %v5691
        %7852 = vmatprep.subr.bf16.mxu0 %v5717
        %7853 = vmatpush1.bf16.msra.mxu0 %v5716
        %7854 = vmatprep.subr.bf16.mxu0 %v5742
        %7855 = vmatpush1.bf16.msra.mxu0 %v5741
        %7856 = vmatprep.subr.bf16.mxu0 %v5767
        %7857 = vmatpush1.bf16.msra.mxu0 %v5766
        %7858 = vmatprep.subr.bf16.mxu0 %v5792
        %7859 = vmatpush1.bf16.msra.mxu0 %v5791
        %7860 = vmatprep.subr.bf16.mxu0 %v5817
        %7861 = vmatpush1.bf16.msra.mxu0 %v5816
        %7862 = vmatprep.subr.bf16.mxu0 %v5842
        %7863 = vmatpush1.bf16.msra.mxu0 %v5841
        %7864 = vmatprep.subr.bf16.mxu0 %v5867
        %7865 = vmatpush1.bf16.msra.mxu0 %v5866
        %7866 = vmatprep.subr.bf16.mxu0 %v5892
        %7867 = vmatpush1.bf16.msra.mxu0 %v5891
        %7868 = vmatprep.mubr.bf16.mxu0 %v2098
        %7869 = vmatmul.mubr.bf16.gmra.mrb[0].mxu0 %v2097
        %v7870 = vpop.f32.mrb[0].mxu0
        %v7871 = vadd.f32 %v3016, %v7870
        %v7872 = vpop.f32.mrb[0].mxu0
        %v7873 = vadd.f32 %v3020, %v7872
        %v7874 = vpop.f32.mrb[0].mxu0
        %v7875 = vpop.f32.mrb[0].mxu0
        %7876 = vdwg.mxu0
        %7877 = vmatprep.subr.bf16.mxu0 %v5917
        %7878 = vmatpush1.bf16.msra.mxu0 %v5916
        %7879 = vmatprep.subr.bf16.mxu0 %v5942
        %7880 = vmatpush1.bf16.msra.mxu0 %v5941
        %7881 = vmatprep.subr.bf16.mxu0 %v5967
        %7882 = vmatpush1.bf16.msra.mxu0 %v5966
        %7883 = vmatprep.subr.bf16.mxu0 %v5992
        %7884 = vmatpush1.bf16.msra.mxu0 %v5991
        %7885 = vmatprep.subr.bf16.mxu0 %v6017
        %7886 = vmatpush1.bf16.msra.mxu0 %v6016
        %7887 = vmatprep.subr.bf16.mxu0 %v6042
        %7888 = vmatpush1.bf16.msra.mxu0 %v6041
        %7889 = vmatprep.subr.bf16.mxu0 %v6067
        %7890 = vmatpush1.bf16.msra.mxu0 %v6066
        %7891 = vmatprep.subr.bf16.mxu0 %v6092
        %7892 = vmatpush1.bf16.msra.mxu0 %v6091
        %7893 = vmatprep.subr.bf16.mxu0 %v6117
        %7894 = vmatpush1.bf16.msra.mxu0 %v6116
        %7895 = vmatprep.subr.bf16.mxu0 %v6142
        %7896 = vmatpush1.bf16.msra.mxu0 %v6141
        %7897 = vmatprep.subr.bf16.mxu0 %v6167
        %7898 = vmatpush1.bf16.msra.mxu0 %v6166
        %7899 = vmatprep.subr.bf16.mxu0 %v6192
        %7900 = vmatpush1.bf16.msra.mxu0 %v6191
        %7901 = vmatprep.subr.bf16.mxu0 %v6217
        %7902 = vmatpush1.bf16.msra.mxu0 %v6216
        %7903 = vmatprep.subr.bf16.mxu0 %v6242
        %7904 = vmatpush1.bf16.msra.mxu0 %v6241
        %7905 = vmatprep.subr.bf16.mxu0 %v6267
        %7906 = vmatpush1.bf16.msra.mxu0 %v6266
        %7907 = vmatprep.subr.bf16.mxu0 %v6292
        %7908 = vmatpush1.bf16.msra.mxu0 %v6291
        %7909 = vmatprep.mubr.bf16.mxu0 %v2100
        %7910 = vmatmul.mubr.bf16.gmra.mrb[0].mxu0 %v2099
        %v7911 = vpop.f32.mrb[0].mxu0
        %v7912 = vadd.f32 %v7871, %v7911
        %v7913 = vpop.f32.mrb[0].mxu0
        %v7914 = vadd.f32 %v7873, %v7913
        %v7915 = vpop.f32.mrb[0].mxu0
        %v7916 = vpop.f32.mrb[0].mxu0
        %7917 = vdwg.mxu0
        %7918 = vmatprep.subr.bf16.mxu0 %v5519
        %7919 = vmatpush1.bf16.msra.mxu0 %v5518
        %7920 = vmatprep.subr.bf16.mxu0 %v5544
        %7921 = vmatpush1.bf16.msra.mxu0 %v5543
        %7922 = vmatprep.subr.bf16.mxu0 %v5569
        %7923 = vmatpush1.bf16.msra.mxu0 %v5568
        %7924 = vmatprep.subr.bf16.mxu0 %v5594
        %7925 = vmatpush1.bf16.msra.mxu0 %v5593
        %7926 = vmatprep.subr.bf16.mxu0 %v5619
        %7927 = vmatpush1.bf16.msra.mxu0 %v5618
        %7928 = vmatprep.subr.bf16.mxu0 %v5644
        %7929 = vmatpush1.bf16.msra.mxu0 %v5643
        %7930 = vmatprep.subr.bf16.mxu0 %v5669
        %7931 = vmatpush1.bf16.msra.mxu0 %v5668
        %7932 = vmatprep.subr.bf16.mxu0 %v5694
        %7933 = vmatpush1.bf16.msra.mxu0 %v5693
        %7934 = vmatprep.subr.bf16.mxu0 %v5719
        %7935 = vmatpush1.bf16.msra.mxu0 %v5718
        %7936 = vmatprep.subr.bf16.mxu0 %v5744
        %7937 = vmatpush1.bf16.msra.mxu0 %v5743
        %7938 = vmatprep.subr.bf16.mxu0 %v5769
        %7939 = vmatpush1.bf16.msra.mxu0 %v5768
        %7940 = vmatprep.subr.bf16.mxu0 %v5794
        %7941 = vmatpush1.bf16.msra.mxu0 %v5793
        %7942 = vmatprep.subr.bf16.mxu0 %v5819
        %7943 = vmatpush1.bf16.msra.mxu0 %v5818
        %7944 = vmatprep.subr.bf16.mxu0 %v5844
        %7945 = vmatpush1.bf16.msra.mxu0 %v5843
        %7946 = vmatprep.subr.bf16.mxu0 %v5869
        %7947 = vmatpush1.bf16.msra.mxu0 %v5868
        %7948 = vmatprep.subr.bf16.mxu0 %v5894
        %7949 = vmatpush1.bf16.msra.mxu0 %v5893
        %7950 = vmatprep.mubr.bf16.mxu0 %v2098
        %7951 = vmatmul.mubr.bf16.gmra.mrb[0].mxu0 %v2097
        %v7952 = vpop.f32.mrb[0].mxu0
        %v7953 = vadd.f32 %v3024, %v7952
        %v7954 = vpop.f32.mrb[0].mxu0
        %v7955 = vadd.f32 %v3028, %v7954
        %v7956 = vpop.f32.mrb[0].mxu0
        %v7957 = vpop.f32.mrb[0].mxu0
        %7958 = vdwg.mxu0
        %7959 = vmatprep.subr.bf16.mxu0 %v5919
        %7960 = vmatpush1.bf16.msra.mxu0 %v5918
        %7961 = vmatprep.subr.bf16.mxu0 %v5944
        %7962 = vmatpush1.bf16.msra.mxu0 %v5943
        %7963 = vmatprep.subr.bf16.mxu0 %v5969
        %7964 = vmatpush1.bf16.msra.mxu0 %v5968
        %7965 = vmatprep.subr.bf16.mxu0 %v5994
        %7966 = vmatpush1.bf16.msra.mxu0 %v5993
        %7967 = vmatprep.subr.bf16.mxu0 %v6019
        %7968 = vmatpush1.bf16.msra.mxu0 %v6018
        %7969 = vmatprep.subr.bf16.mxu0 %v6044
        %7970 = vmatpush1.bf16.msra.mxu0 %v6043
        %7971 = vmatprep.subr.bf16.mxu0 %v6069
        %7972 = vmatpush1.bf16.msra.mxu0 %v6068
        %7973 = vmatprep.subr.bf16.mxu0 %v6094
        %7974 = vmatpush1.bf16.msra.mxu0 %v6093
        %7975 = vmatprep.subr.bf16.mxu0 %v6119
        %7976 = vmatpush1.bf16.msra.mxu0 %v6118
        %7977 = vmatprep.subr.bf16.mxu0 %v6144
        %7978 = vmatpush1.bf16.msra.mxu0 %v6143
        %7979 = vmatprep.subr.bf16.mxu0 %v6169
        %7980 = vmatpush1.bf16.msra.mxu0 %v6168
        %7981 = vmatprep.subr.bf16.mxu0 %v6194
        %7982 = vmatpush1.bf16.msra.mxu0 %v6193
        %7983 = vmatprep.subr.bf16.mxu0 %v6219
        %7984 = vmatpush1.bf16.msra.mxu0 %v6218
        %7985 = vmatprep.subr.bf16.mxu0 %v6244
        %7986 = vmatpush1.bf16.msra.mxu0 %v6243
        %7987 = vmatprep.subr.bf16.mxu0 %v6269
        %7988 = vmatpush1.bf16.msra.mxu0 %v6268
        %7989 = vmatprep.subr.bf16.mxu0 %v6294
        %7990 = vmatpush1.bf16.msra.mxu0 %v6293
        %7991 = vmatprep.mubr.bf16.mxu0 %v2100
        %7992 = vmatmul.mubr.bf16.gmra.mrb[0].mxu0 %v2099
        %v7993 = vpop.f32.mrb[0].mxu0
        %v7994 = vadd.f32 %v7953, %v7993
        %v7995 = vpop.f32.mrb[0].mxu0
        %v7996 = vadd.f32 %v7955, %v7995
        %v7997 = vpop.f32.mrb[0].mxu0
        %v7998 = vpop.f32.mrb[0].mxu0
        %7999 = vdwg.mxu0
        %8000 = vmatprep.subr.bf16.mxu0 %v5521
        %8001 = vmatpush1.bf16.msra.mxu0 %v5520
        %8002 = vmatprep.subr.bf16.mxu0 %v5546
        %8003 = vmatpush1.bf16.msra.mxu0 %v5545
        %8004 = vmatprep.subr.bf16.mxu0 %v5571
        %8005 = vmatpush1.bf16.msra.mxu0 %v5570
        %8006 = vmatprep.subr.bf16.mxu0 %v5596
        %8007 = vmatpush1.bf16.msra.mxu0 %v5595
        %8008 = vmatprep.subr.bf16.mxu0 %v5621
        %8009 = vmatpush1.bf16.msra.mxu0 %v5620
        %8010 = vmatprep.subr.bf16.mxu0 %v5646
        %8011 = vmatpush1.bf16.msra.mxu0 %v5645
        %8012 = vmatprep.subr.bf16.mxu0 %v5671
        %8013 = vmatpush1.bf16.msra.mxu0 %v5670
        %8014 = vmatprep.subr.bf16.mxu0 %v5696
        %8015 = vmatpush1.bf16.msra.mxu0 %v5695
        %8016 = vmatprep.subr.bf16.mxu0 %v5721
        %8017 = vmatpush1.bf16.msra.mxu0 %v5720
        %8018 = vmatprep.subr.bf16.mxu0 %v5746
        %8019 = vmatpush1.bf16.msra.mxu0 %v5745
        %8020 = vmatprep.subr.bf16.mxu0 %v5771
        %8021 = vmatpush1.bf16.msra.mxu0 %v5770
        %8022 = vmatprep.subr.bf16.mxu0 %v5796
        %8023 = vmatpush1.bf16.msra.mxu0 %v5795
        %8024 = vmatprep.subr.bf16.mxu0 %v5821
        %8025 = vmatpush1.bf16.msra.mxu0 %v5820
        %8026 = vmatprep.subr.bf16.mxu0 %v5846
        %8027 = vmatpush1.bf16.msra.mxu0 %v5845
        %8028 = vmatprep.subr.bf16.mxu0 %v5871
        %8029 = vmatpush1.bf16.msra.mxu0 %v5870
        %8030 = vmatprep.subr.bf16.mxu0 %v5896
        %8031 = vmatpush1.bf16.msra.mxu0 %v5895
        %8032 = vmatprep.mubr.bf16.mxu0 %v2098
        %8033 = vmatmul.mubr.bf16.gmra.mrb[0].mxu0 %v2097
        %v8034 = vpop.f32.mrb[0].mxu0
        %v8035 = vadd.f32 %v3032, %v8034
        %v8036 = vpop.f32.mrb[0].mxu0
        %v8037 = vadd.f32 %v3036, %v8036
        %v8038 = vpop.f32.mrb[0].mxu0
        %v8039 = vpop.f32.mrb[0].mxu0
        %8040 = vdwg.mxu0
        %8041 = vmatprep.subr.bf16.mxu0 %v5921
        %8042 = vmatpush1.bf16.msra.mxu0 %v5920
        %8043 = vmatprep.subr.bf16.mxu0 %v5946
        %8044 = vmatpush1.bf16.msra.mxu0 %v5945
        %8045 = vmatprep.subr.bf16.mxu0 %v5971
        %8046 = vmatpush1.bf16.msra.mxu0 %v5970
        %8047 = vmatprep.subr.bf16.mxu0 %v5996
        %8048 = vmatpush1.bf16.msra.mxu0 %v5995
        %8049 = vmatprep.subr.bf16.mxu0 %v6021
        %8050 = vmatpush1.bf16.msra.mxu0 %v6020
        %8051 = vmatprep.subr.bf16.mxu0 %v6046
        %8052 = vmatpush1.bf16.msra.mxu0 %v6045
        %8053 = vmatprep.subr.bf16.mxu0 %v6071
        %8054 = vmatpush1.bf16.msra.mxu0 %v6070
        %8055 = vmatprep.subr.bf16.mxu0 %v6096
        %8056 = vmatpush1.bf16.msra.mxu0 %v6095
        %8057 = vmatprep.subr.bf16.mxu0 %v6121
        %8058 = vmatpush1.bf16.msra.mxu0 %v6120
        %8059 = vmatprep.subr.bf16.mxu0 %v6146
        %8060 = vmatpush1.bf16.msra.mxu0 %v6145
        %8061 = vmatprep.subr.bf16.mxu0 %v6171
        %8062 = vmatpush1.bf16.msra.mxu0 %v6170
        %8063 = vmatprep.subr.bf16.mxu0 %v6196
        %8064 = vmatpush1.bf16.msra.mxu0 %v6195
        %8065 = vmatprep.subr.bf16.mxu0 %v6221
        %8066 = vmatpush1.bf16.msra.mxu0 %v6220
        %8067 = vmatprep.subr.bf16.mxu0 %v6246
        %8068 = vmatpush1.bf16.msra.mxu0 %v6245
        %8069 = vmatprep.subr.bf16.mxu0 %v6271
        %8070 = vmatpush1.bf16.msra.mxu0 %v6270
        %8071 = vmatprep.subr.bf16.mxu0 %v6296
        %8072 = vmatpush1.bf16.msra.mxu0 %v6295
        %8073 = vmatprep.mubr.bf16.mxu0 %v2100
        %8074 = vmatmul.mubr.bf16.gmra.mrb[0].mxu0 %v2099
        %v8075 = vpop.f32.mrb[0].mxu0
        %v8076 = vadd.f32 %v8035, %v8075
        %v8077 = vpop.f32.mrb[0].mxu0
        %v8078 = vadd.f32 %v8037, %v8077
        %v8079 = vpop.f32.mrb[0].mxu0
        %v8080 = vpop.f32.mrb[0].mxu0
        %8081 = vdwg.mxu0
        %8082 = vmatprep.subr.bf16.mxu0 0
        %8083 = vmatpush1.bf16.msra.mxu0 %v5522
        %8084 = vmatprep.subr.bf16.mxu0 0
        %8085 = vmatpush1.bf16.msra.mxu0 %v5547
        %8086 = vmatprep.subr.bf16.mxu0 0
        %8087 = vmatpush1.bf16.msra.mxu0 %v5572
        %8088 = vmatprep.subr.bf16.mxu0 0
        %8089 = vmatpush1.bf16.msra.mxu0 %v5597
        %8090 = vmatprep.subr.bf16.mxu0 0
        %8091 = vmatpush1.bf16.msra.mxu0 %v5622
        %8092 = vmatprep.subr.bf16.mxu0 0
        %8093 = vmatpush1.bf16.msra.mxu0 %v5647
        %8094 = vmatprep.subr.bf16.mxu0 0
        %8095 = vmatpush1.bf16.msra.mxu0 %v5672
        %8096 = vmatprep.subr.bf16.mxu0 0
        %8097 = vmatpush1.bf16.msra.mxu0 %v5697
        %8098 = vmatprep.subr.bf16.mxu0 0
        %8099 = vmatpush1.bf16.msra.mxu0 %v5722
        %8100 = vmatprep.subr.bf16.mxu0 0
        %8101 = vmatpush1.bf16.msra.mxu0 %v5747
        %8102 = vmatprep.subr.bf16.mxu0 0
        %8103 = vmatpush1.bf16.msra.mxu0 %v5772
        %8104 = vmatprep.subr.bf16.mxu0 0
        %8105 = vmatpush1.bf16.msra.mxu0 %v5797
        %8106 = vmatprep.subr.bf16.mxu0 0
        %8107 = vmatpush1.bf16.msra.mxu0 %v5822
        %8108 = vmatprep.subr.bf16.mxu0 0
        %8109 = vmatpush1.bf16.msra.mxu0 %v5847
        %8110 = vmatprep.subr.bf16.mxu0 0
        %8111 = vmatpush1.bf16.msra.mxu0 %v5872
        %8112 = vmatprep.subr.bf16.mxu0 0
        %8113 = vmatpush1.bf16.msra.mxu0 %v5897
        %8114 = vmatprep.mubr.bf16.mxu0 %v2098
        %8115 = vmatmul.mubr.bf16.gmra.mrb[0].mxu0 %v2097
        %v8116 = vpop.f32.mrb[0].mxu0
        %v8117 = vadd.f32 %v3040, %v8116
        %v8118 = vpop.f32.mrb[0].mxu0
        %v8119 = vpop.f32.mrb[0].mxu0
        %v8120 = vpop.f32.mrb[0].mxu0
        %8121 = vdwg.mxu0
        %8122 = vmatprep.subr.bf16.mxu0 0
        %8123 = vmatpush1.bf16.msra.mxu0 %v5922
        %8124 = vmatprep.subr.bf16.mxu0 0
        %8125 = vmatpush1.bf16.msra.mxu0 %v5947
        %8126 = vmatprep.subr.bf16.mxu0 0
        %8127 = vmatpush1.bf16.msra.mxu0 %v5972
        %8128 = vmatprep.subr.bf16.mxu0 0
        %8129 = vmatpush1.bf16.msra.mxu0 %v5997
        %8130 = vmatprep.subr.bf16.mxu0 0
        %8131 = vmatpush1.bf16.msra.mxu0 %v6022
        %8132 = vmatprep.subr.bf16.mxu0 0
        %8133 = vmatpush1.bf16.msra.mxu0 %v6047
        %8134 = vmatprep.subr.bf16.mxu0 0
        %8135 = vmatpush1.bf16.msra.mxu0 %v6072
        %8136 = vmatprep.subr.bf16.mxu0 0
        %8137 = vmatpush1.bf16.msra.mxu0 %v6097
        %8138 = vmatprep.subr.bf16.mxu0 0
        %8139 = vmatpush1.bf16.msra.mxu0 %v6122
        %8140 = vmatprep.subr.bf16.mxu0 0
        %8141 = vmatpush1.bf16.msra.mxu0 %v6147
        %8142 = vmatprep.subr.bf16.mxu0 0
        %8143 = vmatpush1.bf16.msra.mxu0 %v6172
        %8144 = vmatprep.subr.bf16.mxu0 0
        %8145 = vmatpush1.bf16.msra.mxu0 %v6197
        %8146 = vmatprep.subr.bf16.mxu0 0
        %8147 = vmatpush1.bf16.msra.mxu0 %v6222
        %8148 = vmatprep.subr.bf16.mxu0 0
        %8149 = vmatpush1.bf16.msra.mxu0 %v6247
        %8150 = vmatprep.subr.bf16.mxu0 0
        %8151 = vmatpush1.bf16.msra.mxu0 %v6272
        %8152 = vmatprep.subr.bf16.mxu0 0
        %8153 = vmatpush1.bf16.msra.mxu0 %v6297
        %8154 = vmatprep.mubr.bf16.mxu0 %v2100
        %8155 = vmatmul.mubr.bf16.gmra.mrb[0].mxu0 %v2099
        %v8156 = vpop.f32.mrb[0].mxu0
        %v8157 = vadd.f32 %v8117, %v8156
        %v8158 = vpop.f32.mrb[0].mxu0
        %v8159 = vpop.f32.mrb[0].mxu0
        %v8160 = vpop.f32.mrb[0].mxu0
        %8161 = vdwg.mxu0
        %v8162 = vmax.f32 %v7174, 0.0
        %v8163 = vmax.f32 %v7176, 0.0
        %v8164 = vmax.f32 %v7256, 0.0
        %v8165 = vmax.f32 %v7258, 0.0
        %v8166 = vmax.f32 %v7338, 0.0
        %v8167 = vmax.f32 %v7340, 0.0
        %v8168 = vmax.f32 %v7420, 0.0
        %v8169 = vmax.f32 %v7422, 0.0
        %v8170 = vmax.f32 %v7502, 0.0
        %v8171 = vmax.f32 %v7504, 0.0
        %v8172 = vmax.f32 %v7584, 0.0
        %v8173 = vmax.f32 %v7586, 0.0
        %v8174 = vmax.f32 %v7666, 0.0
        %v8175 = vmax.f32 %v7668, 0.0
        %v8176 = vmax.f32 %v7748, 0.0
        %v8177 = vmax.f32 %v7750, 0.0
        %v8178 = vmax.f32 %v7830, 0.0
        %v8179 = vmax.f32 %v7832, 0.0
        %v8180 = vmax.f32 %v7912, 0.0
        %v8181 = vmax.f32 %v7914, 0.0
        %v8182 = vmax.f32 %v7994, 0.0
        %v8183 = vmax.f32 %v7996, 0.0
        %v8184 = vmax.f32 %v8076, 0.0
        %v8185 = vmax.f32 %v8078, 0.0
        %v8186 = vmax.f32 %v8157, 0.0
        %v8187 = vpack.c.bf16 %v8162, %v8162
        %v8188 = vpack.c.bf16 %v8163, %v8163
        %v8189 = vpack.c.bf16 %v8164, %v8164
        %v8190 = vpack.c.bf16 %v8165, %v8165
        %v8191 = vpack.c.bf16 %v8166, %v8166
        %v8192 = vpack.c.bf16 %v8167, %v8167
        %v8193 = vpack.c.bf16 %v8168, %v8168
        %v8194 = vpack.c.bf16 %v8169, %v8169
        %v8195 = vpack.c.bf16 %v8170, %v8170
        %v8196 = vpack.c.bf16 %v8171, %v8171
        %v8197 = vpack.c.bf16 %v8172, %v8172
        %v8198 = vpack.c.bf16 %v8173, %v8173
        %v8199 = vpack.c.bf16 %v8174, %v8174
        %v8200 = vpack.c.bf16 %v8175, %v8175
        %v8201 = vpack.c.bf16 %v8176, %v8176
        %v8202 = vpack.c.bf16 %v8177, %v8177
        %v8203 = vpack.c.bf16 %v8178, %v8178
        %v8204 = vpack.c.bf16 %v8179, %v8179
        %v8205 = vpack.c.bf16 %v8180, %v8180
        %v8206 = vpack.c.bf16 %v8181, %v8181
        %v8207 = vpack.c.bf16 %v8182, %v8182
        %v8208 = vpack.c.bf16 %v8183, %v8183
        %v8209 = vpack.c.bf16 %v8184, %v8184
        %v8210 = vpack.c.bf16 %v8185, %v8185
        %v8211 = vpack.c.bf16 %v8186, %v8186
        %v8237 = vcombine.low %v8187, %v8188
        %v8238 = vcombine.low %v8189, %v8190
        %v8239 = vcombine.low %v8191, %v8192
        %v8240 = vcombine.low %v8193, %v8194
        %v8242 = vunpack.c.l.s4 1966171168
        %v8243 = vunpack.c.0.s8 %v8242
        %v8244 = vlaneseq
        %v8245 = vshrl.u32 %v8244, 7
        %v8246 = vsub.s32 %v8243, %v8245
        %v8247 = vrot.slane %v8237, %v8246
        %v8249 = vunpack.c.l.s4 1966171168
        %v8250 = vunpack.c.0.s8 %v8249
        %v8251 = vlaneseq
        %v8252 = vshrl.u32 %v8251, 7
        %v8253 = vsub.s32 %v8250, %v8252
        %v8254 = vrot.slane %v8238, %v8253
        %v8256 = vunpack.c.l.s4 1966171168
        %v8257 = vunpack.c.0.s8 %v8256
        %v8258 = vlaneseq
        %v8259 = vshrl.u32 %v8258, 7
        %v8260 = vsub.s32 %v8257, %v8259
        %v8261 = vrot.slane %v8239, %v8260
        %v8263 = vunpack.c.l.s4 1966171168
        %v8264 = vunpack.c.0.s8 %v8263
        %v8265 = vlaneseq
        %v8266 = vshrl.u32 %v8265, 7
        %v8267 = vsub.s32 %v8264, %v8266
        %v8268 = vrot.slane %v8240, %v8267
        %v8269 = vcombine.low %v8247, %v8254
        %v8270 = vcombine.low %v8261, %v8268
        %v8272 = vunpack.c.l.s4 1966171168
        %v8273 = vunpack.c.0.s8 %v8272
        %v8274 = vlaneseq
        %v8275 = vshrl.u32 %v8274, 7
        %v8276 = vsub.s32 %v8273, %v8275
        %v8277 = vrot.slane %v8269, %v8276
        %v8279 = vunpack.c.l.s4 1966171168
        %v8280 = vunpack.c.0.s8 %v8279
        %v8281 = vlaneseq
        %v8282 = vshrl.u32 %v8281, 7
        %v8283 = vsub.s32 %v8280, %v8282
        %v8284 = vrot.slane %v8270, %v8283
        %v8285 = vcombine.low %v8277, %v8284
        %v8286 = vcombine.low %v8195, %v8196
        %v8287 = vcombine.low %v8197, %v8198
        %v8288 = vcombine.low %v8199, %v8200
        %v8289 = vcombine.low %v8201, %v8202
        %v8291 = vunpack.c.l.s4 1966171168
        %v8292 = vunpack.c.0.s8 %v8291
        %v8293 = vlaneseq
        %v8294 = vshrl.u32 %v8293, 7
        %v8295 = vsub.s32 %v8292, %v8294
        %v8296 = vrot.slane %v8286, %v8295
        %v8298 = vunpack.c.l.s4 1966171168
        %v8299 = vunpack.c.0.s8 %v8298
        %v8300 = vlaneseq
        %v8301 = vshrl.u32 %v8300, 7
        %v8302 = vsub.s32 %v8299, %v8301
        %v8303 = vrot.slane %v8287, %v8302
        %v8305 = vunpack.c.l.s4 1966171168
        %v8306 = vunpack.c.0.s8 %v8305
        %v8307 = vlaneseq
        %v8308 = vshrl.u32 %v8307, 7
        %v8309 = vsub.s32 %v8306, %v8308
        %v8310 = vrot.slane %v8288, %v8309
        %v8312 = vunpack.c.l.s4 1966171168
        %v8313 = vunpack.c.0.s8 %v8312
        %v8314 = vlaneseq
        %v8315 = vshrl.u32 %v8314, 7
        %v8316 = vsub.s32 %v8313, %v8315
        %v8317 = vrot.slane %v8289, %v8316
        %v8318 = vcombine.low %v8296, %v8303
        %v8319 = vcombine.low %v8310, %v8317
        %v8321 = vunpack.c.l.s4 1966171168
        %v8322 = vunpack.c.0.s8 %v8321
        %v8323 = vlaneseq
        %v8324 = vshrl.u32 %v8323, 7
        %v8325 = vsub.s32 %v8322, %v8324
        %v8326 = vrot.slane %v8318, %v8325
        %v8328 = vunpack.c.l.s4 1966171168
        %v8329 = vunpack.c.0.s8 %v8328
        %v8330 = vlaneseq
        %v8331 = vshrl.u32 %v8330, 7
        %v8332 = vsub.s32 %v8329, %v8331
        %v8333 = vrot.slane %v8319, %v8332
        %v8334 = vcombine.low %v8326, %v8333
        %v8335 = vcombine.low %v8203, %v8204
        %v8336 = vcombine.low %v8205, %v8206
        %v8337 = vcombine.low %v8207, %v8208
        %v8338 = vcombine.low %v8209, %v8210
        %v8340 = vunpack.c.l.s4 1966171168
        %v8341 = vunpack.c.0.s8 %v8340
        %v8342 = vlaneseq
        %v8343 = vshrl.u32 %v8342, 7
        %v8344 = vsub.s32 %v8341, %v8343
        %v8345 = vrot.slane %v8335, %v8344
        %v8347 = vunpack.c.l.s4 1966171168
        %v8348 = vunpack.c.0.s8 %v8347
        %v8349 = vlaneseq
        %v8350 = vshrl.u32 %v8349, 7
        %v8351 = vsub.s32 %v8348, %v8350
        %v8352 = vrot.slane %v8336, %v8351
        %v8354 = vunpack.c.l.s4 1966171168
        %v8355 = vunpack.c.0.s8 %v8354
        %v8356 = vlaneseq
        %v8357 = vshrl.u32 %v8356, 7
        %v8358 = vsub.s32 %v8355, %v8357
        %v8359 = vrot.slane %v8337, %v8358
        %v8361 = vunpack.c.l.s4 1966171168
        %v8362 = vunpack.c.0.s8 %v8361
        %v8363 = vlaneseq
        %v8364 = vshrl.u32 %v8363, 7
        %v8365 = vsub.s32 %v8362, %v8364
        %v8366 = vrot.slane %v8338, %v8365
        %v8367 = vcombine.low %v8345, %v8352
        %v8368 = vcombine.low %v8359, %v8366
        %v8370 = vunpack.c.l.s4 1966171168
        %v8371 = vunpack.c.0.s8 %v8370
        %v8372 = vlaneseq
        %v8373 = vshrl.u32 %v8372, 7
        %v8374 = vsub.s32 %v8371, %v8373
        %v8375 = vrot.slane %v8367, %v8374
        %v8377 = vunpack.c.l.s4 1966171168
        %v8378 = vunpack.c.0.s8 %v8377
        %v8379 = vlaneseq
        %v8380 = vshrl.u32 %v8379, 7
        %v8381 = vsub.s32 %v8378, %v8380
        %v8382 = vrot.slane %v8368, %v8381
        %v8383 = vcombine.low %v8375, %v8382
        %v8385 = vunpack.c.l.s4 1966171168
        %v8386 = vunpack.c.0.s8 %v8385
        %v8387 = vlaneseq
        %v8388 = vshrl.u32 %v8387, 7
        %v8389 = vsub.s32 %v8386, %v8388
        %v8390 = vrot.slane %v8211, %v8389
        %v8392 = vunpack.c.l.s4 1966171168
        %v8393 = vunpack.c.0.s8 %v8392
        %v8394 = vlaneseq
        %v8395 = vshrl.u32 %v8394, 7
        %v8396 = vsub.s32 %v8393, %v8395
        %v8397 = vrot.slane %v8390, %v8396
        %8402 = vst [vmem:[%s1933] sm:$0xff] %v8285
        %8403 = vst [vmem:[%s1933 + $0x8] sm:$0xff] %v8334
        %8404 = vst [vmem:[%s1933 + $0x10] sm:$0xff] %v8383
        %8405 = vst [vmem:[%s1933 + $0x18] sm:$0x1] %v8397
        %s8406 = smul.u32 25, %s16
        %p8407 = scmp.lt.s32.totalorder %s8406, 49
        %s8408 = scalar_select %p8407, %s8406, 49
        %s8409 = scalar_lea.vmem %s5, %s8408
        // Predicated region
        $region67: #{_lambda_.4} parent=61 // pred_check
          %p8410 = pneg %p149
        $region68: #{_lambda_.4} parent=61 // pred_check_branch
          %8412 = sbr.rel (%p8410) target = $region70
        $region69: #{_lambda_.4} parent=61 // pred_region
          %s8413 = smul.u32 25, %s16
        $region70: #{_lambda_.4} parent=61 // pred_fallthru
          _
      $region62: #{_lambda_.4} parent=5 // pred_fallthru
        _
      %p8414 = scmp.le.s32.totalorder 2, %s11
      // Predicated region
      $region71: #{_lambda_.4} parent=5 // pred_check
        %p8415 = pneg %p8414
      $region72: #{_lambda_.4} parent=5 // pred_check_branch
        %8417 = sbr.rel (%p8415) target = $region74
      $region73: #{_lambda_.4} parent=5 // pred_region
        %s8418 = ssub.s32 %s11, 2
        // Predicated region
        $region75: #{_lambda_.4} parent=73 // pred_check
          %p8419 = pneg %p155
        $region76: #{_lambda_.4} parent=73 // pred_check_branch
          %8421 = sbr.rel (%p8419) target = $region78
        $region77: #{_lambda_.4} parent=73 // pred_region
          %s8422 = smul.u32 25, %s17
          %p8423 = scmp.lt.s32.totalorder %s8422, 49
          %s8424 = scalar_select %p8423, %s8422, 49
          %s8425 = scalar_lea.vmem %s5, %s8424
        $region78: #{_lambda_.4} parent=73 // pred_fallthru
          _
      $region74: #{_lambda_.4} parent=5 // pred_fallthru
        _
    $region6: #{_lambda_.4} parent=1 // loop_footer
      %s15 = sadd.s32 1, %s11
    $region7: #{_lambda_.4} parent=1 // loop_footer_branch
      %10 = sbr.rel target = $region3
    $region8: #{_lambda_.4} parent=1 // loop_exit
      _

// kernel: _lambda_.7
$region0: #{_lambda_.7}
  #allocation0 [shape = 'u32[]', space=smem, size = 0x4, offset = 0x4, fixed_abs, tag = 'smem constant byte address 0x4 - core index']
  #allocation1 [shape = 'u32[144,128]{1,0:T(1,128)}', space=vmem, size = 0x12000, scoped, tag = 'internal scratch']
  %s0 = inlined_call_operand.vmem [shape: bf16[882,128], index: 0, kind: input, shape index: {}]
  %s1 = inlined_call_operand.vmem [shape: bf16[128,128], index: 1, kind: input, shape index: {}]
  %s2 = inlined_call_operand.vmem [shape: f32[1,128], index: 2, kind: input, shape index: {}]
  %s3 = inlined_call_operand.vmem [shape: f32[882,128], index: 3, kind: output, shape index: {}]
  %s4 = sld [smem:[#allocation0]]
  $region22: #{_lambda_.7} parent=0
    _
  %s6 = ssub.s32 1, %s4
  %s7 = scalar_select 0, %s6, %s4
  // Predicated region
  $region2: #{_lambda_.7} parent=0 // pred_check
    _
  $region3: #{_lambda_.7} parent=0 // pred_check_branch
    %9 = sbr.rel (0) target = $region5
  $region4: #{_lambda_.7} parent=0 // pred_region
    _
  $region5: #{_lambda_.7} parent=0 // pred_fallthru
    _
  // Predicated region
  $region6: #{_lambda_.7} parent=0 // pred_check
    _
  $region7: #{_lambda_.7} parent=0 // pred_check_branch
    %11 = sbr.rel (0) target = $region9
  $region8: #{_lambda_.7} parent=0 // pred_region
    _
  $region9: #{_lambda_.7} parent=0 // pred_fallthru
    _
  // Predicated region
  $region10: #{_lambda_.7} parent=0 // pred_check
    _
  $region11: #{_lambda_.7} parent=0 // pred_check_branch
    %13 = sbr.rel (0) target = $region13
  $region12: #{_lambda_.7} parent=0 // pred_region
    _
  $region13: #{_lambda_.7} parent=0 // pred_fallthru
    _
  %v15 = vld [vmem:[%s0] sm:$0xf]
  %v16 = vld [vmem:[%s0 + $0x4] sm:$0xf]
  %v17 = vld [vmem:[%s0 + $0x8] sm:$0xf]
  %v18 = vld [vmem:[%s0 + $0xc] sm:$0xf]
  %v19 = vld [vmem:[%s0 + $0x10] sm:$0xf]
  %v20 = vld [vmem:[%s0 + $0x14] sm:$0xf]
  %v21 = vld [vmem:[%s0 + $0x18] sm:$0xf]
  %v22 = vld [vmem:[%s0 + $0x1c] sm:$0xf]
  %v23 = vld [vmem:[%s0 + $0x20] sm:$0xf]
  %v24 = vld [vmem:[%s0 + $0x24] sm:$0xf]
  %v25 = vld [vmem:[%s0 + $0x28] sm:$0xf]
  %v26 = vld [vmem:[%s0 + $0x2c] sm:$0xf]
  %v27 = vld [vmem:[%s0 + $0x30] sm:$0xf]
  %v28 = vld [vmem:[%s0 + $0x34] sm:$0xf]
  %v29 = vld [vmem:[%s0 + $0x38] sm:$0xf]
  %v30 = vld [vmem:[%s0 + $0x3c] sm:$0xf]
  %v31 = vld [vmem:[%s0 + $0x40] sm:$0xf]
  %v32 = vld [vmem:[%s0 + $0x44] sm:$0xf]
  %v33 = vld [vmem:[%s0 + $0x48] sm:$0xf]
  %v34 = vld [vmem:[%s0 + $0x4c] sm:$0xf]
  %v35 = vld [vmem:[%s0 + $0x50] sm:$0xf]
  %v36 = vld [vmem:[%s0 + $0x54] sm:$0xf]
  %v37 = vld [vmem:[%s0 + $0x58] sm:$0xf]
  %v38 = vld [vmem:[%s0 + $0x5c] sm:$0xf]
  %v39 = vld [vmem:[%s0 + $0x60] sm:$0xf]
  %v40 = vld [vmem:[%s0 + $0x64] sm:$0xf]
  %v41 = vld [vmem:[%s0 + $0x68] sm:$0xf]
  %v42 = vld [vmem:[%s0 + $0x6c] sm:$0xf]
  %v43 = vld [vmem:[%s0 + $0x70] sm:$0xf]
  %v44 = vld [vmem:[%s0 + $0x74] sm:$0xf]
  %v45 = vld [vmem:[%s0 + $0x78] sm:$0xf]
  %v46 = vld [vmem:[%s0 + $0x7c] sm:$0xf]
  %v47 = vld [vmem:[%s0 + $0x80] sm:$0xf]
  %v48 = vld [vmem:[%s0 + $0x84] sm:$0xf]
  %v49 = vld [vmem:[%s0 + $0x88] sm:$0xf]
  %v50 = vld [vmem:[%s0 + $0x8c] sm:$0xf]
  %v51 = vld [vmem:[%s0 + $0x90] sm:$0xf]
  %v52 = vld [vmem:[%s0 + $0x94] sm:$0xf]
  %v53 = vld [vmem:[%s0 + $0x98] sm:$0xf]
  %v54 = vld [vmem:[%s0 + $0x9c] sm:$0xf]
  %v55 = vld [vmem:[%s0 + $0xa0] sm:$0xf]
  %v56 = vld [vmem:[%s0 + $0xa4] sm:$0xf]
  %v57 = vld [vmem:[%s0 + $0xa8] sm:$0xf]
  %v58 = vld [vmem:[%s0 + $0xac] sm:$0xf]
  %v59 = vld [vmem:[%s0 + $0xb0] sm:$0xf]
  %v60 = vld [vmem:[%s0 + $0xb4] sm:$0xf]
  %v61 = vld [vmem:[%s0 + $0xb8] sm:$0xf]
  %v62 = vld [vmem:[%s0 + $0xbc] sm:$0xf]
  %v63 = vld [vmem:[%s0 + $0xc0] sm:$0xf]
  %v64 = vld [vmem:[%s0 + $0xc4] sm:$0xf]
  %v65 = vld [vmem:[%s0 + $0xc8] sm:$0xf]
  %v66 = vld [vmem:[%s0 + $0xcc] sm:$0xf]
  %v67 = vld [vmem:[%s0 + $0xd0] sm:$0xf]
  %v68 = vld [vmem:[%s0 + $0xd4] sm:$0xf]
  %v69 = vld [vmem:[%s0 + $0xd8] sm:$0xf]
  %v70 = vld [vmem:[%s0 + $0xdc] sm:$0xf]
  %v71 = vld [vmem:[%s0 + $0xe0] sm:$0xf]
  %v72 = vld [vmem:[%s0 + $0xe4] sm:$0xf]
  %v73 = vld [vmem:[%s0 + $0xe8] sm:$0xf]
  %v74 = vld [vmem:[%s0 + $0xec] sm:$0xf]
  %v75 = vld [vmem:[%s0 + $0xf0] sm:$0xf]
  %v76 = vld [vmem:[%s0 + $0xf4] sm:$0xf]
  %v77 = vld [vmem:[%s0 + $0xf8] sm:$0xf]
  %v78 = vld [vmem:[%s0 + $0xfc] sm:$0xf]
  %v79 = vld [vmem:[%s0 + $0x100] sm:$0xf]
  %v80 = vld [vmem:[%s0 + $0x104] sm:$0xf]
  %v81 = vld [vmem:[%s0 + $0x108] sm:$0xf]
  %v82 = vld [vmem:[%s0 + $0x10c] sm:$0xf]
  %v83 = vld [vmem:[%s0 + $0x110] sm:$0xf]
  %v84 = vld [vmem:[%s0 + $0x114] sm:$0xf]
  %v85 = vld [vmem:[%s0 + $0x118] sm:$0xf]
  %v86 = vld [vmem:[%s0 + $0x11c] sm:$0xf]
  %v87 = vld [vmem:[%s0 + $0x120] sm:$0xf]
  %v88 = vld [vmem:[%s0 + $0x124] sm:$0xf]
  %v89 = vld [vmem:[%s0 + $0x128] sm:$0xf]
  %v90 = vld [vmem:[%s0 + $0x12c] sm:$0xf]
  %v91 = vld [vmem:[%s0 + $0x130] sm:$0xf]
  %v92 = vld [vmem:[%s0 + $0x134] sm:$0xf]
  %v93 = vld [vmem:[%s0 + $0x138] sm:$0xf]
  %v94 = vld [vmem:[%s0 + $0x13c] sm:$0xf]
  %v95 = vld [vmem:[%s0 + $0x140] sm:$0xf]
  %v96 = vld [vmem:[%s0 + $0x144] sm:$0xf]
  %v97 = vld [vmem:[%s0 + $0x148] sm:$0xf]
  %v98 = vld [vmem:[%s0 + $0x14c] sm:$0xf]
  %v99 = vld [vmem:[%s0 + $0x150] sm:$0xf]
  %v100 = vld [vmem:[%s0 + $0x154] sm:$0xf]
  %v101 = vld [vmem:[%s0 + $0x158] sm:$0xf]
  %v102 = vld [vmem:[%s0 + $0x15c] sm:$0xf]
  %v103 = vld [vmem:[%s0 + $0x160] sm:$0xf]
  %v104 = vld [vmem:[%s0 + $0x164] sm:$0xf]
  %v105 = vld [vmem:[%s0 + $0x168] sm:$0xf]
  %v106 = vld [vmem:[%s0 + $0x16c] sm:$0xf]
  %v107 = vld [vmem:[%s0 + $0x170] sm:$0xf]
  %v108 = vld [vmem:[%s0 + $0x174] sm:$0xf]
  %v109 = vld [vmem:[%s0 + $0x178] sm:$0xf]
  %v110 = vld [vmem:[%s0 + $0x17c] sm:$0xf]
  %v111 = vld [vmem:[%s0 + $0x180] sm:$0xf]
  %v112 = vld [vmem:[%s0 + $0x184] sm:$0xf]
  %v113 = vld [vmem:[%s0 + $0x188] sm:$0xf]
  %v114 = vld [vmem:[%s0 + $0x18c] sm:$0xf]
  %v115 = vld [vmem:[%s0 + $0x190] sm:$0xf]
  %v116 = vld [vmem:[%s0 + $0x194] sm:$0xf]
  %v117 = vld [vmem:[%s0 + $0x198] sm:$0xf]
  %v118 = vld [vmem:[%s0 + $0x19c] sm:$0xf]
  %v119 = vld [vmem:[%s0 + $0x1a0] sm:$0xf]
  %v120 = vld [vmem:[%s0 + $0x1a4] sm:$0xf]
  %v121 = vld [vmem:[%s0 + $0x1a8] sm:$0xf]
  %v122 = vld [vmem:[%s0 + $0x1ac] sm:$0xf]
  %v123 = vld [vmem:[%s0 + $0x1b0] sm:$0xf]
  %v124 = vld [vmem:[%s0 + $0x1b4] sm:$0xf]
  %v125 = vld [vmem:[%s0 + $0x1b8] sm:$0x1]
  %v126 = vld [vmem:[%s1] sm:$0xf]
  %v127 = vld [vmem:[%s1 + $0x4] sm:$0xf]
  %v128 = vld [vmem:[%s1 + $0x8] sm:$0xf]
  %v129 = vld [vmem:[%s1 + $0xc] sm:$0xf]
  %v130 = vld [vmem:[%s1 + $0x10] sm:$0xf]
  %v131 = vld [vmem:[%s1 + $0x14] sm:$0xf]
  %v132 = vld [vmem:[%s1 + $0x18] sm:$0xf]
  %v133 = vld [vmem:[%s1 + $0x1c] sm:$0xf]
  %v134 = vld [vmem:[%s1 + $0x20] sm:$0xf]
  %v135 = vld [vmem:[%s1 + $0x24] sm:$0xf]
  %v136 = vld [vmem:[%s1 + $0x28] sm:$0xf]
  %v137 = vld [vmem:[%s1 + $0x2c] sm:$0xf]
  %v138 = vld [vmem:[%s1 + $0x30] sm:$0xf]
  %v139 = vld [vmem:[%s1 + $0x34] sm:$0xf]
  %v140 = vld [vmem:[%s1 + $0x38] sm:$0xf]
  %v141 = vld [vmem:[%s1 + $0x3c] sm:$0xf]
  %v142 = vld [vmem:[%s2] sm:$0x1]
  %v144 = vlaneseq
  %v145 = vshrl.u32 %v144, 7
  %v146 = vsub.s32 0, %v145
  %v147 = vrot.slane %v142, %v146
  %v260 = vunpack.c.l.b16 %v15
  %v261 = vunpack.c.l.b16 %v16
  %v262 = vunpack.c.l.b16 %v17
  %v263 = vunpack.c.l.b16 %v18
  %v264 = vunpack.c.l.b16 %v19
  %v265 = vunpack.c.l.b16 %v20
  %v266 = vunpack.c.l.b16 %v21
  %v267 = vunpack.c.l.b16 %v22
  %v268 = vunpack.c.l.b16 %v23
  %v269 = vunpack.c.l.b16 %v24
  %v270 = vunpack.c.l.b16 %v25
  %v271 = vunpack.c.l.b16 %v26
  %v272 = vunpack.c.l.b16 %v27
  %v273 = vunpack.c.l.b16 %v28
  %v274 = vunpack.c.l.b16 %v29
  %v275 = vunpack.c.l.b16 %v30
  %v276 = vunpack.c.l.b16 %v31
  %v277 = vunpack.c.l.b16 %v32
  %v278 = vunpack.c.l.b16 %v33
  %v279 = vunpack.c.l.b16 %v34
  %v280 = vunpack.c.l.b16 %v35
  %v281 = vunpack.c.l.b16 %v36
  %v282 = vunpack.c.l.b16 %v37
  %v283 = vunpack.c.l.b16 %v38
  %v284 = vunpack.c.l.b16 %v39
  %v285 = vunpack.c.l.b16 %v40
  %v286 = vunpack.c.l.b16 %v41
  %v287 = vunpack.c.l.b16 %v42
  %v288 = vunpack.c.l.b16 %v43
  %v289 = vunpack.c.l.b16 %v44
  %v290 = vunpack.c.l.b16 %v45
  %v291 = vunpack.c.l.b16 %v46
  %v292 = vunpack.c.l.b16 %v47
  %v293 = vunpack.c.l.b16 %v48
  %v294 = vunpack.c.l.b16 %v49
  %v295 = vunpack.c.l.b16 %v50
  %v296 = vunpack.c.l.b16 %v51
  %v297 = vunpack.c.l.b16 %v52
  %v298 = vunpack.c.l.b16 %v53
  %v299 = vunpack.c.l.b16 %v54
  %v300 = vunpack.c.l.b16 %v55
  %v301 = vunpack.c.l.b16 %v56
  %v302 = vunpack.c.l.b16 %v57
  %v303 = vunpack.c.l.b16 %v58
  %v304 = vunpack.c.l.b16 %v59
  %v305 = vunpack.c.l.b16 %v60
  %v306 = vunpack.c.l.b16 %v61
  %v307 = vunpack.c.l.b16 %v62
  %v308 = vunpack.c.l.b16 %v63
  %v309 = vunpack.c.l.b16 %v64
  %v310 = vunpack.c.l.b16 %v65
  %v311 = vunpack.c.l.b16 %v66
  %v312 = vunpack.c.l.b16 %v67
  %v313 = vunpack.c.l.b16 %v68
  %v314 = vunpack.c.l.b16 %v69
  %v315 = vunpack.c.l.b16 %v70
  %v316 = vunpack.c.l.b16 %v71
  %v317 = vunpack.c.l.b16 %v72
  %v318 = vunpack.c.l.b16 %v73
  %v319 = vunpack.c.l.b16 %v74
  %v320 = vunpack.c.l.b16 %v75
  %v321 = vunpack.c.l.b16 %v76
  %v322 = vunpack.c.l.b16 %v77
  %v323 = vunpack.c.l.b16 %v78
  %v324 = vunpack.c.l.b16 %v79
  %v325 = vunpack.c.l.b16 %v80
  %v326 = vunpack.c.l.b16 %v81
  %v327 = vunpack.c.l.b16 %v82
  %v328 = vunpack.c.l.b16 %v83
  %v329 = vunpack.c.l.b16 %v84
  %v330 = vunpack.c.l.b16 %v85
  %v331 = vunpack.c.l.b16 %v86
  %v332 = vunpack.c.l.b16 %v87
  %v333 = vunpack.c.l.b16 %v88
  %v334 = vunpack.c.l.b16 %v89
  %v335 = vunpack.c.l.b16 %v90
  %v336 = vunpack.c.l.b16 %v91
  %v337 = vunpack.c.l.b16 %v92
  %v338 = vunpack.c.l.b16 %v93
  %v339 = vunpack.c.l.b16 %v94
  %v340 = vunpack.c.l.b16 %v95
  %v341 = vunpack.c.l.b16 %v96
  %v342 = vunpack.c.l.b16 %v97
  %v343 = vunpack.c.l.b16 %v98
  %v344 = vunpack.c.l.b16 %v99
  %v345 = vunpack.c.l.b16 %v100
  %v346 = vunpack.c.l.b16 %v101
  %v347 = vunpack.c.l.b16 %v102
  %v348 = vunpack.c.l.b16 %v103
  %v349 = vunpack.c.l.b16 %v104
  %v350 = vunpack.c.l.b16 %v105
  %v351 = vunpack.c.l.b16 %v106
  %v352 = vunpack.c.l.b16 %v107
  %v353 = vunpack.c.l.b16 %v108
  %v354 = vunpack.c.l.b16 %v109
  %v355 = vunpack.c.l.b16 %v110
  %v356 = vunpack.c.l.b16 %v111
  %v357 = vunpack.c.l.b16 %v112
  %v358 = vunpack.c.l.b16 %v113
  %v359 = vunpack.c.l.b16 %v114
  %v360 = vunpack.c.l.b16 %v115
  %v361 = vunpack.c.l.b16 %v116
  %v362 = vunpack.c.l.b16 %v117
  %v363 = vunpack.c.l.b16 %v118
  %v364 = vunpack.c.l.b16 %v119
  %v365 = vunpack.c.l.b16 %v120
  %v366 = vunpack.c.l.b16 %v121
  %v367 = vunpack.c.l.b16 %v122
  %v368 = vunpack.c.l.b16 %v123
  %v369 = vunpack.c.l.b16 %v124
  %v370 = vunpack.c.l.b16 %v125
  %v371 = vpack.c.b16 %v261, %v260
  %v372 = vpack.c.b16 %v263, %v262
  %v373 = vpack.c.b16 %v265, %v264
  %v374 = vpack.c.b16 %v267, %v266
  %v375 = vpack.c.b16 %v269, %v268
  %v376 = vpack.c.b16 %v271, %v270
  %v377 = vpack.c.b16 %v273, %v272
  %v378 = vpack.c.b16 %v275, %v274
  %v379 = vpack.c.b16 %v277, %v276
  %v380 = vpack.c.b16 %v279, %v278
  %v381 = vpack.c.b16 %v281, %v280
  %v382 = vpack.c.b16 %v283, %v282
  %v383 = vpack.c.b16 %v285, %v284
  %v384 = vpack.c.b16 %v287, %v286
  %v385 = vpack.c.b16 %v289, %v288
  %v386 = vpack.c.b16 %v291, %v290
  %v387 = vpack.c.b16 %v293, %v292
  %v388 = vpack.c.b16 %v295, %v294
  %v389 = vpack.c.b16 %v297, %v296
  %v390 = vpack.c.b16 %v299, %v298
  %v391 = vpack.c.b16 %v301, %v300
  %v392 = vpack.c.b16 %v303, %v302
  %v393 = vpack.c.b16 %v305, %v304
  %v394 = vpack.c.b16 %v307, %v306
  %v395 = vpack.c.b16 %v309, %v308
  %v396 = vpack.c.b16 %v311, %v310
  %v397 = vpack.c.b16 %v313, %v312
  %v398 = vpack.c.b16 %v315, %v314
  %v399 = vpack.c.b16 %v317, %v316
  %v400 = vpack.c.b16 %v319, %v318
  %v401 = vpack.c.b16 %v321, %v320
  %v402 = vpack.c.b16 %v323, %v322
  %v403 = vpack.c.b16 %v325, %v324
  %v404 = vpack.c.b16 %v327, %v326
  %v405 = vpack.c.b16 %v329, %v328
  %v406 = vpack.c.b16 %v331, %v330
  %v407 = vpack.c.b16 %v333, %v332
  %v408 = vpack.c.b16 %v335, %v334
  %v409 = vpack.c.b16 %v337, %v336
  %v410 = vpack.c.b16 %v339, %v338
  %v411 = vpack.c.b16 %v341, %v340
  %v412 = vpack.c.b16 %v343, %v342
  %v413 = vpack.c.b16 %v345, %v344
  %v414 = vpack.c.b16 %v347, %v346
  %v415 = vpack.c.b16 %v349, %v348
  %v416 = vpack.c.b16 %v351, %v350
  %v417 = vpack.c.b16 %v353, %v352
  %v418 = vpack.c.b16 %v355, %v354
  %v419 = vpack.c.b16 %v357, %v356
  %v420 = vpack.c.b16 %v359, %v358
  %v421 = vpack.c.b16 %v361, %v360
  %v422 = vpack.c.b16 %v363, %v362
  %v423 = vpack.c.b16 %v365, %v364
  %v424 = vpack.c.b16 %v367, %v366
  %v425 = vpack.c.b16 %v369, %v368
  %v426 = vpack.c.b16 %v370, %v370
  %v499 = vunpack.c.l.b16 %v126
  %v500 = vunpack.c.l.b16 %v127
  %v501 = vunpack.c.l.b16 %v128
  %v502 = vunpack.c.l.b16 %v129
  %v503 = vunpack.c.l.b16 %v130
  %v504 = vunpack.c.l.b16 %v131
  %v505 = vunpack.c.l.b16 %v132
  %v506 = vunpack.c.l.b16 %v133
  %v507 = vunpack.c.l.b16 %v134
  %v508 = vunpack.c.l.b16 %v135
  %v509 = vunpack.c.l.b16 %v136
  %v510 = vunpack.c.l.b16 %v137
  %v511 = vunpack.c.l.b16 %v138
  %v512 = vunpack.c.l.b16 %v139
  %v513 = vunpack.c.l.b16 %v140
  %v514 = vunpack.c.l.b16 %v141
  %v515 = vpack.c.b16 %v500, %v499
  %v516 = vpack.c.b16 %v502, %v501
  %v517 = vpack.c.b16 %v504, %v503
  %v518 = vpack.c.b16 %v506, %v505
  %v519 = vpack.c.b16 %v508, %v507
  %v520 = vpack.c.b16 %v510, %v509
  %v521 = vpack.c.b16 %v512, %v511
  %v522 = vpack.c.b16 %v514, %v513
  %531 = vmatprep.subr.bf16.mxu0 0
  %532 = vmatpush1.bf16.msra.mxu0 %v515
  %533 = vmatprep.subr.bf16.mxu0 0
  %534 = vmatpush1.bf16.msra.mxu0 %v516
  %535 = vmatprep.subr.bf16.mxu0 0
  %536 = vmatpush1.bf16.msra.mxu0 %v517
  %537 = vmatprep.subr.bf16.mxu0 0
  %538 = vmatpush1.bf16.msra.mxu0 %v518
  %539 = vmatprep.subr.bf16.mxu0 0
  %540 = vmatpush1.bf16.msra.mxu0 %v519
  %541 = vmatprep.subr.bf16.mxu0 0
  %542 = vmatpush1.bf16.msra.mxu0 %v520
  %543 = vmatprep.subr.bf16.mxu0 0
  %544 = vmatpush1.bf16.msra.mxu0 %v521
  %545 = vmatprep.subr.bf16.mxu0 0
  %546 = vmatpush1.bf16.msra.mxu0 %v522
  %547 = vmatprep.subr.bf16.mxu0 0
  %548 = vmatpush1.bf16.msra.mxu0 0
  %549 = vmatprep.subr.bf16.mxu0 0
  %550 = vmatpush1.bf16.msra.mxu0 0
  %551 = vmatprep.subr.bf16.mxu0 0
  %552 = vmatpush1.bf16.msra.mxu0 0
  %553 = vmatprep.subr.bf16.mxu0 0
  %554 = vmatpush1.bf16.msra.mxu0 0
  %555 = vmatprep.subr.bf16.mxu0 0
  %556 = vmatpush1.bf16.msra.mxu0 0
  %557 = vmatprep.subr.bf16.mxu0 0
  %558 = vmatpush1.bf16.msra.mxu0 0
  %559 = vmatprep.subr.bf16.mxu0 0
  %560 = vmatpush1.bf16.msra.mxu0 0
  %561 = vmatprep.subr.bf16.mxu0 0
  %562 = vmatpush1.bf16.msra.mxu0 0
  %563 = vmatprep.mubr.bf16.mxu0 0
  %564 = vmatmul.mubr.bf16.gmra.mrb[0].mxu0 %v371
  %v565 = vpop.f32.mrb[0].mxu0
  %v566 = vadd.f32 %v147, %v565
  %v567 = vpop.f32.mrb[0].mxu0
  %v568 = vpop.f32.mrb[0].mxu0
  %v569 = vadd.f32 %v147, %v568
  %v570 = vpop.f32.mrb[0].mxu0
  %571 = vmatprep.mubr.bf16.mxu0 0
  %572 = vmatmul.mubr.bf16.gmra.mrb[0].mxu0 %v372
  %v573 = vpop.f32.mrb[0].mxu0
  %v574 = vadd.f32 %v147, %v573
  %v575 = vpop.f32.mrb[0].mxu0
  %v576 = vpop.f32.mrb[0].mxu0
  %v577 = vadd.f32 %v147, %v576
  %v578 = vpop.f32.mrb[0].mxu0
  %579 = vmatprep.mubr.bf16.mxu0 0
  %580 = vmatmul.mubr.bf16.gmra.mrb[0].mxu0 %v373
  %v581 = vpop.f32.mrb[0].mxu0
  %v582 = vadd.f32 %v147, %v581
  %v583 = vpop.f32.mrb[0].mxu0
  %v584 = vpop.f32.mrb[0].mxu0
  %v585 = vadd.f32 %v147, %v584
  %v586 = vpop.f32.mrb[0].mxu0
  %587 = vmatprep.mubr.bf16.mxu0 0
  %588 = vmatmul.mubr.bf16.gmra.mrb[0].mxu0 %v374
  %v589 = vpop.f32.mrb[0].mxu0
  %v590 = vadd.f32 %v147, %v589
  %v591 = vpop.f32.mrb[0].mxu0
  %v592 = vpop.f32.mrb[0].mxu0
  %v593 = vadd.f32 %v147, %v592
  %v594 = vpop.f32.mrb[0].mxu0
  %595 = vmatprep.mubr.bf16.mxu0 0
  %596 = vmatmul.mubr.bf16.gmra.mrb[0].mxu0 %v375
  %v597 = vpop.f32.mrb[0].mxu0
  %v598 = vadd.f32 %v147, %v597
  %v599 = vpop.f32.mrb[0].mxu0
  %v600 = vpop.f32.mrb[0].mxu0
  %v601 = vadd.f32 %v147, %v600
  %v602 = vpop.f32.mrb[0].mxu0
  %603 = vmatprep.mubr.bf16.mxu0 0
  %604 = vmatmul.mubr.bf16.gmra.mrb[0].mxu0 %v376
  %v605 = vpop.f32.mrb[0].mxu0
  %v606 = vadd.f32 %v147, %v605
  %v607 = vpop.f32.mrb[0].mxu0
  %v608 = vpop.f32.mrb[0].mxu0
  %v609 = vadd.f32 %v147, %v608
  %v610 = vpop.f32.mrb[0].mxu0
  %611 = vmatprep.mubr.bf16.mxu0 0
  %612 = vmatmul.mubr.bf16.gmra.mrb[0].mxu0 %v377
  %v613 = vpop.f32.mrb[0].mxu0
  %v614 = vadd.f32 %v147, %v613
  %v615 = vpop.f32.mrb[0].mxu0
  %v616 = vpop.f32.mrb[0].mxu0
  %v617 = vadd.f32 %v147, %v616
  %v618 = vpop.f32.mrb[0].mxu0
  %619 = vmatprep.mubr.bf16.mxu0 0
  %620 = vmatmul.mubr.bf16.gmra.mrb[0].mxu0 %v378
  %v621 = vpop.f32.mrb[0].mxu0
  %v622 = vadd.f32 %v147, %v621
  %v623 = vpop.f32.mrb[0].mxu0
  %v624 = vpop.f32.mrb[0].mxu0
  %v625 = vadd.f32 %v147, %v624
  %v626 = vpop.f32.mrb[0].mxu0
  %627 = vmatprep.mubr.bf16.mxu0 0
  %628 = vmatmul.mubr.bf16.gmra.mrb[0].mxu0 %v379
  %v629 = vpop.f32.mrb[0].mxu0
  %v630 = vadd.f32 %v147, %v629
  %v631 = vpop.f32.mrb[0].mxu0
  %v632 = vpop.f32.mrb[0].mxu0
  %v633 = vadd.f32 %v147, %v632
  %v634 = vpop.f32.mrb[0].mxu0
  %635 = vmatprep.mubr.bf16.mxu0 0
  %636 = vmatmul.mubr.bf16.gmra.mrb[0].mxu0 %v380
  %v637 = vpop.f32.mrb[0].mxu0
  %v638 = vadd.f32 %v147, %v637
  %v639 = vpop.f32.mrb[0].mxu0
  %v640 = vpop.f32.mrb[0].mxu0
  %v641 = vadd.f32 %v147, %v640
  %v642 = vpop.f32.mrb[0].mxu0
  %643 = vmatprep.mubr.bf16.mxu0 0
  %644 = vmatmul.mubr.bf16.gmra.mrb[0].mxu0 %v381
  %v645 = vpop.f32.mrb[0].mxu0
  %v646 = vadd.f32 %v147, %v645
  %v647 = vpop.f32.mrb[0].mxu0
  %v648 = vpop.f32.mrb[0].mxu0
  %v649 = vadd.f32 %v147, %v648
  %v650 = vpop.f32.mrb[0].mxu0
  %651 = vmatprep.mubr.bf16.mxu0 0
  %652 = vmatmul.mubr.bf16.gmra.mrb[0].mxu0 %v382
  %v653 = vpop.f32.mrb[0].mxu0
  %v654 = vadd.f32 %v147, %v653
  %v655 = vpop.f32.mrb[0].mxu0
  %v656 = vpop.f32.mrb[0].mxu0
  %v657 = vadd.f32 %v147, %v656
  %v658 = vpop.f32.mrb[0].mxu0
  %659 = vmatprep.mubr.bf16.mxu0 0
  %660 = vmatmul.mubr.bf16.gmra.mrb[0].mxu0 %v383
  %v661 = vpop.f32.mrb[0].mxu0
  %v662 = vadd.f32 %v147, %v661
  %v663 = vpop.f32.mrb[0].mxu0
  %v664 = vpop.f32.mrb[0].mxu0
  %v665 = vadd.f32 %v147, %v664
  %v666 = vpop.f32.mrb[0].mxu0
  %667 = vmatprep.mubr.bf16.mxu0 0
  %668 = vmatmul.mubr.bf16.gmra.mrb[0].mxu0 %v384
  %v669 = vpop.f32.mrb[0].mxu0
  %v670 = vadd.f32 %v147, %v669
  %v671 = vpop.f32.mrb[0].mxu0
  %v672 = vpop.f32.mrb[0].mxu0
  %v673 = vadd.f32 %v147, %v672
  %v674 = vpop.f32.mrb[0].mxu0
  %675 = vmatprep.mubr.bf16.mxu0 0
  %676 = vmatmul.mubr.bf16.gmra.mrb[0].mxu0 %v385
  %v677 = vpop.f32.mrb[0].mxu0
  %v678 = vadd.f32 %v147, %v677
  %v679 = vpop.f32.mrb[0].mxu0
  %v680 = vpop.f32.mrb[0].mxu0
  %v681 = vadd.f32 %v147, %v680
  %v682 = vpop.f32.mrb[0].mxu0
  %683 = vmatprep.mubr.bf16.mxu0 0
  %684 = vmatmul.mubr.bf16.gmra.mrb[0].mxu0 %v386
  %v685 = vpop.f32.mrb[0].mxu0
  %v686 = vadd.f32 %v147, %v685
  %v687 = vpop.f32.mrb[0].mxu0
  %v688 = vpop.f32.mrb[0].mxu0
  %v689 = vadd.f32 %v147, %v688
  %v690 = vpop.f32.mrb[0].mxu0
  %691 = vmatprep.mubr.bf16.mxu0 0
  %692 = vmatmul.mubr.bf16.gmra.mrb[0].mxu0 %v387
  %v693 = vpop.f32.mrb[0].mxu0
  %v694 = vadd.f32 %v147, %v693
  %v695 = vpop.f32.mrb[0].mxu0
  %v696 = vpop.f32.mrb[0].mxu0
  %v697 = vadd.f32 %v147, %v696
  %v698 = vpop.f32.mrb[0].mxu0
  %699 = vmatprep.mubr.bf16.mxu0 0
  %700 = vmatmul.mubr.bf16.gmra.mrb[0].mxu0 %v388
  %v701 = vpop.f32.mrb[0].mxu0
  %v702 = vadd.f32 %v147, %v701
  %v703 = vpop.f32.mrb[0].mxu0
  %v704 = vpop.f32.mrb[0].mxu0
  %v705 = vadd.f32 %v147, %v704
  %v706 = vpop.f32.mrb[0].mxu0
  %707 = vmatprep.mubr.bf16.mxu0 0
  %708 = vmatmul.mubr.bf16.gmra.mrb[0].mxu0 %v389
  %v709 = vpop.f32.mrb[0].mxu0
  %v710 = vadd.f32 %v147, %v709
  %v711 = vpop.f32.mrb[0].mxu0
  %v712 = vpop.f32.mrb[0].mxu0
  %v713 = vadd.f32 %v147, %v712
  %v714 = vpop.f32.mrb[0].mxu0
  %715 = vmatprep.mubr.bf16.mxu0 0
  %716 = vmatmul.mubr.bf16.gmra.mrb[0].mxu0 %v390
  %v717 = vpop.f32.mrb[0].mxu0
  %v718 = vadd.f32 %v147, %v717
  %v719 = vpop.f32.mrb[0].mxu0
  %v720 = vpop.f32.mrb[0].mxu0
  %v721 = vadd.f32 %v147, %v720
  %v722 = vpop.f32.mrb[0].mxu0
  %723 = vmatprep.mubr.bf16.mxu0 0
  %724 = vmatmul.mubr.bf16.gmra.mrb[0].mxu0 %v391
  %v725 = vpop.f32.mrb[0].mxu0
  %v726 = vadd.f32 %v147, %v725
  %v727 = vpop.f32.mrb[0].mxu0
  %v728 = vpop.f32.mrb[0].mxu0
  %v729 = vadd.f32 %v147, %v728
  %v730 = vpop.f32.mrb[0].mxu0
  %731 = vmatprep.mubr.bf16.mxu0 0
  %732 = vmatmul.mubr.bf16.gmra.mrb[0].mxu0 %v392
  %v733 = vpop.f32.mrb[0].mxu0
  %v734 = vadd.f32 %v147, %v733
  %v735 = vpop.f32.mrb[0].mxu0
  %v736 = vpop.f32.mrb[0].mxu0
  %v737 = vadd.f32 %v147, %v736
  %v738 = vpop.f32.mrb[0].mxu0
  %739 = vmatprep.mubr.bf16.mxu0 0
  %740 = vmatmul.mubr.bf16.gmra.mrb[0].mxu0 %v393
  %v741 = vpop.f32.mrb[0].mxu0
  %v742 = vadd.f32 %v147, %v741
  %v743 = vpop.f32.mrb[0].mxu0
  %v744 = vpop.f32.mrb[0].mxu0
  %v745 = vadd.f32 %v147, %v744
  %v746 = vpop.f32.mrb[0].mxu0
  %747 = vmatprep.mubr.bf16.mxu0 0
  %748 = vmatmul.mubr.bf16.gmra.mrb[0].mxu0 %v394
  %v749 = vpop.f32.mrb[0].mxu0
  %v750 = vadd.f32 %v147, %v749
  %v751 = vpop.f32.mrb[0].mxu0
  %v752 = vpop.f32.mrb[0].mxu0
  %v753 = vadd.f32 %v147, %v752
  %v754 = vpop.f32.mrb[0].mxu0
  %755 = vmatprep.mubr.bf16.mxu0 0
  %756 = vmatmul.mubr.bf16.gmra.mrb[0].mxu0 %v395
  %v757 = vpop.f32.mrb[0].mxu0
  %v758 = vadd.f32 %v147, %v757
  %v759 = vpop.f32.mrb[0].mxu0
  %v760 = vpop.f32.mrb[0].mxu0
  %v761 = vadd.f32 %v147, %v760
  %v762 = vpop.f32.mrb[0].mxu0
  %763 = vmatprep.mubr.bf16.mxu0 0
  %764 = vmatmul.mubr.bf16.gmra.mrb[0].mxu0 %v396
  %v765 = vpop.f32.mrb[0].mxu0
  %v766 = vadd.f32 %v147, %v765
  %v767 = vpop.f32.mrb[0].mxu0
  %v768 = vpop.f32.mrb[0].mxu0
  %v769 = vadd.f32 %v147, %v768
  %v770 = vpop.f32.mrb[0].mxu0
  %771 = vmatprep.mubr.bf16.mxu0 0
  %772 = vmatmul.mubr.bf16.gmra.mrb[0].mxu0 %v397
  %v773 = vpop.f32.mrb[0].mxu0
  %v774 = vadd.f32 %v147, %v773
  %v775 = vpop.f32.mrb[0].mxu0
  %v776 = vpop.f32.mrb[0].mxu0
  %v777 = vadd.f32 %v147, %v776
  %v778 = vpop.f32.mrb[0].mxu0
  %779 = vmatprep.mubr.bf16.mxu0 0
  %780 = vmatmul.mubr.bf16.gmra.mrb[0].mxu0 %v398
  %v781 = vpop.f32.mrb[0].mxu0
  %v782 = vadd.f32 %v147, %v781
  %v783 = vpop.f32.mrb[0].mxu0
  %v784 = vpop.f32.mrb[0].mxu0
  %v785 = vadd.f32 %v147, %v784
  %v786 = vpop.f32.mrb[0].mxu0
  %787 = vmatprep.mubr.bf16.mxu0 0
  %788 = vmatmul.mubr.bf16.gmra.mrb[0].mxu0 %v399
  %v789 = vpop.f32.mrb[0].mxu0
  %v790 = vadd.f32 %v147, %v789
  %v791 = vpop.f32.mrb[0].mxu0
  %v792 = vpop.f32.mrb[0].mxu0
  %v793 = vadd.f32 %v147, %v792
  %v794 = vpop.f32.mrb[0].mxu0
  %795 = vmatprep.mubr.bf16.mxu0 0
  %796 = vmatmul.mubr.bf16.gmra.mrb[0].mxu0 %v400
  %v797 = vpop.f32.mrb[0].mxu0
  %v798 = vadd.f32 %v147, %v797
  %v799 = vpop.f32.mrb[0].mxu0
  %v800 = vpop.f32.mrb[0].mxu0
  %v801 = vadd.f32 %v147, %v800
  %v802 = vpop.f32.mrb[0].mxu0
  %803 = vmatprep.mubr.bf16.mxu0 0
  %804 = vmatmul.mubr.bf16.gmra.mrb[0].mxu0 %v401
  %v805 = vpop.f32.mrb[0].mxu0
  %v806 = vadd.f32 %v147, %v805
  %v807 = vpop.f32.mrb[0].mxu0
  %v808 = vpop.f32.mrb[0].mxu0
  %v809 = vadd.f32 %v147, %v808
  %v810 = vpop.f32.mrb[0].mxu0
  %811 = vmatprep.mubr.bf16.mxu0 0
  %812 = vmatmul.mubr.bf16.gmra.mrb[0].mxu0 %v402
  %v813 = vpop.f32.mrb[0].mxu0
  %v814 = vadd.f32 %v147, %v813
  %v815 = vpop.f32.mrb[0].mxu0
  %v816 = vpop.f32.mrb[0].mxu0
  %v817 = vadd.f32 %v147, %v816
  %v818 = vpop.f32.mrb[0].mxu0
  %819 = vmatprep.mubr.bf16.mxu0 0
  %820 = vmatmul.mubr.bf16.gmra.mrb[0].mxu0 %v403
  %v821 = vpop.f32.mrb[0].mxu0
  %v822 = vadd.f32 %v147, %v821
  %v823 = vpop.f32.mrb[0].mxu0
  %v824 = vpop.f32.mrb[0].mxu0
  %v825 = vadd.f32 %v147, %v824
  %v826 = vpop.f32.mrb[0].mxu0
  %827 = vmatprep.mubr.bf16.mxu0 0
  %828 = vmatmul.mubr.bf16.gmra.mrb[0].mxu0 %v404
  %v829 = vpop.f32.mrb[0].mxu0
  %v830 = vadd.f32 %v147, %v829
  %v831 = vpop.f32.mrb[0].mxu0
  %v832 = vpop.f32.mrb[0].mxu0
  %v833 = vadd.f32 %v147, %v832
  %v834 = vpop.f32.mrb[0].mxu0
  %835 = vmatprep.mubr.bf16.mxu0 0
  %836 = vmatmul.mubr.bf16.gmra.mrb[0].mxu0 %v405
  %v837 = vpop.f32.mrb[0].mxu0
  %v838 = vadd.f32 %v147, %v837
  %v839 = vpop.f32.mrb[0].mxu0
  %v840 = vpop.f32.mrb[0].mxu0
  %v841 = vadd.f32 %v147, %v840
  %v842 = vpop.f32.mrb[0].mxu0
  %843 = vmatprep.mubr.bf16.mxu0 0
  %844 = vmatmul.mubr.bf16.gmra.mrb[0].mxu0 %v406
  %v845 = vpop.f32.mrb[0].mxu0
  %v846 = vadd.f32 %v147, %v845
  %v847 = vpop.f32.mrb[0].mxu0
  %v848 = vpop.f32.mrb[0].mxu0
  %v849 = vadd.f32 %v147, %v848
  %v850 = vpop.f32.mrb[0].mxu0
  %851 = vmatprep.mubr.bf16.mxu0 0
  %852 = vmatmul.mubr.bf16.gmra.mrb[0].mxu0 %v407
  %v853 = vpop.f32.mrb[0].mxu0
  %v854 = vadd.f32 %v147, %v853
  %v855 = vpop.f32.mrb[0].mxu0
  %v856 = vpop.f32.mrb[0].mxu0
  %v857 = vadd.f32 %v147, %v856
  %v858 = vpop.f32.mrb[0].mxu0
  %859 = vmatprep.mubr.bf16.mxu0 0
  %860 = vmatmul.mubr.bf16.gmra.mrb[0].mxu0 %v408
  %v861 = vpop.f32.mrb[0].mxu0
  %v862 = vadd.f32 %v147, %v861
  %v863 = vpop.f32.mrb[0].mxu0
  %v864 = vpop.f32.mrb[0].mxu0
  %v865 = vadd.f32 %v147, %v864
  %v866 = vpop.f32.mrb[0].mxu0
  %867 = vmatprep.mubr.bf16.mxu0 0
  %868 = vmatmul.mubr.bf16.gmra.mrb[0].mxu0 %v409
  %v869 = vpop.f32.mrb[0].mxu0
  %v870 = vadd.f32 %v147, %v869
  %v871 = vpop.f32.mrb[0].mxu0
  %v872 = vpop.f32.mrb[0].mxu0
  %v873 = vadd.f32 %v147, %v872
  %v874 = vpop.f32.mrb[0].mxu0
  %875 = vmatprep.mubr.bf16.mxu0 0
  %876 = vmatmul.mubr.bf16.gmra.mrb[0].mxu0 %v410
  %v877 = vpop.f32.mrb[0].mxu0
  %v878 = vadd.f32 %v147, %v877
  %v879 = vpop.f32.mrb[0].mxu0
  %v880 = vpop.f32.mrb[0].mxu0
  %v881 = vadd.f32 %v147, %v880
  %v882 = vpop.f32.mrb[0].mxu0
  %883 = vmatprep.mubr.bf16.mxu0 0
  %884 = vmatmul.mubr.bf16.gmra.mrb[0].mxu0 %v411
  %v885 = vpop.f32.mrb[0].mxu0
  %v886 = vadd.f32 %v147, %v885
  %v887 = vpop.f32.mrb[0].mxu0
  %v888 = vpop.f32.mrb[0].mxu0
  %v889 = vadd.f32 %v147, %v888
  %v890 = vpop.f32.mrb[0].mxu0
  %891 = vmatprep.mubr.bf16.mxu0 0
  %892 = vmatmul.mubr.bf16.gmra.mrb[0].mxu0 %v412
  %v893 = vpop.f32.mrb[0].mxu0
  %v894 = vadd.f32 %v147, %v893
  %v895 = vpop.f32.mrb[0].mxu0
  %v896 = vpop.f32.mrb[0].mxu0
  %v897 = vadd.f32 %v147, %v896
  %v898 = vpop.f32.mrb[0].mxu0
  %899 = vmatprep.mubr.bf16.mxu0 0
  %900 = vmatmul.mubr.bf16.gmra.mrb[0].mxu0 %v413
  %v901 = vpop.f32.mrb[0].mxu0
  %v902 = vadd.f32 %v147, %v901
  %v903 = vpop.f32.mrb[0].mxu0
  %v904 = vpop.f32.mrb[0].mxu0
  %v905 = vadd.f32 %v147, %v904
  %v906 = vpop.f32.mrb[0].mxu0
  %907 = vmatprep.mubr.bf16.mxu0 0
  %908 = vmatmul.mubr.bf16.gmra.mrb[0].mxu0 %v414
  %v909 = vpop.f32.mrb[0].mxu0
  %v910 = vadd.f32 %v147, %v909
  %v911 = vpop.f32.mrb[0].mxu0
  %v912 = vpop.f32.mrb[0].mxu0
  %v913 = vadd.f32 %v147, %v912
  %v914 = vpop.f32.mrb[0].mxu0
  %915 = vmatprep.mubr.bf16.mxu0 0
  %916 = vmatmul.mubr.bf16.gmra.mrb[0].mxu0 %v415
  %v917 = vpop.f32.mrb[0].mxu0
  %v918 = vadd.f32 %v147, %v917
  %v919 = vpop.f32.mrb[0].mxu0
  %v920 = vpop.f32.mrb[0].mxu0
  %v921 = vadd.f32 %v147, %v920
  %v922 = vpop.f32.mrb[0].mxu0
  %923 = vmatprep.mubr.bf16.mxu0 0
  %924 = vmatmul.mubr.bf16.gmra.mrb[0].mxu0 %v416
  %v925 = vpop.f32.mrb[0].mxu0
  %v926 = vadd.f32 %v147, %v925
  %v927 = vpop.f32.mrb[0].mxu0
  %v928 = vpop.f32.mrb[0].mxu0
  %v929 = vadd.f32 %v147, %v928
  %v930 = vpop.f32.mrb[0].mxu0
  %931 = vmatprep.mubr.bf16.mxu0 0
  %932 = vmatmul.mubr.bf16.gmra.mrb[0].mxu0 %v417
  %v933 = vpop.f32.mrb[0].mxu0
  %v934 = vadd.f32 %v147, %v933
  %v935 = vpop.f32.mrb[0].mxu0
  %v936 = vpop.f32.mrb[0].mxu0
  %v937 = vadd.f32 %v147, %v936
  %v938 = vpop.f32.mrb[0].mxu0
  %939 = vmatprep.mubr.bf16.mxu0 0
  %940 = vmatmul.mubr.bf16.gmra.mrb[0].mxu0 %v418
  %v941 = vpop.f32.mrb[0].mxu0
  %v942 = vadd.f32 %v147, %v941
  %v943 = vpop.f32.mrb[0].mxu0
  %v944 = vpop.f32.mrb[0].mxu0
  %v945 = vadd.f32 %v147, %v944
  %v946 = vpop.f32.mrb[0].mxu0
  %947 = vmatprep.mubr.bf16.mxu0 0
  %948 = vmatmul.mubr.bf16.gmra.mrb[0].mxu0 %v419
  %v949 = vpop.f32.mrb[0].mxu0
  %v950 = vadd.f32 %v147, %v949
  %v951 = vpop.f32.mrb[0].mxu0
  %v952 = vpop.f32.mrb[0].mxu0
  %v953 = vadd.f32 %v147, %v952
  %v954 = vpop.f32.mrb[0].mxu0
  %955 = vmatprep.mubr.bf16.mxu0 0
  %956 = vmatmul.mubr.bf16.gmra.mrb[0].mxu0 %v420
  %v957 = vpop.f32.mrb[0].mxu0
  %v958 = vadd.f32 %v147, %v957
  %v959 = vpop.f32.mrb[0].mxu0
  %v960 = vpop.f32.mrb[0].mxu0
  %v961 = vadd.f32 %v147, %v960
  %v962 = vpop.f32.mrb[0].mxu0
  %963 = vmatprep.mubr.bf16.mxu0 0
  %964 = vmatmul.mubr.bf16.gmra.mrb[0].mxu0 %v421
  %v965 = vpop.f32.mrb[0].mxu0
  %v966 = vadd.f32 %v147, %v965
  %v967 = vpop.f32.mrb[0].mxu0
  %v968 = vpop.f32.mrb[0].mxu0
  %v969 = vadd.f32 %v147, %v968
  %v970 = vpop.f32.mrb[0].mxu0
  %971 = vmatprep.mubr.bf16.mxu0 0
  %972 = vmatmul.mubr.bf16.gmra.mrb[0].mxu0 %v422
  %v973 = vpop.f32.mrb[0].mxu0
  %v974 = vadd.f32 %v147, %v973
  %v975 = vpop.f32.mrb[0].mxu0
  %v976 = vpop.f32.mrb[0].mxu0
  %v977 = vadd.f32 %v147, %v976
  %v978 = vpop.f32.mrb[0].mxu0
  %979 = vmatprep.mubr.bf16.mxu0 0
  %980 = vmatmul.mubr.bf16.gmra.mrb[0].mxu0 %v423
  %v981 = vpop.f32.mrb[0].mxu0
  %v982 = vadd.f32 %v147, %v981
  %v983 = vpop.f32.mrb[0].mxu0
  %v984 = vpop.f32.mrb[0].mxu0
  %v985 = vadd.f32 %v147, %v984
  %v986 = vpop.f32.mrb[0].mxu0
  %987 = vmatprep.mubr.bf16.mxu0 0
  %988 = vmatmul.mubr.bf16.gmra.mrb[0].mxu0 %v424
  %v989 = vpop.f32.mrb[0].mxu0
  %v990 = vadd.f32 %v147, %v989
  %v991 = vpop.f32.mrb[0].mxu0
  %v992 = vpop.f32.mrb[0].mxu0
  %v993 = vadd.f32 %v147, %v992
  %v994 = vpop.f32.mrb[0].mxu0
  %995 = vmatprep.mubr.bf16.mxu0 0
  %996 = vmatmul.mubr.bf16.gmra.mrb[0].mxu0 %v425
  %v997 = vpop.f32.mrb[0].mxu0
  %v998 = vadd.f32 %v147, %v997
  %v999 = vpop.f32.mrb[0].mxu0
  %v1000 = vpop.f32.mrb[0].mxu0
  %v1001 = vadd.f32 %v147, %v1000
  %v1002 = vpop.f32.mrb[0].mxu0
  %1003 = vmatprep.mubr.bf16.mxu0 0
  %1004 = vmatmul.mubr.bf16.gmra.mrb[0].mxu0 %v426
  %v1005 = vpop.f32.mrb[0].mxu0
  %v1006 = vadd.f32 %v147, %v1005
  %v1007 = vpop.f32.mrb[0].mxu0
  %v1008 = vpop.f32.mrb[0].mxu0
  %v1009 = vpop.f32.mrb[0].mxu0
  %1010 = vdwg.mxu0
  %1011 = vst [vmem:[%s3] sm:$0xff] %v566
  %1012 = vst [vmem:[%s3 + $0x8] sm:$0xff] %v569
  %1013 = vst [vmem:[%s3 + $0x10] sm:$0xff] %v574
  %1014 = vst [vmem:[%s3 + $0x18] sm:$0xff] %v577
  %1015 = vst [vmem:[%s3 + $0x20] sm:$0xff] %v582
  %1016 = vst [vmem:[%s3 + $0x28] sm:$0xff] %v585
  %1017 = vst [vmem:[%s3 + $0x30] sm:$0xff] %v590
  %1018 = vst [vmem:[%s3 + $0x38] sm:$0xff] %v593
  %1019 = vst [vmem:[%s3 + $0x40] sm:$0xff] %v598
  %1020 = vst [vmem:[%s3 + $0x48] sm:$0xff] %v601
  %1021 = vst [vmem:[%s3 + $0x50] sm:$0xff] %v606
  %1022 = vst [vmem:[%s3 + $0x58] sm:$0xff] %v609
  %1023 = vst [vmem:[%s3 + $0x60] sm:$0xff] %v614
  %1024 = vst [vmem:[%s3 + $0x68] sm:$0xff] %v617
  %1025 = vst [vmem:[%s3 + $0x70] sm:$0xff] %v622
  %1026 = vst [vmem:[%s3 + $0x78] sm:$0xff] %v625
  %1027 = vst [vmem:[%s3 + $0x80] sm:$0xff] %v630
  %1028 = vst [vmem:[%s3 + $0x88] sm:$0xff] %v633
  %1029 = vst [vmem:[%s3 + $0x90] sm:$0xff] %v638
  %1030 = vst [vmem:[%s3 + $0x98] sm:$0xff] %v641
  %1031 = vst [vmem:[%s3 + $0xa0] sm:$0xff] %v646
  %1032 = vst [vmem:[%s3 + $0xa8] sm:$0xff] %v649
  %1033 = vst [vmem:[%s3 + $0xb0] sm:$0xff] %v654
  %1034 = vst [vmem:[%s3 + $0xb8] sm:$0xff] %v657
  %1035 = vst [vmem:[%s3 + $0xc0] sm:$0xff] %v662
  %1036 = vst [vmem:[%s3 + $0xc8] sm:$0xff] %v665
  %1037 = vst [vmem:[%s3 + $0xd0] sm:$0xff] %v670
  %1038 = vst [vmem:[%s3 + $0xd8] sm:$0xff] %v673
  %1039 = vst [vmem:[%s3 + $0xe0] sm:$0xff] %v678
  %1040 = vst [vmem:[%s3 + $0xe8] sm:$0xff] %v681
  %1041 = vst [vmem:[%s3 + $0xf0] sm:$0xff] %v686
  %1042 = vst [vmem:[%s3 + $0xf8] sm:$0xff] %v689
  %1043 = vst [vmem:[%s3 + $0x100] sm:$0xff] %v694
  %1044 = vst [vmem:[%s3 + $0x108] sm:$0xff] %v697
  %1045 = vst [vmem:[%s3 + $0x110] sm:$0xff] %v702
  %1046 = vst [vmem:[%s3 + $0x118] sm:$0xff] %v705
  %1047 = vst [vmem:[%s3 + $0x120] sm:$0xff] %v710
  %1048 = vst [vmem:[%s3 + $0x128] sm:$0xff] %v713
  %1049 = vst [vmem:[%s3 + $0x130] sm:$0xff] %v718
  %1050 = vst [vmem:[%s3 + $0x138] sm:$0xff] %v721
  %1051 = vst [vmem:[%s3 + $0x140] sm:$0xff] %v726
  %1052 = vst [vmem:[%s3 + $0x148] sm:$0xff] %v729
  %1053 = vst [vmem:[%s3 + $0x150] sm:$0xff] %v734
  %1054 = vst [vmem:[%s3 + $0x158] sm:$0xff] %v737
  %1055 = vst [vmem:[%s3 + $0x160] sm:$0xff] %v742
  %1056 = vst [vmem:[%s3 + $0x168] sm:$0xff] %v745
  %1057 = vst [vmem:[%s3 + $0x170] sm:$0xff] %v750
  %1058 = vst [vmem:[%s3 + $0x178] sm:$0xff] %v753
  %1059 = vst [vmem:[%s3 + $0x180] sm:$0xff] %v758
  %1060 = vst [vmem:[%s3 + $0x188] sm:$0xff] %v761
  %1061 = vst [vmem:[%s3 + $0x190] sm:$0xff] %v766
  %1062 = vst [vmem:[%s3 + $0x198] sm:$0xff] %v769
  %1063 = vst [vmem:[%s3 + $0x1a0] sm:$0xff] %v774
  %1064 = vst [vmem:[%s3 + $0x1a8] sm:$0xff] %v777
  %1065 = vst [vmem:[%s3 + $0x1b0] sm:$0xff] %v782
  %1066 = vst [vmem:[%s3 + $0x1b8] sm:$0xff] %v785
  %1067 = vst [vmem:[%s3 + $0x1c0] sm:$0xff] %v790
  %1068 = vst [vmem:[%s3 + $0x1c8] sm:$0xff] %v793
  %1069 = vst [vmem:[%s3 + $0x1d0] sm:$0xff] %v798
  %1070 = vst [vmem:[%s3 + $0x1d8] sm:$0xff] %v801
  %1071 = vst [vmem:[%s3 + $0x1e0] sm:$0xff] %v806
  %1072 = vst [vmem:[%s3 + $0x1e8] sm:$0xff] %v809
  %1073 = vst [vmem:[%s3 + $0x1f0] sm:$0xff] %v814
  %1074 = vst [vmem:[%s3 + $0x1f8] sm:$0xff] %v817
  %1075 = vst [vmem:[%s3 + $0x200] sm:$0xff] %v822
  %1076 = vst [vmem:[%s3 + $0x208] sm:$0xff] %v825
  %1077 = vst [vmem:[%s3 + $0x210] sm:$0xff] %v830
  %1078 = vst [vmem:[%s3 + $0x218] sm:$0xff] %v833
  %1079 = vst [vmem:[%s3 + $0x220] sm:$0xff] %v838
  %1080 = vst [vmem:[%s3 + $0x228] sm:$0xff] %v841
  %1081 = vst [vmem:[%s3 + $0x230] sm:$0xff] %v846
  %1082 = vst [vmem:[%s3 + $0x238] sm:$0xff] %v849
  %1083 = vst [vmem:[%s3 + $0x240] sm:$0xff] %v854
  %1084 = vst [vmem:[%s3 + $0x248] sm:$0xff] %v857
  %1085 = vst [vmem:[%s3 + $0x250] sm:$0xff] %v862
  %1086 = vst [vmem:[%s3 + $0x258] sm:$0xff] %v865
  %1087 = vst [vmem:[%s3 + $0x260] sm:$0xff] %v870
  %1088 = vst [vmem:[%s3 + $0x268] sm:$0xff] %v873
  %1089 = vst [vmem:[%s3 + $0x270] sm:$0xff] %v878
  %1090 = vst [vmem:[%s3 + $0x278] sm:$0xff] %v881
  %1091 = vst [vmem:[%s3 + $0x280] sm:$0xff] %v886
  %1092 = vst [vmem:[%s3 + $0x288] sm:$0xff] %v889
  %1093 = vst [vmem:[%s3 + $0x290] sm:$0xff] %v894
  %1094 = vst [vmem:[%s3 + $0x298] sm:$0xff] %v897
  %1095 = vst [vmem:[%s3 + $0x2a0] sm:$0xff] %v902
  %1096 = vst [vmem:[%s3 + $0x2a8] sm:$0xff] %v905
  %1097 = vst [vmem:[%s3 + $0x2b0] sm:$0xff] %v910
  %1098 = vst [vmem:[%s3 + $0x2b8] sm:$0xff] %v913
  %1099 = vst [vmem:[%s3 + $0x2c0] sm:$0xff] %v918
  %1100 = vst [vmem:[%s3 + $0x2c8] sm:$0xff] %v921
  %1101 = vst [vmem:[%s3 + $0x2d0] sm:$0xff] %v926
  %1102 = vst [vmem:[%s3 + $0x2d8] sm:$0xff] %v929
  %1103 = vst [vmem:[%s3 + $0x2e0] sm:$0xff] %v934
  %1104 = vst [vmem:[%s3 + $0x2e8] sm:$0xff] %v937
  %1105 = vst [vmem:[%s3 + $0x2f0] sm:$0xff] %v942
  %1106 = vst [vmem:[%s3 + $0x2f8] sm:$0xff] %v945
  %1107 = vst [vmem:[%s3 + $0x300] sm:$0xff] %v950
  %1108 = vst [vmem:[%s3 + $0x308] sm:$0xff] %v953
  %1109 = vst [vmem:[%s3 + $0x310] sm:$0xff] %v958
  %1110 = vst [vmem:[%s3 + $0x318] sm:$0xff] %v961
  %1111 = vst [vmem:[%s3 + $0x320] sm:$0xff] %v966
  %1112 = vst [vmem:[%s3 + $0x328] sm:$0xff] %v969
  %1113 = vst [vmem:[%s3 + $0x330] sm:$0xff] %v974
  %1114 = vst [vmem:[%s3 + $0x338] sm:$0xff] %v977
  %1115 = vst [vmem:[%s3 + $0x340] sm:$0xff] %v982
  %1116 = vst [vmem:[%s3 + $0x348] sm:$0xff] %v985
  %1117 = vst [vmem:[%s3 + $0x350] sm:$0xff] %v990
  %1118 = vst [vmem:[%s3 + $0x358] sm:$0xff] %v993
  %1119 = vst [vmem:[%s3 + $0x360] sm:$0xff] %v998
  %1120 = vst [vmem:[%s3 + $0x368] sm:$0xff] %v1001
  %1121 = vst [vmem:[%s3 + $0x370] sm:$0x3] %v1006
  // Predicated region
  $region14: #{_lambda_.7} parent=0 // pred_check
    _
  $region15: #{_lambda_.7} parent=0 // pred_check_branch
    %1123 = sbr.rel (0) target = $region17
  $region16: #{_lambda_.7} parent=0 // pred_region
    _
  $region17: #{_lambda_.7} parent=0 // pred_fallthru
    _
  // Predicated region
  $region18: #{_lambda_.7} parent=0 // pred_check
    _
  $region19: #{_lambda_.7} parent=0 // pred_check_branch
    %1125 = sbr.rel (0) target = $region21
  $region20: #{_lambda_.7} parent=0 // pred_region
    _
  $region21: #{_lambda_.7} parent=0 // pred_fallthru
    _

</llo_original>
